<compile_context>
chip_gen: v5e
topology: v5e:2x2
jax: 0.10.0
libtpu: 0.0.40
codegen_flags: <defaults>
</compile_context>

<pallas_src>
import functools
import math

import jax
import jax.numpy as jnp
from jax.experimental import pallas as pl
from jax.experimental.pallas import tpu as pltpu

_MARGIN = 128  # lane-aligned zero pad on each side of the flattened spatial axis


def _bff_kernel(masks_ref, fi_ref, fip1_ref,
                wf1_ref, bf1_ref, wf2_ref, bf2_ref,
                wb1_ref, bb1_ref, wb2_ref, bb2_ref,
                fi_new_ref, fip1_new_ref,
                *, img_w, hw, channels):
    f32 = jnp.float32
    half = channels // 2

    # Column-edge masks, hoisted (loaded once): valid where x-1 >= 0 / x+1 < W.
    mask_l = masks_ref[0]          # (1, hw)
    mask_r = masks_ref[1]          # (1, hw)

    def pad_flat(x):
        # Aligned (128-lane) zero margins around the flattened spatial axis.
        c = x.shape[0]
        z = jnp.zeros((c, _MARGIN), f32)
        return jnp.concatenate([z, x, z], axis=1)            # (c, hw + 2*_MARGIN)

    def conv3x3(parts, c_out, w_ref, b_ref):
        """3x3 'same' conv over the channel-concatenation of `parts` (VPU FMAs).

        parts : list of (c_part, hw) f32 values; their channel order matches the
                packed weight's input-channel order.
        w_ref : (9, c_in_total, c_out, 1) packed as w[k, i, o, 0] = W_torch[o, i, ky, kx]
        b_ref : (c_out, 1)
        """
        padded = [pad_flat(p) for p in parts]
        acc = jnp.zeros((c_out, hw), f32)
        for k in range(9):
            dy, dx = k // 3 - 1, k % 3 - 1
            start = _MARGIN + dy * img_w + dx
            ci = 0
            for part, p_pad in zip(parts, padded):
                c_part = part.shape[0]
                if dy == 0 and dx == 0:
                    win = part                                 # center tap: no shift
                else:
                    win = p_pad[:, start:start + hw]           # shifted flat window
                if dx == -1:
                    win = win * mask_l
                elif dx == 1:
                    win = win * mask_r
                for i in range(c_part):
                    # rank-1 VPU update: (c_out, 1) * (1, hw) -> (c_out, hw)
                    acc = acc + w_ref[k, ci + i] * win[i:i + 1, :]
                ci += c_part
        return acc + b_ref[...]

    def fusion_sub_block(parts, w1_ref, b1_ref, w2_ref, b2_ref):
        c_in = sum(p.shape[0] for p in parts)
        t = conv3x3(parts, c_in, w1_ref, b1_ref)               # conv1
        gated = t[:c_in // 2, :] * t[c_in // 2:, :]            # SimpleGate
        return conv3x3([gated], channels, w2_ref, b2_ref)      # conv2

    f_i = fi_ref[0]          # (C, hw)
    f_ip1 = fip1_ref[0]      # (C, hw)

    # forward:  cat([f_i[:half], f_ip1]) -> forward_block -> f_ip1_new
    f_ip1_new = fusion_sub_block([f_i[:half, :], f_ip1],
                                 wf1_ref, bf1_ref, wf2_ref, bf2_ref)
    # backward: cat([f_ip1_new, f_i[half:]]) -> backward_block -> f_i_new
    f_i_new = fusion_sub_block([f_ip1_new, f_i[half:, :]],
                               wb1_ref, bb1_ref, wb2_ref, bb2_ref)

    fi_new_ref[...] = f_i_new.reshape(1, channels, hw).astype(fi_new_ref.dtype)
    fip1_new_ref[...] = f_ip1_new.reshape(1, channels, hw).astype(fip1_new_ref.dtype)


def bidirectional_frame_fusion(f_i, f_ip1, params):
    """params: PyTorch-layout (OIHW weights, 1-D biases) for the four convs."""
    wf1, bf1, wf2, bf2, wb1, bb1, wb2, bb2 = params
    N, C, H, W = f_i.shape
    HW = H * W

    # NCHW with spatial flattened onto the lane axis (free reshape, no transpose).
    fi_flat = f_i.reshape(N, C, HW).astype(jnp.float32)
    fip1_flat = f_ip1.reshape(N, C, HW).astype(jnp.float32)

    # Column-edge masks for dx = -1 / +1 taps (row edges handled by zero margins).
    col = jnp.arange(HW, dtype=jnp.int32) % W
    masks = jnp.stack([col > 0, col < W - 1], axis=0).reshape(2, 1, HW)
    masks = masks.astype(jnp.float32)

    def pack_w(w):    # torch OIHW (O, I, 3, 3) -> (9, I, O, 1)
        O, I = w.shape[0], w.shape[1]
        return jnp.transpose(w, (2, 3, 1, 0)).reshape(9, I, O)[..., None].astype(jnp.float32)

    def pack_b(b):
        return b.reshape(-1, 1).astype(jnp.float32)

    w_args = (pack_w(wf1), pack_b(bf1), pack_w(wf2), pack_b(bf2),
              pack_w(wb1), pack_b(bb1), pack_w(wb2), pack_b(bb2))

    def full_spec(shape):
        return pl.BlockSpec(shape, lambda n, _nd=len(shape): (0,) * _nd)

    batch_spec = pl.BlockSpec((1, C, HW), lambda n: (n, 0, 0))

    kernel = functools.partial(_bff_kernel, img_w=W, hw=HW, channels=C)

    out_fi, out_fip1 = pl.pallas_call(
        kernel,
        out_shape=(jax.ShapeDtypeStruct((N, C, HW), jnp.float32),
                   jax.ShapeDtypeStruct((N, C, HW), jnp.float32)),
        grid_spec=pltpu.PrefetchScalarGridSpec(
            num_scalar_prefetch=0,
            grid=(N,),
            in_specs=[
                full_spec((2, 1, HW)),                         # column masks
                batch_spec,                                    # f_i
                batch_spec,                                    # f_ip1
                full_spec(w_args[0].shape), full_spec(w_args[1].shape),
                full_spec(w_args[2].shape), full_spec(w_args[3].shape),
                full_spec(w_args[4].shape), full_spec(w_args[5].shape),
                full_spec(w_args[6].shape), full_spec(w_args[7].shape),
            ],
            out_specs=[batch_spec, batch_spec],
        ),
        compiler_params=pltpu.CompilerParams(
            dimension_semantics=("parallel",)),
    )(masks, fi_flat, fip1_flat, *w_args)

    return out_fi.reshape(N, C, H, W), out_fip1.reshape(N, C, H, W)


# ----------------------------- reference & setup -----------------------------

def _conv2d_nchw(x, w, b):
    y = jax.lax.conv_general_dilated(
        x, w, window_strides=(1, 1), padding=[(1, 1), (1, 1)],
        dimension_numbers=("NCHW", "OIHW", "NCHW"))
    return y + b.reshape(1, -1, 1, 1)


def reference_forward(f_i, f_ip1, params):
    """Pure-JAX (lax.conv) reference mirroring the PyTorch module."""
    wf1, bf1, wf2, bf2, wb1, bb1, wb2, bb2 = params
    C = f_i.shape[1]
    half = C // 2

    def sub_block(x, w1, b1, w2, b2):
        t = _conv2d_nchw(x, w1, b1)
        c = t.shape[1] // 2
        return _conv2d_nchw(t[:, :c] * t[:, c:], w2, b2)

    fwd_in = jnp.concatenate([f_i[:, :half], f_ip1], axis=1)
    f_ip1_new = sub_block(fwd_in, wf1, bf1, wf2, bf2)
    bwd_in = jnp.concatenate([f_ip1_new, f_i[:, half:]], axis=1)
    f_i_new = sub_block(bwd_in, wb1, bb1, wb2, bb2)
    return f_i_new, f_ip1_new


def init_params(key, channels):
    """Deterministic init with PyTorch Conv2d-style uniform bounds."""
    C = channels
    half = C // 2
    cin1 = C + half            # FusionSubBlock in_channels
    ks = jax.random.split(key, 8)

    def u(k, shape, fan_in):
        bound = 1.0 / math.sqrt(fan_in)
        return jax.random.uniform(k, shape, jnp.float32, -bound, bound)

    wf1 = u(ks[0], (cin1, cin1, 3, 3), cin1 * 9)
    bf1 = u(ks[1], (cin1,), cin1 * 9)
    wf2 = u(ks[2], (C, cin1 // 2, 3, 3), (cin1 // 2) * 9)
    bf2 = u(ks[3], (C,), (cin1 // 2) * 9)
    wb1 = u(ks[4], (cin1, cin1, 3, 3), cin1 * 9)
    bb1 = u(ks[5], (cin1,), cin1 * 9)
    wb2 = u(ks[6], (C, cin1 // 2, 3, 3), (cin1 // 2) * 9)
    bb2 = u(ks[7], (C,), (cin1 // 2) * 9)
    return (wf1, bf1, wf2, bf2, wb1, bb1, wb2, bb2)


if __name__ == "__main__":
    N, C, H, W = 2, 4, 16, 16
    key = jax.random.PRNGKey(0)
    kp, k1, k2 = jax.random.split(key, 3)

    params = init_params(kp, C)
    f_i = jax.random.normal(k1, (N, C, H, W), jnp.float32)
    f_ip1 = jax.random.normal(k2, (N, C, H, W), jnp.float32)

    f_i_new, f_ip1_new = bidirectional_frame_fusion(f_i, f_ip1, params)
    f_i_new = jax.block_until_ready(f_i_new)
    f_ip1_new = jax.block_until_ready(f_ip1_new)

    ref_i, ref_ip1 = reference_forward(f_i, f_ip1, params)
    ref_i = jax.block_until_ready(ref_i)
    ref_ip1 = jax.block_until_ready(ref_ip1)

    assert f_i_new.shape == (N, C, H, W), f_i_new.shape
    assert f_ip1_new.shape == (N, C, H, W), f_ip1_new.shape
    assert jnp.allclose(f_ip1_new, ref_ip1, atol=1e-3, rtol=1e-3), (
        float(jnp.max(jnp.abs(f_ip1_new - ref_ip1))))
    assert jnp.allclose(f_i_new, ref_i, atol=1e-3, rtol=1e-3), (
        float(jnp.max(jnp.abs(f_i_new - ref_i))))
    print("KERNEL_OK")
</pallas_src>

<mosaic_0001>
module attributes {stable_mosaic.version = 11 : i64} {
  func.func @_bff_kernel(%arg0: i32, %arg1: memref<2x1x256xf32, #tpu.memory_space<vmem>>, %arg2: memref<1x4x256xf32, #tpu.memory_space<vmem>>, %arg3: memref<1x4x256xf32, #tpu.memory_space<vmem>>, %arg4: memref<9x6x6x1xf32, #tpu.memory_space<vmem>>, %arg5: memref<6x1xf32, #tpu.memory_space<vmem>>, %arg6: memref<9x3x4x1xf32, #tpu.memory_space<vmem>>, %arg7: memref<4x1xf32, #tpu.memory_space<vmem>>, %arg8: memref<9x6x6x1xf32, #tpu.memory_space<vmem>>, %arg9: memref<6x1xf32, #tpu.memory_space<vmem>>, %arg10: memref<9x3x4x1xf32, #tpu.memory_space<vmem>>, %arg11: memref<4x1xf32, #tpu.memory_space<vmem>>, %arg12: memref<1x4x256xf32, #tpu.memory_space<vmem>>, %arg13: memref<1x4x256xf32, #tpu.memory_space<vmem>>) attributes {dimension_semantics = [#tpu.dimension_semantics<parallel>], iteration_bounds = array<i64: 2>, scalar_prefetch = 0 : i64, scratch_operands = 0 : i64, tpu.core_type = #tpu.core_type<tc>, window_params = [{pipeline_mode = #tpu.pipeline_mode<synchronous>, transform_indices = @transform_0, window_bounds = array<i64: 2, 1, 256>}, {transform_indices = @transform_1, window_bounds = array<i64: 1, 4, 256>}, {transform_indices = @transform_2, window_bounds = array<i64: 1, 4, 256>}, {pipeline_mode = #tpu.pipeline_mode<synchronous>, transform_indices = @transform_3, window_bounds = array<i64: 9, 6, 6, 1>}, {pipeline_mode = #tpu.pipeline_mode<synchronous>, transform_indices = @transform_4, window_bounds = array<i64: 6, 1>}, {pipeline_mode = #tpu.pipeline_mode<synchronous>, transform_indices = @transform_5, window_bounds = array<i64: 9, 3, 4, 1>}, {pipeline_mode = #tpu.pipeline_mode<synchronous>, transform_indices = @transform_6, window_bounds = array<i64: 4, 1>}, {pipeline_mode = #tpu.pipeline_mode<synchronous>, transform_indices = @transform_7, window_bounds = array<i64: 9, 6, 6, 1>}, {pipeline_mode = #tpu.pipeline_mode<synchronous>, transform_indices = @transform_8, window_bounds = array<i64: 6, 1>}, {pipeline_mode = #tpu.pipeline_mode<synchronous>, transform_indices = @transform_9, window_bounds = array<i64: 9, 3, 4, 1>}, {pipeline_mode = #tpu.pipeline_mode<synchronous>, transform_indices = @transform_10, window_bounds = array<i64: 4, 1>}, {transform_indices = @transform_11, window_bounds = array<i64: 1, 4, 256>}, {transform_indices = @transform_12, window_bounds = array<i64: 1, 4, 256>}]} {
    %c0 = arith.constant 0 : index
    %c0_0 = arith.constant 0 : index
    %c0_1 = arith.constant 0 : index
    %0 = vector.load %arg1[%c0, %c0_0, %c0_1] : memref<2x1x256xf32, #tpu.memory_space<vmem>>, vector<1x1x256xf32>
    %1 = vector.shape_cast %0 : vector<1x1x256xf32> to vector<1x256xf32>
    %c1 = arith.constant 1 : index
    %c0_2 = arith.constant 0 : index
    %c0_3 = arith.constant 0 : index
    %2 = vector.load %arg1[%c1, %c0_2, %c0_3] : memref<2x1x256xf32, #tpu.memory_space<vmem>>, vector<1x1x256xf32>
    %3 = vector.shape_cast %2 : vector<1x1x256xf32> to vector<1x256xf32>
    %c0_4 = arith.constant 0 : index
    %c0_5 = arith.constant 0 : index
    %c0_6 = arith.constant 0 : index
    %4 = vector.load %arg2[%c0_4, %c0_5, %c0_6] : memref<1x4x256xf32, #tpu.memory_space<vmem>>, vector<1x4x256xf32>
    %5 = vector.shape_cast %4 : vector<1x4x256xf32> to vector<4x256xf32>
    %c0_7 = arith.constant 0 : index
    %c0_8 = arith.constant 0 : index
    %c0_9 = arith.constant 0 : index
    %6 = vector.load %arg3[%c0_7, %c0_8, %c0_9] : memref<1x4x256xf32, #tpu.memory_space<vmem>>, vector<1x4x256xf32>
    %7 = vector.shape_cast %6 : vector<1x4x256xf32> to vector<4x256xf32>
    %8 = vector.extract_strided_slice %5 {offsets = [0, 0], sizes = [2, 256], strides = [1, 1]} : vector<4x256xf32> to vector<2x256xf32>
    %cst = arith.constant 0.000000e+00 : f32
    %9 = vector.broadcast %cst : f32 to vector<2x128xf32>
    %10 = tpu.concatenate %9, %8, %9 in 1 : vector<2x128xf32>, vector<2x256xf32>, vector<2x128xf32> -> vector<2x512xf32>
    %cst_10 = arith.constant 0.000000e+00 : f32
    %11 = vector.broadcast %cst_10 : f32 to vector<4x128xf32>
    %12 = tpu.concatenate %11, %7, %11 in 1 : vector<4x128xf32>, vector<4x256xf32>, vector<4x128xf32> -> vector<4x512xf32>
    %cst_11 = arith.constant 0.000000e+00 : f32
    %13 = vector.broadcast %cst_11 : f32 to vector<6x256xf32>
    %14 = vector.extract_strided_slice %10 {offsets = [0, 111], sizes = [2, 256], strides = [1, 1]} : vector<2x512xf32> to vector<2x256xf32>
    %15 = vector.broadcast %1 : vector<1x256xf32> to vector<2x256xf32>
    %16 = arith.mulf %14, %15 : vector<2x256xf32>
    %c0_12 = arith.constant 0 : index
    %c0_13 = arith.constant 0 : index
    %c0_14 = arith.constant 0 : index
    %c0_15 = arith.constant 0 : index
    %17 = vector.load %arg4[%c0_12, %c0_13, %c0_14, %c0_15] : memref<9x6x6x1xf32, #tpu.memory_space<vmem>>, vector<1x1x6x1xf32>
    %18 = vector.shape_cast %17 : vector<1x1x6x1xf32> to vector<6x1xf32>
    %19 = vector.extract_strided_slice %16 {offsets = [0, 0], sizes = [1, 256], strides = [1, 1]} : vector<2x256xf32> to vector<1x256xf32>
    %20 = vector.broadcast %18 : vector<6x1xf32> to vector<6x256xf32>
    %21 = vector.broadcast %19 : vector<1x256xf32> to vector<6x256xf32>
    %22 = arith.mulf %20, %21 : vector<6x256xf32>
    %23 = arith.addf %13, %22 : vector<6x256xf32>
    %c0_16 = arith.constant 0 : index
    %c1_17 = arith.constant 1 : index
    %c0_18 = arith.constant 0 : index
    %c0_19 = arith.constant 0 : index
    %24 = vector.load %arg4[%c0_16, %c1_17, %c0_18, %c0_19] : memref<9x6x6x1xf32, #tpu.memory_space<vmem>>, vector<1x1x6x1xf32>
    %25 = vector.shape_cast %24 : vector<1x1x6x1xf32> to vector<6x1xf32>
    %26 = vector.extract_strided_slice %16 {offsets = [1, 0], sizes = [1, 256], strides = [1, 1]} : vector<2x256xf32> to vector<1x256xf32>
    %27 = vector.broadcast %25 : vector<6x1xf32> to vector<6x256xf32>
    %28 = vector.broadcast %26 : vector<1x256xf32> to vector<6x256xf32>
    %29 = arith.mulf %27, %28 : vector<6x256xf32>
    %30 = arith.addf %23, %29 : vector<6x256xf32>
    %31 = vector.extract_strided_slice %12 {offsets = [0, 111], sizes = [4, 256], strides = [1, 1]} : vector<4x512xf32> to vector<4x256xf32>
    %32 = vector.broadcast %1 : vector<1x256xf32> to vector<4x256xf32>
    %33 = arith.mulf %31, %32 : vector<4x256xf32>
    %c0_20 = arith.constant 0 : index
    %c2 = arith.constant 2 : index
    %c0_21 = arith.constant 0 : index
    %c0_22 = arith.constant 0 : index
    %34 = vector.load %arg4[%c0_20, %c2, %c0_21, %c0_22] : memref<9x6x6x1xf32, #tpu.memory_space<vmem>>, vector<1x1x6x1xf32>
    %35 = vector.shape_cast %34 : vector<1x1x6x1xf32> to vector<6x1xf32>
    %36 = vector.extract_strided_slice %33 {offsets = [0, 0], sizes = [1, 256], strides = [1, 1]} : vector<4x256xf32> to vector<1x256xf32>
    %37 = vector.broadcast %35 : vector<6x1xf32> to vector<6x256xf32>
    %38 = vector.broadcast %36 : vector<1x256xf32> to vector<6x256xf32>
    %39 = arith.mulf %37, %38 : vector<6x256xf32>
    %40 = arith.addf %30, %39 : vector<6x256xf32>
    %c0_23 = arith.constant 0 : index
    %c3 = arith.constant 3 : index
    %c0_24 = arith.constant 0 : index
    %c0_25 = arith.constant 0 : index
    %41 = vector.load %arg4[%c0_23, %c3, %c0_24, %c0_25] : memref<9x6x6x1xf32, #tpu.memory_space<vmem>>, vector<1x1x6x1xf32>
    %42 = vector.shape_cast %41 : vector<1x1x6x1xf32> to vector<6x1xf32>
    %43 = vector.extract_strided_slice %33 {offsets = [1, 0], sizes = [1, 256], strides = [1, 1]} : vector<4x256xf32> to vector<1x256xf32>
    %44 = vector.broadcast %42 : vector<6x1xf32> to vector<6x256xf32>
    %45 = vector.broadcast %43 : vector<1x256xf32> to vector<6x256xf32>
    %46 = arith.mulf %44, %45 : vector<6x256xf32>
    %47 = arith.addf %40, %46 : vector<6x256xf32>
    %c0_26 = arith.constant 0 : index
    %c4 = arith.constant 4 : index
    %c0_27 = arith.constant 0 : index
    %c0_28 = arith.constant 0 : index
    %48 = vector.load %arg4[%c0_26, %c4, %c0_27, %c0_28] : memref<9x6x6x1xf32, #tpu.memory_space<vmem>>, vector<1x1x6x1xf32>
    %49 = vector.shape_cast %48 : vector<1x1x6x1xf32> to vector<6x1xf32>
    %50 = vector.extract_strided_slice %33 {offsets = [2, 0], sizes = [1, 256], strides = [1, 1]} : vector<4x256xf32> to vector<1x256xf32>
    %51 = vector.broadcast %49 : vector<6x1xf32> to vector<6x256xf32>
    %52 = vector.broadcast %50 : vector<1x256xf32> to vector<6x256xf32>
    %53 = arith.mulf %51, %52 : vector<6x256xf32>
    %54 = arith.addf %47, %53 : vector<6x256xf32>
    %c0_29 = arith.constant 0 : index
    %c5 = arith.constant 5 : index
    %c0_30 = arith.constant 0 : index
    %c0_31 = arith.constant 0 : index
    %55 = vector.load %arg4[%c0_29, %c5, %c0_30, %c0_31] : memref<9x6x6x1xf32, #tpu.memory_space<vmem>>, vector<1x1x6x1xf32>
    %56 = vector.shape_cast %55 : vector<1x1x6x1xf32> to vector<6x1xf32>
    %57 = vector.extract_strided_slice %33 {offsets = [3, 0], sizes = [1, 256], strides = [1, 1]} : vector<4x256xf32> to vector<1x256xf32>
    %58 = vector.broadcast %56 : vector<6x1xf32> to vector<6x256xf32>
    %59 = vector.broadcast %57 : vector<1x256xf32> to vector<6x256xf32>
    %60 = arith.mulf %58, %59 : vector<6x256xf32>
    %61 = arith.addf %54, %60 : vector<6x256xf32>
    %62 = vector.extract_strided_slice %10 {offsets = [0, 112], sizes = [2, 256], strides = [1, 1]} : vector<2x512xf32> to vector<2x256xf32>
    %c1_32 = arith.constant 1 : index
    %c0_33 = arith.constant 0 : index
    %c0_34 = arith.constant 0 : index
    %c0_35 = arith.constant 0 : index
    %63 = vector.load %arg4[%c1_32, %c0_33, %c0_34, %c0_35] : memref<9x6x6x1xf32, #tpu.memory_space<vmem>>, vector<1x1x6x1xf32>
    %64 = vector.shape_cast %63 : vector<1x1x6x1xf32> to vector<6x1xf32>
    %65 = vector.extract_strided_slice %62 {offsets = [0, 0], sizes = [1, 256], strides = [1, 1]} : vector<2x256xf32> to vector<1x256xf32>
    %66 = vector.broadcast %64 : vector<6x1xf32> to vector<6x256xf32>
    %67 = vector.broadcast %65 : vector<1x256xf32> to vector<6x256xf32>
    %68 = arith.mulf %66, %67 : vector<6x256xf32>
    %69 = arith.addf %61, %68 : vector<6x256xf32>
    %c1_36 = arith.constant 1 : index
    %c1_37 = arith.constant 1 : index
    %c0_38 = arith.constant 0 : index
    %c0_39 = arith.constant 0 : index
    %70 = vector.load %arg4[%c1_36, %c1_37, %c0_38, %c0_39] : memref<9x6x6x1xf32, #tpu.memory_space<vmem>>, vector<1x1x6x1xf32>
    %71 = vector.shape_cast %70 : vector<1x1x6x1xf32> to vector<6x1xf32>
    %72 = vector.extract_strided_slice %62 {offsets = [1, 0], sizes = [1, 256], strides = [1, 1]} : vector<2x256xf32> to vector<1x256xf32>
    %73 = vector.broadcast %71 : vector<6x1xf32> to vector<6x256xf32>
    %74 = vector.broadcast %72 : vector<1x256xf32> to vector<6x256xf32>
    %75 = arith.mulf %73, %74 : vector<6x256xf32>
    %76 = arith.addf %69, %75 : vector<6x256xf32>
    %77 = vector.extract_strided_slice %12 {offsets = [0, 112], sizes = [4, 256], strides = [1, 1]} : vector<4x512xf32> to vector<4x256xf32>
    %c1_40 = arith.constant 1 : index
    %c2_41 = arith.constant 2 : index
    %c0_42 = arith.constant 0 : index
    %c0_43 = arith.constant 0 : index
    %78 = vector.load %arg4[%c1_40, %c2_41, %c0_42, %c0_43] : memref<9x6x6x1xf32, #tpu.memory_space<vmem>>, vector<1x1x6x1xf32>
    %79 = vector.shape_cast %78 : vector<1x1x6x1xf32> to vector<6x1xf32>
    %80 = vector.extract_strided_slice %77 {offsets = [0, 0], sizes = [1, 256], strides = [1, 1]} : vector<4x256xf32> to vector<1x256xf32>
    %81 = vector.broadcast %79 : vector<6x1xf32> to vector<6x256xf32>
    %82 = vector.broadcast %80 : vector<1x256xf32> to vector<6x256xf32>
    %83 = arith.mulf %81, %82 : vector<6x256xf32>
    %84 = arith.addf %76, %83 : vector<6x256xf32>
    %c1_44 = arith.constant 1 : index
    %c3_45 = arith.constant 3 : index
    %c0_46 = arith.constant 0 : index
    %c0_47 = arith.constant 0 : index
    %85 = vector.load %arg4[%c1_44, %c3_45, %c0_46, %c0_47] : memref<9x6x6x1xf32, #tpu.memory_space<vmem>>, vector<1x1x6x1xf32>
    %86 = vector.shape_cast %85 : vector<1x1x6x1xf32> to vector<6x1xf32>
    %87 = vector.extract_strided_slice %77 {offsets = [1, 0], sizes = [1, 256], strides = [1, 1]} : vector<4x256xf32> to vector<1x256xf32>
    %88 = vector.broadcast %86 : vector<6x1xf32> to vector<6x256xf32>
    %89 = vector.broadcast %87 : vector<1x256xf32> to vector<6x256xf32>
    %90 = arith.mulf %88, %89 : vector<6x256xf32>
    %91 = arith.addf %84, %90 : vector<6x256xf32>
    %c1_48 = arith.constant 1 : index
    %c4_49 = arith.constant 4 : index
    %c0_50 = arith.constant 0 : index
    %c0_51 = arith.constant 0 : index
    %92 = vector.load %arg4[%c1_48, %c4_49, %c0_50, %c0_51] : memref<9x6x6x1xf32, #tpu.memory_space<vmem>>, vector<1x1x6x1xf32>
    %93 = vector.shape_cast %92 : vector<1x1x6x1xf32> to vector<6x1xf32>
    %94 = vector.extract_strided_slice %77 {offsets = [2, 0], sizes = [1, 256], strides = [1, 1]} : vector<4x256xf32> to vector<1x256xf32>
    %95 = vector.broadcast %93 : vector<6x1xf32> to vector<6x256xf32>
    %96 = vector.broadcast %94 : vector<1x256xf32> to vector<6x256xf32>
    %97 = arith.mulf %95, %96 : vector<6x256xf32>
    %98 = arith.addf %91, %97 : vector<6x256xf32>
    %c1_52 = arith.constant 1 : index
    %c5_53 = arith.constant 5 : index
    %c0_54 = arith.constant 0 : index
    %c0_55 = arith.constant 0 : index
    %99 = vector.load %arg4[%c1_52, %c5_53, %c0_54, %c0_55] : memref<9x6x6x1xf32, #tpu.memory_space<vmem>>, vector<1x1x6x1xf32>
    %100 = vector.shape_cast %99 : vector<1x1x6x1xf32> to vector<6x1xf32>
    %101 = vector.extract_strided_slice %77 {offsets = [3, 0], sizes = [1, 256], strides = [1, 1]} : vector<4x256xf32> to vector<1x256xf32>
    %102 = vector.broadcast %100 : vector<6x1xf32> to vector<6x256xf32>
    %103 = vector.broadcast %101 : vector<1x256xf32> to vector<6x256xf32>
    %104 = arith.mulf %102, %103 : vector<6x256xf32>
    %105 = arith.addf %98, %104 : vector<6x256xf32>
    %106 = vector.extract_strided_slice %10 {offsets = [0, 113], sizes = [2, 256], strides = [1, 1]} : vector<2x512xf32> to vector<2x256xf32>
    %107 = vector.broadcast %3 : vector<1x256xf32> to vector<2x256xf32>
    %108 = arith.mulf %106, %107 : vector<2x256xf32>
    %c2_56 = arith.constant 2 : index
    %c0_57 = arith.constant 0 : index
    %c0_58 = arith.constant 0 : index
    %c0_59 = arith.constant 0 : index
    %109 = vector.load %arg4[%c2_56, %c0_57, %c0_58, %c0_59] : memref<9x6x6x1xf32, #tpu.memory_space<vmem>>, vector<1x1x6x1xf32>
    %110 = vector.shape_cast %109 : vector<1x1x6x1xf32> to vector<6x1xf32>
    %111 = vector.extract_strided_slice %108 {offsets = [0, 0], sizes = [1, 256], strides = [1, 1]} : vector<2x256xf32> to vector<1x256xf32>
    %112 = vector.broadcast %110 : vector<6x1xf32> to vector<6x256xf32>
    %113 = vector.broadcast %111 : vector<1x256xf32> to vector<6x256xf32>
    %114 = arith.mulf %112, %113 : vector<6x256xf32>
    %115 = arith.addf %105, %114 : vector<6x256xf32>
    %c2_60 = arith.constant 2 : index
    %c1_61 = arith.constant 1 : index
    %c0_62 = arith.constant 0 : index
    %c0_63 = arith.constant 0 : index
    %116 = vector.load %arg4[%c2_60, %c1_61, %c0_62, %c0_63] : memref<9x6x6x1xf32, #tpu.memory_space<vmem>>, vector<1x1x6x1xf32>
    %117 = vector.shape_cast %116 : vector<1x1x6x1xf32> to vector<6x1xf32>
    %118 = vector.extract_strided_slice %108 {offsets = [1, 0], sizes = [1, 256], strides = [1, 1]} : vector<2x256xf32> to vector<1x256xf32>
    %119 = vector.broadcast %117 : vector<6x1xf32> to vector<6x256xf32>
    %120 = vector.broadcast %118 : vector<1x256xf32> to vector<6x256xf32>
    %121 = arith.mulf %119, %120 : vector<6x256xf32>
    %122 = arith.addf %115, %121 : vector<6x256xf32>
    %123 = vector.extract_strided_slice %12 {offsets = [0, 113], sizes = [4, 256], strides = [1, 1]} : vector<4x512xf32> to vector<4x256xf32>
    %124 = vector.broadcast %3 : vector<1x256xf32> to vector<4x256xf32>
    %125 = arith.mulf %123, %124 : vector<4x256xf32>
    %c2_64 = arith.constant 2 : index
    %c2_65 = arith.constant 2 : index
    %c0_66 = arith.constant 0 : index
    %c0_67 = arith.constant 0 : index
    %126 = vector.load %arg4[%c2_64, %c2_65, %c0_66, %c0_67] : memref<9x6x6x1xf32, #tpu.memory_space<vmem>>, vector<1x1x6x1xf32>
    %127 = vector.shape_cast %126 : vector<1x1x6x1xf32> to vector<6x1xf32>
    %128 = vector.extract_strided_slice %125 {offsets = [0, 0], sizes = [1, 256], strides = [1, 1]} : vector<4x256xf32> to vector<1x256xf32>
    %129 = vector.broadcast %127 : vector<6x1xf32> to vector<6x256xf32>
    %130 = vector.broadcast %128 : vector<1x256xf32> to vector<6x256xf32>
    %131 = arith.mulf %129, %130 : vector<6x256xf32>
    %132 = arith.addf %122, %131 : vector<6x256xf32>
    %c2_68 = arith.constant 2 : index
    %c3_69 = arith.constant 3 : index
    %c0_70 = arith.constant 0 : index
    %c0_71 = arith.constant 0 : index
    %133 = vector.load %arg4[%c2_68, %c3_69, %c0_70, %c0_71] : memref<9x6x6x1xf32, #tpu.memory_space<vmem>>, vector<1x1x6x1xf32>
    %134 = vector.shape_cast %133 : vector<1x1x6x1xf32> to vector<6x1xf32>
    %135 = vector.extract_strided_slice %125 {offsets = [1, 0], sizes = [1, 256], strides = [1, 1]} : vector<4x256xf32> to vector<1x256xf32>
    %136 = vector.broadcast %134 : vector<6x1xf32> to vector<6x256xf32>
    %137 = vector.broadcast %135 : vector<1x256xf32> to vector<6x256xf32>
    %138 = arith.mulf %136, %137 : vector<6x256xf32>
    %139 = arith.addf %132, %138 : vector<6x256xf32>
    %c2_72 = arith.constant 2 : index
    %c4_73 = arith.constant 4 : index
    %c0_74 = arith.constant 0 : index
    %c0_75 = arith.constant 0 : index
    %140 = vector.load %arg4[%c2_72, %c4_73, %c0_74, %c0_75] : memref<9x6x6x1xf32, #tpu.memory_space<vmem>>, vector<1x1x6x1xf32>
    %141 = vector.shape_cast %140 : vector<1x1x6x1xf32> to vector<6x1xf32>
    %142 = vector.extract_strided_slice %125 {offsets = [2, 0], sizes = [1, 256], strides = [1, 1]} : vector<4x256xf32> to vector<1x256xf32>
    %143 = vector.broadcast %141 : vector<6x1xf32> to vector<6x256xf32>
    %144 = vector.broadcast %142 : vector<1x256xf32> to vector<6x256xf32>
    %145 = arith.mulf %143, %144 : vector<6x256xf32>
    %146 = arith.addf %139, %145 : vector<6x256xf32>
    %c2_76 = arith.constant 2 : index
    %c5_77 = arith.constant 5 : index
    %c0_78 = arith.constant 0 : index
    %c0_79 = arith.constant 0 : index
    %147 = vector.load %arg4[%c2_76, %c5_77, %c0_78, %c0_79] : memref<9x6x6x1xf32, #tpu.memory_space<vmem>>, vector<1x1x6x1xf32>
    %148 = vector.shape_cast %147 : vector<1x1x6x1xf32> to vector<6x1xf32>
    %149 = vector.extract_strided_slice %125 {offsets = [3, 0], sizes = [1, 256], strides = [1, 1]} : vector<4x256xf32> to vector<1x256xf32>
    %150 = vector.broadcast %148 : vector<6x1xf32> to vector<6x256xf32>
    %151 = vector.broadcast %149 : vector<1x256xf32> to vector<6x256xf32>
    %152 = arith.mulf %150, %151 : vector<6x256xf32>
    %153 = arith.addf %146, %152 : vector<6x256xf32>
    %154 = vector.extract_strided_slice %10 {offsets = [0, 127], sizes = [2, 256], strides = [1, 1]} : vector<2x512xf32> to vector<2x256xf32>
    %155 = vector.broadcast %1 : vector<1x256xf32> to vector<2x256xf32>
    %156 = arith.mulf %154, %155 : vector<2x256xf32>
    %c3_80 = arith.constant 3 : index
    %c0_81 = arith.constant 0 : index
    %c0_82 = arith.constant 0 : index
    %c0_83 = arith.constant 0 : index
    %157 = vector.load %arg4[%c3_80, %c0_81, %c0_82, %c0_83] : memref<9x6x6x1xf32, #tpu.memory_space<vmem>>, vector<1x1x6x1xf32>
    %158 = vector.shape_cast %157 : vector<1x1x6x1xf32> to vector<6x1xf32>
    %159 = vector.extract_strided_slice %156 {offsets = [0, 0], sizes = [1, 256], strides = [1, 1]} : vector<2x256xf32> to vector<1x256xf32>
    %160 = vector.broadcast %158 : vector<6x1xf32> to vector<6x256xf32>
    %161 = vector.broadcast %159 : vector<1x256xf32> to vector<6x256xf32>
    %162 = arith.mulf %160, %161 : vector<6x256xf32>
    %163 = arith.addf %153, %162 : vector<6x256xf32>
    %c3_84 = arith.constant 3 : index
    %c1_85 = arith.constant 1 : index
    %c0_86 = arith.constant 0 : index
    %c0_87 = arith.constant 0 : index
    %164 = vector.load %arg4[%c3_84, %c1_85, %c0_86, %c0_87] : memref<9x6x6x1xf32, #tpu.memory_space<vmem>>, vector<1x1x6x1xf32>
    %165 = vector.shape_cast %164 : vector<1x1x6x1xf32> to vector<6x1xf32>
    %166 = vector.extract_strided_slice %156 {offsets = [1, 0], sizes = [1, 256], strides = [1, 1]} : vector<2x256xf32> to vector<1x256xf32>
    %167 = vector.broadcast %165 : vector<6x1xf32> to vector<6x256xf32>
    %168 = vector.broadcast %166 : vector<1x256xf32> to vector<6x256xf32>
    %169 = arith.mulf %167, %168 : vector<6x256xf32>
    %170 = arith.addf %163, %169 : vector<6x256xf32>
    %171 = vector.extract_strided_slice %12 {offsets = [0, 127], sizes = [4, 256], strides = [1, 1]} : vector<4x512xf32> to vector<4x256xf32>
    %172 = vector.broadcast %1 : vector<1x256xf32> to vector<4x256xf32>
    %173 = arith.mulf %171, %172 : vector<4x256xf32>
    %c3_88 = arith.constant 3 : index
    %c2_89 = arith.constant 2 : index
    %c0_90 = arith.constant 0 : index
    %c0_91 = arith.constant 0 : index
    %174 = vector.load %arg4[%c3_88, %c2_89, %c0_90, %c0_91] : memref<9x6x6x1xf32, #tpu.memory_space<vmem>>, vector<1x1x6x1xf32>
    %175 = vector.shape_cast %174 : vector<1x1x6x1xf32> to vector<6x1xf32>
    %176 = vector.extract_strided_slice %173 {offsets = [0, 0], sizes = [1, 256], strides = [1, 1]} : vector<4x256xf32> to vector<1x256xf32>
    %177 = vector.broadcast %175 : vector<6x1xf32> to vector<6x256xf32>
    %178 = vector.broadcast %176 : vector<1x256xf32> to vector<6x256xf32>
    %179 = arith.mulf %177, %178 : vector<6x256xf32>
    %180 = arith.addf %170, %179 : vector<6x256xf32>
    %c3_92 = arith.constant 3 : index
    %c3_93 = arith.constant 3 : index
    %c0_94 = arith.constant 0 : index
    %c0_95 = arith.constant 0 : index
    %181 = vector.load %arg4[%c3_92, %c3_93, %c0_94, %c0_95] : memref<9x6x6x1xf32, #tpu.memory_space<vmem>>, vector<1x1x6x1xf32>
    %182 = vector.shape_cast %181 : vector<1x1x6x1xf32> to vector<6x1xf32>
    %183 = vector.extract_strided_slice %173 {offsets = [1, 0], sizes = [1, 256], strides = [1, 1]} : vector<4x256xf32> to vector<1x256xf32>
    %184 = vector.broadcast %182 : vector<6x1xf32> to vector<6x256xf32>
    %185 = vector.broadcast %183 : vector<1x256xf32> to vector<6x256xf32>
    %186 = arith.mulf %184, %185 : vector<6x256xf32>
    %187 = arith.addf %180, %186 : vector<6x256xf32>
    %c3_96 = arith.constant 3 : index
    %c4_97 = arith.constant 4 : index
    %c0_98 = arith.constant 0 : index
    %c0_99 = arith.constant 0 : index
    %188 = vector.load %arg4[%c3_96, %c4_97, %c0_98, %c0_99] : memref<9x6x6x1xf32, #tpu.memory_space<vmem>>, vector<1x1x6x1xf32>
    %189 = vector.shape_cast %188 : vector<1x1x6x1xf32> to vector<6x1xf32>
    %190 = vector.extract_strided_slice %173 {offsets = [2, 0], sizes = [1, 256], strides = [1, 1]} : vector<4x256xf32> to vector<1x256xf32>
    %191 = vector.broadcast %189 : vector<6x1xf32> to vector<6x256xf32>
    %192 = vector.broadcast %190 : vector<1x256xf32> to vector<6x256xf32>
    %193 = arith.mulf %191, %192 : vector<6x256xf32>
    %194 = arith.addf %187, %193 : vector<6x256xf32>
    %c3_100 = arith.constant 3 : index
    %c5_101 = arith.constant 5 : index
    %c0_102 = arith.constant 0 : index
    %c0_103 = arith.constant 0 : index
    %195 = vector.load %arg4[%c3_100, %c5_101, %c0_102, %c0_103] : memref<9x6x6x1xf32, #tpu.memory_space<vmem>>, vector<1x1x6x1xf32>
    %196 = vector.shape_cast %195 : vector<1x1x6x1xf32> to vector<6x1xf32>
    %197 = vector.extract_strided_slice %173 {offsets = [3, 0], sizes = [1, 256], strides = [1, 1]} : vector<4x256xf32> to vector<1x256xf32>
    %198 = vector.broadcast %196 : vector<6x1xf32> to vector<6x256xf32>
    %199 = vector.broadcast %197 : vector<1x256xf32> to vector<6x256xf32>
    %200 = arith.mulf %198, %199 : vector<6x256xf32>
    %201 = arith.addf %194, %200 : vector<6x256xf32>
    %c4_104 = arith.constant 4 : index
    %c0_105 = arith.constant 0 : index
    %c0_106 = arith.constant 0 : index
    %c0_107 = arith.constant 0 : index
    %202 = vector.load %arg4[%c4_104, %c0_105, %c0_106, %c0_107] : memref<9x6x6x1xf32, #tpu.memory_space<vmem>>, vector<1x1x6x1xf32>
    %203 = vector.shape_cast %202 : vector<1x1x6x1xf32> to vector<6x1xf32>
    %204 = vector.extract_strided_slice %8 {offsets = [0, 0], sizes = [1, 256], strides = [1, 1]} : vector<2x256xf32> to vector<1x256xf32>
    %205 = vector.broadcast %203 : vector<6x1xf32> to vector<6x256xf32>
    %206 = vector.broadcast %204 : vector<1x256xf32> to vector<6x256xf32>
    %207 = arith.mulf %205, %206 : vector<6x256xf32>
    %208 = arith.addf %201, %207 : vector<6x256xf32>
    %c4_108 = arith.constant 4 : index
    %c1_109 = arith.constant 1 : index
    %c0_110 = arith.constant 0 : index
    %c0_111 = arith.constant 0 : index
    %209 = vector.load %arg4[%c4_108, %c1_109, %c0_110, %c0_111] : memref<9x6x6x1xf32, #tpu.memory_space<vmem>>, vector<1x1x6x1xf32>
    %210 = vector.shape_cast %209 : vector<1x1x6x1xf32> to vector<6x1xf32>
    %211 = vector.extract_strided_slice %8 {offsets = [1, 0], sizes = [1, 256], strides = [1, 1]} : vector<2x256xf32> to vector<1x256xf32>
    %212 = vector.broadcast %210 : vector<6x1xf32> to vector<6x256xf32>
    %213 = vector.broadcast %211 : vector<1x256xf32> to vector<6x256xf32>
    %214 = arith.mulf %212, %213 : vector<6x256xf32>
    %215 = arith.addf %208, %214 : vector<6x256xf32>
    %c4_112 = arith.constant 4 : index
    %c2_113 = arith.constant 2 : index
    %c0_114 = arith.constant 0 : index
    %c0_115 = arith.constant 0 : index
    %216 = vector.load %arg4[%c4_112, %c2_113, %c0_114, %c0_115] : memref<9x6x6x1xf32, #tpu.memory_space<vmem>>, vector<1x1x6x1xf32>
    %217 = vector.shape_cast %216 : vector<1x1x6x1xf32> to vector<6x1xf32>
    %218 = vector.extract_strided_slice %7 {offsets = [0, 0], sizes = [1, 256], strides = [1, 1]} : vector<4x256xf32> to vector<1x256xf32>
    %219 = vector.broadcast %217 : vector<6x1xf32> to vector<6x256xf32>
    %220 = vector.broadcast %218 : vector<1x256xf32> to vector<6x256xf32>
    %221 = arith.mulf %219, %220 : vector<6x256xf32>
    %222 = arith.addf %215, %221 : vector<6x256xf32>
    %c4_116 = arith.constant 4 : index
    %c3_117 = arith.constant 3 : index
    %c0_118 = arith.constant 0 : index
    %c0_119 = arith.constant 0 : index
    %223 = vector.load %arg4[%c4_116, %c3_117, %c0_118, %c0_119] : memref<9x6x6x1xf32, #tpu.memory_space<vmem>>, vector<1x1x6x1xf32>
    %224 = vector.shape_cast %223 : vector<1x1x6x1xf32> to vector<6x1xf32>
    %225 = vector.extract_strided_slice %7 {offsets = [1, 0], sizes = [1, 256], strides = [1, 1]} : vector<4x256xf32> to vector<1x256xf32>
    %226 = vector.broadcast %224 : vector<6x1xf32> to vector<6x256xf32>
    %227 = vector.broadcast %225 : vector<1x256xf32> to vector<6x256xf32>
    %228 = arith.mulf %226, %227 : vector<6x256xf32>
    %229 = arith.addf %222, %228 : vector<6x256xf32>
    %c4_120 = arith.constant 4 : index
    %c4_121 = arith.constant 4 : index
    %c0_122 = arith.constant 0 : index
    %c0_123 = arith.constant 0 : index
    %230 = vector.load %arg4[%c4_120, %c4_121, %c0_122, %c0_123] : memref<9x6x6x1xf32, #tpu.memory_space<vmem>>, vector<1x1x6x1xf32>
    %231 = vector.shape_cast %230 : vector<1x1x6x1xf32> to vector<6x1xf32>
    %232 = vector.extract_strided_slice %7 {offsets = [2, 0], sizes = [1, 256], strides = [1, 1]} : vector<4x256xf32> to vector<1x256xf32>
    %233 = vector.broadcast %231 : vector<6x1xf32> to vector<6x256xf32>
    %234 = vector.broadcast %232 : vector<1x256xf32> to vector<6x256xf32>
    %235 = arith.mulf %233, %234 : vector<6x256xf32>
    %236 = arith.addf %229, %235 : vector<6x256xf32>
    %c4_124 = arith.constant 4 : index
    %c5_125 = arith.constant 5 : index
    %c0_126 = arith.constant 0 : index
    %c0_127 = arith.constant 0 : index
    %237 = vector.load %arg4[%c4_124, %c5_125, %c0_126, %c0_127] : memref<9x6x6x1xf32, #tpu.memory_space<vmem>>, vector<1x1x6x1xf32>
    %238 = vector.shape_cast %237 : vector<1x1x6x1xf32> to vector<6x1xf32>
    %239 = vector.extract_strided_slice %7 {offsets = [3, 0], sizes = [1, 256], strides = [1, 1]} : vector<4x256xf32> to vector<1x256xf32>
    %240 = vector.broadcast %238 : vector<6x1xf32> to vector<6x256xf32>
    %241 = vector.broadcast %239 : vector<1x256xf32> to vector<6x256xf32>
    %242 = arith.mulf %240, %241 : vector<6x256xf32>
    %243 = arith.addf %236, %242 : vector<6x256xf32>
    %244 = vector.extract_strided_slice %10 {offsets = [0, 129], sizes = [2, 256], strides = [1, 1]} : vector<2x512xf32> to vector<2x256xf32>
    %245 = vector.broadcast %3 : vector<1x256xf32> to vector<2x256xf32>
    %246 = arith.mulf %244, %245 : vector<2x256xf32>
    %c5_128 = arith.constant 5 : index
    %c0_129 = arith.constant 0 : index
    %c0_130 = arith.constant 0 : index
    %c0_131 = arith.constant 0 : index
    %247 = vector.load %arg4[%c5_128, %c0_129, %c0_130, %c0_131] : memref<9x6x6x1xf32, #tpu.memory_space<vmem>>, vector<1x1x6x1xf32>
    %248 = vector.shape_cast %247 : vector<1x1x6x1xf32> to vector<6x1xf32>
    %249 = vector.extract_strided_slice %246 {offsets = [0, 0], sizes = [1, 256], strides = [1, 1]} : vector<2x256xf32> to vector<1x256xf32>
    %250 = vector.broadcast %248 : vector<6x1xf32> to vector<6x256xf32>
    %251 = vector.broadcast %249 : vector<1x256xf32> to vector<6x256xf32>
    %252 = arith.mulf %250, %251 : vector<6x256xf32>
    %253 = arith.addf %243, %252 : vector<6x256xf32>
    %c5_132 = arith.constant 5 : index
    %c1_133 = arith.constant 1 : index
    %c0_134 = arith.constant 0 : index
    %c0_135 = arith.constant 0 : index
    %254 = vector.load %arg4[%c5_132, %c1_133, %c0_134, %c0_135] : memref<9x6x6x1xf32, #tpu.memory_space<vmem>>, vector<1x1x6x1xf32>
    %255 = vector.shape_cast %254 : vector<1x1x6x1xf32> to vector<6x1xf32>
    %256 = vector.extract_strided_slice %246 {offsets = [1, 0], sizes = [1, 256], strides = [1, 1]} : vector<2x256xf32> to vector<1x256xf32>
    %257 = vector.broadcast %255 : vector<6x1xf32> to vector<6x256xf32>
    %258 = vector.broadcast %256 : vector<1x256xf32> to vector<6x256xf32>
    %259 = arith.mulf %257, %258 : vector<6x256xf32>
    %260 = arith.addf %253, %259 : vector<6x256xf32>
    %261 = vector.extract_strided_slice %12 {offsets = [0, 129], sizes = [4, 256], strides = [1, 1]} : vector<4x512xf32> to vector<4x256xf32>
    %262 = vector.broadcast %3 : vector<1x256xf32> to vector<4x256xf32>
    %263 = arith.mulf %261, %262 : vector<4x256xf32>
    %c5_136 = arith.constant 5 : index
    %c2_137 = arith.constant 2 : index
    %c0_138 = arith.constant 0 : index
    %c0_139 = arith.constant 0 : index
    %264 = vector.load %arg4[%c5_136, %c2_137, %c0_138, %c0_139] : memref<9x6x6x1xf32, #tpu.memory_space<vmem>>, vector<1x1x6x1xf32>
    %265 = vector.shape_cast %264 : vector<1x1x6x1xf32> to vector<6x1xf32>
    %266 = vector.extract_strided_slice %263 {offsets = [0, 0], sizes = [1, 256], strides = [1, 1]} : vector<4x256xf32> to vector<1x256xf32>
    %267 = vector.broadcast %265 : vector<6x1xf32> to vector<6x256xf32>
    %268 = vector.broadcast %266 : vector<1x256xf32> to vector<6x256xf32>
    %269 = arith.mulf %267, %268 : vector<6x256xf32>
    %270 = arith.addf %260, %269 : vector<6x256xf32>
    %c5_140 = arith.constant 5 : index
    %c3_141 = arith.constant 3 : index
    %c0_142 = arith.constant 0 : index
    %c0_143 = arith.constant 0 : index
    %271 = vector.load %arg4[%c5_140, %c3_141, %c0_142, %c0_143] : memref<9x6x6x1xf32, #tpu.memory_space<vmem>>, vector<1x1x6x1xf32>
    %272 = vector.shape_cast %271 : vector<1x1x6x1xf32> to vector<6x1xf32>
    %273 = vector.extract_strided_slice %263 {offsets = [1, 0], sizes = [1, 256], strides = [1, 1]} : vector<4x256xf32> to vector<1x256xf32>
    %274 = vector.broadcast %272 : vector<6x1xf32> to vector<6x256xf32>
    %275 = vector.broadcast %273 : vector<1x256xf32> to vector<6x256xf32>
    %276 = arith.mulf %274, %275 : vector<6x256xf32>
    %277 = arith.addf %270, %276 : vector<6x256xf32>
    %c5_144 = arith.constant 5 : index
    %c4_145 = arith.constant 4 : index
    %c0_146 = arith.constant 0 : index
    %c0_147 = arith.constant 0 : index
    %278 = vector.load %arg4[%c5_144, %c4_145, %c0_146, %c0_147] : memref<9x6x6x1xf32, #tpu.memory_space<vmem>>, vector<1x1x6x1xf32>
    %279 = vector.shape_cast %278 : vector<1x1x6x1xf32> to vector<6x1xf32>
    %280 = vector.extract_strided_slice %263 {offsets = [2, 0], sizes = [1, 256], strides = [1, 1]} : vector<4x256xf32> to vector<1x256xf32>
    %281 = vector.broadcast %279 : vector<6x1xf32> to vector<6x256xf32>
    %282 = vector.broadcast %280 : vector<1x256xf32> to vector<6x256xf32>
    %283 = arith.mulf %281, %282 : vector<6x256xf32>
    %284 = arith.addf %277, %283 : vector<6x256xf32>
    %c5_148 = arith.constant 5 : index
    %c5_149 = arith.constant 5 : index
    %c0_150 = arith.constant 0 : index
    %c0_151 = arith.constant 0 : index
    %285 = vector.load %arg4[%c5_148, %c5_149, %c0_150, %c0_151] : memref<9x6x6x1xf32, #tpu.memory_space<vmem>>, vector<1x1x6x1xf32>
    %286 = vector.shape_cast %285 : vector<1x1x6x1xf32> to vector<6x1xf32>
    %287 = vector.extract_strided_slice %263 {offsets = [3, 0], sizes = [1, 256], strides = [1, 1]} : vector<4x256xf32> to vector<1x256xf32>
    %288 = vector.broadcast %286 : vector<6x1xf32> to vector<6x256xf32>
    %289 = vector.broadcast %287 : vector<1x256xf32> to vector<6x256xf32>
    %290 = arith.mulf %288, %289 : vector<6x256xf32>
    %291 = arith.addf %284, %290 : vector<6x256xf32>
    %292 = vector.extract_strided_slice %10 {offsets = [0, 143], sizes = [2, 256], strides = [1, 1]} : vector<2x512xf32> to vector<2x256xf32>
    %293 = vector.broadcast %1 : vector<1x256xf32> to vector<2x256xf32>
    %294 = arith.mulf %292, %293 : vector<2x256xf32>
    %c6 = arith.constant 6 : index
    %c0_152 = arith.constant 0 : index
    %c0_153 = arith.constant 0 : index
    %c0_154 = arith.constant 0 : index
    %295 = vector.load %arg4[%c6, %c0_152, %c0_153, %c0_154] : memref<9x6x6x1xf32, #tpu.memory_space<vmem>>, vector<1x1x6x1xf32>
    %296 = vector.shape_cast %295 : vector<1x1x6x1xf32> to vector<6x1xf32>
    %297 = vector.extract_strided_slice %294 {offsets = [0, 0], sizes = [1, 256], strides = [1, 1]} : vector<2x256xf32> to vector<1x256xf32>
    %298 = vector.broadcast %296 : vector<6x1xf32> to vector<6x256xf32>
    %299 = vector.broadcast %297 : vector<1x256xf32> to vector<6x256xf32>
    %300 = arith.mulf %298, %299 : vector<6x256xf32>
    %301 = arith.addf %291, %300 : vector<6x256xf32>
    %c6_155 = arith.constant 6 : index
    %c1_156 = arith.constant 1 : index
    %c0_157 = arith.constant 0 : index
    %c0_158 = arith.constant 0 : index
    %302 = vector.load %arg4[%c6_155, %c1_156, %c0_157, %c0_158] : memref<9x6x6x1xf32, #tpu.memory_space<vmem>>, vector<1x1x6x1xf32>
    %303 = vector.shape_cast %302 : vector<1x1x6x1xf32> to vector<6x1xf32>
    %304 = vector.extract_strided_slice %294 {offsets = [1, 0], sizes = [1, 256], strides = [1, 1]} : vector<2x256xf32> to vector<1x256xf32>
    %305 = vector.broadcast %303 : vector<6x1xf32> to vector<6x256xf32>
    %306 = vector.broadcast %304 : vector<1x256xf32> to vector<6x256xf32>
    %307 = arith.mulf %305, %306 : vector<6x256xf32>
    %308 = arith.addf %301, %307 : vector<6x256xf32>
    %309 = vector.extract_strided_slice %12 {offsets = [0, 143], sizes = [4, 256], strides = [1, 1]} : vector<4x512xf32> to vector<4x256xf32>
    %310 = vector.broadcast %1 : vector<1x256xf32> to vector<4x256xf32>
    %311 = arith.mulf %309, %310 : vector<4x256xf32>
    %c6_159 = arith.constant 6 : index
    %c2_160 = arith.constant 2 : index
    %c0_161 = arith.constant 0 : index
    %c0_162 = arith.constant 0 : index
    %312 = vector.load %arg4[%c6_159, %c2_160, %c0_161, %c0_162] : memref<9x6x6x1xf32, #tpu.memory_space<vmem>>, vector<1x1x6x1xf32>
    %313 = vector.shape_cast %312 : vector<1x1x6x1xf32> to vector<6x1xf32>
    %314 = vector.extract_strided_slice %311 {offsets = [0, 0], sizes = [1, 256], strides = [1, 1]} : vector<4x256xf32> to vector<1x256xf32>
    %315 = vector.broadcast %313 : vector<6x1xf32> to vector<6x256xf32>
    %316 = vector.broadcast %314 : vector<1x256xf32> to vector<6x256xf32>
    %317 = arith.mulf %315, %316 : vector<6x256xf32>
    %318 = arith.addf %308, %317 : vector<6x256xf32>
    %c6_163 = arith.constant 6 : index
    %c3_164 = arith.constant 3 : index
    %c0_165 = arith.constant 0 : index
    %c0_166 = arith.constant 0 : index
    %319 = vector.load %arg4[%c6_163, %c3_164, %c0_165, %c0_166] : memref<9x6x6x1xf32, #tpu.memory_space<vmem>>, vector<1x1x6x1xf32>
    %320 = vector.shape_cast %319 : vector<1x1x6x1xf32> to vector<6x1xf32>
    %321 = vector.extract_strided_slice %311 {offsets = [1, 0], sizes = [1, 256], strides = [1, 1]} : vector<4x256xf32> to vector<1x256xf32>
    %322 = vector.broadcast %320 : vector<6x1xf32> to vector<6x256xf32>
    %323 = vector.broadcast %321 : vector<1x256xf32> to vector<6x256xf32>
    %324 = arith.mulf %322, %323 : vector<6x256xf32>
    %325 = arith.addf %318, %324 : vector<6x256xf32>
    %c6_167 = arith.constant 6 : index
    %c4_168 = arith.constant 4 : index
    %c0_169 = arith.constant 0 : index
    %c0_170 = arith.constant 0 : index
    %326 = vector.load %arg4[%c6_167, %c4_168, %c0_169, %c0_170] : memref<9x6x6x1xf32, #tpu.memory_space<vmem>>, vector<1x1x6x1xf32>
    %327 = vector.shape_cast %326 : vector<1x1x6x1xf32> to vector<6x1xf32>
    %328 = vector.extract_strided_slice %311 {offsets = [2, 0], sizes = [1, 256], strides = [1, 1]} : vector<4x256xf32> to vector<1x256xf32>
    %329 = vector.broadcast %327 : vector<6x1xf32> to vector<6x256xf32>
    %330 = vector.broadcast %328 : vector<1x256xf32> to vector<6x256xf32>
    %331 = arith.mulf %329, %330 : vector<6x256xf32>
    %332 = arith.addf %325, %331 : vector<6x256xf32>
    %c6_171 = arith.constant 6 : index
    %c5_172 = arith.constant 5 : index
    %c0_173 = arith.constant 0 : index
    %c0_174 = arith.constant 0 : index
    %333 = vector.load %arg4[%c6_171, %c5_172, %c0_173, %c0_174] : memref<9x6x6x1xf32, #tpu.memory_space<vmem>>, vector<1x1x6x1xf32>
    %334 = vector.shape_cast %333 : vector<1x1x6x1xf32> to vector<6x1xf32>
    %335 = vector.extract_strided_slice %311 {offsets = [3, 0], sizes = [1, 256], strides = [1, 1]} : vector<4x256xf32> to vector<1x256xf32>
    %336 = vector.broadcast %334 : vector<6x1xf32> to vector<6x256xf32>
    %337 = vector.broadcast %335 : vector<1x256xf32> to vector<6x256xf32>
    %338 = arith.mulf %336, %337 : vector<6x256xf32>
    %339 = arith.addf %332, %338 : vector<6x256xf32>
    %340 = vector.extract_strided_slice %10 {offsets = [0, 144], sizes = [2, 256], strides = [1, 1]} : vector<2x512xf32> to vector<2x256xf32>
    %c7 = arith.constant 7 : index
    %c0_175 = arith.constant 0 : index
    %c0_176 = arith.constant 0 : index
    %c0_177 = arith.constant 0 : index
    %341 = vector.load %arg4[%c7, %c0_175, %c0_176, %c0_177] : memref<9x6x6x1xf32, #tpu.memory_space<vmem>>, vector<1x1x6x1xf32>
    %342 = vector.shape_cast %341 : vector<1x1x6x1xf32> to vector<6x1xf32>
    %343 = vector.extract_strided_slice %340 {offsets = [0, 0], sizes = [1, 256], strides = [1, 1]} : vector<2x256xf32> to vector<1x256xf32>
    %344 = vector.broadcast %342 : vector<6x1xf32> to vector<6x256xf32>
    %345 = vector.broadcast %343 : vector<1x256xf32> to vector<6x256xf32>
    %346 = arith.mulf %344, %345 : vector<6x256xf32>
    %347 = arith.addf %339, %346 : vector<6x256xf32>
    %c7_178 = arith.constant 7 : index
    %c1_179 = arith.constant 1 : index
    %c0_180 = arith.constant 0 : index
    %c0_181 = arith.constant 0 : index
    %348 = vector.load %arg4[%c7_178, %c1_179, %c0_180, %c0_181] : memref<9x6x6x1xf32, #tpu.memory_space<vmem>>, vector<1x1x6x1xf32>
    %349 = vector.shape_cast %348 : vector<1x1x6x1xf32> to vector<6x1xf32>
    %350 = vector.extract_strided_slice %340 {offsets = [1, 0], sizes = [1, 256], strides = [1, 1]} : vector<2x256xf32> to vector<1x256xf32>
    %351 = vector.broadcast %349 : vector<6x1xf32> to vector<6x256xf32>
    %352 = vector.broadcast %350 : vector<1x256xf32> to vector<6x256xf32>
    %353 = arith.mulf %351, %352 : vector<6x256xf32>
    %354 = arith.addf %347, %353 : vector<6x256xf32>
    %355 = vector.extract_strided_slice %12 {offsets = [0, 144], sizes = [4, 256], strides = [1, 1]} : vector<4x512xf32> to vector<4x256xf32>
    %c7_182 = arith.constant 7 : index
    %c2_183 = arith.constant 2 : index
    %c0_184 = arith.constant 0 : index
    %c0_185 = arith.constant 0 : index
    %356 = vector.load %arg4[%c7_182, %c2_183, %c0_184, %c0_185] : memref<9x6x6x1xf32, #tpu.memory_space<vmem>>, vector<1x1x6x1xf32>
    %357 = vector.shape_cast %356 : vector<1x1x6x1xf32> to vector<6x1xf32>
    %358 = vector.extract_strided_slice %355 {offsets = [0, 0], sizes = [1, 256], strides = [1, 1]} : vector<4x256xf32> to vector<1x256xf32>
    %359 = vector.broadcast %357 : vector<6x1xf32> to vector<6x256xf32>
    %360 = vector.broadcast %358 : vector<1x256xf32> to vector<6x256xf32>
    %361 = arith.mulf %359, %360 : vector<6x256xf32>
    %362 = arith.addf %354, %361 : vector<6x256xf32>
    %c7_186 = arith.constant 7 : index
    %c3_187 = arith.constant 3 : index
    %c0_188 = arith.constant 0 : index
    %c0_189 = arith.constant 0 : index
    %363 = vector.load %arg4[%c7_186, %c3_187, %c0_188, %c0_189] : memref<9x6x6x1xf32, #tpu.memory_space<vmem>>, vector<1x1x6x1xf32>
    %364 = vector.shape_cast %363 : vector<1x1x6x1xf32> to vector<6x1xf32>
    %365 = vector.extract_strided_slice %355 {offsets = [1, 0], sizes = [1, 256], strides = [1, 1]} : vector<4x256xf32> to vector<1x256xf32>
    %366 = vector.broadcast %364 : vector<6x1xf32> to vector<6x256xf32>
    %367 = vector.broadcast %365 : vector<1x256xf32> to vector<6x256xf32>
    %368 = arith.mulf %366, %367 : vector<6x256xf32>
    %369 = arith.addf %362, %368 : vector<6x256xf32>
    %c7_190 = arith.constant 7 : index
    %c4_191 = arith.constant 4 : index
    %c0_192 = arith.constant 0 : index
    %c0_193 = arith.constant 0 : index
    %370 = vector.load %arg4[%c7_190, %c4_191, %c0_192, %c0_193] : memref<9x6x6x1xf32, #tpu.memory_space<vmem>>, vector<1x1x6x1xf32>
    %371 = vector.shape_cast %370 : vector<1x1x6x1xf32> to vector<6x1xf32>
    %372 = vector.extract_strided_slice %355 {offsets = [2, 0], sizes = [1, 256], strides = [1, 1]} : vector<4x256xf32> to vector<1x256xf32>
    %373 = vector.broadcast %371 : vector<6x1xf32> to vector<6x256xf32>
    %374 = vector.broadcast %372 : vector<1x256xf32> to vector<6x256xf32>
    %375 = arith.mulf %373, %374 : vector<6x256xf32>
    %376 = arith.addf %369, %375 : vector<6x256xf32>
    %c7_194 = arith.constant 7 : index
    %c5_195 = arith.constant 5 : index
    %c0_196 = arith.constant 0 : index
    %c0_197 = arith.constant 0 : index
    %377 = vector.load %arg4[%c7_194, %c5_195, %c0_196, %c0_197] : memref<9x6x6x1xf32, #tpu.memory_space<vmem>>, vector<1x1x6x1xf32>
    %378 = vector.shape_cast %377 : vector<1x1x6x1xf32> to vector<6x1xf32>
    %379 = vector.extract_strided_slice %355 {offsets = [3, 0], sizes = [1, 256], strides = [1, 1]} : vector<4x256xf32> to vector<1x256xf32>
    %380 = vector.broadcast %378 : vector<6x1xf32> to vector<6x256xf32>
    %381 = vector.broadcast %379 : vector<1x256xf32> to vector<6x256xf32>
    %382 = arith.mulf %380, %381 : vector<6x256xf32>
    %383 = arith.addf %376, %382 : vector<6x256xf32>
    %384 = vector.extract_strided_slice %10 {offsets = [0, 145], sizes = [2, 256], strides = [1, 1]} : vector<2x512xf32> to vector<2x256xf32>
    %385 = vector.broadcast %3 : vector<1x256xf32> to vector<2x256xf32>
    %386 = arith.mulf %384, %385 : vector<2x256xf32>
    %c8 = arith.constant 8 : index
    %c0_198 = arith.constant 0 : index
    %c0_199 = arith.constant 0 : index
    %c0_200 = arith.constant 0 : index
    %387 = vector.load %arg4[%c8, %c0_198, %c0_199, %c0_200] : memref<9x6x6x1xf32, #tpu.memory_space<vmem>>, vector<1x1x6x1xf32>
    %388 = vector.shape_cast %387 : vector<1x1x6x1xf32> to vector<6x1xf32>
    %389 = vector.extract_strided_slice %386 {offsets = [0, 0], sizes = [1, 256], strides = [1, 1]} : vector<2x256xf32> to vector<1x256xf32>
    %390 = vector.broadcast %388 : vector<6x1xf32> to vector<6x256xf32>
    %391 = vector.broadcast %389 : vector<1x256xf32> to vector<6x256xf32>
    %392 = arith.mulf %390, %391 : vector<6x256xf32>
    %393 = arith.addf %383, %392 : vector<6x256xf32>
    %c8_201 = arith.constant 8 : index
    %c1_202 = arith.constant 1 : index
    %c0_203 = arith.constant 0 : index
    %c0_204 = arith.constant 0 : index
    %394 = vector.load %arg4[%c8_201, %c1_202, %c0_203, %c0_204] : memref<9x6x6x1xf32, #tpu.memory_space<vmem>>, vector<1x1x6x1xf32>
    %395 = vector.shape_cast %394 : vector<1x1x6x1xf32> to vector<6x1xf32>
    %396 = vector.extract_strided_slice %386 {offsets = [1, 0], sizes = [1, 256], strides = [1, 1]} : vector<2x256xf32> to vector<1x256xf32>
    %397 = vector.broadcast %395 : vector<6x1xf32> to vector<6x256xf32>
    %398 = vector.broadcast %396 : vector<1x256xf32> to vector<6x256xf32>
    %399 = arith.mulf %397, %398 : vector<6x256xf32>
    %400 = arith.addf %393, %399 : vector<6x256xf32>
    %401 = vector.extract_strided_slice %12 {offsets = [0, 145], sizes = [4, 256], strides = [1, 1]} : vector<4x512xf32> to vector<4x256xf32>
    %402 = vector.broadcast %3 : vector<1x256xf32> to vector<4x256xf32>
    %403 = arith.mulf %401, %402 : vector<4x256xf32>
    %c8_205 = arith.constant 8 : index
    %c2_206 = arith.constant 2 : index
    %c0_207 = arith.constant 0 : index
    %c0_208 = arith.constant 0 : index
    %404 = vector.load %arg4[%c8_205, %c2_206, %c0_207, %c0_208] : memref<9x6x6x1xf32, #tpu.memory_space<vmem>>, vector<1x1x6x1xf32>
    %405 = vector.shape_cast %404 : vector<1x1x6x1xf32> to vector<6x1xf32>
    %406 = vector.extract_strided_slice %403 {offsets = [0, 0], sizes = [1, 256], strides = [1, 1]} : vector<4x256xf32> to vector<1x256xf32>
    %407 = vector.broadcast %405 : vector<6x1xf32> to vector<6x256xf32>
    %408 = vector.broadcast %406 : vector<1x256xf32> to vector<6x256xf32>
    %409 = arith.mulf %407, %408 : vector<6x256xf32>
    %410 = arith.addf %400, %409 : vector<6x256xf32>
    %c8_209 = arith.constant 8 : index
    %c3_210 = arith.constant 3 : index
    %c0_211 = arith.constant 0 : index
    %c0_212 = arith.constant 0 : index
    %411 = vector.load %arg4[%c8_209, %c3_210, %c0_211, %c0_212] : memref<9x6x6x1xf32, #tpu.memory_space<vmem>>, vector<1x1x6x1xf32>
    %412 = vector.shape_cast %411 : vector<1x1x6x1xf32> to vector<6x1xf32>
    %413 = vector.extract_strided_slice %403 {offsets = [1, 0], sizes = [1, 256], strides = [1, 1]} : vector<4x256xf32> to vector<1x256xf32>
    %414 = vector.broadcast %412 : vector<6x1xf32> to vector<6x256xf32>
    %415 = vector.broadcast %413 : vector<1x256xf32> to vector<6x256xf32>
    %416 = arith.mulf %414, %415 : vector<6x256xf32>
    %417 = arith.addf %410, %416 : vector<6x256xf32>
    %c8_213 = arith.constant 8 : index
    %c4_214 = arith.constant 4 : index
    %c0_215 = arith.constant 0 : index
    %c0_216 = arith.constant 0 : index
    %418 = vector.load %arg4[%c8_213, %c4_214, %c0_215, %c0_216] : memref<9x6x6x1xf32, #tpu.memory_space<vmem>>, vector<1x1x6x1xf32>
    %419 = vector.shape_cast %418 : vector<1x1x6x1xf32> to vector<6x1xf32>
    %420 = vector.extract_strided_slice %403 {offsets = [2, 0], sizes = [1, 256], strides = [1, 1]} : vector<4x256xf32> to vector<1x256xf32>
    %421 = vector.broadcast %419 : vector<6x1xf32> to vector<6x256xf32>
    %422 = vector.broadcast %420 : vector<1x256xf32> to vector<6x256xf32>
    %423 = arith.mulf %421, %422 : vector<6x256xf32>
    %424 = arith.addf %417, %423 : vector<6x256xf32>
    %c8_217 = arith.constant 8 : index
    %c5_218 = arith.constant 5 : index
    %c0_219 = arith.constant 0 : index
    %c0_220 = arith.constant 0 : index
    %425 = vector.load %arg4[%c8_217, %c5_218, %c0_219, %c0_220] : memref<9x6x6x1xf32, #tpu.memory_space<vmem>>, vector<1x1x6x1xf32>
    %426 = vector.shape_cast %425 : vector<1x1x6x1xf32> to vector<6x1xf32>
    %427 = vector.extract_strided_slice %403 {offsets = [3, 0], sizes = [1, 256], strides = [1, 1]} : vector<4x256xf32> to vector<1x256xf32>
    %428 = vector.broadcast %426 : vector<6x1xf32> to vector<6x256xf32>
    %429 = vector.broadcast %427 : vector<1x256xf32> to vector<6x256xf32>
    %430 = arith.mulf %428, %429 : vector<6x256xf32>
    %431 = arith.addf %424, %430 : vector<6x256xf32>
    %c0_221 = arith.constant 0 : index
    %c0_222 = arith.constant 0 : index
    %432 = vector.load %arg5[%c0_221, %c0_222] : memref<6x1xf32, #tpu.memory_space<vmem>>, vector<6x1xf32>
    %433 = vector.broadcast %432 : vector<6x1xf32> to vector<6x256xf32>
    %434 = arith.addf %431, %433 : vector<6x256xf32>
    %435 = vector.extract_strided_slice %434 {offsets = [0, 0], sizes = [3, 256], strides = [1, 1]} : vector<6x256xf32> to vector<3x256xf32>
    %436 = vector.extract_strided_slice %434 {offsets = [3, 0], sizes = [3, 256], strides = [1, 1]} : vector<6x256xf32> to vector<3x256xf32>
    %437 = arith.mulf %435, %436 : vector<3x256xf32>
    %cst_223 = arith.constant 0.000000e+00 : f32
    %438 = vector.broadcast %cst_223 : f32 to vector<3x128xf32>
    %439 = tpu.concatenate %438, %437, %438 in 1 : vector<3x128xf32>, vector<3x256xf32>, vector<3x128xf32> -> vector<3x512xf32>
    %cst_224 = arith.constant 0.000000e+00 : f32
    %440 = vector.broadcast %cst_224 : f32 to vector<4x256xf32>
    %441 = vector.extract_strided_slice %439 {offsets = [0, 111], sizes = [3, 256], strides = [1, 1]} : vector<3x512xf32> to vector<3x256xf32>
    %442 = vector.broadcast %1 : vector<1x256xf32> to vector<3x256xf32>
    %443 = arith.mulf %441, %442 : vector<3x256xf32>
    %c0_225 = arith.constant 0 : index
    %c0_226 = arith.constant 0 : index
    %c0_227 = arith.constant 0 : index
    %c0_228 = arith.constant 0 : index
    %444 = vector.load %arg6[%c0_225, %c0_226, %c0_227, %c0_228] : memref<9x3x4x1xf32, #tpu.memory_space<vmem>>, vector<1x1x4x1xf32>
    %445 = vector.shape_cast %444 : vector<1x1x4x1xf32> to vector<4x1xf32>
    %446 = vector.extract_strided_slice %443 {offsets = [0, 0], sizes = [1, 256], strides = [1, 1]} : vector<3x256xf32> to vector<1x256xf32>
    %447 = vector.broadcast %445 : vector<4x1xf32> to vector<4x256xf32>
    %448 = vector.broadcast %446 : vector<1x256xf32> to vector<4x256xf32>
    %449 = arith.mulf %447, %448 : vector<4x256xf32>
    %450 = arith.addf %440, %449 : vector<4x256xf32>
    %c0_229 = arith.constant 0 : index
    %c1_230 = arith.constant 1 : index
    %c0_231 = arith.constant 0 : index
    %c0_232 = arith.constant 0 : index
    %451 = vector.load %arg6[%c0_229, %c1_230, %c0_231, %c0_232] : memref<9x3x4x1xf32, #tpu.memory_space<vmem>>, vector<1x1x4x1xf32>
    %452 = vector.shape_cast %451 : vector<1x1x4x1xf32> to vector<4x1xf32>
    %453 = vector.extract_strided_slice %443 {offsets = [1, 0], sizes = [1, 256], strides = [1, 1]} : vector<3x256xf32> to vector<1x256xf32>
    %454 = vector.broadcast %452 : vector<4x1xf32> to vector<4x256xf32>
    %455 = vector.broadcast %453 : vector<1x256xf32> to vector<4x256xf32>
    %456 = arith.mulf %454, %455 : vector<4x256xf32>
    %457 = arith.addf %450, %456 : vector<4x256xf32>
    %c0_233 = arith.constant 0 : index
    %c2_234 = arith.constant 2 : index
    %c0_235 = arith.constant 0 : index
    %c0_236 = arith.constant 0 : index
    %458 = vector.load %arg6[%c0_233, %c2_234, %c0_235, %c0_236] : memref<9x3x4x1xf32, #tpu.memory_space<vmem>>, vector<1x1x4x1xf32>
    %459 = vector.shape_cast %458 : vector<1x1x4x1xf32> to vector<4x1xf32>
    %460 = vector.extract_strided_slice %443 {offsets = [2, 0], sizes = [1, 256], strides = [1, 1]} : vector<3x256xf32> to vector<1x256xf32>
    %461 = vector.broadcast %459 : vector<4x1xf32> to vector<4x256xf32>
    %462 = vector.broadcast %460 : vector<1x256xf32> to vector<4x256xf32>
    %463 = arith.mulf %461, %462 : vector<4x256xf32>
    %464 = arith.addf %457, %463 : vector<4x256xf32>
    %465 = vector.extract_strided_slice %439 {offsets = [0, 112], sizes = [3, 256], strides = [1, 1]} : vector<3x512xf32> to vector<3x256xf32>
    %c1_237 = arith.constant 1 : index
    %c0_238 = arith.constant 0 : index
    %c0_239 = arith.constant 0 : index
    %c0_240 = arith.constant 0 : index
    %466 = vector.load %arg6[%c1_237, %c0_238, %c0_239, %c0_240] : memref<9x3x4x1xf32, #tpu.memory_space<vmem>>, vector<1x1x4x1xf32>
    %467 = vector.shape_cast %466 : vector<1x1x4x1xf32> to vector<4x1xf32>
    %468 = vector.extract_strided_slice %465 {offsets = [0, 0], sizes = [1, 256], strides = [1, 1]} : vector<3x256xf32> to vector<1x256xf32>
    %469 = vector.broadcast %467 : vector<4x1xf32> to vector<4x256xf32>
    %470 = vector.broadcast %468 : vector<1x256xf32> to vector<4x256xf32>
    %471 = arith.mulf %469, %470 : vector<4x256xf32>
    %472 = arith.addf %464, %471 : vector<4x256xf32>
    %c1_241 = arith.constant 1 : index
    %c1_242 = arith.constant 1 : index
    %c0_243 = arith.constant 0 : index
    %c0_244 = arith.constant 0 : index
    %473 = vector.load %arg6[%c1_241, %c1_242, %c0_243, %c0_244] : memref<9x3x4x1xf32, #tpu.memory_space<vmem>>, vector<1x1x4x1xf32>
    %474 = vector.shape_cast %473 : vector<1x1x4x1xf32> to vector<4x1xf32>
    %475 = vector.extract_strided_slice %465 {offsets = [1, 0], sizes = [1, 256], strides = [1, 1]} : vector<3x256xf32> to vector<1x256xf32>
    %476 = vector.broadcast %474 : vector<4x1xf32> to vector<4x256xf32>
    %477 = vector.broadcast %475 : vector<1x256xf32> to vector<4x256xf32>
    %478 = arith.mulf %476, %477 : vector<4x256xf32>
    %479 = arith.addf %472, %478 : vector<4x256xf32>
    %c1_245 = arith.constant 1 : index
    %c2_246 = arith.constant 2 : index
    %c0_247 = arith.constant 0 : index
    %c0_248 = arith.constant 0 : index
    %480 = vector.load %arg6[%c1_245, %c2_246, %c0_247, %c0_248] : memref<9x3x4x1xf32, #tpu.memory_space<vmem>>, vector<1x1x4x1xf32>
    %481 = vector.shape_cast %480 : vector<1x1x4x1xf32> to vector<4x1xf32>
    %482 = vector.extract_strided_slice %465 {offsets = [2, 0], sizes = [1, 256], strides = [1, 1]} : vector<3x256xf32> to vector<1x256xf32>
    %483 = vector.broadcast %481 : vector<4x1xf32> to vector<4x256xf32>
    %484 = vector.broadcast %482 : vector<1x256xf32> to vector<4x256xf32>
    %485 = arith.mulf %483, %484 : vector<4x256xf32>
    %486 = arith.addf %479, %485 : vector<4x256xf32>
    %487 = vector.extract_strided_slice %439 {offsets = [0, 113], sizes = [3, 256], strides = [1, 1]} : vector<3x512xf32> to vector<3x256xf32>
    %488 = vector.broadcast %3 : vector<1x256xf32> to vector<3x256xf32>
    %489 = arith.mulf %487, %488 : vector<3x256xf32>
    %c2_249 = arith.constant 2 : index
    %c0_250 = arith.constant 0 : index
    %c0_251 = arith.constant 0 : index
    %c0_252 = arith.constant 0 : index
    %490 = vector.load %arg6[%c2_249, %c0_250, %c0_251, %c0_252] : memref<9x3x4x1xf32, #tpu.memory_space<vmem>>, vector<1x1x4x1xf32>
    %491 = vector.shape_cast %490 : vector<1x1x4x1xf32> to vector<4x1xf32>
    %492 = vector.extract_strided_slice %489 {offsets = [0, 0], sizes = [1, 256], strides = [1, 1]} : vector<3x256xf32> to vector<1x256xf32>
    %493 = vector.broadcast %491 : vector<4x1xf32> to vector<4x256xf32>
    %494 = vector.broadcast %492 : vector<1x256xf32> to vector<4x256xf32>
    %495 = arith.mulf %493, %494 : vector<4x256xf32>
    %496 = arith.addf %486, %495 : vector<4x256xf32>
    %c2_253 = arith.constant 2 : index
    %c1_254 = arith.constant 1 : index
    %c0_255 = arith.constant 0 : index
    %c0_256 = arith.constant 0 : index
    %497 = vector.load %arg6[%c2_253, %c1_254, %c0_255, %c0_256] : memref<9x3x4x1xf32, #tpu.memory_space<vmem>>, vector<1x1x4x1xf32>
    %498 = vector.shape_cast %497 : vector<1x1x4x1xf32> to vector<4x1xf32>
    %499 = vector.extract_strided_slice %489 {offsets = [1, 0], sizes = [1, 256], strides = [1, 1]} : vector<3x256xf32> to vector<1x256xf32>
    %500 = vector.broadcast %498 : vector<4x1xf32> to vector<4x256xf32>
    %501 = vector.broadcast %499 : vector<1x256xf32> to vector<4x256xf32>
    %502 = arith.mulf %500, %501 : vector<4x256xf32>
    %503 = arith.addf %496, %502 : vector<4x256xf32>
    %c2_257 = arith.constant 2 : index
    %c2_258 = arith.constant 2 : index
    %c0_259 = arith.constant 0 : index
    %c0_260 = arith.constant 0 : index
    %504 = vector.load %arg6[%c2_257, %c2_258, %c0_259, %c0_260] : memref<9x3x4x1xf32, #tpu.memory_space<vmem>>, vector<1x1x4x1xf32>
    %505 = vector.shape_cast %504 : vector<1x1x4x1xf32> to vector<4x1xf32>
    %506 = vector.extract_strided_slice %489 {offsets = [2, 0], sizes = [1, 256], strides = [1, 1]} : vector<3x256xf32> to vector<1x256xf32>
    %507 = vector.broadcast %505 : vector<4x1xf32> to vector<4x256xf32>
    %508 = vector.broadcast %506 : vector<1x256xf32> to vector<4x256xf32>
    %509 = arith.mulf %507, %508 : vector<4x256xf32>
    %510 = arith.addf %503, %509 : vector<4x256xf32>
    %511 = vector.extract_strided_slice %439 {offsets = [0, 127], sizes = [3, 256], strides = [1, 1]} : vector<3x512xf32> to vector<3x256xf32>
    %512 = vector.broadcast %1 : vector<1x256xf32> to vector<3x256xf32>
    %513 = arith.mulf %511, %512 : vector<3x256xf32>
    %c3_261 = arith.constant 3 : index
    %c0_262 = arith.constant 0 : index
    %c0_263 = arith.constant 0 : index
    %c0_264 = arith.constant 0 : index
    %514 = vector.load %arg6[%c3_261, %c0_262, %c0_263, %c0_264] : memref<9x3x4x1xf32, #tpu.memory_space<vmem>>, vector<1x1x4x1xf32>
    %515 = vector.shape_cast %514 : vector<1x1x4x1xf32> to vector<4x1xf32>
    %516 = vector.extract_strided_slice %513 {offsets = [0, 0], sizes = [1, 256], strides = [1, 1]} : vector<3x256xf32> to vector<1x256xf32>
    %517 = vector.broadcast %515 : vector<4x1xf32> to vector<4x256xf32>
    %518 = vector.broadcast %516 : vector<1x256xf32> to vector<4x256xf32>
    %519 = arith.mulf %517, %518 : vector<4x256xf32>
    %520 = arith.addf %510, %519 : vector<4x256xf32>
    %c3_265 = arith.constant 3 : index
    %c1_266 = arith.constant 1 : index
    %c0_267 = arith.constant 0 : index
    %c0_268 = arith.constant 0 : index
    %521 = vector.load %arg6[%c3_265, %c1_266, %c0_267, %c0_268] : memref<9x3x4x1xf32, #tpu.memory_space<vmem>>, vector<1x1x4x1xf32>
    %522 = vector.shape_cast %521 : vector<1x1x4x1xf32> to vector<4x1xf32>
    %523 = vector.extract_strided_slice %513 {offsets = [1, 0], sizes = [1, 256], strides = [1, 1]} : vector<3x256xf32> to vector<1x256xf32>
    %524 = vector.broadcast %522 : vector<4x1xf32> to vector<4x256xf32>
    %525 = vector.broadcast %523 : vector<1x256xf32> to vector<4x256xf32>
    %526 = arith.mulf %524, %525 : vector<4x256xf32>
    %527 = arith.addf %520, %526 : vector<4x256xf32>
    %c3_269 = arith.constant 3 : index
    %c2_270 = arith.constant 2 : index
    %c0_271 = arith.constant 0 : index
    %c0_272 = arith.constant 0 : index
    %528 = vector.load %arg6[%c3_269, %c2_270, %c0_271, %c0_272] : memref<9x3x4x1xf32, #tpu.memory_space<vmem>>, vector<1x1x4x1xf32>
    %529 = vector.shape_cast %528 : vector<1x1x4x1xf32> to vector<4x1xf32>
    %530 = vector.extract_strided_slice %513 {offsets = [2, 0], sizes = [1, 256], strides = [1, 1]} : vector<3x256xf32> to vector<1x256xf32>
    %531 = vector.broadcast %529 : vector<4x1xf32> to vector<4x256xf32>
    %532 = vector.broadcast %530 : vector<1x256xf32> to vector<4x256xf32>
    %533 = arith.mulf %531, %532 : vector<4x256xf32>
    %534 = arith.addf %527, %533 : vector<4x256xf32>
    %c4_273 = arith.constant 4 : index
    %c0_274 = arith.constant 0 : index
    %c0_275 = arith.constant 0 : index
    %c0_276 = arith.constant 0 : index
    %535 = vector.load %arg6[%c4_273, %c0_274, %c0_275, %c0_276] : memref<9x3x4x1xf32, #tpu.memory_space<vmem>>, vector<1x1x4x1xf32>
    %536 = vector.shape_cast %535 : vector<1x1x4x1xf32> to vector<4x1xf32>
    %537 = vector.extract_strided_slice %437 {offsets = [0, 0], sizes = [1, 256], strides = [1, 1]} : vector<3x256xf32> to vector<1x256xf32>
    %538 = vector.broadcast %536 : vector<4x1xf32> to vector<4x256xf32>
    %539 = vector.broadcast %537 : vector<1x256xf32> to vector<4x256xf32>
    %540 = arith.mulf %538, %539 : vector<4x256xf32>
    %541 = arith.addf %534, %540 : vector<4x256xf32>
    %c4_277 = arith.constant 4 : index
    %c1_278 = arith.constant 1 : index
    %c0_279 = arith.constant 0 : index
    %c0_280 = arith.constant 0 : index
    %542 = vector.load %arg6[%c4_277, %c1_278, %c0_279, %c0_280] : memref<9x3x4x1xf32, #tpu.memory_space<vmem>>, vector<1x1x4x1xf32>
    %543 = vector.shape_cast %542 : vector<1x1x4x1xf32> to vector<4x1xf32>
    %544 = vector.extract_strided_slice %437 {offsets = [1, 0], sizes = [1, 256], strides = [1, 1]} : vector<3x256xf32> to vector<1x256xf32>
    %545 = vector.broadcast %543 : vector<4x1xf32> to vector<4x256xf32>
    %546 = vector.broadcast %544 : vector<1x256xf32> to vector<4x256xf32>
    %547 = arith.mulf %545, %546 : vector<4x256xf32>
    %548 = arith.addf %541, %547 : vector<4x256xf32>
    %c4_281 = arith.constant 4 : index
    %c2_282 = arith.constant 2 : index
    %c0_283 = arith.constant 0 : index
    %c0_284 = arith.constant 0 : index
    %549 = vector.load %arg6[%c4_281, %c2_282, %c0_283, %c0_284] : memref<9x3x4x1xf32, #tpu.memory_space<vmem>>, vector<1x1x4x1xf32>
    %550 = vector.shape_cast %549 : vector<1x1x4x1xf32> to vector<4x1xf32>
    %551 = vector.extract_strided_slice %437 {offsets = [2, 0], sizes = [1, 256], strides = [1, 1]} : vector<3x256xf32> to vector<1x256xf32>
    %552 = vector.broadcast %550 : vector<4x1xf32> to vector<4x256xf32>
    %553 = vector.broadcast %551 : vector<1x256xf32> to vector<4x256xf32>
    %554 = arith.mulf %552, %553 : vector<4x256xf32>
    %555 = arith.addf %548, %554 : vector<4x256xf32>
    %556 = vector.extract_strided_slice %439 {offsets = [0, 129], sizes = [3, 256], strides = [1, 1]} : vector<3x512xf32> to vector<3x256xf32>
    %557 = vector.broadcast %3 : vector<1x256xf32> to vector<3x256xf32>
    %558 = arith.mulf %556, %557 : vector<3x256xf32>
    %c5_285 = arith.constant 5 : index
    %c0_286 = arith.constant 0 : index
    %c0_287 = arith.constant 0 : index
    %c0_288 = arith.constant 0 : index
    %559 = vector.load %arg6[%c5_285, %c0_286, %c0_287, %c0_288] : memref<9x3x4x1xf32, #tpu.memory_space<vmem>>, vector<1x1x4x1xf32>
    %560 = vector.shape_cast %559 : vector<1x1x4x1xf32> to vector<4x1xf32>
    %561 = vector.extract_strided_slice %558 {offsets = [0, 0], sizes = [1, 256], strides = [1, 1]} : vector<3x256xf32> to vector<1x256xf32>
    %562 = vector.broadcast %560 : vector<4x1xf32> to vector<4x256xf32>
    %563 = vector.broadcast %561 : vector<1x256xf32> to vector<4x256xf32>
    %564 = arith.mulf %562, %563 : vector<4x256xf32>
    %565 = arith.addf %555, %564 : vector<4x256xf32>
    %c5_289 = arith.constant 5 : index
    %c1_290 = arith.constant 1 : index
    %c0_291 = arith.constant 0 : index
    %c0_292 = arith.constant 0 : index
    %566 = vector.load %arg6[%c5_289, %c1_290, %c0_291, %c0_292] : memref<9x3x4x1xf32, #tpu.memory_space<vmem>>, vector<1x1x4x1xf32>
    %567 = vector.shape_cast %566 : vector<1x1x4x1xf32> to vector<4x1xf32>
    %568 = vector.extract_strided_slice %558 {offsets = [1, 0], sizes = [1, 256], strides = [1, 1]} : vector<3x256xf32> to vector<1x256xf32>
    %569 = vector.broadcast %567 : vector<4x1xf32> to vector<4x256xf32>
    %570 = vector.broadcast %568 : vector<1x256xf32> to vector<4x256xf32>
    %571 = arith.mulf %569, %570 : vector<4x256xf32>
    %572 = arith.addf %565, %571 : vector<4x256xf32>
    %c5_293 = arith.constant 5 : index
    %c2_294 = arith.constant 2 : index
    %c0_295 = arith.constant 0 : index
    %c0_296 = arith.constant 0 : index
    %573 = vector.load %arg6[%c5_293, %c2_294, %c0_295, %c0_296] : memref<9x3x4x1xf32, #tpu.memory_space<vmem>>, vector<1x1x4x1xf32>
    %574 = vector.shape_cast %573 : vector<1x1x4x1xf32> to vector<4x1xf32>
    %575 = vector.extract_strided_slice %558 {offsets = [2, 0], sizes = [1, 256], strides = [1, 1]} : vector<3x256xf32> to vector<1x256xf32>
    %576 = vector.broadcast %574 : vector<4x1xf32> to vector<4x256xf32>
    %577 = vector.broadcast %575 : vector<1x256xf32> to vector<4x256xf32>
    %578 = arith.mulf %576, %577 : vector<4x256xf32>
    %579 = arith.addf %572, %578 : vector<4x256xf32>
    %580 = vector.extract_strided_slice %439 {offsets = [0, 143], sizes = [3, 256], strides = [1, 1]} : vector<3x512xf32> to vector<3x256xf32>
    %581 = vector.broadcast %1 : vector<1x256xf32> to vector<3x256xf32>
    %582 = arith.mulf %580, %581 : vector<3x256xf32>
    %c6_297 = arith.constant 6 : index
    %c0_298 = arith.constant 0 : index
    %c0_299 = arith.constant 0 : index
    %c0_300 = arith.constant 0 : index
    %583 = vector.load %arg6[%c6_297, %c0_298, %c0_299, %c0_300] : memref<9x3x4x1xf32, #tpu.memory_space<vmem>>, vector<1x1x4x1xf32>
    %584 = vector.shape_cast %583 : vector<1x1x4x1xf32> to vector<4x1xf32>
    %585 = vector.extract_strided_slice %582 {offsets = [0, 0], sizes = [1, 256], strides = [1, 1]} : vector<3x256xf32> to vector<1x256xf32>
    %586 = vector.broadcast %584 : vector<4x1xf32> to vector<4x256xf32>
    %587 = vector.broadcast %585 : vector<1x256xf32> to vector<4x256xf32>
    %588 = arith.mulf %586, %587 : vector<4x256xf32>
    %589 = arith.addf %579, %588 : vector<4x256xf32>
    %c6_301 = arith.constant 6 : index
    %c1_302 = arith.constant 1 : index
    %c0_303 = arith.constant 0 : index
    %c0_304 = arith.constant 0 : index
    %590 = vector.load %arg6[%c6_301, %c1_302, %c0_303, %c0_304] : memref<9x3x4x1xf32, #tpu.memory_space<vmem>>, vector<1x1x4x1xf32>
    %591 = vector.shape_cast %590 : vector<1x1x4x1xf32> to vector<4x1xf32>
    %592 = vector.extract_strided_slice %582 {offsets = [1, 0], sizes = [1, 256], strides = [1, 1]} : vector<3x256xf32> to vector<1x256xf32>
    %593 = vector.broadcast %591 : vector<4x1xf32> to vector<4x256xf32>
    %594 = vector.broadcast %592 : vector<1x256xf32> to vector<4x256xf32>
    %595 = arith.mulf %593, %594 : vector<4x256xf32>
    %596 = arith.addf %589, %595 : vector<4x256xf32>
    %c6_305 = arith.constant 6 : index
    %c2_306 = arith.constant 2 : index
    %c0_307 = arith.constant 0 : index
    %c0_308 = arith.constant 0 : index
    %597 = vector.load %arg6[%c6_305, %c2_306, %c0_307, %c0_308] : memref<9x3x4x1xf32, #tpu.memory_space<vmem>>, vector<1x1x4x1xf32>
    %598 = vector.shape_cast %597 : vector<1x1x4x1xf32> to vector<4x1xf32>
    %599 = vector.extract_strided_slice %582 {offsets = [2, 0], sizes = [1, 256], strides = [1, 1]} : vector<3x256xf32> to vector<1x256xf32>
    %600 = vector.broadcast %598 : vector<4x1xf32> to vector<4x256xf32>
    %601 = vector.broadcast %599 : vector<1x256xf32> to vector<4x256xf32>
    %602 = arith.mulf %600, %601 : vector<4x256xf32>
    %603 = arith.addf %596, %602 : vector<4x256xf32>
    %604 = vector.extract_strided_slice %439 {offsets = [0, 144], sizes = [3, 256], strides = [1, 1]} : vector<3x512xf32> to vector<3x256xf32>
    %c7_309 = arith.constant 7 : index
    %c0_310 = arith.constant 0 : index
    %c0_311 = arith.constant 0 : index
    %c0_312 = arith.constant 0 : index
    %605 = vector.load %arg6[%c7_309, %c0_310, %c0_311, %c0_312] : memref<9x3x4x1xf32, #tpu.memory_space<vmem>>, vector<1x1x4x1xf32>
    %606 = vector.shape_cast %605 : vector<1x1x4x1xf32> to vector<4x1xf32>
    %607 = vector.extract_strided_slice %604 {offsets = [0, 0], sizes = [1, 256], strides = [1, 1]} : vector<3x256xf32> to vector<1x256xf32>
    %608 = vector.broadcast %606 : vector<4x1xf32> to vector<4x256xf32>
    %609 = vector.broadcast %607 : vector<1x256xf32> to vector<4x256xf32>
    %610 = arith.mulf %608, %609 : vector<4x256xf32>
    %611 = arith.addf %603, %610 : vector<4x256xf32>
    %c7_313 = arith.constant 7 : index
    %c1_314 = arith.constant 1 : index
    %c0_315 = arith.constant 0 : index
    %c0_316 = arith.constant 0 : index
    %612 = vector.load %arg6[%c7_313, %c1_314, %c0_315, %c0_316] : memref<9x3x4x1xf32, #tpu.memory_space<vmem>>, vector<1x1x4x1xf32>
    %613 = vector.shape_cast %612 : vector<1x1x4x1xf32> to vector<4x1xf32>
    %614 = vector.extract_strided_slice %604 {offsets = [1, 0], sizes = [1, 256], strides = [1, 1]} : vector<3x256xf32> to vector<1x256xf32>
    %615 = vector.broadcast %613 : vector<4x1xf32> to vector<4x256xf32>
    %616 = vector.broadcast %614 : vector<1x256xf32> to vector<4x256xf32>
    %617 = arith.mulf %615, %616 : vector<4x256xf32>
    %618 = arith.addf %611, %617 : vector<4x256xf32>
    %c7_317 = arith.constant 7 : index
    %c2_318 = arith.constant 2 : index
    %c0_319 = arith.constant 0 : index
    %c0_320 = arith.constant 0 : index
    %619 = vector.load %arg6[%c7_317, %c2_318, %c0_319, %c0_320] : memref<9x3x4x1xf32, #tpu.memory_space<vmem>>, vector<1x1x4x1xf32>
    %620 = vector.shape_cast %619 : vector<1x1x4x1xf32> to vector<4x1xf32>
    %621 = vector.extract_strided_slice %604 {offsets = [2, 0], sizes = [1, 256], strides = [1, 1]} : vector<3x256xf32> to vector<1x256xf32>
    %622 = vector.broadcast %620 : vector<4x1xf32> to vector<4x256xf32>
    %623 = vector.broadcast %621 : vector<1x256xf32> to vector<4x256xf32>
    %624 = arith.mulf %622, %623 : vector<4x256xf32>
    %625 = arith.addf %618, %624 : vector<4x256xf32>
    %626 = vector.extract_strided_slice %439 {offsets = [0, 145], sizes = [3, 256], strides = [1, 1]} : vector<3x512xf32> to vector<3x256xf32>
    %627 = vector.broadcast %3 : vector<1x256xf32> to vector<3x256xf32>
    %628 = arith.mulf %626, %627 : vector<3x256xf32>
    %c8_321 = arith.constant 8 : index
    %c0_322 = arith.constant 0 : index
    %c0_323 = arith.constant 0 : index
    %c0_324 = arith.constant 0 : index
    %629 = vector.load %arg6[%c8_321, %c0_322, %c0_323, %c0_324] : memref<9x3x4x1xf32, #tpu.memory_space<vmem>>, vector<1x1x4x1xf32>
    %630 = vector.shape_cast %629 : vector<1x1x4x1xf32> to vector<4x1xf32>
    %631 = vector.extract_strided_slice %628 {offsets = [0, 0], sizes = [1, 256], strides = [1, 1]} : vector<3x256xf32> to vector<1x256xf32>
    %632 = vector.broadcast %630 : vector<4x1xf32> to vector<4x256xf32>
    %633 = vector.broadcast %631 : vector<1x256xf32> to vector<4x256xf32>
    %634 = arith.mulf %632, %633 : vector<4x256xf32>
    %635 = arith.addf %625, %634 : vector<4x256xf32>
    %c8_325 = arith.constant 8 : index
    %c1_326 = arith.constant 1 : index
    %c0_327 = arith.constant 0 : index
    %c0_328 = arith.constant 0 : index
    %636 = vector.load %arg6[%c8_325, %c1_326, %c0_327, %c0_328] : memref<9x3x4x1xf32, #tpu.memory_space<vmem>>, vector<1x1x4x1xf32>
    %637 = vector.shape_cast %636 : vector<1x1x4x1xf32> to vector<4x1xf32>
    %638 = vector.extract_strided_slice %628 {offsets = [1, 0], sizes = [1, 256], strides = [1, 1]} : vector<3x256xf32> to vector<1x256xf32>
    %639 = vector.broadcast %637 : vector<4x1xf32> to vector<4x256xf32>
    %640 = vector.broadcast %638 : vector<1x256xf32> to vector<4x256xf32>
    %641 = arith.mulf %639, %640 : vector<4x256xf32>
    %642 = arith.addf %635, %641 : vector<4x256xf32>
    %c8_329 = arith.constant 8 : index
    %c2_330 = arith.constant 2 : index
    %c0_331 = arith.constant 0 : index
    %c0_332 = arith.constant 0 : index
    %643 = vector.load %arg6[%c8_329, %c2_330, %c0_331, %c0_332] : memref<9x3x4x1xf32, #tpu.memory_space<vmem>>, vector<1x1x4x1xf32>
    %644 = vector.shape_cast %643 : vector<1x1x4x1xf32> to vector<4x1xf32>
    %645 = vector.extract_strided_slice %628 {offsets = [2, 0], sizes = [1, 256], strides = [1, 1]} : vector<3x256xf32> to vector<1x256xf32>
    %646 = vector.broadcast %644 : vector<4x1xf32> to vector<4x256xf32>
    %647 = vector.broadcast %645 : vector<1x256xf32> to vector<4x256xf32>
    %648 = arith.mulf %646, %647 : vector<4x256xf32>
    %649 = arith.addf %642, %648 : vector<4x256xf32>
    %c0_333 = arith.constant 0 : index
    %c0_334 = arith.constant 0 : index
    %650 = vector.load %arg7[%c0_333, %c0_334] : memref<4x1xf32, #tpu.memory_space<vmem>>, vector<4x1xf32>
    %651 = vector.broadcast %650 : vector<4x1xf32> to vector<4x256xf32>
    %652 = arith.addf %649, %651 : vector<4x256xf32>
    %653 = vector.extract_strided_slice %5 {offsets = [2, 0], sizes = [2, 256], strides = [1, 1]} : vector<4x256xf32> to vector<2x256xf32>
    %cst_335 = arith.constant 0.000000e+00 : f32
    %654 = vector.broadcast %cst_335 : f32 to vector<4x128xf32>
    %655 = tpu.concatenate %654, %652, %654 in 1 : vector<4x128xf32>, vector<4x256xf32>, vector<4x128xf32> -> vector<4x512xf32>
    %cst_336 = arith.constant 0.000000e+00 : f32
    %656 = vector.broadcast %cst_336 : f32 to vector<2x128xf32>
    %657 = tpu.concatenate %656, %653, %656 in 1 : vector<2x128xf32>, vector<2x256xf32>, vector<2x128xf32> -> vector<2x512xf32>
    %cst_337 = arith.constant 0.000000e+00 : f32
    %658 = vector.broadcast %cst_337 : f32 to vector<6x256xf32>
    %659 = vector.extract_strided_slice %655 {offsets = [0, 111], sizes = [4, 256], strides = [1, 1]} : vector<4x512xf32> to vector<4x256xf32>
    %660 = vector.broadcast %1 : vector<1x256xf32> to vector<4x256xf32>
    %661 = arith.mulf %659, %660 : vector<4x256xf32>
    %c0_338 = arith.constant 0 : index
    %c0_339 = arith.constant 0 : index
    %c0_340 = arith.constant 0 : index
    %c0_341 = arith.constant 0 : index
    %662 = vector.load %arg8[%c0_338, %c0_339, %c0_340, %c0_341] : memref<9x6x6x1xf32, #tpu.memory_space<vmem>>, vector<1x1x6x1xf32>
    %663 = vector.shape_cast %662 : vector<1x1x6x1xf32> to vector<6x1xf32>
    %664 = vector.extract_strided_slice %661 {offsets = [0, 0], sizes = [1, 256], strides = [1, 1]} : vector<4x256xf32> to vector<1x256xf32>
    %665 = vector.broadcast %663 : vector<6x1xf32> to vector<6x256xf32>
    %666 = vector.broadcast %664 : vector<1x256xf32> to vector<6x256xf32>
    %667 = arith.mulf %665, %666 : vector<6x256xf32>
    %668 = arith.addf %658, %667 : vector<6x256xf32>
    %c0_342 = arith.constant 0 : index
    %c1_343 = arith.constant 1 : index
    %c0_344 = arith.constant 0 : index
    %c0_345 = arith.constant 0 : index
    %669 = vector.load %arg8[%c0_342, %c1_343, %c0_344, %c0_345] : memref<9x6x6x1xf32, #tpu.memory_space<vmem>>, vector<1x1x6x1xf32>
    %670 = vector.shape_cast %669 : vector<1x1x6x1xf32> to vector<6x1xf32>
    %671 = vector.extract_strided_slice %661 {offsets = [1, 0], sizes = [1, 256], strides = [1, 1]} : vector<4x256xf32> to vector<1x256xf32>
    %672 = vector.broadcast %670 : vector<6x1xf32> to vector<6x256xf32>
    %673 = vector.broadcast %671 : vector<1x256xf32> to vector<6x256xf32>
    %674 = arith.mulf %672, %673 : vector<6x256xf32>
    %675 = arith.addf %668, %674 : vector<6x256xf32>
    %c0_346 = arith.constant 0 : index
    %c2_347 = arith.constant 2 : index
    %c0_348 = arith.constant 0 : index
    %c0_349 = arith.constant 0 : index
    %676 = vector.load %arg8[%c0_346, %c2_347, %c0_348, %c0_349] : memref<9x6x6x1xf32, #tpu.memory_space<vmem>>, vector<1x1x6x1xf32>
    %677 = vector.shape_cast %676 : vector<1x1x6x1xf32> to vector<6x1xf32>
    %678 = vector.extract_strided_slice %661 {offsets = [2, 0], sizes = [1, 256], strides = [1, 1]} : vector<4x256xf32> to vector<1x256xf32>
    %679 = vector.broadcast %677 : vector<6x1xf32> to vector<6x256xf32>
    %680 = vector.broadcast %678 : vector<1x256xf32> to vector<6x256xf32>
    %681 = arith.mulf %679, %680 : vector<6x256xf32>
    %682 = arith.addf %675, %681 : vector<6x256xf32>
    %c0_350 = arith.constant 0 : index
    %c3_351 = arith.constant 3 : index
    %c0_352 = arith.constant 0 : index
    %c0_353 = arith.constant 0 : index
    %683 = vector.load %arg8[%c0_350, %c3_351, %c0_352, %c0_353] : memref<9x6x6x1xf32, #tpu.memory_space<vmem>>, vector<1x1x6x1xf32>
    %684 = vector.shape_cast %683 : vector<1x1x6x1xf32> to vector<6x1xf32>
    %685 = vector.extract_strided_slice %661 {offsets = [3, 0], sizes = [1, 256], strides = [1, 1]} : vector<4x256xf32> to vector<1x256xf32>
    %686 = vector.broadcast %684 : vector<6x1xf32> to vector<6x256xf32>
    %687 = vector.broadcast %685 : vector<1x256xf32> to vector<6x256xf32>
    %688 = arith.mulf %686, %687 : vector<6x256xf32>
    %689 = arith.addf %682, %688 : vector<6x256xf32>
    %690 = vector.extract_strided_slice %657 {offsets = [0, 111], sizes = [2, 256], strides = [1, 1]} : vector<2x512xf32> to vector<2x256xf32>
    %691 = vector.broadcast %1 : vector<1x256xf32> to vector<2x256xf32>
    %692 = arith.mulf %690, %691 : vector<2x256xf32>
    %c0_354 = arith.constant 0 : index
    %c4_355 = arith.constant 4 : index
    %c0_356 = arith.constant 0 : index
    %c0_357 = arith.constant 0 : index
    %693 = vector.load %arg8[%c0_354, %c4_355, %c0_356, %c0_357] : memref<9x6x6x1xf32, #tpu.memory_space<vmem>>, vector<1x1x6x1xf32>
    %694 = vector.shape_cast %693 : vector<1x1x6x1xf32> to vector<6x1xf32>
    %695 = vector.extract_strided_slice %692 {offsets = [0, 0], sizes = [1, 256], strides = [1, 1]} : vector<2x256xf32> to vector<1x256xf32>
    %696 = vector.broadcast %694 : vector<6x1xf32> to vector<6x256xf32>
    %697 = vector.broadcast %695 : vector<1x256xf32> to vector<6x256xf32>
    %698 = arith.mulf %696, %697 : vector<6x256xf32>
    %699 = arith.addf %689, %698 : vector<6x256xf32>
    %c0_358 = arith.constant 0 : index
    %c5_359 = arith.constant 5 : index
    %c0_360 = arith.constant 0 : index
    %c0_361 = arith.constant 0 : index
    %700 = vector.load %arg8[%c0_358, %c5_359, %c0_360, %c0_361] : memref<9x6x6x1xf32, #tpu.memory_space<vmem>>, vector<1x1x6x1xf32>
    %701 = vector.shape_cast %700 : vector<1x1x6x1xf32> to vector<6x1xf32>
    %702 = vector.extract_strided_slice %692 {offsets = [1, 0], sizes = [1, 256], strides = [1, 1]} : vector<2x256xf32> to vector<1x256xf32>
    %703 = vector.broadcast %701 : vector<6x1xf32> to vector<6x256xf32>
    %704 = vector.broadcast %702 : vector<1x256xf32> to vector<6x256xf32>
    %705 = arith.mulf %703, %704 : vector<6x256xf32>
    %706 = arith.addf %699, %705 : vector<6x256xf32>
    %707 = vector.extract_strided_slice %655 {offsets = [0, 112], sizes = [4, 256], strides = [1, 1]} : vector<4x512xf32> to vector<4x256xf32>
    %c1_362 = arith.constant 1 : index
    %c0_363 = arith.constant 0 : index
    %c0_364 = arith.constant 0 : index
    %c0_365 = arith.constant 0 : index
    %708 = vector.load %arg8[%c1_362, %c0_363, %c0_364, %c0_365] : memref<9x6x6x1xf32, #tpu.memory_space<vmem>>, vector<1x1x6x1xf32>
    %709 = vector.shape_cast %708 : vector<1x1x6x1xf32> to vector<6x1xf32>
    %710 = vector.extract_strided_slice %707 {offsets = [0, 0], sizes = [1, 256], strides = [1, 1]} : vector<4x256xf32> to vector<1x256xf32>
    %711 = vector.broadcast %709 : vector<6x1xf32> to vector<6x256xf32>
    %712 = vector.broadcast %710 : vector<1x256xf32> to vector<6x256xf32>
    %713 = arith.mulf %711, %712 : vector<6x256xf32>
    %714 = arith.addf %706, %713 : vector<6x256xf32>
    %c1_366 = arith.constant 1 : index
    %c1_367 = arith.constant 1 : index
    %c0_368 = arith.constant 0 : index
    %c0_369 = arith.constant 0 : index
    %715 = vector.load %arg8[%c1_366, %c1_367, %c0_368, %c0_369] : memref<9x6x6x1xf32, #tpu.memory_space<vmem>>, vector<1x1x6x1xf32>
    %716 = vector.shape_cast %715 : vector<1x1x6x1xf32> to vector<6x1xf32>
    %717 = vector.extract_strided_slice %707 {offsets = [1, 0], sizes = [1, 256], strides = [1, 1]} : vector<4x256xf32> to vector<1x256xf32>
    %718 = vector.broadcast %716 : vector<6x1xf32> to vector<6x256xf32>
    %719 = vector.broadcast %717 : vector<1x256xf32> to vector<6x256xf32>
    %720 = arith.mulf %718, %719 : vector<6x256xf32>
    %721 = arith.addf %714, %720 : vector<6x256xf32>
    %c1_370 = arith.constant 1 : index
    %c2_371 = arith.constant 2 : index
    %c0_372 = arith.constant 0 : index
    %c0_373 = arith.constant 0 : index
    %722 = vector.load %arg8[%c1_370, %c2_371, %c0_372, %c0_373] : memref<9x6x6x1xf32, #tpu.memory_space<vmem>>, vector<1x1x6x1xf32>
    %723 = vector.shape_cast %722 : vector<1x1x6x1xf32> to vector<6x1xf32>
    %724 = vector.extract_strided_slice %707 {offsets = [2, 0], sizes = [1, 256], strides = [1, 1]} : vector<4x256xf32> to vector<1x256xf32>
    %725 = vector.broadcast %723 : vector<6x1xf32> to vector<6x256xf32>
    %726 = vector.broadcast %724 : vector<1x256xf32> to vector<6x256xf32>
    %727 = arith.mulf %725, %726 : vector<6x256xf32>
    %728 = arith.addf %721, %727 : vector<6x256xf32>
    %c1_374 = arith.constant 1 : index
    %c3_375 = arith.constant 3 : index
    %c0_376 = arith.constant 0 : index
    %c0_377 = arith.constant 0 : index
    %729 = vector.load %arg8[%c1_374, %c3_375, %c0_376, %c0_377] : memref<9x6x6x1xf32, #tpu.memory_space<vmem>>, vector<1x1x6x1xf32>
    %730 = vector.shape_cast %729 : vector<1x1x6x1xf32> to vector<6x1xf32>
    %731 = vector.extract_strided_slice %707 {offsets = [3, 0], sizes = [1, 256], strides = [1, 1]} : vector<4x256xf32> to vector<1x256xf32>
    %732 = vector.broadcast %730 : vector<6x1xf32> to vector<6x256xf32>
    %733 = vector.broadcast %731 : vector<1x256xf32> to vector<6x256xf32>
    %734 = arith.mulf %732, %733 : vector<6x256xf32>
    %735 = arith.addf %728, %734 : vector<6x256xf32>
    %736 = vector.extract_strided_slice %657 {offsets = [0, 112], sizes = [2, 256], strides = [1, 1]} : vector<2x512xf32> to vector<2x256xf32>
    %c1_378 = arith.constant 1 : index
    %c4_379 = arith.constant 4 : index
    %c0_380 = arith.constant 0 : index
    %c0_381 = arith.constant 0 : index
    %737 = vector.load %arg8[%c1_378, %c4_379, %c0_380, %c0_381] : memref<9x6x6x1xf32, #tpu.memory_space<vmem>>, vector<1x1x6x1xf32>
    %738 = vector.shape_cast %737 : vector<1x1x6x1xf32> to vector<6x1xf32>
    %739 = vector.extract_strided_slice %736 {offsets = [0, 0], sizes = [1, 256], strides = [1, 1]} : vector<2x256xf32> to vector<1x256xf32>
    %740 = vector.broadcast %738 : vector<6x1xf32> to vector<6x256xf32>
    %741 = vector.broadcast %739 : vector<1x256xf32> to vector<6x256xf32>
    %742 = arith.mulf %740, %741 : vector<6x256xf32>
    %743 = arith.addf %735, %742 : vector<6x256xf32>
    %c1_382 = arith.constant 1 : index
    %c5_383 = arith.constant 5 : index
    %c0_384 = arith.constant 0 : index
    %c0_385 = arith.constant 0 : index
    %744 = vector.load %arg8[%c1_382, %c5_383, %c0_384, %c0_385] : memref<9x6x6x1xf32, #tpu.memory_space<vmem>>, vector<1x1x6x1xf32>
    %745 = vector.shape_cast %744 : vector<1x1x6x1xf32> to vector<6x1xf32>
    %746 = vector.extract_strided_slice %736 {offsets = [1, 0], sizes = [1, 256], strides = [1, 1]} : vector<2x256xf32> to vector<1x256xf32>
    %747 = vector.broadcast %745 : vector<6x1xf32> to vector<6x256xf32>
    %748 = vector.broadcast %746 : vector<1x256xf32> to vector<6x256xf32>
    %749 = arith.mulf %747, %748 : vector<6x256xf32>
    %750 = arith.addf %743, %749 : vector<6x256xf32>
    %751 = vector.extract_strided_slice %655 {offsets = [0, 113], sizes = [4, 256], strides = [1, 1]} : vector<4x512xf32> to vector<4x256xf32>
    %752 = vector.broadcast %3 : vector<1x256xf32> to vector<4x256xf32>
    %753 = arith.mulf %751, %752 : vector<4x256xf32>
    %c2_386 = arith.constant 2 : index
    %c0_387 = arith.constant 0 : index
    %c0_388 = arith.constant 0 : index
    %c0_389 = arith.constant 0 : index
    %754 = vector.load %arg8[%c2_386, %c0_387, %c0_388, %c0_389] : memref<9x6x6x1xf32, #tpu.memory_space<vmem>>, vector<1x1x6x1xf32>
    %755 = vector.shape_cast %754 : vector<1x1x6x1xf32> to vector<6x1xf32>
    %756 = vector.extract_strided_slice %753 {offsets = [0, 0], sizes = [1, 256], strides = [1, 1]} : vector<4x256xf32> to vector<1x256xf32>
    %757 = vector.broadcast %755 : vector<6x1xf32> to vector<6x256xf32>
    %758 = vector.broadcast %756 : vector<1x256xf32> to vector<6x256xf32>
    %759 = arith.mulf %757, %758 : vector<6x256xf32>
    %760 = arith.addf %750, %759 : vector<6x256xf32>
    %c2_390 = arith.constant 2 : index
    %c1_391 = arith.constant 1 : index
    %c0_392 = arith.constant 0 : index
    %c0_393 = arith.constant 0 : index
    %761 = vector.load %arg8[%c2_390, %c1_391, %c0_392, %c0_393] : memref<9x6x6x1xf32, #tpu.memory_space<vmem>>, vector<1x1x6x1xf32>
    %762 = vector.shape_cast %761 : vector<1x1x6x1xf32> to vector<6x1xf32>
    %763 = vector.extract_strided_slice %753 {offsets = [1, 0], sizes = [1, 256], strides = [1, 1]} : vector<4x256xf32> to vector<1x256xf32>
    %764 = vector.broadcast %762 : vector<6x1xf32> to vector<6x256xf32>
    %765 = vector.broadcast %763 : vector<1x256xf32> to vector<6x256xf32>
    %766 = arith.mulf %764, %765 : vector<6x256xf32>
    %767 = arith.addf %760, %766 : vector<6x256xf32>
    %c2_394 = arith.constant 2 : index
    %c2_395 = arith.constant 2 : index
    %c0_396 = arith.constant 0 : index
    %c0_397 = arith.constant 0 : index
    %768 = vector.load %arg8[%c2_394, %c2_395, %c0_396, %c0_397] : memref<9x6x6x1xf32, #tpu.memory_space<vmem>>, vector<1x1x6x1xf32>
    %769 = vector.shape_cast %768 : vector<1x1x6x1xf32> to vector<6x1xf32>
    %770 = vector.extract_strided_slice %753 {offsets = [2, 0], sizes = [1, 256], strides = [1, 1]} : vector<4x256xf32> to vector<1x256xf32>
    %771 = vector.broadcast %769 : vector<6x1xf32> to vector<6x256xf32>
    %772 = vector.broadcast %770 : vector<1x256xf32> to vector<6x256xf32>
    %773 = arith.mulf %771, %772 : vector<6x256xf32>
    %774 = arith.addf %767, %773 : vector<6x256xf32>
    %c2_398 = arith.constant 2 : index
    %c3_399 = arith.constant 3 : index
    %c0_400 = arith.constant 0 : index
    %c0_401 = arith.constant 0 : index
    %775 = vector.load %arg8[%c2_398, %c3_399, %c0_400, %c0_401] : memref<9x6x6x1xf32, #tpu.memory_space<vmem>>, vector<1x1x6x1xf32>
    %776 = vector.shape_cast %775 : vector<1x1x6x1xf32> to vector<6x1xf32>
    %777 = vector.extract_strided_slice %753 {offsets = [3, 0], sizes = [1, 256], strides = [1, 1]} : vector<4x256xf32> to vector<1x256xf32>
    %778 = vector.broadcast %776 : vector<6x1xf32> to vector<6x256xf32>
    %779 = vector.broadcast %777 : vector<1x256xf32> to vector<6x256xf32>
    %780 = arith.mulf %778, %779 : vector<6x256xf32>
    %781 = arith.addf %774, %780 : vector<6x256xf32>
    %782 = vector.extract_strided_slice %657 {offsets = [0, 113], sizes = [2, 256], strides = [1, 1]} : vector<2x512xf32> to vector<2x256xf32>
    %783 = vector.broadcast %3 : vector<1x256xf32> to vector<2x256xf32>
    %784 = arith.mulf %782, %783 : vector<2x256xf32>
    %c2_402 = arith.constant 2 : index
    %c4_403 = arith.constant 4 : index
    %c0_404 = arith.constant 0 : index
    %c0_405 = arith.constant 0 : index
    %785 = vector.load %arg8[%c2_402, %c4_403, %c0_404, %c0_405] : memref<9x6x6x1xf32, #tpu.memory_space<vmem>>, vector<1x1x6x1xf32>
    %786 = vector.shape_cast %785 : vector<1x1x6x1xf32> to vector<6x1xf32>
    %787 = vector.extract_strided_slice %784 {offsets = [0, 0], sizes = [1, 256], strides = [1, 1]} : vector<2x256xf32> to vector<1x256xf32>
    %788 = vector.broadcast %786 : vector<6x1xf32> to vector<6x256xf32>
    %789 = vector.broadcast %787 : vector<1x256xf32> to vector<6x256xf32>
    %790 = arith.mulf %788, %789 : vector<6x256xf32>
    %791 = arith.addf %781, %790 : vector<6x256xf32>
    %c2_406 = arith.constant 2 : index
    %c5_407 = arith.constant 5 : index
    %c0_408 = arith.constant 0 : index
    %c0_409 = arith.constant 0 : index
    %792 = vector.load %arg8[%c2_406, %c5_407, %c0_408, %c0_409] : memref<9x6x6x1xf32, #tpu.memory_space<vmem>>, vector<1x1x6x1xf32>
    %793 = vector.shape_cast %792 : vector<1x1x6x1xf32> to vector<6x1xf32>
    %794 = vector.extract_strided_slice %784 {offsets = [1, 0], sizes = [1, 256], strides = [1, 1]} : vector<2x256xf32> to vector<1x256xf32>
    %795 = vector.broadcast %793 : vector<6x1xf32> to vector<6x256xf32>
    %796 = vector.broadcast %794 : vector<1x256xf32> to vector<6x256xf32>
    %797 = arith.mulf %795, %796 : vector<6x256xf32>
    %798 = arith.addf %791, %797 : vector<6x256xf32>
    %799 = vector.extract_strided_slice %655 {offsets = [0, 127], sizes = [4, 256], strides = [1, 1]} : vector<4x512xf32> to vector<4x256xf32>
    %800 = vector.broadcast %1 : vector<1x256xf32> to vector<4x256xf32>
    %801 = arith.mulf %799, %800 : vector<4x256xf32>
    %c3_410 = arith.constant 3 : index
    %c0_411 = arith.constant 0 : index
    %c0_412 = arith.constant 0 : index
    %c0_413 = arith.constant 0 : index
    %802 = vector.load %arg8[%c3_410, %c0_411, %c0_412, %c0_413] : memref<9x6x6x1xf32, #tpu.memory_space<vmem>>, vector<1x1x6x1xf32>
    %803 = vector.shape_cast %802 : vector<1x1x6x1xf32> to vector<6x1xf32>
    %804 = vector.extract_strided_slice %801 {offsets = [0, 0], sizes = [1, 256], strides = [1, 1]} : vector<4x256xf32> to vector<1x256xf32>
    %805 = vector.broadcast %803 : vector<6x1xf32> to vector<6x256xf32>
    %806 = vector.broadcast %804 : vector<1x256xf32> to vector<6x256xf32>
    %807 = arith.mulf %805, %806 : vector<6x256xf32>
    %808 = arith.addf %798, %807 : vector<6x256xf32>
    %c3_414 = arith.constant 3 : index
    %c1_415 = arith.constant 1 : index
    %c0_416 = arith.constant 0 : index
    %c0_417 = arith.constant 0 : index
    %809 = vector.load %arg8[%c3_414, %c1_415, %c0_416, %c0_417] : memref<9x6x6x1xf32, #tpu.memory_space<vmem>>, vector<1x1x6x1xf32>
    %810 = vector.shape_cast %809 : vector<1x1x6x1xf32> to vector<6x1xf32>
    %811 = vector.extract_strided_slice %801 {offsets = [1, 0], sizes = [1, 256], strides = [1, 1]} : vector<4x256xf32> to vector<1x256xf32>
    %812 = vector.broadcast %810 : vector<6x1xf32> to vector<6x256xf32>
    %813 = vector.broadcast %811 : vector<1x256xf32> to vector<6x256xf32>
    %814 = arith.mulf %812, %813 : vector<6x256xf32>
    %815 = arith.addf %808, %814 : vector<6x256xf32>
    %c3_418 = arith.constant 3 : index
    %c2_419 = arith.constant 2 : index
    %c0_420 = arith.constant 0 : index
    %c0_421 = arith.constant 0 : index
    %816 = vector.load %arg8[%c3_418, %c2_419, %c0_420, %c0_421] : memref<9x6x6x1xf32, #tpu.memory_space<vmem>>, vector<1x1x6x1xf32>
    %817 = vector.shape_cast %816 : vector<1x1x6x1xf32> to vector<6x1xf32>
    %818 = vector.extract_strided_slice %801 {offsets = [2, 0], sizes = [1, 256], strides = [1, 1]} : vector<4x256xf32> to vector<1x256xf32>
    %819 = vector.broadcast %817 : vector<6x1xf32> to vector<6x256xf32>
    %820 = vector.broadcast %818 : vector<1x256xf32> to vector<6x256xf32>
    %821 = arith.mulf %819, %820 : vector<6x256xf32>
    %822 = arith.addf %815, %821 : vector<6x256xf32>
    %c3_422 = arith.constant 3 : index
    %c3_423 = arith.constant 3 : index
    %c0_424 = arith.constant 0 : index
    %c0_425 = arith.constant 0 : index
    %823 = vector.load %arg8[%c3_422, %c3_423, %c0_424, %c0_425] : memref<9x6x6x1xf32, #tpu.memory_space<vmem>>, vector<1x1x6x1xf32>
    %824 = vector.shape_cast %823 : vector<1x1x6x1xf32> to vector<6x1xf32>
    %825 = vector.extract_strided_slice %801 {offsets = [3, 0], sizes = [1, 256], strides = [1, 1]} : vector<4x256xf32> to vector<1x256xf32>
    %826 = vector.broadcast %824 : vector<6x1xf32> to vector<6x256xf32>
    %827 = vector.broadcast %825 : vector<1x256xf32> to vector<6x256xf32>
    %828 = arith.mulf %826, %827 : vector<6x256xf32>
    %829 = arith.addf %822, %828 : vector<6x256xf32>
    %830 = vector.extract_strided_slice %657 {offsets = [0, 127], sizes = [2, 256], strides = [1, 1]} : vector<2x512xf32> to vector<2x256xf32>
    %831 = vector.broadcast %1 : vector<1x256xf32> to vector<2x256xf32>
    %832 = arith.mulf %830, %831 : vector<2x256xf32>
    %c3_426 = arith.constant 3 : index
    %c4_427 = arith.constant 4 : index
    %c0_428 = arith.constant 0 : index
    %c0_429 = arith.constant 0 : index
    %833 = vector.load %arg8[%c3_426, %c4_427, %c0_428, %c0_429] : memref<9x6x6x1xf32, #tpu.memory_space<vmem>>, vector<1x1x6x1xf32>
    %834 = vector.shape_cast %833 : vector<1x1x6x1xf32> to vector<6x1xf32>
    %835 = vector.extract_strided_slice %832 {offsets = [0, 0], sizes = [1, 256], strides = [1, 1]} : vector<2x256xf32> to vector<1x256xf32>
    %836 = vector.broadcast %834 : vector<6x1xf32> to vector<6x256xf32>
    %837 = vector.broadcast %835 : vector<1x256xf32> to vector<6x256xf32>
    %838 = arith.mulf %836, %837 : vector<6x256xf32>
    %839 = arith.addf %829, %838 : vector<6x256xf32>
    %c3_430 = arith.constant 3 : index
    %c5_431 = arith.constant 5 : index
    %c0_432 = arith.constant 0 : index
    %c0_433 = arith.constant 0 : index
    %840 = vector.load %arg8[%c3_430, %c5_431, %c0_432, %c0_433] : memref<9x6x6x1xf32, #tpu.memory_space<vmem>>, vector<1x1x6x1xf32>
    %841 = vector.shape_cast %840 : vector<1x1x6x1xf32> to vector<6x1xf32>
    %842 = vector.extract_strided_slice %832 {offsets = [1, 0], sizes = [1, 256], strides = [1, 1]} : vector<2x256xf32> to vector<1x256xf32>
    %843 = vector.broadcast %841 : vector<6x1xf32> to vector<6x256xf32>
    %844 = vector.broadcast %842 : vector<1x256xf32> to vector<6x256xf32>
    %845 = arith.mulf %843, %844 : vector<6x256xf32>
    %846 = arith.addf %839, %845 : vector<6x256xf32>
    %c4_434 = arith.constant 4 : index
    %c0_435 = arith.constant 0 : index
    %c0_436 = arith.constant 0 : index
    %c0_437 = arith.constant 0 : index
    %847 = vector.load %arg8[%c4_434, %c0_435, %c0_436, %c0_437] : memref<9x6x6x1xf32, #tpu.memory_space<vmem>>, vector<1x1x6x1xf32>
    %848 = vector.shape_cast %847 : vector<1x1x6x1xf32> to vector<6x1xf32>
    %849 = vector.extract_strided_slice %652 {offsets = [0, 0], sizes = [1, 256], strides = [1, 1]} : vector<4x256xf32> to vector<1x256xf32>
    %850 = vector.broadcast %848 : vector<6x1xf32> to vector<6x256xf32>
    %851 = vector.broadcast %849 : vector<1x256xf32> to vector<6x256xf32>
    %852 = arith.mulf %850, %851 : vector<6x256xf32>
    %853 = arith.addf %846, %852 : vector<6x256xf32>
    %c4_438 = arith.constant 4 : index
    %c1_439 = arith.constant 1 : index
    %c0_440 = arith.constant 0 : index
    %c0_441 = arith.constant 0 : index
    %854 = vector.load %arg8[%c4_438, %c1_439, %c0_440, %c0_441] : memref<9x6x6x1xf32, #tpu.memory_space<vmem>>, vector<1x1x6x1xf32>
    %855 = vector.shape_cast %854 : vector<1x1x6x1xf32> to vector<6x1xf32>
    %856 = vector.extract_strided_slice %652 {offsets = [1, 0], sizes = [1, 256], strides = [1, 1]} : vector<4x256xf32> to vector<1x256xf32>
    %857 = vector.broadcast %855 : vector<6x1xf32> to vector<6x256xf32>
    %858 = vector.broadcast %856 : vector<1x256xf32> to vector<6x256xf32>
    %859 = arith.mulf %857, %858 : vector<6x256xf32>
    %860 = arith.addf %853, %859 : vector<6x256xf32>
    %c4_442 = arith.constant 4 : index
    %c2_443 = arith.constant 2 : index
    %c0_444 = arith.constant 0 : index
    %c0_445 = arith.constant 0 : index
    %861 = vector.load %arg8[%c4_442, %c2_443, %c0_444, %c0_445] : memref<9x6x6x1xf32, #tpu.memory_space<vmem>>, vector<1x1x6x1xf32>
    %862 = vector.shape_cast %861 : vector<1x1x6x1xf32> to vector<6x1xf32>
    %863 = vector.extract_strided_slice %652 {offsets = [2, 0], sizes = [1, 256], strides = [1, 1]} : vector<4x256xf32> to vector<1x256xf32>
    %864 = vector.broadcast %862 : vector<6x1xf32> to vector<6x256xf32>
    %865 = vector.broadcast %863 : vector<1x256xf32> to vector<6x256xf32>
    %866 = arith.mulf %864, %865 : vector<6x256xf32>
    %867 = arith.addf %860, %866 : vector<6x256xf32>
    %c4_446 = arith.constant 4 : index
    %c3_447 = arith.constant 3 : index
    %c0_448 = arith.constant 0 : index
    %c0_449 = arith.constant 0 : index
    %868 = vector.load %arg8[%c4_446, %c3_447, %c0_448, %c0_449] : memref<9x6x6x1xf32, #tpu.memory_space<vmem>>, vector<1x1x6x1xf32>
    %869 = vector.shape_cast %868 : vector<1x1x6x1xf32> to vector<6x1xf32>
    %870 = vector.extract_strided_slice %652 {offsets = [3, 0], sizes = [1, 256], strides = [1, 1]} : vector<4x256xf32> to vector<1x256xf32>
    %871 = vector.broadcast %869 : vector<6x1xf32> to vector<6x256xf32>
    %872 = vector.broadcast %870 : vector<1x256xf32> to vector<6x256xf32>
    %873 = arith.mulf %871, %872 : vector<6x256xf32>
    %874 = arith.addf %867, %873 : vector<6x256xf32>
    %c4_450 = arith.constant 4 : index
    %c4_451 = arith.constant 4 : index
    %c0_452 = arith.constant 0 : index
    %c0_453 = arith.constant 0 : index
    %875 = vector.load %arg8[%c4_450, %c4_451, %c0_452, %c0_453] : memref<9x6x6x1xf32, #tpu.memory_space<vmem>>, vector<1x1x6x1xf32>
    %876 = vector.shape_cast %875 : vector<1x1x6x1xf32> to vector<6x1xf32>
    %877 = vector.extract_strided_slice %653 {offsets = [0, 0], sizes = [1, 256], strides = [1, 1]} : vector<2x256xf32> to vector<1x256xf32>
    %878 = vector.broadcast %876 : vector<6x1xf32> to vector<6x256xf32>
    %879 = vector.broadcast %877 : vector<1x256xf32> to vector<6x256xf32>
    %880 = arith.mulf %878, %879 : vector<6x256xf32>
    %881 = arith.addf %874, %880 : vector<6x256xf32>
    %c4_454 = arith.constant 4 : index
    %c5_455 = arith.constant 5 : index
    %c0_456 = arith.constant 0 : index
    %c0_457 = arith.constant 0 : index
    %882 = vector.load %arg8[%c4_454, %c5_455, %c0_456, %c0_457] : memref<9x6x6x1xf32, #tpu.memory_space<vmem>>, vector<1x1x6x1xf32>
    %883 = vector.shape_cast %882 : vector<1x1x6x1xf32> to vector<6x1xf32>
    %884 = vector.extract_strided_slice %653 {offsets = [1, 0], sizes = [1, 256], strides = [1, 1]} : vector<2x256xf32> to vector<1x256xf32>
    %885 = vector.broadcast %883 : vector<6x1xf32> to vector<6x256xf32>
    %886 = vector.broadcast %884 : vector<1x256xf32> to vector<6x256xf32>
    %887 = arith.mulf %885, %886 : vector<6x256xf32>
    %888 = arith.addf %881, %887 : vector<6x256xf32>
    %889 = vector.extract_strided_slice %655 {offsets = [0, 129], sizes = [4, 256], strides = [1, 1]} : vector<4x512xf32> to vector<4x256xf32>
    %890 = vector.broadcast %3 : vector<1x256xf32> to vector<4x256xf32>
    %891 = arith.mulf %889, %890 : vector<4x256xf32>
    %c5_458 = arith.constant 5 : index
    %c0_459 = arith.constant 0 : index
    %c0_460 = arith.constant 0 : index
    %c0_461 = arith.constant 0 : index
    %892 = vector.load %arg8[%c5_458, %c0_459, %c0_460, %c0_461] : memref<9x6x6x1xf32, #tpu.memory_space<vmem>>, vector<1x1x6x1xf32>
    %893 = vector.shape_cast %892 : vector<1x1x6x1xf32> to vector<6x1xf32>
    %894 = vector.extract_strided_slice %891 {offsets = [0, 0], sizes = [1, 256], strides = [1, 1]} : vector<4x256xf32> to vector<1x256xf32>
    %895 = vector.broadcast %893 : vector<6x1xf32> to vector<6x256xf32>
    %896 = vector.broadcast %894 : vector<1x256xf32> to vector<6x256xf32>
    %897 = arith.mulf %895, %896 : vector<6x256xf32>
    %898 = arith.addf %888, %897 : vector<6x256xf32>
    %c5_462 = arith.constant 5 : index
    %c1_463 = arith.constant 1 : index
    %c0_464 = arith.constant 0 : index
    %c0_465 = arith.constant 0 : index
    %899 = vector.load %arg8[%c5_462, %c1_463, %c0_464, %c0_465] : memref<9x6x6x1xf32, #tpu.memory_space<vmem>>, vector<1x1x6x1xf32>
    %900 = vector.shape_cast %899 : vector<1x1x6x1xf32> to vector<6x1xf32>
    %901 = vector.extract_strided_slice %891 {offsets = [1, 0], sizes = [1, 256], strides = [1, 1]} : vector<4x256xf32> to vector<1x256xf32>
    %902 = vector.broadcast %900 : vector<6x1xf32> to vector<6x256xf32>
    %903 = vector.broadcast %901 : vector<1x256xf32> to vector<6x256xf32>
    %904 = arith.mulf %902, %903 : vector<6x256xf32>
    %905 = arith.addf %898, %904 : vector<6x256xf32>
    %c5_466 = arith.constant 5 : index
    %c2_467 = arith.constant 2 : index
    %c0_468 = arith.constant 0 : index
    %c0_469 = arith.constant 0 : index
    %906 = vector.load %arg8[%c5_466, %c2_467, %c0_468, %c0_469] : memref<9x6x6x1xf32, #tpu.memory_space<vmem>>, vector<1x1x6x1xf32>
    %907 = vector.shape_cast %906 : vector<1x1x6x1xf32> to vector<6x1xf32>
    %908 = vector.extract_strided_slice %891 {offsets = [2, 0], sizes = [1, 256], strides = [1, 1]} : vector<4x256xf32> to vector<1x256xf32>
    %909 = vector.broadcast %907 : vector<6x1xf32> to vector<6x256xf32>
    %910 = vector.broadcast %908 : vector<1x256xf32> to vector<6x256xf32>
    %911 = arith.mulf %909, %910 : vector<6x256xf32>
    %912 = arith.addf %905, %911 : vector<6x256xf32>
    %c5_470 = arith.constant 5 : index
    %c3_471 = arith.constant 3 : index
    %c0_472 = arith.constant 0 : index
    %c0_473 = arith.constant 0 : index
    %913 = vector.load %arg8[%c5_470, %c3_471, %c0_472, %c0_473] : memref<9x6x6x1xf32, #tpu.memory_space<vmem>>, vector<1x1x6x1xf32>
    %914 = vector.shape_cast %913 : vector<1x1x6x1xf32> to vector<6x1xf32>
    %915 = vector.extract_strided_slice %891 {offsets = [3, 0], sizes = [1, 256], strides = [1, 1]} : vector<4x256xf32> to vector<1x256xf32>
    %916 = vector.broadcast %914 : vector<6x1xf32> to vector<6x256xf32>
    %917 = vector.broadcast %915 : vector<1x256xf32> to vector<6x256xf32>
    %918 = arith.mulf %916, %917 : vector<6x256xf32>
    %919 = arith.addf %912, %918 : vector<6x256xf32>
    %920 = vector.extract_strided_slice %657 {offsets = [0, 129], sizes = [2, 256], strides = [1, 1]} : vector<2x512xf32> to vector<2x256xf32>
    %921 = vector.broadcast %3 : vector<1x256xf32> to vector<2x256xf32>
    %922 = arith.mulf %920, %921 : vector<2x256xf32>
    %c5_474 = arith.constant 5 : index
    %c4_475 = arith.constant 4 : index
    %c0_476 = arith.constant 0 : index
    %c0_477 = arith.constant 0 : index
    %923 = vector.load %arg8[%c5_474, %c4_475, %c0_476, %c0_477] : memref<9x6x6x1xf32, #tpu.memory_space<vmem>>, vector<1x1x6x1xf32>
    %924 = vector.shape_cast %923 : vector<1x1x6x1xf32> to vector<6x1xf32>
    %925 = vector.extract_strided_slice %922 {offsets = [0, 0], sizes = [1, 256], strides = [1, 1]} : vector<2x256xf32> to vector<1x256xf32>
    %926 = vector.broadcast %924 : vector<6x1xf32> to vector<6x256xf32>
    %927 = vector.broadcast %925 : vector<1x256xf32> to vector<6x256xf32>
    %928 = arith.mulf %926, %927 : vector<6x256xf32>
    %929 = arith.addf %919, %928 : vector<6x256xf32>
    %c5_478 = arith.constant 5 : index
    %c5_479 = arith.constant 5 : index
    %c0_480 = arith.constant 0 : index
    %c0_481 = arith.constant 0 : index
    %930 = vector.load %arg8[%c5_478, %c5_479, %c0_480, %c0_481] : memref<9x6x6x1xf32, #tpu.memory_space<vmem>>, vector<1x1x6x1xf32>
    %931 = vector.shape_cast %930 : vector<1x1x6x1xf32> to vector<6x1xf32>
    %932 = vector.extract_strided_slice %922 {offsets = [1, 0], sizes = [1, 256], strides = [1, 1]} : vector<2x256xf32> to vector<1x256xf32>
    %933 = vector.broadcast %931 : vector<6x1xf32> to vector<6x256xf32>
    %934 = vector.broadcast %932 : vector<1x256xf32> to vector<6x256xf32>
    %935 = arith.mulf %933, %934 : vector<6x256xf32>
    %936 = arith.addf %929, %935 : vector<6x256xf32>
    %937 = vector.extract_strided_slice %655 {offsets = [0, 143], sizes = [4, 256], strides = [1, 1]} : vector<4x512xf32> to vector<4x256xf32>
    %938 = vector.broadcast %1 : vector<1x256xf32> to vector<4x256xf32>
    %939 = arith.mulf %937, %938 : vector<4x256xf32>
    %c6_482 = arith.constant 6 : index
    %c0_483 = arith.constant 0 : index
    %c0_484 = arith.constant 0 : index
    %c0_485 = arith.constant 0 : index
    %940 = vector.load %arg8[%c6_482, %c0_483, %c0_484, %c0_485] : memref<9x6x6x1xf32, #tpu.memory_space<vmem>>, vector<1x1x6x1xf32>
    %941 = vector.shape_cast %940 : vector<1x1x6x1xf32> to vector<6x1xf32>
    %942 = vector.extract_strided_slice %939 {offsets = [0, 0], sizes = [1, 256], strides = [1, 1]} : vector<4x256xf32> to vector<1x256xf32>
    %943 = vector.broadcast %941 : vector<6x1xf32> to vector<6x256xf32>
    %944 = vector.broadcast %942 : vector<1x256xf32> to vector<6x256xf32>
    %945 = arith.mulf %943, %944 : vector<6x256xf32>
    %946 = arith.addf %936, %945 : vector<6x256xf32>
    %c6_486 = arith.constant 6 : index
    %c1_487 = arith.constant 1 : index
    %c0_488 = arith.constant 0 : index
    %c0_489 = arith.constant 0 : index
    %947 = vector.load %arg8[%c6_486, %c1_487, %c0_488, %c0_489] : memref<9x6x6x1xf32, #tpu.memory_space<vmem>>, vector<1x1x6x1xf32>
    %948 = vector.shape_cast %947 : vector<1x1x6x1xf32> to vector<6x1xf32>
    %949 = vector.extract_strided_slice %939 {offsets = [1, 0], sizes = [1, 256], strides = [1, 1]} : vector<4x256xf32> to vector<1x256xf32>
    %950 = vector.broadcast %948 : vector<6x1xf32> to vector<6x256xf32>
    %951 = vector.broadcast %949 : vector<1x256xf32> to vector<6x256xf32>
    %952 = arith.mulf %950, %951 : vector<6x256xf32>
    %953 = arith.addf %946, %952 : vector<6x256xf32>
    %c6_490 = arith.constant 6 : index
    %c2_491 = arith.constant 2 : index
    %c0_492 = arith.constant 0 : index
    %c0_493 = arith.constant 0 : index
    %954 = vector.load %arg8[%c6_490, %c2_491, %c0_492, %c0_493] : memref<9x6x6x1xf32, #tpu.memory_space<vmem>>, vector<1x1x6x1xf32>
    %955 = vector.shape_cast %954 : vector<1x1x6x1xf32> to vector<6x1xf32>
    %956 = vector.extract_strided_slice %939 {offsets = [2, 0], sizes = [1, 256], strides = [1, 1]} : vector<4x256xf32> to vector<1x256xf32>
    %957 = vector.broadcast %955 : vector<6x1xf32> to vector<6x256xf32>
    %958 = vector.broadcast %956 : vector<1x256xf32> to vector<6x256xf32>
    %959 = arith.mulf %957, %958 : vector<6x256xf32>
    %960 = arith.addf %953, %959 : vector<6x256xf32>
    %c6_494 = arith.constant 6 : index
    %c3_495 = arith.constant 3 : index
    %c0_496 = arith.constant 0 : index
    %c0_497 = arith.constant 0 : index
    %961 = vector.load %arg8[%c6_494, %c3_495, %c0_496, %c0_497] : memref<9x6x6x1xf32, #tpu.memory_space<vmem>>, vector<1x1x6x1xf32>
    %962 = vector.shape_cast %961 : vector<1x1x6x1xf32> to vector<6x1xf32>
    %963 = vector.extract_strided_slice %939 {offsets = [3, 0], sizes = [1, 256], strides = [1, 1]} : vector<4x256xf32> to vector<1x256xf32>
    %964 = vector.broadcast %962 : vector<6x1xf32> to vector<6x256xf32>
    %965 = vector.broadcast %963 : vector<1x256xf32> to vector<6x256xf32>
    %966 = arith.mulf %964, %965 : vector<6x256xf32>
    %967 = arith.addf %960, %966 : vector<6x256xf32>
    %968 = vector.extract_strided_slice %657 {offsets = [0, 143], sizes = [2, 256], strides = [1, 1]} : vector<2x512xf32> to vector<2x256xf32>
    %969 = vector.broadcast %1 : vector<1x256xf32> to vector<2x256xf32>
    %970 = arith.mulf %968, %969 : vector<2x256xf32>
    %c6_498 = arith.constant 6 : index
    %c4_499 = arith.constant 4 : index
    %c0_500 = arith.constant 0 : index
    %c0_501 = arith.constant 0 : index
    %971 = vector.load %arg8[%c6_498, %c4_499, %c0_500, %c0_501] : memref<9x6x6x1xf32, #tpu.memory_space<vmem>>, vector<1x1x6x1xf32>
    %972 = vector.shape_cast %971 : vector<1x1x6x1xf32> to vector<6x1xf32>
    %973 = vector.extract_strided_slice %970 {offsets = [0, 0], sizes = [1, 256], strides = [1, 1]} : vector<2x256xf32> to vector<1x256xf32>
    %974 = vector.broadcast %972 : vector<6x1xf32> to vector<6x256xf32>
    %975 = vector.broadcast %973 : vector<1x256xf32> to vector<6x256xf32>
    %976 = arith.mulf %974, %975 : vector<6x256xf32>
    %977 = arith.addf %967, %976 : vector<6x256xf32>
    %c6_502 = arith.constant 6 : index
    %c5_503 = arith.constant 5 : index
    %c0_504 = arith.constant 0 : index
    %c0_505 = arith.constant 0 : index
    %978 = vector.load %arg8[%c6_502, %c5_503, %c0_504, %c0_505] : memref<9x6x6x1xf32, #tpu.memory_space<vmem>>, vector<1x1x6x1xf32>
    %979 = vector.shape_cast %978 : vector<1x1x6x1xf32> to vector<6x1xf32>
    %980 = vector.extract_strided_slice %970 {offsets = [1, 0], sizes = [1, 256], strides = [1, 1]} : vector<2x256xf32> to vector<1x256xf32>
    %981 = vector.broadcast %979 : vector<6x1xf32> to vector<6x256xf32>
    %982 = vector.broadcast %980 : vector<1x256xf32> to vector<6x256xf32>
    %983 = arith.mulf %981, %982 : vector<6x256xf32>
    %984 = arith.addf %977, %983 : vector<6x256xf32>
    %985 = vector.extract_strided_slice %655 {offsets = [0, 144], sizes = [4, 256], strides = [1, 1]} : vector<4x512xf32> to vector<4x256xf32>
    %c7_506 = arith.constant 7 : index
    %c0_507 = arith.constant 0 : index
    %c0_508 = arith.constant 0 : index
    %c0_509 = arith.constant 0 : index
    %986 = vector.load %arg8[%c7_506, %c0_507, %c0_508, %c0_509] : memref<9x6x6x1xf32, #tpu.memory_space<vmem>>, vector<1x1x6x1xf32>
    %987 = vector.shape_cast %986 : vector<1x1x6x1xf32> to vector<6x1xf32>
    %988 = vector.extract_strided_slice %985 {offsets = [0, 0], sizes = [1, 256], strides = [1, 1]} : vector<4x256xf32> to vector<1x256xf32>
    %989 = vector.broadcast %987 : vector<6x1xf32> to vector<6x256xf32>
    %990 = vector.broadcast %988 : vector<1x256xf32> to vector<6x256xf32>
    %991 = arith.mulf %989, %990 : vector<6x256xf32>
    %992 = arith.addf %984, %991 : vector<6x256xf32>
    %c7_510 = arith.constant 7 : index
    %c1_511 = arith.constant 1 : index
    %c0_512 = arith.constant 0 : index
    %c0_513 = arith.constant 0 : index
    %993 = vector.load %arg8[%c7_510, %c1_511, %c0_512, %c0_513] : memref<9x6x6x1xf32, #tpu.memory_space<vmem>>, vector<1x1x6x1xf32>
    %994 = vector.shape_cast %993 : vector<1x1x6x1xf32> to vector<6x1xf32>
    %995 = vector.extract_strided_slice %985 {offsets = [1, 0], sizes = [1, 256], strides = [1, 1]} : vector<4x256xf32> to vector<1x256xf32>
    %996 = vector.broadcast %994 : vector<6x1xf32> to vector<6x256xf32>
    %997 = vector.broadcast %995 : vector<1x256xf32> to vector<6x256xf32>
    %998 = arith.mulf %996, %997 : vector<6x256xf32>
    %999 = arith.addf %992, %998 : vector<6x256xf32>
    %c7_514 = arith.constant 7 : index
    %c2_515 = arith.constant 2 : index
    %c0_516 = arith.constant 0 : index
    %c0_517 = arith.constant 0 : index
    %1000 = vector.load %arg8[%c7_514, %c2_515, %c0_516, %c0_517] : memref<9x6x6x1xf32, #tpu.memory_space<vmem>>, vector<1x1x6x1xf32>
    %1001 = vector.shape_cast %1000 : vector<1x1x6x1xf32> to vector<6x1xf32>
    %1002 = vector.extract_strided_slice %985 {offsets = [2, 0], sizes = [1, 256], strides = [1, 1]} : vector<4x256xf32> to vector<1x256xf32>
    %1003 = vector.broadcast %1001 : vector<6x1xf32> to vector<6x256xf32>
    %1004 = vector.broadcast %1002 : vector<1x256xf32> to vector<6x256xf32>
    %1005 = arith.mulf %1003, %1004 : vector<6x256xf32>
    %1006 = arith.addf %999, %1005 : vector<6x256xf32>
    %c7_518 = arith.constant 7 : index
    %c3_519 = arith.constant 3 : index
    %c0_520 = arith.constant 0 : index
    %c0_521 = arith.constant 0 : index
    %1007 = vector.load %arg8[%c7_518, %c3_519, %c0_520, %c0_521] : memref<9x6x6x1xf32, #tpu.memory_space<vmem>>, vector<1x1x6x1xf32>
    %1008 = vector.shape_cast %1007 : vector<1x1x6x1xf32> to vector<6x1xf32>
    %1009 = vector.extract_strided_slice %985 {offsets = [3, 0], sizes = [1, 256], strides = [1, 1]} : vector<4x256xf32> to vector<1x256xf32>
    %1010 = vector.broadcast %1008 : vector<6x1xf32> to vector<6x256xf32>
    %1011 = vector.broadcast %1009 : vector<1x256xf32> to vector<6x256xf32>
    %1012 = arith.mulf %1010, %1011 : vector<6x256xf32>
    %1013 = arith.addf %1006, %1012 : vector<6x256xf32>
    %1014 = vector.extract_strided_slice %657 {offsets = [0, 144], sizes = [2, 256], strides = [1, 1]} : vector<2x512xf32> to vector<2x256xf32>
    %c7_522 = arith.constant 7 : index
    %c4_523 = arith.constant 4 : index
    %c0_524 = arith.constant 0 : index
    %c0_525 = arith.constant 0 : index
    %1015 = vector.load %arg8[%c7_522, %c4_523, %c0_524, %c0_525] : memref<9x6x6x1xf32, #tpu.memory_space<vmem>>, vector<1x1x6x1xf32>
    %1016 = vector.shape_cast %1015 : vector<1x1x6x1xf32> to vector<6x1xf32>
    %1017 = vector.extract_strided_slice %1014 {offsets = [0, 0], sizes = [1, 256], strides = [1, 1]} : vector<2x256xf32> to vector<1x256xf32>
    %1018 = vector.broadcast %1016 : vector<6x1xf32> to vector<6x256xf32>
    %1019 = vector.broadcast %1017 : vector<1x256xf32> to vector<6x256xf32>
    %1020 = arith.mulf %1018, %1019 : vector<6x256xf32>
    %1021 = arith.addf %1013, %1020 : vector<6x256xf32>
    %c7_526 = arith.constant 7 : index
    %c5_527 = arith.constant 5 : index
    %c0_528 = arith.constant 0 : index
    %c0_529 = arith.constant 0 : index
    %1022 = vector.load %arg8[%c7_526, %c5_527, %c0_528, %c0_529] : memref<9x6x6x1xf32, #tpu.memory_space<vmem>>, vector<1x1x6x1xf32>
    %1023 = vector.shape_cast %1022 : vector<1x1x6x1xf32> to vector<6x1xf32>
    %1024 = vector.extract_strided_slice %1014 {offsets = [1, 0], sizes = [1, 256], strides = [1, 1]} : vector<2x256xf32> to vector<1x256xf32>
    %1025 = vector.broadcast %1023 : vector<6x1xf32> to vector<6x256xf32>
    %1026 = vector.broadcast %1024 : vector<1x256xf32> to vector<6x256xf32>
    %1027 = arith.mulf %1025, %1026 : vector<6x256xf32>
    %1028 = arith.addf %1021, %1027 : vector<6x256xf32>
    %1029 = vector.extract_strided_slice %655 {offsets = [0, 145], sizes = [4, 256], strides = [1, 1]} : vector<4x512xf32> to vector<4x256xf32>
    %1030 = vector.broadcast %3 : vector<1x256xf32> to vector<4x256xf32>
    %1031 = arith.mulf %1029, %1030 : vector<4x256xf32>
    %c8_530 = arith.constant 8 : index
    %c0_531 = arith.constant 0 : index
    %c0_532 = arith.constant 0 : index
    %c0_533 = arith.constant 0 : index
    %1032 = vector.load %arg8[%c8_530, %c0_531, %c0_532, %c0_533] : memref<9x6x6x1xf32, #tpu.memory_space<vmem>>, vector<1x1x6x1xf32>
    %1033 = vector.shape_cast %1032 : vector<1x1x6x1xf32> to vector<6x1xf32>
    %1034 = vector.extract_strided_slice %1031 {offsets = [0, 0], sizes = [1, 256], strides = [1, 1]} : vector<4x256xf32> to vector<1x256xf32>
    %1035 = vector.broadcast %1033 : vector<6x1xf32> to vector<6x256xf32>
    %1036 = vector.broadcast %1034 : vector<1x256xf32> to vector<6x256xf32>
    %1037 = arith.mulf %1035, %1036 : vector<6x256xf32>
    %1038 = arith.addf %1028, %1037 : vector<6x256xf32>
    %c8_534 = arith.constant 8 : index
    %c1_535 = arith.constant 1 : index
    %c0_536 = arith.constant 0 : index
    %c0_537 = arith.constant 0 : index
    %1039 = vector.load %arg8[%c8_534, %c1_535, %c0_536, %c0_537] : memref<9x6x6x1xf32, #tpu.memory_space<vmem>>, vector<1x1x6x1xf32>
    %1040 = vector.shape_cast %1039 : vector<1x1x6x1xf32> to vector<6x1xf32>
    %1041 = vector.extract_strided_slice %1031 {offsets = [1, 0], sizes = [1, 256], strides = [1, 1]} : vector<4x256xf32> to vector<1x256xf32>
    %1042 = vector.broadcast %1040 : vector<6x1xf32> to vector<6x256xf32>
    %1043 = vector.broadcast %1041 : vector<1x256xf32> to vector<6x256xf32>
    %1044 = arith.mulf %1042, %1043 : vector<6x256xf32>
    %1045 = arith.addf %1038, %1044 : vector<6x256xf32>
    %c8_538 = arith.constant 8 : index
    %c2_539 = arith.constant 2 : index
    %c0_540 = arith.constant 0 : index
    %c0_541 = arith.constant 0 : index
    %1046 = vector.load %arg8[%c8_538, %c2_539, %c0_540, %c0_541] : memref<9x6x6x1xf32, #tpu.memory_space<vmem>>, vector<1x1x6x1xf32>
    %1047 = vector.shape_cast %1046 : vector<1x1x6x1xf32> to vector<6x1xf32>
    %1048 = vector.extract_strided_slice %1031 {offsets = [2, 0], sizes = [1, 256], strides = [1, 1]} : vector<4x256xf32> to vector<1x256xf32>
    %1049 = vector.broadcast %1047 : vector<6x1xf32> to vector<6x256xf32>
    %1050 = vector.broadcast %1048 : vector<1x256xf32> to vector<6x256xf32>
    %1051 = arith.mulf %1049, %1050 : vector<6x256xf32>
    %1052 = arith.addf %1045, %1051 : vector<6x256xf32>
    %c8_542 = arith.constant 8 : index
    %c3_543 = arith.constant 3 : index
    %c0_544 = arith.constant 0 : index
    %c0_545 = arith.constant 0 : index
    %1053 = vector.load %arg8[%c8_542, %c3_543, %c0_544, %c0_545] : memref<9x6x6x1xf32, #tpu.memory_space<vmem>>, vector<1x1x6x1xf32>
    %1054 = vector.shape_cast %1053 : vector<1x1x6x1xf32> to vector<6x1xf32>
    %1055 = vector.extract_strided_slice %1031 {offsets = [3, 0], sizes = [1, 256], strides = [1, 1]} : vector<4x256xf32> to vector<1x256xf32>
    %1056 = vector.broadcast %1054 : vector<6x1xf32> to vector<6x256xf32>
    %1057 = vector.broadcast %1055 : vector<1x256xf32> to vector<6x256xf32>
    %1058 = arith.mulf %1056, %1057 : vector<6x256xf32>
    %1059 = arith.addf %1052, %1058 : vector<6x256xf32>
    %1060 = vector.extract_strided_slice %657 {offsets = [0, 145], sizes = [2, 256], strides = [1, 1]} : vector<2x512xf32> to vector<2x256xf32>
    %1061 = vector.broadcast %3 : vector<1x256xf32> to vector<2x256xf32>
    %1062 = arith.mulf %1060, %1061 : vector<2x256xf32>
    %c8_546 = arith.constant 8 : index
    %c4_547 = arith.constant 4 : index
    %c0_548 = arith.constant 0 : index
    %c0_549 = arith.constant 0 : index
    %1063 = vector.load %arg8[%c8_546, %c4_547, %c0_548, %c0_549] : memref<9x6x6x1xf32, #tpu.memory_space<vmem>>, vector<1x1x6x1xf32>
    %1064 = vector.shape_cast %1063 : vector<1x1x6x1xf32> to vector<6x1xf32>
    %1065 = vector.extract_strided_slice %1062 {offsets = [0, 0], sizes = [1, 256], strides = [1, 1]} : vector<2x256xf32> to vector<1x256xf32>
    %1066 = vector.broadcast %1064 : vector<6x1xf32> to vector<6x256xf32>
    %1067 = vector.broadcast %1065 : vector<1x256xf32> to vector<6x256xf32>
    %1068 = arith.mulf %1066, %1067 : vector<6x256xf32>
    %1069 = arith.addf %1059, %1068 : vector<6x256xf32>
    %c8_550 = arith.constant 8 : index
    %c5_551 = arith.constant 5 : index
    %c0_552 = arith.constant 0 : index
    %c0_553 = arith.constant 0 : index
    %1070 = vector.load %arg8[%c8_550, %c5_551, %c0_552, %c0_553] : memref<9x6x6x1xf32, #tpu.memory_space<vmem>>, vector<1x1x6x1xf32>
    %1071 = vector.shape_cast %1070 : vector<1x1x6x1xf32> to vector<6x1xf32>
    %1072 = vector.extract_strided_slice %1062 {offsets = [1, 0], sizes = [1, 256], strides = [1, 1]} : vector<2x256xf32> to vector<1x256xf32>
    %1073 = vector.broadcast %1071 : vector<6x1xf32> to vector<6x256xf32>
    %1074 = vector.broadcast %1072 : vector<1x256xf32> to vector<6x256xf32>
    %1075 = arith.mulf %1073, %1074 : vector<6x256xf32>
    %1076 = arith.addf %1069, %1075 : vector<6x256xf32>
    %c0_554 = arith.constant 0 : index
    %c0_555 = arith.constant 0 : index
    %1077 = vector.load %arg9[%c0_554, %c0_555] : memref<6x1xf32, #tpu.memory_space<vmem>>, vector<6x1xf32>
    %1078 = vector.broadcast %1077 : vector<6x1xf32> to vector<6x256xf32>
    %1079 = arith.addf %1076, %1078 : vector<6x256xf32>
    %1080 = vector.extract_strided_slice %1079 {offsets = [0, 0], sizes = [3, 256], strides = [1, 1]} : vector<6x256xf32> to vector<3x256xf32>
    %1081 = vector.extract_strided_slice %1079 {offsets = [3, 0], sizes = [3, 256], strides = [1, 1]} : vector<6x256xf32> to vector<3x256xf32>
    %1082 = arith.mulf %1080, %1081 : vector<3x256xf32>
    %cst_556 = arith.constant 0.000000e+00 : f32
    %1083 = vector.broadcast %cst_556 : f32 to vector<3x128xf32>
    %1084 = tpu.concatenate %1083, %1082, %1083 in 1 : vector<3x128xf32>, vector<3x256xf32>, vector<3x128xf32> -> vector<3x512xf32>
    %cst_557 = arith.constant 0.000000e+00 : f32
    %1085 = vector.broadcast %cst_557 : f32 to vector<4x256xf32>
    %1086 = vector.extract_strided_slice %1084 {offsets = [0, 111], sizes = [3, 256], strides = [1, 1]} : vector<3x512xf32> to vector<3x256xf32>
    %1087 = vector.broadcast %1 : vector<1x256xf32> to vector<3x256xf32>
    %1088 = arith.mulf %1086, %1087 : vector<3x256xf32>
    %c0_558 = arith.constant 0 : index
    %c0_559 = arith.constant 0 : index
    %c0_560 = arith.constant 0 : index
    %c0_561 = arith.constant 0 : index
    %1089 = vector.load %arg10[%c0_558, %c0_559, %c0_560, %c0_561] : memref<9x3x4x1xf32, #tpu.memory_space<vmem>>, vector<1x1x4x1xf32>
    %1090 = vector.shape_cast %1089 : vector<1x1x4x1xf32> to vector<4x1xf32>
    %1091 = vector.extract_strided_slice %1088 {offsets = [0, 0], sizes = [1, 256], strides = [1, 1]} : vector<3x256xf32> to vector<1x256xf32>
    %1092 = vector.broadcast %1090 : vector<4x1xf32> to vector<4x256xf32>
    %1093 = vector.broadcast %1091 : vector<1x256xf32> to vector<4x256xf32>
    %1094 = arith.mulf %1092, %1093 : vector<4x256xf32>
    %1095 = arith.addf %1085, %1094 : vector<4x256xf32>
    %c0_562 = arith.constant 0 : index
    %c1_563 = arith.constant 1 : index
    %c0_564 = arith.constant 0 : index
    %c0_565 = arith.constant 0 : index
    %1096 = vector.load %arg10[%c0_562, %c1_563, %c0_564, %c0_565] : memref<9x3x4x1xf32, #tpu.memory_space<vmem>>, vector<1x1x4x1xf32>
    %1097 = vector.shape_cast %1096 : vector<1x1x4x1xf32> to vector<4x1xf32>
    %1098 = vector.extract_strided_slice %1088 {offsets = [1, 0], sizes = [1, 256], strides = [1, 1]} : vector<3x256xf32> to vector<1x256xf32>
    %1099 = vector.broadcast %1097 : vector<4x1xf32> to vector<4x256xf32>
    %1100 = vector.broadcast %1098 : vector<1x256xf32> to vector<4x256xf32>
    %1101 = arith.mulf %1099, %1100 : vector<4x256xf32>
    %1102 = arith.addf %1095, %1101 : vector<4x256xf32>
    %c0_566 = arith.constant 0 : index
    %c2_567 = arith.constant 2 : index
    %c0_568 = arith.constant 0 : index
    %c0_569 = arith.constant 0 : index
    %1103 = vector.load %arg10[%c0_566, %c2_567, %c0_568, %c0_569] : memref<9x3x4x1xf32, #tpu.memory_space<vmem>>, vector<1x1x4x1xf32>
    %1104 = vector.shape_cast %1103 : vector<1x1x4x1xf32> to vector<4x1xf32>
    %1105 = vector.extract_strided_slice %1088 {offsets = [2, 0], sizes = [1, 256], strides = [1, 1]} : vector<3x256xf32> to vector<1x256xf32>
    %1106 = vector.broadcast %1104 : vector<4x1xf32> to vector<4x256xf32>
    %1107 = vector.broadcast %1105 : vector<1x256xf32> to vector<4x256xf32>
    %1108 = arith.mulf %1106, %1107 : vector<4x256xf32>
    %1109 = arith.addf %1102, %1108 : vector<4x256xf32>
    %1110 = vector.extract_strided_slice %1084 {offsets = [0, 112], sizes = [3, 256], strides = [1, 1]} : vector<3x512xf32> to vector<3x256xf32>
    %c1_570 = arith.constant 1 : index
    %c0_571 = arith.constant 0 : index
    %c0_572 = arith.constant 0 : index
    %c0_573 = arith.constant 0 : index
    %1111 = vector.load %arg10[%c1_570, %c0_571, %c0_572, %c0_573] : memref<9x3x4x1xf32, #tpu.memory_space<vmem>>, vector<1x1x4x1xf32>
    %1112 = vector.shape_cast %1111 : vector<1x1x4x1xf32> to vector<4x1xf32>
    %1113 = vector.extract_strided_slice %1110 {offsets = [0, 0], sizes = [1, 256], strides = [1, 1]} : vector<3x256xf32> to vector<1x256xf32>
    %1114 = vector.broadcast %1112 : vector<4x1xf32> to vector<4x256xf32>
    %1115 = vector.broadcast %1113 : vector<1x256xf32> to vector<4x256xf32>
    %1116 = arith.mulf %1114, %1115 : vector<4x256xf32>
    %1117 = arith.addf %1109, %1116 : vector<4x256xf32>
    %c1_574 = arith.constant 1 : index
    %c1_575 = arith.constant 1 : index
    %c0_576 = arith.constant 0 : index
    %c0_577 = arith.constant 0 : index
    %1118 = vector.load %arg10[%c1_574, %c1_575, %c0_576, %c0_577] : memref<9x3x4x1xf32, #tpu.memory_space<vmem>>, vector<1x1x4x1xf32>
    %1119 = vector.shape_cast %1118 : vector<1x1x4x1xf32> to vector<4x1xf32>
    %1120 = vector.extract_strided_slice %1110 {offsets = [1, 0], sizes = [1, 256], strides = [1, 1]} : vector<3x256xf32> to vector<1x256xf32>
    %1121 = vector.broadcast %1119 : vector<4x1xf32> to vector<4x256xf32>
    %1122 = vector.broadcast %1120 : vector<1x256xf32> to vector<4x256xf32>
    %1123 = arith.mulf %1121, %1122 : vector<4x256xf32>
    %1124 = arith.addf %1117, %1123 : vector<4x256xf32>
    %c1_578 = arith.constant 1 : index
    %c2_579 = arith.constant 2 : index
    %c0_580 = arith.constant 0 : index
    %c0_581 = arith.constant 0 : index
    %1125 = vector.load %arg10[%c1_578, %c2_579, %c0_580, %c0_581] : memref<9x3x4x1xf32, #tpu.memory_space<vmem>>, vector<1x1x4x1xf32>
    %1126 = vector.shape_cast %1125 : vector<1x1x4x1xf32> to vector<4x1xf32>
    %1127 = vector.extract_strided_slice %1110 {offsets = [2, 0], sizes = [1, 256], strides = [1, 1]} : vector<3x256xf32> to vector<1x256xf32>
    %1128 = vector.broadcast %1126 : vector<4x1xf32> to vector<4x256xf32>
    %1129 = vector.broadcast %1127 : vector<1x256xf32> to vector<4x256xf32>
    %1130 = arith.mulf %1128, %1129 : vector<4x256xf32>
    %1131 = arith.addf %1124, %1130 : vector<4x256xf32>
    %1132 = vector.extract_strided_slice %1084 {offsets = [0, 113], sizes = [3, 256], strides = [1, 1]} : vector<3x512xf32> to vector<3x256xf32>
    %1133 = vector.broadcast %3 : vector<1x256xf32> to vector<3x256xf32>
    %1134 = arith.mulf %1132, %1133 : vector<3x256xf32>
    %c2_582 = arith.constant 2 : index
    %c0_583 = arith.constant 0 : index
    %c0_584 = arith.constant 0 : index
    %c0_585 = arith.constant 0 : index
    %1135 = vector.load %arg10[%c2_582, %c0_583, %c0_584, %c0_585] : memref<9x3x4x1xf32, #tpu.memory_space<vmem>>, vector<1x1x4x1xf32>
    %1136 = vector.shape_cast %1135 : vector<1x1x4x1xf32> to vector<4x1xf32>
    %1137 = vector.extract_strided_slice %1134 {offsets = [0, 0], sizes = [1, 256], strides = [1, 1]} : vector<3x256xf32> to vector<1x256xf32>
    %1138 = vector.broadcast %1136 : vector<4x1xf32> to vector<4x256xf32>
    %1139 = vector.broadcast %1137 : vector<1x256xf32> to vector<4x256xf32>
    %1140 = arith.mulf %1138, %1139 : vector<4x256xf32>
    %1141 = arith.addf %1131, %1140 : vector<4x256xf32>
    %c2_586 = arith.constant 2 : index
    %c1_587 = arith.constant 1 : index
    %c0_588 = arith.constant 0 : index
    %c0_589 = arith.constant 0 : index
    %1142 = vector.load %arg10[%c2_586, %c1_587, %c0_588, %c0_589] : memref<9x3x4x1xf32, #tpu.memory_space<vmem>>, vector<1x1x4x1xf32>
    %1143 = vector.shape_cast %1142 : vector<1x1x4x1xf32> to vector<4x1xf32>
    %1144 = vector.extract_strided_slice %1134 {offsets = [1, 0], sizes = [1, 256], strides = [1, 1]} : vector<3x256xf32> to vector<1x256xf32>
    %1145 = vector.broadcast %1143 : vector<4x1xf32> to vector<4x256xf32>
    %1146 = vector.broadcast %1144 : vector<1x256xf32> to vector<4x256xf32>
    %1147 = arith.mulf %1145, %1146 : vector<4x256xf32>
    %1148 = arith.addf %1141, %1147 : vector<4x256xf32>
    %c2_590 = arith.constant 2 : index
    %c2_591 = arith.constant 2 : index
    %c0_592 = arith.constant 0 : index
    %c0_593 = arith.constant 0 : index
    %1149 = vector.load %arg10[%c2_590, %c2_591, %c0_592, %c0_593] : memref<9x3x4x1xf32, #tpu.memory_space<vmem>>, vector<1x1x4x1xf32>
    %1150 = vector.shape_cast %1149 : vector<1x1x4x1xf32> to vector<4x1xf32>
    %1151 = vector.extract_strided_slice %1134 {offsets = [2, 0], sizes = [1, 256], strides = [1, 1]} : vector<3x256xf32> to vector<1x256xf32>
    %1152 = vector.broadcast %1150 : vector<4x1xf32> to vector<4x256xf32>
    %1153 = vector.broadcast %1151 : vector<1x256xf32> to vector<4x256xf32>
    %1154 = arith.mulf %1152, %1153 : vector<4x256xf32>
    %1155 = arith.addf %1148, %1154 : vector<4x256xf32>
    %1156 = vector.extract_strided_slice %1084 {offsets = [0, 127], sizes = [3, 256], strides = [1, 1]} : vector<3x512xf32> to vector<3x256xf32>
    %1157 = vector.broadcast %1 : vector<1x256xf32> to vector<3x256xf32>
    %1158 = arith.mulf %1156, %1157 : vector<3x256xf32>
    %c3_594 = arith.constant 3 : index
    %c0_595 = arith.constant 0 : index
    %c0_596 = arith.constant 0 : index
    %c0_597 = arith.constant 0 : index
    %1159 = vector.load %arg10[%c3_594, %c0_595, %c0_596, %c0_597] : memref<9x3x4x1xf32, #tpu.memory_space<vmem>>, vector<1x1x4x1xf32>
    %1160 = vector.shape_cast %1159 : vector<1x1x4x1xf32> to vector<4x1xf32>
    %1161 = vector.extract_strided_slice %1158 {offsets = [0, 0], sizes = [1, 256], strides = [1, 1]} : vector<3x256xf32> to vector<1x256xf32>
    %1162 = vector.broadcast %1160 : vector<4x1xf32> to vector<4x256xf32>
    %1163 = vector.broadcast %1161 : vector<1x256xf32> to vector<4x256xf32>
    %1164 = arith.mulf %1162, %1163 : vector<4x256xf32>
    %1165 = arith.addf %1155, %1164 : vector<4x256xf32>
    %c3_598 = arith.constant 3 : index
    %c1_599 = arith.constant 1 : index
    %c0_600 = arith.constant 0 : index
    %c0_601 = arith.constant 0 : index
    %1166 = vector.load %arg10[%c3_598, %c1_599, %c0_600, %c0_601] : memref<9x3x4x1xf32, #tpu.memory_space<vmem>>, vector<1x1x4x1xf32>
    %1167 = vector.shape_cast %1166 : vector<1x1x4x1xf32> to vector<4x1xf32>
    %1168 = vector.extract_strided_slice %1158 {offsets = [1, 0], sizes = [1, 256], strides = [1, 1]} : vector<3x256xf32> to vector<1x256xf32>
    %1169 = vector.broadcast %1167 : vector<4x1xf32> to vector<4x256xf32>
    %1170 = vector.broadcast %1168 : vector<1x256xf32> to vector<4x256xf32>
    %1171 = arith.mulf %1169, %1170 : vector<4x256xf32>
    %1172 = arith.addf %1165, %1171 : vector<4x256xf32>
    %c3_602 = arith.constant 3 : index
    %c2_603 = arith.constant 2 : index
    %c0_604 = arith.constant 0 : index
    %c0_605 = arith.constant 0 : index
    %1173 = vector.load %arg10[%c3_602, %c2_603, %c0_604, %c0_605] : memref<9x3x4x1xf32, #tpu.memory_space<vmem>>, vector<1x1x4x1xf32>
    %1174 = vector.shape_cast %1173 : vector<1x1x4x1xf32> to vector<4x1xf32>
    %1175 = vector.extract_strided_slice %1158 {offsets = [2, 0], sizes = [1, 256], strides = [1, 1]} : vector<3x256xf32> to vector<1x256xf32>
    %1176 = vector.broadcast %1174 : vector<4x1xf32> to vector<4x256xf32>
    %1177 = vector.broadcast %1175 : vector<1x256xf32> to vector<4x256xf32>
    %1178 = arith.mulf %1176, %1177 : vector<4x256xf32>
    %1179 = arith.addf %1172, %1178 : vector<4x256xf32>
    %c4_606 = arith.constant 4 : index
    %c0_607 = arith.constant 0 : index
    %c0_608 = arith.constant 0 : index
    %c0_609 = arith.constant 0 : index
    %1180 = vector.load %arg10[%c4_606, %c0_607, %c0_608, %c0_609] : memref<9x3x4x1xf32, #tpu.memory_space<vmem>>, vector<1x1x4x1xf32>
    %1181 = vector.shape_cast %1180 : vector<1x1x4x1xf32> to vector<4x1xf32>
    %1182 = vector.extract_strided_slice %1082 {offsets = [0, 0], sizes = [1, 256], strides = [1, 1]} : vector<3x256xf32> to vector<1x256xf32>
    %1183 = vector.broadcast %1181 : vector<4x1xf32> to vector<4x256xf32>
    %1184 = vector.broadcast %1182 : vector<1x256xf32> to vector<4x256xf32>
    %1185 = arith.mulf %1183, %1184 : vector<4x256xf32>
    %1186 = arith.addf %1179, %1185 : vector<4x256xf32>
    %c4_610 = arith.constant 4 : index
    %c1_611 = arith.constant 1 : index
    %c0_612 = arith.constant 0 : index
    %c0_613 = arith.constant 0 : index
    %1187 = vector.load %arg10[%c4_610, %c1_611, %c0_612, %c0_613] : memref<9x3x4x1xf32, #tpu.memory_space<vmem>>, vector<1x1x4x1xf32>
    %1188 = vector.shape_cast %1187 : vector<1x1x4x1xf32> to vector<4x1xf32>
    %1189 = vector.extract_strided_slice %1082 {offsets = [1, 0], sizes = [1, 256], strides = [1, 1]} : vector<3x256xf32> to vector<1x256xf32>
    %1190 = vector.broadcast %1188 : vector<4x1xf32> to vector<4x256xf32>
    %1191 = vector.broadcast %1189 : vector<1x256xf32> to vector<4x256xf32>
    %1192 = arith.mulf %1190, %1191 : vector<4x256xf32>
    %1193 = arith.addf %1186, %1192 : vector<4x256xf32>
    %c4_614 = arith.constant 4 : index
    %c2_615 = arith.constant 2 : index
    %c0_616 = arith.constant 0 : index
    %c0_617 = arith.constant 0 : index
    %1194 = vector.load %arg10[%c4_614, %c2_615, %c0_616, %c0_617] : memref<9x3x4x1xf32, #tpu.memory_space<vmem>>, vector<1x1x4x1xf32>
    %1195 = vector.shape_cast %1194 : vector<1x1x4x1xf32> to vector<4x1xf32>
    %1196 = vector.extract_strided_slice %1082 {offsets = [2, 0], sizes = [1, 256], strides = [1, 1]} : vector<3x256xf32> to vector<1x256xf32>
    %1197 = vector.broadcast %1195 : vector<4x1xf32> to vector<4x256xf32>
    %1198 = vector.broadcast %1196 : vector<1x256xf32> to vector<4x256xf32>
    %1199 = arith.mulf %1197, %1198 : vector<4x256xf32>
    %1200 = arith.addf %1193, %1199 : vector<4x256xf32>
    %1201 = vector.extract_strided_slice %1084 {offsets = [0, 129], sizes = [3, 256], strides = [1, 1]} : vector<3x512xf32> to vector<3x256xf32>
    %1202 = vector.broadcast %3 : vector<1x256xf32> to vector<3x256xf32>
    %1203 = arith.mulf %1201, %1202 : vector<3x256xf32>
    %c5_618 = arith.constant 5 : index
    %c0_619 = arith.constant 0 : index
    %c0_620 = arith.constant 0 : index
    %c0_621 = arith.constant 0 : index
    %1204 = vector.load %arg10[%c5_618, %c0_619, %c0_620, %c0_621] : memref<9x3x4x1xf32, #tpu.memory_space<vmem>>, vector<1x1x4x1xf32>
    %1205 = vector.shape_cast %1204 : vector<1x1x4x1xf32> to vector<4x1xf32>
    %1206 = vector.extract_strided_slice %1203 {offsets = [0, 0], sizes = [1, 256], strides = [1, 1]} : vector<3x256xf32> to vector<1x256xf32>
    %1207 = vector.broadcast %1205 : vector<4x1xf32> to vector<4x256xf32>
    %1208 = vector.broadcast %1206 : vector<1x256xf32> to vector<4x256xf32>
    %1209 = arith.mulf %1207, %1208 : vector<4x256xf32>
    %1210 = arith.addf %1200, %1209 : vector<4x256xf32>
    %c5_622 = arith.constant 5 : index
    %c1_623 = arith.constant 1 : index
    %c0_624 = arith.constant 0 : index
    %c0_625 = arith.constant 0 : index
    %1211 = vector.load %arg10[%c5_622, %c1_623, %c0_624, %c0_625] : memref<9x3x4x1xf32, #tpu.memory_space<vmem>>, vector<1x1x4x1xf32>
    %1212 = vector.shape_cast %1211 : vector<1x1x4x1xf32> to vector<4x1xf32>
    %1213 = vector.extract_strided_slice %1203 {offsets = [1, 0], sizes = [1, 256], strides = [1, 1]} : vector<3x256xf32> to vector<1x256xf32>
    %1214 = vector.broadcast %1212 : vector<4x1xf32> to vector<4x256xf32>
    %1215 = vector.broadcast %1213 : vector<1x256xf32> to vector<4x256xf32>
    %1216 = arith.mulf %1214, %1215 : vector<4x256xf32>
    %1217 = arith.addf %1210, %1216 : vector<4x256xf32>
    %c5_626 = arith.constant 5 : index
    %c2_627 = arith.constant 2 : index
    %c0_628 = arith.constant 0 : index
    %c0_629 = arith.constant 0 : index
    %1218 = vector.load %arg10[%c5_626, %c2_627, %c0_628, %c0_629] : memref<9x3x4x1xf32, #tpu.memory_space<vmem>>, vector<1x1x4x1xf32>
    %1219 = vector.shape_cast %1218 : vector<1x1x4x1xf32> to vector<4x1xf32>
    %1220 = vector.extract_strided_slice %1203 {offsets = [2, 0], sizes = [1, 256], strides = [1, 1]} : vector<3x256xf32> to vector<1x256xf32>
    %1221 = vector.broadcast %1219 : vector<4x1xf32> to vector<4x256xf32>
    %1222 = vector.broadcast %1220 : vector<1x256xf32> to vector<4x256xf32>
    %1223 = arith.mulf %1221, %1222 : vector<4x256xf32>
    %1224 = arith.addf %1217, %1223 : vector<4x256xf32>
    %1225 = vector.extract_strided_slice %1084 {offsets = [0, 143], sizes = [3, 256], strides = [1, 1]} : vector<3x512xf32> to vector<3x256xf32>
    %1226 = vector.broadcast %1 : vector<1x256xf32> to vector<3x256xf32>
    %1227 = arith.mulf %1225, %1226 : vector<3x256xf32>
    %c6_630 = arith.constant 6 : index
    %c0_631 = arith.constant 0 : index
    %c0_632 = arith.constant 0 : index
    %c0_633 = arith.constant 0 : index
    %1228 = vector.load %arg10[%c6_630, %c0_631, %c0_632, %c0_633] : memref<9x3x4x1xf32, #tpu.memory_space<vmem>>, vector<1x1x4x1xf32>
    %1229 = vector.shape_cast %1228 : vector<1x1x4x1xf32> to vector<4x1xf32>
    %1230 = vector.extract_strided_slice %1227 {offsets = [0, 0], sizes = [1, 256], strides = [1, 1]} : vector<3x256xf32> to vector<1x256xf32>
    %1231 = vector.broadcast %1229 : vector<4x1xf32> to vector<4x256xf32>
    %1232 = vector.broadcast %1230 : vector<1x256xf32> to vector<4x256xf32>
    %1233 = arith.mulf %1231, %1232 : vector<4x256xf32>
    %1234 = arith.addf %1224, %1233 : vector<4x256xf32>
    %c6_634 = arith.constant 6 : index
    %c1_635 = arith.constant 1 : index
    %c0_636 = arith.constant 0 : index
    %c0_637 = arith.constant 0 : index
    %1235 = vector.load %arg10[%c6_634, %c1_635, %c0_636, %c0_637] : memref<9x3x4x1xf32, #tpu.memory_space<vmem>>, vector<1x1x4x1xf32>
    %1236 = vector.shape_cast %1235 : vector<1x1x4x1xf32> to vector<4x1xf32>
    %1237 = vector.extract_strided_slice %1227 {offsets = [1, 0], sizes = [1, 256], strides = [1, 1]} : vector<3x256xf32> to vector<1x256xf32>
    %1238 = vector.broadcast %1236 : vector<4x1xf32> to vector<4x256xf32>
    %1239 = vector.broadcast %1237 : vector<1x256xf32> to vector<4x256xf32>
    %1240 = arith.mulf %1238, %1239 : vector<4x256xf32>
    %1241 = arith.addf %1234, %1240 : vector<4x256xf32>
    %c6_638 = arith.constant 6 : index
    %c2_639 = arith.constant 2 : index
    %c0_640 = arith.constant 0 : index
    %c0_641 = arith.constant 0 : index
    %1242 = vector.load %arg10[%c6_638, %c2_639, %c0_640, %c0_641] : memref<9x3x4x1xf32, #tpu.memory_space<vmem>>, vector<1x1x4x1xf32>
    %1243 = vector.shape_cast %1242 : vector<1x1x4x1xf32> to vector<4x1xf32>
    %1244 = vector.extract_strided_slice %1227 {offsets = [2, 0], sizes = [1, 256], strides = [1, 1]} : vector<3x256xf32> to vector<1x256xf32>
    %1245 = vector.broadcast %1243 : vector<4x1xf32> to vector<4x256xf32>
    %1246 = vector.broadcast %1244 : vector<1x256xf32> to vector<4x256xf32>
    %1247 = arith.mulf %1245, %1246 : vector<4x256xf32>
    %1248 = arith.addf %1241, %1247 : vector<4x256xf32>
    %1249 = vector.extract_strided_slice %1084 {offsets = [0, 144], sizes = [3, 256], strides = [1, 1]} : vector<3x512xf32> to vector<3x256xf32>
    %c7_642 = arith.constant 7 : index
    %c0_643 = arith.constant 0 : index
    %c0_644 = arith.constant 0 : index
    %c0_645 = arith.constant 0 : index
    %1250 = vector.load %arg10[%c7_642, %c0_643, %c0_644, %c0_645] : memref<9x3x4x1xf32, #tpu.memory_space<vmem>>, vector<1x1x4x1xf32>
    %1251 = vector.shape_cast %1250 : vector<1x1x4x1xf32> to vector<4x1xf32>
    %1252 = vector.extract_strided_slice %1249 {offsets = [0, 0], sizes = [1, 256], strides = [1, 1]} : vector<3x256xf32> to vector<1x256xf32>
    %1253 = vector.broadcast %1251 : vector<4x1xf32> to vector<4x256xf32>
    %1254 = vector.broadcast %1252 : vector<1x256xf32> to vector<4x256xf32>
    %1255 = arith.mulf %1253, %1254 : vector<4x256xf32>
    %1256 = arith.addf %1248, %1255 : vector<4x256xf32>
    %c7_646 = arith.constant 7 : index
    %c1_647 = arith.constant 1 : index
    %c0_648 = arith.constant 0 : index
    %c0_649 = arith.constant 0 : index
    %1257 = vector.load %arg10[%c7_646, %c1_647, %c0_648, %c0_649] : memref<9x3x4x1xf32, #tpu.memory_space<vmem>>, vector<1x1x4x1xf32>
    %1258 = vector.shape_cast %1257 : vector<1x1x4x1xf32> to vector<4x1xf32>
    %1259 = vector.extract_strided_slice %1249 {offsets = [1, 0], sizes = [1, 256], strides = [1, 1]} : vector<3x256xf32> to vector<1x256xf32>
    %1260 = vector.broadcast %1258 : vector<4x1xf32> to vector<4x256xf32>
    %1261 = vector.broadcast %1259 : vector<1x256xf32> to vector<4x256xf32>
    %1262 = arith.mulf %1260, %1261 : vector<4x256xf32>
    %1263 = arith.addf %1256, %1262 : vector<4x256xf32>
    %c7_650 = arith.constant 7 : index
    %c2_651 = arith.constant 2 : index
    %c0_652 = arith.constant 0 : index
    %c0_653 = arith.constant 0 : index
    %1264 = vector.load %arg10[%c7_650, %c2_651, %c0_652, %c0_653] : memref<9x3x4x1xf32, #tpu.memory_space<vmem>>, vector<1x1x4x1xf32>
    %1265 = vector.shape_cast %1264 : vector<1x1x4x1xf32> to vector<4x1xf32>
    %1266 = vector.extract_strided_slice %1249 {offsets = [2, 0], sizes = [1, 256], strides = [1, 1]} : vector<3x256xf32> to vector<1x256xf32>
    %1267 = vector.broadcast %1265 : vector<4x1xf32> to vector<4x256xf32>
    %1268 = vector.broadcast %1266 : vector<1x256xf32> to vector<4x256xf32>
    %1269 = arith.mulf %1267, %1268 : vector<4x256xf32>
    %1270 = arith.addf %1263, %1269 : vector<4x256xf32>
    %1271 = vector.extract_strided_slice %1084 {offsets = [0, 145], sizes = [3, 256], strides = [1, 1]} : vector<3x512xf32> to vector<3x256xf32>
    %1272 = vector.broadcast %3 : vector<1x256xf32> to vector<3x256xf32>
    %1273 = arith.mulf %1271, %1272 : vector<3x256xf32>
    %c8_654 = arith.constant 8 : index
    %c0_655 = arith.constant 0 : index
    %c0_656 = arith.constant 0 : index
    %c0_657 = arith.constant 0 : index
    %1274 = vector.load %arg10[%c8_654, %c0_655, %c0_656, %c0_657] : memref<9x3x4x1xf32, #tpu.memory_space<vmem>>, vector<1x1x4x1xf32>
    %1275 = vector.shape_cast %1274 : vector<1x1x4x1xf32> to vector<4x1xf32>
    %1276 = vector.extract_strided_slice %1273 {offsets = [0, 0], sizes = [1, 256], strides = [1, 1]} : vector<3x256xf32> to vector<1x256xf32>
    %1277 = vector.broadcast %1275 : vector<4x1xf32> to vector<4x256xf32>
    %1278 = vector.broadcast %1276 : vector<1x256xf32> to vector<4x256xf32>
    %1279 = arith.mulf %1277, %1278 : vector<4x256xf32>
    %1280 = arith.addf %1270, %1279 : vector<4x256xf32>
    %c8_658 = arith.constant 8 : index
    %c1_659 = arith.constant 1 : index
    %c0_660 = arith.constant 0 : index
    %c0_661 = arith.constant 0 : index
    %1281 = vector.load %arg10[%c8_658, %c1_659, %c0_660, %c0_661] : memref<9x3x4x1xf32, #tpu.memory_space<vmem>>, vector<1x1x4x1xf32>
    %1282 = vector.shape_cast %1281 : vector<1x1x4x1xf32> to vector<4x1xf32>
    %1283 = vector.extract_strided_slice %1273 {offsets = [1, 0], sizes = [1, 256], strides = [1, 1]} : vector<3x256xf32> to vector<1x256xf32>
    %1284 = vector.broadcast %1282 : vector<4x1xf32> to vector<4x256xf32>
    %1285 = vector.broadcast %1283 : vector<1x256xf32> to vector<4x256xf32>
    %1286 = arith.mulf %1284, %1285 : vector<4x256xf32>
    %1287 = arith.addf %1280, %1286 : vector<4x256xf32>
    %c8_662 = arith.constant 8 : index
    %c2_663 = arith.constant 2 : index
    %c0_664 = arith.constant 0 : index
    %c0_665 = arith.constant 0 : index
    %1288 = vector.load %arg10[%c8_662, %c2_663, %c0_664, %c0_665] : memref<9x3x4x1xf32, #tpu.memory_space<vmem>>, vector<1x1x4x1xf32>
    %1289 = vector.shape_cast %1288 : vector<1x1x4x1xf32> to vector<4x1xf32>
    %1290 = vector.extract_strided_slice %1273 {offsets = [2, 0], sizes = [1, 256], strides = [1, 1]} : vector<3x256xf32> to vector<1x256xf32>
    %1291 = vector.broadcast %1289 : vector<4x1xf32> to vector<4x256xf32>
    %1292 = vector.broadcast %1290 : vector<1x256xf32> to vector<4x256xf32>
    %1293 = arith.mulf %1291, %1292 : vector<4x256xf32>
    %1294 = arith.addf %1287, %1293 : vector<4x256xf32>
    %c0_666 = arith.constant 0 : index
    %c0_667 = arith.constant 0 : index
    %1295 = vector.load %arg11[%c0_666, %c0_667] : memref<4x1xf32, #tpu.memory_space<vmem>>, vector<4x1xf32>
    %1296 = vector.broadcast %1295 : vector<4x1xf32> to vector<4x256xf32>
    %1297 = arith.addf %1294, %1296 : vector<4x256xf32>
    %1298 = vector.shape_cast %1297 : vector<4x256xf32> to vector<1x4x256xf32>
    %c0_668 = arith.constant 0 : index
    %c0_669 = arith.constant 0 : index
    %c0_670 = arith.constant 0 : index
    %1299 = vector.load %arg12[%c0_668, %c0_669, %c0_670] : memref<1x4x256xf32, #tpu.memory_space<vmem>>, vector<1x4x256xf32>
    tpu.vector_store %arg12[%c0_668, %c0_669, %c0_670], %1298 {strides = array<i32>} : memref<1x4x256xf32, #tpu.memory_space<vmem>>, vector<1x4x256xf32>,
    %1300 = vector.shape_cast %652 : vector<4x256xf32> to vector<1x4x256xf32>
    %c0_671 = arith.constant 0 : index
    %c0_672 = arith.constant 0 : index
    %c0_673 = arith.constant 0 : index
    %1301 = vector.load %arg13[%c0_671, %c0_672, %c0_673] : memref<1x4x256xf32, #tpu.memory_space<vmem>>, vector<1x4x256xf32>
    tpu.vector_store %arg13[%c0_671, %c0_672, %c0_673], %1300 {strides = array<i32>} : memref<1x4x256xf32, #tpu.memory_space<vmem>>, vector<1x4x256xf32>,
    return
  }
  func.func @transform_0(%arg0: i32) -> (i32, i32, i32) {
    %c0_i32 = arith.constant 0 : i32
    %c0_i32_0 = arith.constant 0 : i32
    %c0_i32_1 = arith.constant 0 : i32
    %c0_i32_2 = arith.constant 0 : i32
    return %c0_i32, %c0_i32_0, %c0_i32_1 : i32, i32, i32
  }
  func.func @transform_1(%arg0: i32) -> (i32, i32, i32) {
    %c0_i32 = arith.constant 0 : i32
    %c0_i32_0 = arith.constant 0 : i32
    %c0_i32_1 = arith.constant 0 : i32
    return %arg0, %c0_i32, %c0_i32_0 : i32, i32, i32
  }
  func.func @transform_2(%arg0: i32) -> (i32, i32, i32) {
    %c0_i32 = arith.constant 0 : i32
    %c0_i32_0 = arith.constant 0 : i32
    %c0_i32_1 = arith.constant 0 : i32
    return %arg0, %c0_i32, %c0_i32_0 : i32, i32, i32
  }
  func.func @transform_3(%arg0: i32) -> (i32, i32, i32, i32) {
    %c0_i32 = arith.constant 0 : i32
    %c0_i32_0 = arith.constant 0 : i32
    %c0_i32_1 = arith.constant 0 : i32
    %c0_i32_2 = arith.constant 0 : i32
    %c0_i32_3 = arith.constant 0 : i32
    return %c0_i32, %c0_i32_0, %c0_i32_1, %c0_i32_2 : i32, i32, i32, i32
  }
  func.func @transform_4(%arg0: i32) -> (i32, i32) {
    %c0_i32 = arith.constant 0 : i32
    %c0_i32_0 = arith.constant 0 : i32
    %c0_i32_1 = arith.constant 0 : i32
    return %c0_i32, %c0_i32_0 : i32, i32
  }
  func.func @transform_5(%arg0: i32) -> (i32, i32, i32, i32) {
    %c0_i32 = arith.constant 0 : i32
    %c0_i32_0 = arith.constant 0 : i32
    %c0_i32_1 = arith.constant 0 : i32
    %c0_i32_2 = arith.constant 0 : i32
    %c0_i32_3 = arith.constant 0 : i32
    return %c0_i32, %c0_i32_0, %c0_i32_1, %c0_i32_2 : i32, i32, i32, i32
  }
  func.func @transform_6(%arg0: i32) -> (i32, i32) {
    %c0_i32 = arith.constant 0 : i32
    %c0_i32_0 = arith.constant 0 : i32
    %c0_i32_1 = arith.constant 0 : i32
    return %c0_i32, %c0_i32_0 : i32, i32
  }
  func.func @transform_7(%arg0: i32) -> (i32, i32, i32, i32) {
    %c0_i32 = arith.constant 0 : i32
    %c0_i32_0 = arith.constant 0 : i32
    %c0_i32_1 = arith.constant 0 : i32
    %c0_i32_2 = arith.constant 0 : i32
    %c0_i32_3 = arith.constant 0 : i32
    return %c0_i32, %c0_i32_0, %c0_i32_1, %c0_i32_2 : i32, i32, i32, i32
  }
  func.func @transform_8(%arg0: i32) -> (i32, i32) {
    %c0_i32 = arith.constant 0 : i32
    %c0_i32_0 = arith.constant 0 : i32
    %c0_i32_1 = arith.constant 0 : i32
    return %c0_i32, %c0_i32_0 : i32, i32
  }
  func.func @transform_9(%arg0: i32) -> (i32, i32, i32, i32) {
    %c0_i32 = arith.constant 0 : i32
    %c0_i32_0 = arith.constant 0 : i32
    %c0_i32_1 = arith.constant 0 : i32
    %c0_i32_2 = arith.constant 0 : i32
    %c0_i32_3 = arith.constant 0 : i32
    return %c0_i32, %c0_i32_0, %c0_i32_1, %c0_i32_2 : i32, i32, i32, i32
  }
  func.func @transform_10(%arg0: i32) -> (i32, i32) {
    %c0_i32 = arith.constant 0 : i32
    %c0_i32_0 = arith.constant 0 : i32
    %c0_i32_1 = arith.constant 0 : i32
    return %c0_i32, %c0_i32_0 : i32, i32
  }
  func.func @transform_11(%arg0: i32) -> (i32, i32, i32) {
    %c0_i32 = arith.constant 0 : i32
    %c0_i32_0 = arith.constant 0 : i32
    %c0_i32_1 = arith.constant 0 : i32
    return %arg0, %c0_i32, %c0_i32_0 : i32, i32, i32
  }
  func.func @transform_12(%arg0: i32) -> (i32, i32, i32) {
    %c0_i32 = arith.constant 0 : i32
    %c0_i32_0 = arith.constant 0 : i32
    %c0_i32_1 = arith.constant 0 : i32
    return %arg0, %c0_i32, %c0_i32_0 : i32, i32, i32
  }
}

</mosaic_0001>

<llo_original>
// kernel: tpu_custom_call.1
$region0: #{tpu_custom_call.1}
  #allocation0 [shape = 'u32[]', space=smem, size = 0x4, offset = 0x4, fixed_abs, tag = 'smem constant byte address 0x4 - core index']
  #allocation1 [shape = 'u32[72,128]{1,0:T(1,128)}', space=vmem, size = 0x9000, scoped, tag = 'internal scratch']
  %s0 = inlined_call_operand.vmem [shape: f32[2,1,256], index: 0, kind: input, shape index: {}]
  %s1 = inlined_call_operand.vmem [shape: f32[2,4,256], index: 1, kind: input, shape index: {}]
  %s2 = inlined_call_operand.vmem [shape: f32[2,4,256], index: 2, kind: input, shape index: {}]
  %s3 = inlined_call_operand.vmem [shape: f32[9,6,6,1], index: 3, kind: input, shape index: {}]
  %s4 = inlined_call_operand.vmem [shape: f32[6,1], index: 4, kind: input, shape index: {}]
  %s5 = inlined_call_operand.vmem [shape: f32[9,3,4,1], index: 5, kind: input, shape index: {}]
  %s6 = inlined_call_operand.vmem [shape: f32[4,1], index: 6, kind: input, shape index: {}]
  %s7 = inlined_call_operand.vmem [shape: f32[9,6,6,1], index: 7, kind: input, shape index: {}]
  %s8 = inlined_call_operand.vmem [shape: f32[6,1], index: 8, kind: input, shape index: {}]
  %s9 = inlined_call_operand.vmem [shape: f32[9,3,4,1], index: 9, kind: input, shape index: {}]
  %s10 = inlined_call_operand.vmem [shape: f32[4,1], index: 10, kind: input, shape index: {}]
  %s11 = inlined_call_operand.hbm [shape: f32[2,4,256], index: 11, kind: output, shape index: {0}]
  %s12 = inlined_call_operand.hbm [shape: f32[2,4,256], index: 12, kind: output, shape index: {1}]
  %13 = xla_tuple %s11, %s12
  %s14 = sld [smem:[#allocation0]]
  $region85: #{tpu_custom_call.1} parent=0
    _
  %s16 = ssub.s32 1, %s14
  %s17 = scalar_select 0, %s16, %s14
  $region1: #{tpu_custom_call.1} parent=0
    #allocation2 [shape = 'u8[8192]{0}', space=vmem, size = 0x2000, scoped, tag = 'output window, operand 0']
    #allocation3 [shape = 's32[2]{0}', space=sflag, size = 0x8, scoped, tag = 'scoped memory for tpu_custom_call.1']
    #allocation4 [shape = 'u8[8192]{0}', space=vmem, size = 0x2000, scoped, tag = 'output window, operand 1']
    #allocation5 [shape = 's32[2]{0}', space=sflag, size = 0x8, scoped, tag = 'scoped memory for tpu_custom_call.1']
    %18 = vsyncpa [#allocation3], 0
    %s19 = scalar_lea.sflag [#allocation3], 1
    %20 = vsyncpa %s19, 0
    %21 = vsyncpa [#allocation5], 0
    %s22 = scalar_lea.sflag [#allocation5], 1
    %23 = vsyncpa %s22, 0
    loop: start=0, step=1, limit=4
    $region2: #{tpu_custom_call.1} parent=1 // loop_pre_header
      _
    $region3: #{tpu_custom_call.1} parent=1 // loop_header
      %s25 = sphi 0, %s29
      %p26 = scmp.ge.s32.totalorder %s25, 4
      %s33 = sphi 0, %s33
      %s35 = sphi 0, %s33
      %s36 = sphi 0, %s35
      %s50 = sphi 0, %s36
      %s56 = sphi 0, %s58
      %s59 = sphi 0, %s56
      %s60 = sphi 0, %s59
      %s76 = sphi 0, %s60
      %s82 = sphi 0, %s84
      %s85 = sphi 0, %s82
      %s86 = sphi 0, %s85
      %s102 = sphi 0, %s86
      %s106 = sphi 0, %s106
      %s108 = sphi 0, %s106
      %s109 = sphi 0, %s108
      %s123 = sphi 0, %s109
      %s127 = sphi 0, %s127
      %s129 = sphi 0, %s127
      %s130 = sphi 0, %s129
      %s144 = sphi 0, %s130
      %s148 = sphi 0, %s148
      %s150 = sphi 0, %s148
      %s151 = sphi 0, %s150
      %s165 = sphi 0, %s151
      %s169 = sphi 0, %s169
      %s171 = sphi 0, %s169
      %s172 = sphi 0, %s171
      %s186 = sphi 0, %s172
      %s190 = sphi 0, %s190
      %s192 = sphi 0, %s190
      %s193 = sphi 0, %s192
      %s207 = sphi 0, %s193
      %s211 = sphi 0, %s211
      %s213 = sphi 0, %s211
      %s214 = sphi 0, %s213
      %s228 = sphi 0, %s214
      %s232 = sphi 0, %s232
      %s234 = sphi 0, %s232
      %s235 = sphi 0, %s234
      %s249 = sphi 0, %s235
      %s253 = sphi 0, %s253
      %s255 = sphi 0, %s253
      %s256 = sphi 0, %s255
      %s270 = sphi 0, %s256
      %s276 = sphi 0, %s278
      %s279 = sphi 0, %s276
      %s280 = sphi 0, %s279
      %s296 = sphi 0, %s280
      %s302 = sphi 0, %s304
      %s305 = sphi 0, %s302
      %s306 = sphi 0, %s305
      %s322 = sphi 0, %s306
    $region4: #{tpu_custom_call.1} parent=1 // loop_header_branch
      %28 = sbr.rel (%p26) target = $region8
    $region5: #{tpu_custom_call.1} parent=1 // loop_body
      %s30 = ssub.s32 %s25, 1
      %s31 = ssub.s32 %s25, 2
      %s32 = sadd.s32 %s25, 1
      %s34 = sadd.s32 %s33, 1
      %p37 = scmp.eq.s32.totalorder %s25, 1
      %p38 = scmp.ne.s32.totalorder %s33, %s35
      %p39 = scmp.eq.s32.totalorder %s25, 0
      %p40 = por %p38, %p39
      %p41 = scmp.ne.s32.totalorder %s33, %s35
      %p42 = scmp.eq.s32.totalorder %s30, 1
      %p43 = por %p41, %p42
      %p44 = scmp.ne.s32.totalorder %s35, %s36
      %p45 = scmp.eq.s32.totalorder %s30, 0
      %p46 = por %p44, %p45
      %p47 = scmp.ne.s32.totalorder %s35, %s36
      %p48 = scmp.eq.s32.totalorder %s31, 1
      %p49 = por %p47, %p48
      %p51 = scmp.ne.s32.totalorder %s36, %s50
      %p52 = scmp.eq.s32.totalorder %s31, 0
      %p53 = por %p51, %p52
      %s54 = ssub.s32 %s25, %s32
      %p55 = scmp.eq.s32.totalorder %s54, 0
      %s57 = sadd.s32 %s56, 1
      %s58 = scalar_select %p55, %s56, %s57
      %p61 = pneg %p55
      %p62 = scmp.eq.s32.totalorder %s25, 1
      %p63 = por %p61, %p62
      %p64 = scmp.ne.s32.totalorder %s56, %s59
      %p65 = scmp.eq.s32.totalorder %s25, 0
      %p66 = por %p64, %p65
      %p67 = scmp.ne.s32.totalorder %s56, %s59
      %p68 = scmp.eq.s32.totalorder %s30, 1
      %p69 = por %p67, %p68
      %p70 = scmp.ne.s32.totalorder %s59, %s60
      %p71 = scmp.eq.s32.totalorder %s30, 0
      %p72 = por %p70, %p71
      %p73 = scmp.ne.s32.totalorder %s59, %s60
      %p74 = scmp.eq.s32.totalorder %s31, 1
      %p75 = por %p73, %p74
      %p77 = scmp.ne.s32.totalorder %s60, %s76
      %p78 = scmp.eq.s32.totalorder %s31, 0
      %p79 = por %p77, %p78
      %s80 = ssub.s32 %s25, %s32
      %p81 = scmp.eq.s32.totalorder %s80, 0
      %s83 = sadd.s32 %s82, 1
      %s84 = scalar_select %p81, %s82, %s83
      %p87 = pneg %p81
      %p88 = scmp.eq.s32.totalorder %s25, 1
      %p89 = por %p87, %p88
      %p90 = scmp.ne.s32.totalorder %s82, %s85
      %p91 = scmp.eq.s32.totalorder %s25, 0
      %p92 = por %p90, %p91
      %p93 = scmp.ne.s32.totalorder %s82, %s85
      %p94 = scmp.eq.s32.totalorder %s30, 1
      %p95 = por %p93, %p94
      %p96 = scmp.ne.s32.totalorder %s85, %s86
      %p97 = scmp.eq.s32.totalorder %s30, 0
      %p98 = por %p96, %p97
      %p99 = scmp.ne.s32.totalorder %s85, %s86
      %p100 = scmp.eq.s32.totalorder %s31, 1
      %p101 = por %p99, %p100
      %p103 = scmp.ne.s32.totalorder %s86, %s102
      %p104 = scmp.eq.s32.totalorder %s31, 0
      %p105 = por %p103, %p104
      %s107 = sadd.s32 %s106, 1
      %p110 = scmp.eq.s32.totalorder %s25, 1
      %p111 = scmp.ne.s32.totalorder %s106, %s108
      %p112 = scmp.eq.s32.totalorder %s25, 0
      %p113 = por %p111, %p112
      %p114 = scmp.ne.s32.totalorder %s106, %s108
      %p115 = scmp.eq.s32.totalorder %s30, 1
      %p116 = por %p114, %p115
      %p117 = scmp.ne.s32.totalorder %s108, %s109
      %p118 = scmp.eq.s32.totalorder %s30, 0
      %p119 = por %p117, %p118
      %p120 = scmp.ne.s32.totalorder %s108, %s109
      %p121 = scmp.eq.s32.totalorder %s31, 1
      %p122 = por %p120, %p121
      %p124 = scmp.ne.s32.totalorder %s109, %s123
      %p125 = scmp.eq.s32.totalorder %s31, 0
      %p126 = por %p124, %p125
      %s128 = sadd.s32 %s127, 1
      %p131 = scmp.eq.s32.totalorder %s25, 1
      %p132 = scmp.ne.s32.totalorder %s127, %s129
      %p133 = scmp.eq.s32.totalorder %s25, 0
      %p134 = por %p132, %p133
      %p135 = scmp.ne.s32.totalorder %s127, %s129
      %p136 = scmp.eq.s32.totalorder %s30, 1
      %p137 = por %p135, %p136
      %p138 = scmp.ne.s32.totalorder %s129, %s130
      %p139 = scmp.eq.s32.totalorder %s30, 0
      %p140 = por %p138, %p139
      %p141 = scmp.ne.s32.totalorder %s129, %s130
      %p142 = scmp.eq.s32.totalorder %s31, 1
      %p143 = por %p141, %p142
      %p145 = scmp.ne.s32.totalorder %s130, %s144
      %p146 = scmp.eq.s32.totalorder %s31, 0
      %p147 = por %p145, %p146
      %s149 = sadd.s32 %s148, 1
      %p152 = scmp.eq.s32.totalorder %s25, 1
      %p153 = scmp.ne.s32.totalorder %s148, %s150
      %p154 = scmp.eq.s32.totalorder %s25, 0
      %p155 = por %p153, %p154
      %p156 = scmp.ne.s32.totalorder %s148, %s150
      %p157 = scmp.eq.s32.totalorder %s30, 1
      %p158 = por %p156, %p157
      %p159 = scmp.ne.s32.totalorder %s150, %s151
      %p160 = scmp.eq.s32.totalorder %s30, 0
      %p161 = por %p159, %p160
      %p162 = scmp.ne.s32.totalorder %s150, %s151
      %p163 = scmp.eq.s32.totalorder %s31, 1
      %p164 = por %p162, %p163
      %p166 = scmp.ne.s32.totalorder %s151, %s165
      %p167 = scmp.eq.s32.totalorder %s31, 0
      %p168 = por %p166, %p167
      %s170 = sadd.s32 %s169, 1
      %p173 = scmp.eq.s32.totalorder %s25, 1
      %p174 = scmp.ne.s32.totalorder %s169, %s171
      %p175 = scmp.eq.s32.totalorder %s25, 0
      %p176 = por %p174, %p175
      %p177 = scmp.ne.s32.totalorder %s169, %s171
      %p178 = scmp.eq.s32.totalorder %s30, 1
      %p179 = por %p177, %p178
      %p180 = scmp.ne.s32.totalorder %s171, %s172
      %p181 = scmp.eq.s32.totalorder %s30, 0
      %p182 = por %p180, %p181
      %p183 = scmp.ne.s32.totalorder %s171, %s172
      %p184 = scmp.eq.s32.totalorder %s31, 1
      %p185 = por %p183, %p184
      %p187 = scmp.ne.s32.totalorder %s172, %s186
      %p188 = scmp.eq.s32.totalorder %s31, 0
      %p189 = por %p187, %p188
      %s191 = sadd.s32 %s190, 1
      %p194 = scmp.eq.s32.totalorder %s25, 1
      %p195 = scmp.ne.s32.totalorder %s190, %s192
      %p196 = scmp.eq.s32.totalorder %s25, 0
      %p197 = por %p195, %p196
      %p198 = scmp.ne.s32.totalorder %s190, %s192
      %p199 = scmp.eq.s32.totalorder %s30, 1
      %p200 = por %p198, %p199
      %p201 = scmp.ne.s32.totalorder %s192, %s193
      %p202 = scmp.eq.s32.totalorder %s30, 0
      %p203 = por %p201, %p202
      %p204 = scmp.ne.s32.totalorder %s192, %s193
      %p205 = scmp.eq.s32.totalorder %s31, 1
      %p206 = por %p204, %p205
      %p208 = scmp.ne.s32.totalorder %s193, %s207
      %p209 = scmp.eq.s32.totalorder %s31, 0
      %p210 = por %p208, %p209
      %s212 = sadd.s32 %s211, 1
      %p215 = scmp.eq.s32.totalorder %s25, 1
      %p216 = scmp.ne.s32.totalorder %s211, %s213
      %p217 = scmp.eq.s32.totalorder %s25, 0
      %p218 = por %p216, %p217
      %p219 = scmp.ne.s32.totalorder %s211, %s213
      %p220 = scmp.eq.s32.totalorder %s30, 1
      %p221 = por %p219, %p220
      %p222 = scmp.ne.s32.totalorder %s213, %s214
      %p223 = scmp.eq.s32.totalorder %s30, 0
      %p224 = por %p222, %p223
      %p225 = scmp.ne.s32.totalorder %s213, %s214
      %p226 = scmp.eq.s32.totalorder %s31, 1
      %p227 = por %p225, %p226
      %p229 = scmp.ne.s32.totalorder %s214, %s228
      %p230 = scmp.eq.s32.totalorder %s31, 0
      %p231 = por %p229, %p230
      %s233 = sadd.s32 %s232, 1
      %p236 = scmp.eq.s32.totalorder %s25, 1
      %p237 = scmp.ne.s32.totalorder %s232, %s234
      %p238 = scmp.eq.s32.totalorder %s25, 0
      %p239 = por %p237, %p238
      %p240 = scmp.ne.s32.totalorder %s232, %s234
      %p241 = scmp.eq.s32.totalorder %s30, 1
      %p242 = por %p240, %p241
      %p243 = scmp.ne.s32.totalorder %s234, %s235
      %p244 = scmp.eq.s32.totalorder %s30, 0
      %p245 = por %p243, %p244
      %p246 = scmp.ne.s32.totalorder %s234, %s235
      %p247 = scmp.eq.s32.totalorder %s31, 1
      %p248 = por %p246, %p247
      %p250 = scmp.ne.s32.totalorder %s235, %s249
      %p251 = scmp.eq.s32.totalorder %s31, 0
      %p252 = por %p250, %p251
      %s254 = sadd.s32 %s253, 1
      %p257 = scmp.eq.s32.totalorder %s25, 1
      %p258 = scmp.ne.s32.totalorder %s253, %s255
      %p259 = scmp.eq.s32.totalorder %s25, 0
      %p260 = por %p258, %p259
      %p261 = scmp.ne.s32.totalorder %s253, %s255
      %p262 = scmp.eq.s32.totalorder %s30, 1
      %p263 = por %p261, %p262
      %p264 = scmp.ne.s32.totalorder %s255, %s256
      %p265 = scmp.eq.s32.totalorder %s30, 0
      %p266 = por %p264, %p265
      %p267 = scmp.ne.s32.totalorder %s255, %s256
      %p268 = scmp.eq.s32.totalorder %s31, 1
      %p269 = por %p267, %p268
      %p271 = scmp.ne.s32.totalorder %s256, %s270
      %p272 = scmp.eq.s32.totalorder %s31, 0
      %p273 = por %p271, %p272
      %s274 = ssub.s32 %s25, %s32
      %p275 = scmp.eq.s32.totalorder %s274, 0
      %s277 = sadd.s32 %s276, 1
      %s278 = scalar_select %p275, %s276, %s277
      %p281 = pneg %p275
      %p282 = scmp.eq.s32.totalorder %s25, 1
      %p283 = por %p281, %p282
      %p284 = scmp.ne.s32.totalorder %s276, %s279
      %p285 = scmp.eq.s32.totalorder %s25, 0
      %p286 = por %p284, %p285
      %p287 = scmp.ne.s32.totalorder %s276, %s279
      %p288 = scmp.eq.s32.totalorder %s30, 1
      %p289 = por %p287, %p288
      %p290 = scmp.ne.s32.totalorder %s279, %s280
      %p291 = scmp.eq.s32.totalorder %s30, 0
      %p292 = por %p290, %p291
      %p293 = scmp.ne.s32.totalorder %s279, %s280
      %p294 = scmp.eq.s32.totalorder %s31, 1
      %p295 = por %p293, %p294
      %p297 = scmp.ne.s32.totalorder %s280, %s296
      %p298 = scmp.eq.s32.totalorder %s31, 0
      %p299 = por %p297, %p298
      %s300 = ssub.s32 %s25, %s32
      %p301 = scmp.eq.s32.totalorder %s300, 0
      %s303 = sadd.s32 %s302, 1
      %s304 = scalar_select %p301, %s302, %s303
      %p307 = pneg %p301
      %p308 = scmp.eq.s32.totalorder %s25, 1
      %p309 = por %p307, %p308
      %p310 = scmp.ne.s32.totalorder %s302, %s305
      %p311 = scmp.eq.s32.totalorder %s25, 0
      %p312 = por %p310, %p311
      %p313 = scmp.ne.s32.totalorder %s302, %s305
      %p314 = scmp.eq.s32.totalorder %s30, 1
      %p315 = por %p313, %p314
      %p316 = scmp.ne.s32.totalorder %s305, %s306
      %p317 = scmp.eq.s32.totalorder %s30, 0
      %p318 = por %p316, %p317
      %p319 = scmp.ne.s32.totalorder %s305, %s306
      %p320 = scmp.eq.s32.totalorder %s31, 1
      %p321 = por %p319, %p320
      %p323 = scmp.ne.s32.totalorder %s306, %s322
      %p324 = scmp.eq.s32.totalorder %s31, 0
      %p325 = por %p323, %p324
      %p326 = scmp.le.s32.totalorder 1, %s25
      %p327 = scmp.lt.s32.totalorder %s25, 3
      %p328 = pnand %p326, %p327
      %p329 = pneg %p328
      // Predicated region
      $region9: #{tpu_custom_call.1} parent=5 // pred_check
        _
      $region10: #{tpu_custom_call.1} parent=5 // pred_check_branch
        %331 = sbr.rel (%p328) target = $region12
      $region11: #{tpu_custom_call.1} parent=5 // pred_region
        %s332 = ssub.s32 %s25, 1
        // Predicated region
        $region13: #{tpu_custom_call.1} parent=11 // pred_check
          %p333 = pneg %p46
        $region14: #{tpu_custom_call.1} parent=11 // pred_check_branch
          %335 = sbr.rel (%p333) target = $region16
        $region15: #{tpu_custom_call.1} parent=11 // pred_region
          _
        $region16: #{tpu_custom_call.1} parent=11 // pred_fallthru
          _
        // Predicated region
        $region17: #{tpu_custom_call.1} parent=11 // pred_check
          %p336 = pneg %p119
        $region18: #{tpu_custom_call.1} parent=11 // pred_check_branch
          %338 = sbr.rel (%p336) target = $region20
        $region19: #{tpu_custom_call.1} parent=11 // pred_region
          _
        $region20: #{tpu_custom_call.1} parent=11 // pred_fallthru
          _
        // Predicated region
        $region21: #{tpu_custom_call.1} parent=11 // pred_check
          %p339 = pneg %p140
        $region22: #{tpu_custom_call.1} parent=11 // pred_check_branch
          %341 = sbr.rel (%p339) target = $region24
        $region23: #{tpu_custom_call.1} parent=11 // pred_region
          _
        $region24: #{tpu_custom_call.1} parent=11 // pred_fallthru
          _
        // Predicated region
        $region25: #{tpu_custom_call.1} parent=11 // pred_check
          %p342 = pneg %p161
        $region26: #{tpu_custom_call.1} parent=11 // pred_check_branch
          %344 = sbr.rel (%p342) target = $region28
        $region27: #{tpu_custom_call.1} parent=11 // pred_region
          _
        $region28: #{tpu_custom_call.1} parent=11 // pred_fallthru
          _
        // Predicated region
        $region29: #{tpu_custom_call.1} parent=11 // pred_check
          %p345 = pneg %p182
        $region30: #{tpu_custom_call.1} parent=11 // pred_check_branch
          %347 = sbr.rel (%p345) target = $region32
        $region31: #{tpu_custom_call.1} parent=11 // pred_region
          _
        $region32: #{tpu_custom_call.1} parent=11 // pred_fallthru
          _
        // Predicated region
        $region33: #{tpu_custom_call.1} parent=11 // pred_check
          %p348 = pneg %p203
        $region34: #{tpu_custom_call.1} parent=11 // pred_check_branch
          %350 = sbr.rel (%p348) target = $region36
        $region35: #{tpu_custom_call.1} parent=11 // pred_region
          _
        $region36: #{tpu_custom_call.1} parent=11 // pred_fallthru
          _
        // Predicated region
        $region37: #{tpu_custom_call.1} parent=11 // pred_check
          %p351 = pneg %p224
        $region38: #{tpu_custom_call.1} parent=11 // pred_check_branch
          %353 = sbr.rel (%p351) target = $region40
        $region39: #{tpu_custom_call.1} parent=11 // pred_region
          _
        $region40: #{tpu_custom_call.1} parent=11 // pred_fallthru
          _
        // Predicated region
        $region41: #{tpu_custom_call.1} parent=11 // pred_check
          %p354 = pneg %p245
        $region42: #{tpu_custom_call.1} parent=11 // pred_check_branch
          %356 = sbr.rel (%p354) target = $region44
        $region43: #{tpu_custom_call.1} parent=11 // pred_region
          _
        $region44: #{tpu_custom_call.1} parent=11 // pred_fallthru
          _
        // Predicated region
        $region45: #{tpu_custom_call.1} parent=11 // pred_check
          %p357 = pneg %p266
        $region46: #{tpu_custom_call.1} parent=11 // pred_check_branch
          %359 = sbr.rel (%p357) target = $region48
        $region47: #{tpu_custom_call.1} parent=11 // pred_region
          _
        $region48: #{tpu_custom_call.1} parent=11 // pred_fallthru
          _
      $region12: #{tpu_custom_call.1} parent=5 // pred_fallthru
        _
      %p360 = scmp.lt.s32.totalorder %s25, 2
      // Predicated region
      $region49: #{tpu_custom_call.1} parent=5 // pred_check
        %p361 = pneg %p360
      $region50: #{tpu_custom_call.1} parent=5 // pred_check_branch
        %363 = sbr.rel (%p361) target = $region52
      $region51: #{tpu_custom_call.1} parent=5 // pred_region
        // Predicated region
        $region53: #{tpu_custom_call.1} parent=51 // pred_check
          %p364 = pneg %p66
        $region54: #{tpu_custom_call.1} parent=51 // pred_check_branch
          %366 = sbr.rel (%p364) target = $region56
        $region55: #{tpu_custom_call.1} parent=51 // pred_region
          %p367 = scmp.lt.s32.totalorder %s25, 1
          %s368 = scalar_select %p367, %s25, 1
          %s369 = smul.addr %s368, 2
          %s370 = smul.addr %s369, 4
          %s371 = scalar_lea.vmem %s1, %s370
        $region56: #{tpu_custom_call.1} parent=51 // pred_fallthru
          _
        // Predicated region
        $region57: #{tpu_custom_call.1} parent=51 // pred_check
          %p372 = pneg %p92
        $region58: #{tpu_custom_call.1} parent=51 // pred_check_branch
          %374 = sbr.rel (%p372) target = $region60
        $region59: #{tpu_custom_call.1} parent=51 // pred_region
          %p375 = scmp.lt.s32.totalorder %s25, 1
          %s376 = scalar_select %p375, %s25, 1
          %s377 = smul.addr %s376, 2
          %s378 = smul.addr %s377, 4
          %s379 = scalar_lea.vmem %s2, %s378
        $region60: #{tpu_custom_call.1} parent=51 // pred_fallthru
          _
      $region52: #{tpu_custom_call.1} parent=5 // pred_fallthru
        _
      %p380 = scmp.le.s32.totalorder 1, %s25
      %p381 = scmp.lt.s32.totalorder %s25, 3
      %p382 = pnand %p380, %p381
      %p383 = pneg %p382
      // Predicated region
      $region61: #{tpu_custom_call.1} parent=5 // pred_check
        _
      $region62: #{tpu_custom_call.1} parent=5 // pred_check_branch
        %385 = sbr.rel (%p382) target = $region64
      $region63: #{tpu_custom_call.1} parent=5 // pred_region
        %s386 = ssub.s32 %s25, 1
        %p387 = pneg %p46
        %p388 = pneg %p43
        %p389 = scmp.lt.s32.totalorder %s30, 1
        %s390 = scalar_select %p389, %s30, 1
        %s391 = smul.addr %s390, 2
        %s392 = smul.addr %s391, 4
        %s393 = scalar_lea.vmem %s1, %s392
        %p394 = pneg %p72
        %p395 = pneg %p69
        %p396 = scmp.lt.s32.totalorder %s30, 1
        %s397 = scalar_select %p396, %s30, 1
        %s398 = smul.addr %s397, 2
        %s399 = smul.addr %s398, 4
        %s400 = scalar_lea.vmem %s2, %s399
        %p401 = pneg %p98
        %p402 = pneg %p95
        %p403 = pneg %p119
        %p404 = pneg %p116
        %p405 = pneg %p140
        %p406 = pneg %p137
        %p407 = pneg %p161
        %p408 = pneg %p158
        %p409 = pneg %p182
        %p410 = pneg %p179
        %p411 = pneg %p203
        %p412 = pneg %p200
        %p413 = pneg %p224
        %p414 = pneg %p221
        %p415 = pneg %p245
        %p416 = pneg %p242
        %p417 = pneg %p266
        %p418 = pneg %p263
        %p419 = pneg %p292
        %p420 = pneg %p289
        %s421 = sand.u32 %s279, 1
        %s422 = scalar_lea.sflag [#allocation3], %s421
        %s423 = sand.u32 %s279, 1
        %s424 = smul.addr %s423, 8
        %s425 = scalar_lea.vmem [#allocation2], %s424
        %p426 = pneg %p318
        %p427 = pneg %p315
        %s428 = sand.u32 %s305, 1
        %s429 = scalar_lea.sflag [#allocation5], %s428
        %s430 = sand.u32 %s305, 1
        %s431 = smul.addr %s430, 8
        %s432 = scalar_lea.vmem [#allocation4], %s431
        %p433 = scmp.lt.s32.totalorder %s30, 1
        %s434 = scalar_select %p433, %s30, 1
        %s435 = smul.addr %s434, 2
        %s436 = smul.addr %s435, 4
        %s437 = scalar_lea.vmem %s1, %s436
        %p438 = scmp.lt.s32.totalorder %s30, 1
        %s439 = scalar_select %p438, %s30, 1
        %s440 = smul.addr %s439, 2
        %s441 = smul.addr %s440, 4
        %s442 = scalar_lea.vmem %s2, %s441
        %v443 = vld [vmem:[%s0] sm:$0x3]
        %s444 = scalar_lea.vmem %s0, 2
        %v445 = vld [vmem:[%s444] sm:$0x3]
        %v446 = vld [vmem:[%s437] sm:$0xff]
        %v447 = vld [vmem:[%s442] sm:$0xff]
        %449 = vst [vmem:[#allocation1] ss:$2 sm:$0xff] %v446
        %v450 = vld.sshfl [vmem:[#allocation1] sm:$0xff pattern:$0x75316420]
        %v451 = vld.sshfl [vmem:[#allocation1 + $0x8] sm:$0xff pattern:$0x75316420]
        %455 = vst [vmem:[#allocation1] ss:$2 sm:$0xff] %v447
        %v456 = vld.sshfl [vmem:[#allocation1] sm:$0xff pattern:$0x75316420]
        %v457 = vld.sshfl [vmem:[#allocation1 + $0x8] sm:$0xff pattern:$0x75316420]
        %v461 = vperm.slane %v443, 0
        %v462 = vperm.slane %v443, 1
        %463 = vrot.lane.b32.xlu0 %v461, 111
        %v464 = vpop.permute.xlu0 %463
        %465 = vrot.lane.b32.xlu0 %v462, 111
        %v466 = vpop.permute.xlu0 %465
        %vm467 = vcmask 908288
        %v468 = vsel %vm467, %v464, %v466
        %v472 = vmul.f32 %v464, 0.0
        %v473 = vmul.f32 %v450, %v468
        %v474 = vmul.f32 %v451, %v466
        %v475 = vld [vmem:[%s3] sm:$0x3f]
        %477 = vset.pattern.permute.xlu0 0
        %478 = vperm.xlu0 %477, %v475
        %v479 = vpop.permute.xlu0 %478
        %v481 = vperm.slane %v472, 0
        %v482 = vperm.slane %v473, 0
        %v483 = vperm.slane %v474, 0
        %v484 = vmul.f32 %v479, %v481
        %v485 = vmul.f32 %v479, %v482
        %v486 = vmul.f32 %v479, %v483
        %v487 = vadd.f32 %v484, 0.0
        %v488 = vadd.f32 %v485, 0.0
        %v489 = vadd.f32 %v486, 0.0
        %s490 = scalar_lea.vmem %s3, 8
        %v491 = vld [vmem:[%s490] sm:$0x3f]
        %493 = vset.pattern.permute.xlu0 0
        %494 = vperm.xlu0 %493, %v491
        %v495 = vpop.permute.xlu0 %494
        %v497 = vperm.slane %v472, 1
        %v498 = vperm.slane %v473, 1
        %v499 = vperm.slane %v474, 1
        %v500 = vmul.f32 %v495, %v497
        %v501 = vmul.f32 %v495, %v498
        %v502 = vmul.f32 %v495, %v499
        %v503 = vadd.f32 %v487, %v500
        %v504 = vadd.f32 %v488, %v501
        %v505 = vadd.f32 %v489, %v502
        %v506 = vmul.f32 %v456, %v468
        %v507 = vmul.f32 %v457, %v466
        %s508 = scalar_lea.vmem %s3, 16
        %v509 = vld [vmem:[%s508] sm:$0x3f]
        %511 = vset.pattern.permute.xlu0 0
        %512 = vperm.xlu0 %511, %v509
        %v513 = vpop.permute.xlu0 %512
        %v515 = vperm.slane %v506, 0
        %v516 = vperm.slane %v507, 0
        %v517 = vmul.f32 %v513, %v481
        %v518 = vmul.f32 %v513, %v515
        %v519 = vmul.f32 %v513, %v516
        %v520 = vadd.f32 %v503, %v517
        %v521 = vadd.f32 %v504, %v518
        %v522 = vadd.f32 %v505, %v519
        %s523 = scalar_lea.vmem %s3, 24
        %v524 = vld [vmem:[%s523] sm:$0x3f]
        %526 = vset.pattern.permute.xlu0 0
        %527 = vperm.xlu0 %526, %v524
        %v528 = vpop.permute.xlu0 %527
        %v530 = vperm.slane %v506, 1
        %v531 = vperm.slane %v507, 1
        %v532 = vmul.f32 %v528, %v497
        %v533 = vmul.f32 %v528, %v530
        %v534 = vmul.f32 %v528, %v531
        %v535 = vadd.f32 %v520, %v532
        %v536 = vadd.f32 %v521, %v533
        %v537 = vadd.f32 %v522, %v534
        %s538 = scalar_lea.vmem %s3, 32
        %v539 = vld [vmem:[%s538] sm:$0x3f]
        %541 = vset.pattern.permute.xlu0 0
        %542 = vperm.xlu0 %541, %v539
        %v543 = vpop.permute.xlu0 %542
        %v545 = vperm.slane %v472, 2
        %v546 = vperm.slane %v506, 2
        %v547 = vperm.slane %v507, 2
        %v548 = vmul.f32 %v543, %v545
        %v549 = vmul.f32 %v543, %v546
        %v550 = vmul.f32 %v543, %v547
        %v551 = vadd.f32 %v535, %v548
        %v552 = vadd.f32 %v536, %v549
        %v553 = vadd.f32 %v537, %v550
        %s554 = scalar_lea.vmem %s3, 40
        %v555 = vld [vmem:[%s554] sm:$0x3f]
        %557 = vset.pattern.permute.xlu0 0
        %558 = vperm.xlu0 %557, %v555
        %v559 = vpop.permute.xlu0 %558
        %v561 = vperm.slane %v472, 3
        %v562 = vperm.slane %v506, 3
        %v563 = vperm.slane %v507, 3
        %v564 = vmul.f32 %v559, %v561
        %v565 = vmul.f32 %v559, %v562
        %v566 = vmul.f32 %v559, %v563
        %v567 = vadd.f32 %v551, %v564
        %v568 = vadd.f32 %v552, %v565
        %v569 = vadd.f32 %v553, %v566
        %s570 = scalar_lea.vmem %s3, 48
        %v571 = vld [vmem:[%s570] sm:$0x3f]
        %573 = vset.pattern.permute.xlu0 0
        %574 = vperm.xlu0 %573, %v571
        %v575 = vpop.permute.xlu0 %574
        %v577 = vperm.slane 0.0, 0
        %v578 = vperm.slane %v450, 0
        %v579 = vperm.slane %v451, 0
        %v580 = vmul.f32 %v575, %v577
        %v581 = vmul.f32 %v575, %v578
        %v582 = vmul.f32 %v575, %v579
        %586 = vrot.lane.b32.xlu0 %v580, 127
        %v587 = vpop.permute.xlu0 %586
        %588 = vrot.lane.b32.xlu0 %v581, 127
        %v589 = vpop.permute.xlu0 %588
        %590 = vrot.lane.b32.xlu0 %v582, 127
        %v591 = vpop.permute.xlu0 %590
        %vm592 = vcmask 1039360
        %v593 = vsel %vm592, %v587, %v589
        %v594 = vsel %vm592, %v589, %v591
        %v598 = vadd.f32 %v567, %v593
        %v599 = vadd.f32 %v568, %v594
        %v600 = vadd.f32 %v569, %v591
        %s601 = scalar_lea.vmem %s3, 56
        %v602 = vld [vmem:[%s601] sm:$0x3f]
        %604 = vset.pattern.permute.xlu0 0
        %605 = vperm.xlu0 %604, %v602
        %v606 = vpop.permute.xlu0 %605
        %v608 = vperm.slane 0.0, 1
        %v609 = vperm.slane %v450, 1
        %v610 = vperm.slane %v451, 1
        %v611 = vmul.f32 %v606, %v608
        %v612 = vmul.f32 %v606, %v609
        %v613 = vmul.f32 %v606, %v610
        %617 = vrot.lane.b32.xlu0 %v611, 127
        %v618 = vpop.permute.xlu0 %617
        %619 = vrot.lane.b32.xlu0 %v612, 127
        %v620 = vpop.permute.xlu0 %619
        %621 = vrot.lane.b32.xlu0 %v613, 127
        %v622 = vpop.permute.xlu0 %621
        %v623 = vsel %vm592, %v618, %v620
        %v624 = vsel %vm592, %v620, %v622
        %v628 = vadd.f32 %v598, %v623
        %v629 = vadd.f32 %v599, %v624
        %v630 = vadd.f32 %v600, %v622
        %s631 = scalar_lea.vmem %s3, 64
        %v632 = vld [vmem:[%s631] sm:$0x3f]
        %634 = vset.pattern.permute.xlu0 0
        %635 = vperm.xlu0 %634, %v632
        %v636 = vpop.permute.xlu0 %635
        %v638 = vperm.slane %v456, 0
        %v639 = vperm.slane %v457, 0
        %v640 = vmul.f32 %v636, %v577
        %v641 = vmul.f32 %v636, %v638
        %v642 = vmul.f32 %v636, %v639
        %646 = vrot.lane.b32.xlu0 %v640, 127
        %v647 = vpop.permute.xlu0 %646
        %648 = vrot.lane.b32.xlu0 %v641, 127
        %v649 = vpop.permute.xlu0 %648
        %650 = vrot.lane.b32.xlu0 %v642, 127
        %v651 = vpop.permute.xlu0 %650
        %v652 = vsel %vm592, %v647, %v649
        %v653 = vsel %vm592, %v649, %v651
        %v657 = vadd.f32 %v628, %v652
        %v658 = vadd.f32 %v629, %v653
        %v659 = vadd.f32 %v630, %v651
        %s660 = scalar_lea.vmem %s3, 72
        %v661 = vld [vmem:[%s660] sm:$0x3f]
        %663 = vset.pattern.permute.xlu0 0
        %664 = vperm.xlu0 %663, %v661
        %v665 = vpop.permute.xlu0 %664
        %v667 = vperm.slane %v456, 1
        %v668 = vperm.slane %v457, 1
        %v669 = vmul.f32 %v665, %v608
        %v670 = vmul.f32 %v665, %v667
        %v671 = vmul.f32 %v665, %v668
        %675 = vrot.lane.b32.xlu0 %v669, 127
        %v676 = vpop.permute.xlu0 %675
        %677 = vrot.lane.b32.xlu0 %v670, 127
        %v678 = vpop.permute.xlu0 %677
        %679 = vrot.lane.b32.xlu0 %v671, 127
        %v680 = vpop.permute.xlu0 %679
        %v681 = vsel %vm592, %v676, %v678
        %v682 = vsel %vm592, %v678, %v680
        %v686 = vadd.f32 %v657, %v681
        %v687 = vadd.f32 %v658, %v682
        %v688 = vadd.f32 %v659, %v680
        %s689 = scalar_lea.vmem %s3, 80
        %v690 = vld [vmem:[%s689] sm:$0x3f]
        %692 = vset.pattern.permute.xlu0 0
        %693 = vperm.xlu0 %692, %v690
        %v694 = vpop.permute.xlu0 %693
        %v696 = vperm.slane 0.0, 2
        %v697 = vperm.slane %v456, 2
        %v698 = vperm.slane %v457, 2
        %v699 = vmul.f32 %v694, %v696
        %v700 = vmul.f32 %v694, %v697
        %v701 = vmul.f32 %v694, %v698
        %705 = vrot.lane.b32.xlu0 %v699, 127
        %v706 = vpop.permute.xlu0 %705
        %707 = vrot.lane.b32.xlu0 %v700, 127
        %v708 = vpop.permute.xlu0 %707
        %709 = vrot.lane.b32.xlu0 %v701, 127
        %v710 = vpop.permute.xlu0 %709
        %v711 = vsel %vm592, %v706, %v708
        %v712 = vsel %vm592, %v708, %v710
        %v716 = vadd.f32 %v686, %v711
        %v717 = vadd.f32 %v687, %v712
        %v718 = vadd.f32 %v688, %v710
        %s719 = scalar_lea.vmem %s3, 88
        %v720 = vld [vmem:[%s719] sm:$0x3f]
        %722 = vset.pattern.permute.xlu0 0
        %723 = vperm.xlu0 %722, %v720
        %v724 = vpop.permute.xlu0 %723
        %v726 = vperm.slane 0.0, 3
        %v727 = vperm.slane %v456, 3
        %v728 = vperm.slane %v457, 3
        %v729 = vmul.f32 %v724, %v726
        %v730 = vmul.f32 %v724, %v727
        %v731 = vmul.f32 %v724, %v728
        %735 = vrot.lane.b32.xlu0 %v729, 127
        %v736 = vpop.permute.xlu0 %735
        %737 = vrot.lane.b32.xlu0 %v730, 127
        %v738 = vpop.permute.xlu0 %737
        %739 = vrot.lane.b32.xlu0 %v731, 127
        %v740 = vpop.permute.xlu0 %739
        %v741 = vsel %vm592, %v736, %v738
        %v742 = vsel %vm592, %v738, %v740
        %v746 = vadd.f32 %v716, %v741
        %v747 = vadd.f32 %v717, %v742
        %v748 = vadd.f32 %v718, %v740
        %v750 = vperm.slane %v445, 0
        %v751 = vperm.slane %v445, 1
        %752 = vrot.lane.b32.xlu0 %v750, 113
        %v753 = vpop.permute.xlu0 %752
        %754 = vrot.lane.b32.xlu0 %v751, 113
        %v755 = vpop.permute.xlu0 %754
        %vm756 = vcmask 924672
        %v757 = vsel %vm756, %v753, %v755
        %v761 = vmul.f32 %v753, 0.0
        %v762 = vmul.f32 %v450, %v757
        %v763 = vmul.f32 %v451, %v755
        %s764 = scalar_lea.vmem %s3, 96
        %v765 = vld [vmem:[%s764] sm:$0x3f]
        %767 = vset.pattern.permute.xlu0 0
        %768 = vperm.xlu0 %767, %v765
        %v769 = vpop.permute.xlu0 %768
        %v771 = vperm.slane %v761, 0
        %v772 = vperm.slane %v762, 0
        %v773 = vperm.slane %v763, 0
        %v774 = vmul.f32 %v769, %v771
        %v775 = vmul.f32 %v769, %v772
        %v776 = vmul.f32 %v769, %v773
        %780 = vrot.lane.b32.xlu0 %v774, 126
        %v781 = vpop.permute.xlu0 %780
        %782 = vrot.lane.b32.xlu0 %v775, 126
        %v783 = vpop.permute.xlu0 %782
        %784 = vrot.lane.b32.xlu0 %v776, 126
        %v785 = vpop.permute.xlu0 %784
        %vm786 = vcmask 1031168
        %v787 = vsel %vm786, %v781, %v783
        %v788 = vsel %vm786, %v783, %v785
        %v792 = vadd.f32 %v746, %v787
        %v793 = vadd.f32 %v747, %v788
        %v794 = vadd.f32 %v748, %v785
        %s795 = scalar_lea.vmem %s3, 104
        %v796 = vld [vmem:[%s795] sm:$0x3f]
        %798 = vset.pattern.permute.xlu0 0
        %799 = vperm.xlu0 %798, %v796
        %v800 = vpop.permute.xlu0 %799
        %v802 = vperm.slane %v761, 1
        %v803 = vperm.slane %v762, 1
        %v804 = vperm.slane %v763, 1
        %v805 = vmul.f32 %v800, %v802
        %v806 = vmul.f32 %v800, %v803
        %v807 = vmul.f32 %v800, %v804
        %811 = vrot.lane.b32.xlu0 %v805, 126
        %v812 = vpop.permute.xlu0 %811
        %813 = vrot.lane.b32.xlu0 %v806, 126
        %v814 = vpop.permute.xlu0 %813
        %815 = vrot.lane.b32.xlu0 %v807, 126
        %v816 = vpop.permute.xlu0 %815
        %v817 = vsel %vm786, %v812, %v814
        %v818 = vsel %vm786, %v814, %v816
        %v822 = vadd.f32 %v792, %v817
        %v823 = vadd.f32 %v793, %v818
        %v824 = vadd.f32 %v794, %v816
        %v825 = vmul.f32 %v456, %v757
        %v826 = vmul.f32 %v457, %v755
        %s827 = scalar_lea.vmem %s3, 112
        %v828 = vld [vmem:[%s827] sm:$0x3f]
        %830 = vset.pattern.permute.xlu0 0
        %831 = vperm.xlu0 %830, %v828
        %v832 = vpop.permute.xlu0 %831
        %v834 = vperm.slane %v825, 0
        %v835 = vperm.slane %v826, 0
        %v836 = vmul.f32 %v832, %v771
        %v837 = vmul.f32 %v832, %v834
        %v838 = vmul.f32 %v832, %v835
        %842 = vrot.lane.b32.xlu0 %v836, 126
        %v843 = vpop.permute.xlu0 %842
        %844 = vrot.lane.b32.xlu0 %v837, 126
        %v845 = vpop.permute.xlu0 %844
        %846 = vrot.lane.b32.xlu0 %v838, 126
        %v847 = vpop.permute.xlu0 %846
        %v848 = vsel %vm786, %v843, %v845
        %v849 = vsel %vm786, %v845, %v847
        %v853 = vadd.f32 %v822, %v848
        %v854 = vadd.f32 %v823, %v849
        %v855 = vadd.f32 %v824, %v847
        %s856 = scalar_lea.vmem %s3, 120
        %v857 = vld [vmem:[%s856] sm:$0x3f]
        %859 = vset.pattern.permute.xlu0 0
        %860 = vperm.xlu0 %859, %v857
        %v861 = vpop.permute.xlu0 %860
        %v863 = vperm.slane %v825, 1
        %v864 = vperm.slane %v826, 1
        %v865 = vmul.f32 %v861, %v802
        %v866 = vmul.f32 %v861, %v863
        %v867 = vmul.f32 %v861, %v864
        %871 = vrot.lane.b32.xlu0 %v865, 126
        %v872 = vpop.permute.xlu0 %871
        %873 = vrot.lane.b32.xlu0 %v866, 126
        %v874 = vpop.permute.xlu0 %873
        %875 = vrot.lane.b32.xlu0 %v867, 126
        %v876 = vpop.permute.xlu0 %875
        %v877 = vsel %vm786, %v872, %v874
        %v878 = vsel %vm786, %v874, %v876
        %v882 = vadd.f32 %v853, %v877
        %v883 = vadd.f32 %v854, %v878
        %v884 = vadd.f32 %v855, %v876
        %s885 = scalar_lea.vmem %s3, 128
        %v886 = vld [vmem:[%s885] sm:$0x3f]
        %888 = vset.pattern.permute.xlu0 0
        %889 = vperm.xlu0 %888, %v886
        %v890 = vpop.permute.xlu0 %889
        %v892 = vperm.slane %v761, 2
        %v893 = vperm.slane %v825, 2
        %v894 = vperm.slane %v826, 2
        %v895 = vmul.f32 %v890, %v892
        %v896 = vmul.f32 %v890, %v893
        %v897 = vmul.f32 %v890, %v894
        %901 = vrot.lane.b32.xlu0 %v895, 126
        %v902 = vpop.permute.xlu0 %901
        %903 = vrot.lane.b32.xlu0 %v896, 126
        %v904 = vpop.permute.xlu0 %903
        %905 = vrot.lane.b32.xlu0 %v897, 126
        %v906 = vpop.permute.xlu0 %905
        %v907 = vsel %vm786, %v902, %v904
        %v908 = vsel %vm786, %v904, %v906
        %v912 = vadd.f32 %v882, %v907
        %v913 = vadd.f32 %v883, %v908
        %v914 = vadd.f32 %v884, %v906
        %s915 = scalar_lea.vmem %s3, 136
        %v916 = vld [vmem:[%s915] sm:$0x3f]
        %918 = vset.pattern.permute.xlu0 0
        %919 = vperm.xlu0 %918, %v916
        %v920 = vpop.permute.xlu0 %919
        %v922 = vperm.slane %v761, 3
        %v923 = vperm.slane %v825, 3
        %v924 = vperm.slane %v826, 3
        %v925 = vmul.f32 %v920, %v922
        %v926 = vmul.f32 %v920, %v923
        %v927 = vmul.f32 %v920, %v924
        %931 = vrot.lane.b32.xlu0 %v925, 126
        %v932 = vpop.permute.xlu0 %931
        %933 = vrot.lane.b32.xlu0 %v926, 126
        %v934 = vpop.permute.xlu0 %933
        %935 = vrot.lane.b32.xlu0 %v927, 126
        %v936 = vpop.permute.xlu0 %935
        %v937 = vsel %vm786, %v932, %v934
        %v938 = vsel %vm786, %v934, %v936
        %v942 = vadd.f32 %v912, %v937
        %v943 = vadd.f32 %v913, %v938
        %v944 = vadd.f32 %v914, %v936
        %945 = vrot.lane.b32.xlu0 %v461, 127
        %v946 = vpop.permute.xlu0 %945
        %947 = vrot.lane.b32.xlu0 %v462, 127
        %v948 = vpop.permute.xlu0 %947
        %v949 = vsel %vm592, %v946, %v948
        %v953 = vmul.f32 %v946, 0.0
        %v954 = vmul.f32 %v450, %v949
        %v955 = vmul.f32 %v451, %v948
        %s956 = scalar_lea.vmem %s3, 144
        %v957 = vld [vmem:[%s956] sm:$0x3f]
        %959 = vset.pattern.permute.xlu0 0
        %960 = vperm.xlu0 %959, %v957
        %v961 = vpop.permute.xlu0 %960
        %v963 = vperm.slane %v953, 0
        %v964 = vperm.slane %v954, 0
        %v965 = vperm.slane %v955, 0
        %v966 = vmul.f32 %v961, %v963
        %v967 = vmul.f32 %v961, %v964
        %v968 = vmul.f32 %v961, %v965
        %972 = vrot.lane.b32.xlu0 %v966, 112
        %v973 = vpop.permute.xlu0 %972
        %974 = vrot.lane.b32.xlu0 %v967, 112
        %v975 = vpop.permute.xlu0 %974
        %976 = vrot.lane.b32.xlu0 %v968, 112
        %v977 = vpop.permute.xlu0 %976
        %vm978 = vcmask 916480
        %v979 = vsel %vm978, %v973, %v975
        %v980 = vsel %vm978, %v975, %v977
        %v984 = vadd.f32 %v942, %v979
        %v985 = vadd.f32 %v943, %v980
        %v986 = vadd.f32 %v944, %v977
        %s987 = scalar_lea.vmem %s3, 152
        %v988 = vld [vmem:[%s987] sm:$0x3f]
        %990 = vset.pattern.permute.xlu0 0
        %991 = vperm.xlu0 %990, %v988
        %v992 = vpop.permute.xlu0 %991
        %v994 = vperm.slane %v953, 1
        %v995 = vperm.slane %v954, 1
        %v996 = vperm.slane %v955, 1
        %v997 = vmul.f32 %v992, %v994
        %v998 = vmul.f32 %v992, %v995
        %v999 = vmul.f32 %v992, %v996
        %1003 = vrot.lane.b32.xlu0 %v997, 112
        %v1004 = vpop.permute.xlu0 %1003
        %1005 = vrot.lane.b32.xlu0 %v998, 112
        %v1006 = vpop.permute.xlu0 %1005
        %1007 = vrot.lane.b32.xlu0 %v999, 112
        %v1008 = vpop.permute.xlu0 %1007
        %v1009 = vsel %vm978, %v1004, %v1006
        %v1010 = vsel %vm978, %v1006, %v1008
        %v1014 = vadd.f32 %v984, %v1009
        %v1015 = vadd.f32 %v985, %v1010
        %v1016 = vadd.f32 %v986, %v1008
        %v1017 = vmul.f32 %v456, %v949
        %v1018 = vmul.f32 %v457, %v948
        %s1019 = scalar_lea.vmem %s3, 160
        %v1020 = vld [vmem:[%s1019] sm:$0x3f]
        %1022 = vset.pattern.permute.xlu0 0
        %1023 = vperm.xlu0 %1022, %v1020
        %v1024 = vpop.permute.xlu0 %1023
        %v1026 = vperm.slane %v1017, 0
        %v1027 = vperm.slane %v1018, 0
        %v1028 = vmul.f32 %v1024, %v963
        %v1029 = vmul.f32 %v1024, %v1026
        %v1030 = vmul.f32 %v1024, %v1027
        %1034 = vrot.lane.b32.xlu0 %v1028, 112
        %v1035 = vpop.permute.xlu0 %1034
        %1036 = vrot.lane.b32.xlu0 %v1029, 112
        %v1037 = vpop.permute.xlu0 %1036
        %1038 = vrot.lane.b32.xlu0 %v1030, 112
        %v1039 = vpop.permute.xlu0 %1038
        %v1040 = vsel %vm978, %v1035, %v1037
        %v1041 = vsel %vm978, %v1037, %v1039
        %v1045 = vadd.f32 %v1014, %v1040
        %v1046 = vadd.f32 %v1015, %v1041
        %v1047 = vadd.f32 %v1016, %v1039
        %s1048 = scalar_lea.vmem %s3, 168
        %v1049 = vld [vmem:[%s1048] sm:$0x3f]
        %1051 = vset.pattern.permute.xlu0 0
        %1052 = vperm.xlu0 %1051, %v1049
        %v1053 = vpop.permute.xlu0 %1052
        %v1055 = vperm.slane %v1017, 1
        %v1056 = vperm.slane %v1018, 1
        %v1057 = vmul.f32 %v1053, %v994
        %v1058 = vmul.f32 %v1053, %v1055
        %v1059 = vmul.f32 %v1053, %v1056
        %1063 = vrot.lane.b32.xlu0 %v1057, 112
        %v1064 = vpop.permute.xlu0 %1063
        %1065 = vrot.lane.b32.xlu0 %v1058, 112
        %v1066 = vpop.permute.xlu0 %1065
        %1067 = vrot.lane.b32.xlu0 %v1059, 112
        %v1068 = vpop.permute.xlu0 %1067
        %v1069 = vsel %vm978, %v1064, %v1066
        %v1070 = vsel %vm978, %v1066, %v1068
        %v1074 = vadd.f32 %v1045, %v1069
        %v1075 = vadd.f32 %v1046, %v1070
        %v1076 = vadd.f32 %v1047, %v1068
        %s1077 = scalar_lea.vmem %s3, 176
        %v1078 = vld [vmem:[%s1077] sm:$0x3f]
        %1080 = vset.pattern.permute.xlu0 0
        %1081 = vperm.xlu0 %1080, %v1078
        %v1082 = vpop.permute.xlu0 %1081
        %v1084 = vperm.slane %v953, 2
        %v1085 = vperm.slane %v1017, 2
        %v1086 = vperm.slane %v1018, 2
        %v1087 = vmul.f32 %v1082, %v1084
        %v1088 = vmul.f32 %v1082, %v1085
        %v1089 = vmul.f32 %v1082, %v1086
        %1093 = vrot.lane.b32.xlu0 %v1087, 112
        %v1094 = vpop.permute.xlu0 %1093
        %1095 = vrot.lane.b32.xlu0 %v1088, 112
        %v1096 = vpop.permute.xlu0 %1095
        %1097 = vrot.lane.b32.xlu0 %v1089, 112
        %v1098 = vpop.permute.xlu0 %1097
        %v1099 = vsel %vm978, %v1094, %v1096
        %v1100 = vsel %vm978, %v1096, %v1098
        %v1104 = vadd.f32 %v1074, %v1099
        %v1105 = vadd.f32 %v1075, %v1100
        %v1106 = vadd.f32 %v1076, %v1098
        %s1107 = scalar_lea.vmem %s3, 184
        %v1108 = vld [vmem:[%s1107] sm:$0x3f]
        %1110 = vset.pattern.permute.xlu0 0
        %1111 = vperm.xlu0 %1110, %v1108
        %v1112 = vpop.permute.xlu0 %1111
        %v1114 = vperm.slane %v953, 3
        %v1115 = vperm.slane %v1017, 3
        %v1116 = vperm.slane %v1018, 3
        %v1117 = vmul.f32 %v1112, %v1114
        %v1118 = vmul.f32 %v1112, %v1115
        %v1119 = vmul.f32 %v1112, %v1116
        %1123 = vrot.lane.b32.xlu0 %v1117, 112
        %v1124 = vpop.permute.xlu0 %1123
        %1125 = vrot.lane.b32.xlu0 %v1118, 112
        %v1126 = vpop.permute.xlu0 %1125
        %1127 = vrot.lane.b32.xlu0 %v1119, 112
        %v1128 = vpop.permute.xlu0 %1127
        %v1129 = vsel %vm978, %v1124, %v1126
        %v1130 = vsel %vm978, %v1126, %v1128
        %v1134 = vadd.f32 %v1104, %v1129
        %v1135 = vadd.f32 %v1105, %v1130
        %v1136 = vadd.f32 %v1106, %v1128
        %s1137 = scalar_lea.vmem %s3, 192
        %v1138 = vld [vmem:[%s1137] sm:$0x3f]
        %1140 = vset.pattern.permute.xlu0 0
        %1141 = vperm.xlu0 %1140, %v1138
        %v1142 = vpop.permute.xlu0 %1141
        %v1144 = vperm.slane %v446, 0
        %v1145 = vperm.slane %v446, 4
        %v1148 = vperm.slane %v1144, 0
        %v1149 = vperm.slane %v1145, 0
        %v1150 = vmul.f32 %v1142, %v1148
        %v1151 = vmul.f32 %v1142, %v1149
        %1154 = vrot.lane.b32.xlu0 %v1150, 111
        %v1155 = vpop.permute.xlu0 %1154
        %1156 = vrot.lane.b32.xlu0 %v1151, 111
        %v1157 = vpop.permute.xlu0 %1156
        %v1158 = vsel %vm467, %v1155, %v1157
        %v1162 = vadd.f32 %v1134, %v1155
        %v1163 = vadd.f32 %v1135, %v1158
        %v1164 = vadd.f32 %v1136, %v1157
        %s1165 = scalar_lea.vmem %s3, 200
        %v1166 = vld [vmem:[%s1165] sm:$0x3f]
        %1168 = vset.pattern.permute.xlu0 0
        %1169 = vperm.xlu0 %1168, %v1166
        %v1170 = vpop.permute.xlu0 %1169
        %v1172 = vperm.slane %v446, 1
        %v1173 = vperm.slane %v446, 5
        %v1176 = vperm.slane %v1172, 1
        %v1177 = vperm.slane %v1173, 1
        %v1178 = vmul.f32 %v1170, %v1176
        %v1179 = vmul.f32 %v1170, %v1177
        %1182 = vrot.lane.b32.xlu0 %v1178, 111
        %v1183 = vpop.permute.xlu0 %1182
        %1184 = vrot.lane.b32.xlu0 %v1179, 111
        %v1185 = vpop.permute.xlu0 %1184
        %v1186 = vsel %vm467, %v1183, %v1185
        %v1190 = vadd.f32 %v1162, %v1183
        %v1191 = vadd.f32 %v1163, %v1186
        %v1192 = vadd.f32 %v1164, %v1185
        %s1193 = scalar_lea.vmem %s3, 208
        %v1194 = vld [vmem:[%s1193] sm:$0x3f]
        %1196 = vset.pattern.permute.xlu0 0
        %1197 = vperm.xlu0 %1196, %v1194
        %v1198 = vpop.permute.xlu0 %1197
        %v1200 = vperm.slane %v447, 0
        %v1201 = vperm.slane %v447, 4
        %v1204 = vperm.slane %v1200, 0
        %v1205 = vperm.slane %v1201, 0
        %v1206 = vmul.f32 %v1198, %v1204
        %v1207 = vmul.f32 %v1198, %v1205
        %1210 = vrot.lane.b32.xlu0 %v1206, 111
        %v1211 = vpop.permute.xlu0 %1210
        %1212 = vrot.lane.b32.xlu0 %v1207, 111
        %v1213 = vpop.permute.xlu0 %1212
        %v1214 = vsel %vm467, %v1211, %v1213
        %v1218 = vadd.f32 %v1190, %v1211
        %v1219 = vadd.f32 %v1191, %v1214
        %v1220 = vadd.f32 %v1192, %v1213
        %s1221 = scalar_lea.vmem %s3, 216
        %v1222 = vld [vmem:[%s1221] sm:$0x3f]
        %1224 = vset.pattern.permute.xlu0 0
        %1225 = vperm.xlu0 %1224, %v1222
        %v1226 = vpop.permute.xlu0 %1225
        %v1228 = vperm.slane %v447, 1
        %v1229 = vperm.slane %v447, 5
        %v1232 = vperm.slane %v1228, 1
        %v1233 = vperm.slane %v1229, 1
        %v1234 = vmul.f32 %v1226, %v1232
        %v1235 = vmul.f32 %v1226, %v1233
        %1238 = vrot.lane.b32.xlu0 %v1234, 111
        %v1239 = vpop.permute.xlu0 %1238
        %1240 = vrot.lane.b32.xlu0 %v1235, 111
        %v1241 = vpop.permute.xlu0 %1240
        %v1242 = vsel %vm467, %v1239, %v1241
        %v1246 = vadd.f32 %v1218, %v1239
        %v1247 = vadd.f32 %v1219, %v1242
        %v1248 = vadd.f32 %v1220, %v1241
        %s1249 = scalar_lea.vmem %s3, 224
        %v1250 = vld [vmem:[%s1249] sm:$0x3f]
        %1252 = vset.pattern.permute.xlu0 0
        %1253 = vperm.xlu0 %1252, %v1250
        %v1254 = vpop.permute.xlu0 %1253
        %v1256 = vperm.slane %v447, 2
        %v1257 = vperm.slane %v447, 6
        %v1260 = vperm.slane %v1256, 2
        %v1261 = vperm.slane %v1257, 2
        %v1262 = vmul.f32 %v1254, %v1260
        %v1263 = vmul.f32 %v1254, %v1261
        %1266 = vrot.lane.b32.xlu0 %v1262, 111
        %v1267 = vpop.permute.xlu0 %1266
        %1268 = vrot.lane.b32.xlu0 %v1263, 111
        %v1269 = vpop.permute.xlu0 %1268
        %v1270 = vsel %vm467, %v1267, %v1269
        %v1274 = vadd.f32 %v1246, %v1267
        %v1275 = vadd.f32 %v1247, %v1270
        %v1276 = vadd.f32 %v1248, %v1269
        %s1277 = scalar_lea.vmem %s3, 232
        %v1278 = vld [vmem:[%s1277] sm:$0x3f]
        %1280 = vset.pattern.permute.xlu0 0
        %1281 = vperm.xlu0 %1280, %v1278
        %v1282 = vpop.permute.xlu0 %1281
        %v1284 = vperm.slane %v447, 3
        %v1285 = vperm.slane %v447, 7
        %v1288 = vperm.slane %v1284, 3
        %v1289 = vperm.slane %v1285, 3
        %v1290 = vmul.f32 %v1282, %v1288
        %v1291 = vmul.f32 %v1282, %v1289
        %1294 = vrot.lane.b32.xlu0 %v1290, 111
        %v1295 = vpop.permute.xlu0 %1294
        %1296 = vrot.lane.b32.xlu0 %v1291, 111
        %v1297 = vpop.permute.xlu0 %1296
        %v1298 = vsel %vm467, %v1295, %v1297
        %v1302 = vadd.f32 %v1274, %v1295
        %v1303 = vadd.f32 %v1275, %v1298
        %v1304 = vadd.f32 %v1276, %v1297
        %1305 = vrot.lane.b32.xlu0 %v750, 1
        %v1306 = vpop.permute.xlu0 %1305
        %1307 = vrot.lane.b32.xlu0 %v751, 1
        %v1308 = vpop.permute.xlu0 %1307
        %vm1309 = vcmask 7168
        %v1310 = vsel %vm1309, %v1306, %v1308
        %v1314 = vmul.f32 %v450, %v1306
        %v1315 = vmul.f32 %v451, %v1310
        %v1316 = vmul.f32 %v1308, 0.0
        %s1317 = scalar_lea.vmem %s3, 240
        %v1318 = vld [vmem:[%s1317] sm:$0x3f]
        %1320 = vset.pattern.permute.xlu0 0
        %1321 = vperm.xlu0 %1320, %v1318
        %v1322 = vpop.permute.xlu0 %1321
        %v1324 = vperm.slane %v1314, 0
        %v1325 = vperm.slane %v1315, 0
        %v1326 = vperm.slane %v1316, 0
        %v1327 = vmul.f32 %v1322, %v1324
        %v1328 = vmul.f32 %v1322, %v1325
        %v1329 = vmul.f32 %v1322, %v1326
        %1333 = vrot.lane.b32.xlu0 %v1327, 110
        %v1334 = vpop.permute.xlu0 %1333
        %1335 = vrot.lane.b32.xlu0 %v1328, 110
        %v1336 = vpop.permute.xlu0 %1335
        %1337 = vrot.lane.b32.xlu0 %v1329, 110
        %v1338 = vpop.permute.xlu0 %1337
        %vm1339 = vcmask 900096
        %v1340 = vsel %vm1339, %v1334, %v1336
        %v1341 = vsel %vm1339, %v1336, %v1338
        %v1345 = vadd.f32 %v1302, %v1334
        %v1346 = vadd.f32 %v1303, %v1340
        %v1347 = vadd.f32 %v1304, %v1341
        %s1348 = scalar_lea.vmem %s3, 248
        %v1349 = vld [vmem:[%s1348] sm:$0x3f]
        %1351 = vset.pattern.permute.xlu0 0
        %1352 = vperm.xlu0 %1351, %v1349
        %v1353 = vpop.permute.xlu0 %1352
        %v1355 = vperm.slane %v1314, 1
        %v1356 = vperm.slane %v1315, 1
        %v1357 = vperm.slane %v1316, 1
        %v1358 = vmul.f32 %v1353, %v1355
        %v1359 = vmul.f32 %v1353, %v1356
        %v1360 = vmul.f32 %v1353, %v1357
        %1364 = vrot.lane.b32.xlu0 %v1358, 110
        %v1365 = vpop.permute.xlu0 %1364
        %1366 = vrot.lane.b32.xlu0 %v1359, 110
        %v1367 = vpop.permute.xlu0 %1366
        %1368 = vrot.lane.b32.xlu0 %v1360, 110
        %v1369 = vpop.permute.xlu0 %1368
        %v1370 = vsel %vm1339, %v1365, %v1367
        %v1371 = vsel %vm1339, %v1367, %v1369
        %v1375 = vadd.f32 %v1345, %v1365
        %v1376 = vadd.f32 %v1346, %v1370
        %v1377 = vadd.f32 %v1347, %v1371
        %v1378 = vmul.f32 %v456, %v1306
        %v1379 = vmul.f32 %v457, %v1310
        %s1380 = scalar_lea.vmem %s3, 256
        %v1381 = vld [vmem:[%s1380] sm:$0x3f]
        %1383 = vset.pattern.permute.xlu0 0
        %1384 = vperm.xlu0 %1383, %v1381
        %v1385 = vpop.permute.xlu0 %1384
        %v1387 = vperm.slane %v1378, 0
        %v1388 = vperm.slane %v1379, 0
        %v1389 = vmul.f32 %v1385, %v1387
        %v1390 = vmul.f32 %v1385, %v1388
        %v1391 = vmul.f32 %v1385, %v1326
        %1395 = vrot.lane.b32.xlu0 %v1389, 110
        %v1396 = vpop.permute.xlu0 %1395
        %1397 = vrot.lane.b32.xlu0 %v1390, 110
        %v1398 = vpop.permute.xlu0 %1397
        %1399 = vrot.lane.b32.xlu0 %v1391, 110
        %v1400 = vpop.permute.xlu0 %1399
        %v1401 = vsel %vm1339, %v1396, %v1398
        %v1402 = vsel %vm1339, %v1398, %v1400
        %v1406 = vadd.f32 %v1375, %v1396
        %v1407 = vadd.f32 %v1376, %v1401
        %v1408 = vadd.f32 %v1377, %v1402
        %s1409 = scalar_lea.vmem %s3, 264
        %v1410 = vld [vmem:[%s1409] sm:$0x3f]
        %1412 = vset.pattern.permute.xlu0 0
        %1413 = vperm.xlu0 %1412, %v1410
        %v1414 = vpop.permute.xlu0 %1413
        %v1416 = vperm.slane %v1378, 1
        %v1417 = vperm.slane %v1379, 1
        %v1418 = vmul.f32 %v1414, %v1416
        %v1419 = vmul.f32 %v1414, %v1417
        %v1420 = vmul.f32 %v1414, %v1357
        %1424 = vrot.lane.b32.xlu0 %v1418, 110
        %v1425 = vpop.permute.xlu0 %1424
        %1426 = vrot.lane.b32.xlu0 %v1419, 110
        %v1427 = vpop.permute.xlu0 %1426
        %1428 = vrot.lane.b32.xlu0 %v1420, 110
        %v1429 = vpop.permute.xlu0 %1428
        %v1430 = vsel %vm1339, %v1425, %v1427
        %v1431 = vsel %vm1339, %v1427, %v1429
        %v1435 = vadd.f32 %v1406, %v1425
        %v1436 = vadd.f32 %v1407, %v1430
        %v1437 = vadd.f32 %v1408, %v1431
        %s1438 = scalar_lea.vmem %s3, 272
        %v1439 = vld [vmem:[%s1438] sm:$0x3f]
        %1441 = vset.pattern.permute.xlu0 0
        %1442 = vperm.xlu0 %1441, %v1439
        %v1443 = vpop.permute.xlu0 %1442
        %v1445 = vperm.slane %v1378, 2
        %v1446 = vperm.slane %v1379, 2
        %v1447 = vperm.slane %v1316, 2
        %v1448 = vmul.f32 %v1443, %v1445
        %v1449 = vmul.f32 %v1443, %v1446
        %v1450 = vmul.f32 %v1443, %v1447
        %1454 = vrot.lane.b32.xlu0 %v1448, 110
        %v1455 = vpop.permute.xlu0 %1454
        %1456 = vrot.lane.b32.xlu0 %v1449, 110
        %v1457 = vpop.permute.xlu0 %1456
        %1458 = vrot.lane.b32.xlu0 %v1450, 110
        %v1459 = vpop.permute.xlu0 %1458
        %v1460 = vsel %vm1339, %v1455, %v1457
        %v1461 = vsel %vm1339, %v1457, %v1459
        %v1465 = vadd.f32 %v1435, %v1455
        %v1466 = vadd.f32 %v1436, %v1460
        %v1467 = vadd.f32 %v1437, %v1461
        %s1468 = scalar_lea.vmem %s3, 280
        %v1469 = vld [vmem:[%s1468] sm:$0x3f]
        %1471 = vset.pattern.permute.xlu0 0
        %1472 = vperm.xlu0 %1471, %v1469
        %v1473 = vpop.permute.xlu0 %1472
        %v1475 = vperm.slane %v1378, 3
        %v1476 = vperm.slane %v1379, 3
        %v1477 = vperm.slane %v1316, 3
        %v1478 = vmul.f32 %v1473, %v1475
        %v1479 = vmul.f32 %v1473, %v1476
        %v1480 = vmul.f32 %v1473, %v1477
        %1484 = vrot.lane.b32.xlu0 %v1478, 110
        %v1485 = vpop.permute.xlu0 %1484
        %1486 = vrot.lane.b32.xlu0 %v1479, 110
        %v1487 = vpop.permute.xlu0 %1486
        %1488 = vrot.lane.b32.xlu0 %v1480, 110
        %v1489 = vpop.permute.xlu0 %1488
        %v1490 = vsel %vm1339, %v1485, %v1487
        %v1491 = vsel %vm1339, %v1487, %v1489
        %v1495 = vadd.f32 %v1465, %v1485
        %v1496 = vadd.f32 %v1466, %v1490
        %v1497 = vadd.f32 %v1467, %v1491
        %1498 = vrot.lane.b32.xlu0 %v461, 15
        %v1499 = vpop.permute.xlu0 %1498
        %1500 = vrot.lane.b32.xlu0 %v462, 15
        %v1501 = vpop.permute.xlu0 %1500
        %vm1502 = vcmask 121856
        %v1503 = vsel %vm1502, %v1499, %v1501
        %v1507 = vmul.f32 %v450, %v1499
        %v1508 = vmul.f32 %v451, %v1503
        %v1509 = vmul.f32 %v1501, 0.0
        %s1510 = scalar_lea.vmem %s3, 288
        %v1511 = vld [vmem:[%s1510] sm:$0x3f]
        %1513 = vset.pattern.permute.xlu0 0
        %1514 = vperm.xlu0 %1513, %v1511
        %v1515 = vpop.permute.xlu0 %1514
        %v1517 = vperm.slane %v1507, 0
        %v1518 = vperm.slane %v1508, 0
        %v1519 = vperm.slane %v1509, 0
        %v1520 = vmul.f32 %v1515, %v1517
        %v1521 = vmul.f32 %v1515, %v1518
        %v1522 = vmul.f32 %v1515, %v1519
        %1526 = vrot.lane.b32.xlu0 %v1520, 96
        %v1527 = vpop.permute.xlu0 %1526
        %1528 = vrot.lane.b32.xlu0 %v1521, 96
        %v1529 = vpop.permute.xlu0 %1528
        %1530 = vrot.lane.b32.xlu0 %v1522, 96
        %v1531 = vpop.permute.xlu0 %1530
        %vm1532 = vcmask 785408
        %v1533 = vsel %vm1532, %v1527, %v1529
        %v1534 = vsel %vm1532, %v1529, %v1531
        %v1538 = vadd.f32 %v1495, %v1527
        %v1539 = vadd.f32 %v1496, %v1533
        %v1540 = vadd.f32 %v1497, %v1534
        %s1541 = scalar_lea.vmem %s3, 296
        %v1542 = vld [vmem:[%s1541] sm:$0x3f]
        %1544 = vset.pattern.permute.xlu0 0
        %1545 = vperm.xlu0 %1544, %v1542
        %v1546 = vpop.permute.xlu0 %1545
        %v1548 = vperm.slane %v1507, 1
        %v1549 = vperm.slane %v1508, 1
        %v1550 = vperm.slane %v1509, 1
        %v1551 = vmul.f32 %v1546, %v1548
        %v1552 = vmul.f32 %v1546, %v1549
        %v1553 = vmul.f32 %v1546, %v1550
        %1557 = vrot.lane.b32.xlu0 %v1551, 96
        %v1558 = vpop.permute.xlu0 %1557
        %1559 = vrot.lane.b32.xlu0 %v1552, 96
        %v1560 = vpop.permute.xlu0 %1559
        %1561 = vrot.lane.b32.xlu0 %v1553, 96
        %v1562 = vpop.permute.xlu0 %1561
        %v1563 = vsel %vm1532, %v1558, %v1560
        %v1564 = vsel %vm1532, %v1560, %v1562
        %v1568 = vadd.f32 %v1538, %v1558
        %v1569 = vadd.f32 %v1539, %v1563
        %v1570 = vadd.f32 %v1540, %v1564
        %v1571 = vmul.f32 %v456, %v1499
        %v1572 = vmul.f32 %v457, %v1503
        %s1573 = scalar_lea.vmem %s3, 304
        %v1574 = vld [vmem:[%s1573] sm:$0x3f]
        %1576 = vset.pattern.permute.xlu0 0
        %1577 = vperm.xlu0 %1576, %v1574
        %v1578 = vpop.permute.xlu0 %1577
        %v1580 = vperm.slane %v1571, 0
        %v1581 = vperm.slane %v1572, 0
        %v1582 = vmul.f32 %v1578, %v1580
        %v1583 = vmul.f32 %v1578, %v1581
        %v1584 = vmul.f32 %v1578, %v1519
        %1588 = vrot.lane.b32.xlu0 %v1582, 96
        %v1589 = vpop.permute.xlu0 %1588
        %1590 = vrot.lane.b32.xlu0 %v1583, 96
        %v1591 = vpop.permute.xlu0 %1590
        %1592 = vrot.lane.b32.xlu0 %v1584, 96
        %v1593 = vpop.permute.xlu0 %1592
        %v1594 = vsel %vm1532, %v1589, %v1591
        %v1595 = vsel %vm1532, %v1591, %v1593
        %v1599 = vadd.f32 %v1568, %v1589
        %v1600 = vadd.f32 %v1569, %v1594
        %v1601 = vadd.f32 %v1570, %v1595
        %s1602 = scalar_lea.vmem %s3, 312
        %v1603 = vld [vmem:[%s1602] sm:$0x3f]
        %1605 = vset.pattern.permute.xlu0 0
        %1606 = vperm.xlu0 %1605, %v1603
        %v1607 = vpop.permute.xlu0 %1606
        %v1609 = vperm.slane %v1571, 1
        %v1610 = vperm.slane %v1572, 1
        %v1611 = vmul.f32 %v1607, %v1609
        %v1612 = vmul.f32 %v1607, %v1610
        %v1613 = vmul.f32 %v1607, %v1550
        %1617 = vrot.lane.b32.xlu0 %v1611, 96
        %v1618 = vpop.permute.xlu0 %1617
        %1619 = vrot.lane.b32.xlu0 %v1612, 96
        %v1620 = vpop.permute.xlu0 %1619
        %1621 = vrot.lane.b32.xlu0 %v1613, 96
        %v1622 = vpop.permute.xlu0 %1621
        %v1623 = vsel %vm1532, %v1618, %v1620
        %v1624 = vsel %vm1532, %v1620, %v1622
        %v1628 = vadd.f32 %v1599, %v1618
        %v1629 = vadd.f32 %v1600, %v1623
        %v1630 = vadd.f32 %v1601, %v1624
        %s1631 = scalar_lea.vmem %s3, 320
        %v1632 = vld [vmem:[%s1631] sm:$0x3f]
        %1634 = vset.pattern.permute.xlu0 0
        %1635 = vperm.xlu0 %1634, %v1632
        %v1636 = vpop.permute.xlu0 %1635
        %v1638 = vperm.slane %v1571, 2
        %v1639 = vperm.slane %v1572, 2
        %v1640 = vperm.slane %v1509, 2
        %v1641 = vmul.f32 %v1636, %v1638
        %v1642 = vmul.f32 %v1636, %v1639
        %v1643 = vmul.f32 %v1636, %v1640
        %1647 = vrot.lane.b32.xlu0 %v1641, 96
        %v1648 = vpop.permute.xlu0 %1647
        %1649 = vrot.lane.b32.xlu0 %v1642, 96
        %v1650 = vpop.permute.xlu0 %1649
        %1651 = vrot.lane.b32.xlu0 %v1643, 96
        %v1652 = vpop.permute.xlu0 %1651
        %v1653 = vsel %vm1532, %v1648, %v1650
        %v1654 = vsel %vm1532, %v1650, %v1652
        %v1658 = vadd.f32 %v1628, %v1648
        %v1659 = vadd.f32 %v1629, %v1653
        %v1660 = vadd.f32 %v1630, %v1654
        %s1661 = scalar_lea.vmem %s3, 328
        %v1662 = vld [vmem:[%s1661] sm:$0x3f]
        %1664 = vset.pattern.permute.xlu0 0
        %1665 = vperm.xlu0 %1664, %v1662
        %v1666 = vpop.permute.xlu0 %1665
        %v1668 = vperm.slane %v1571, 3
        %v1669 = vperm.slane %v1572, 3
        %v1670 = vperm.slane %v1509, 3
        %v1671 = vmul.f32 %v1666, %v1668
        %v1672 = vmul.f32 %v1666, %v1669
        %v1673 = vmul.f32 %v1666, %v1670
        %1677 = vrot.lane.b32.xlu0 %v1671, 96
        %v1678 = vpop.permute.xlu0 %1677
        %1679 = vrot.lane.b32.xlu0 %v1672, 96
        %v1680 = vpop.permute.xlu0 %1679
        %1681 = vrot.lane.b32.xlu0 %v1673, 96
        %v1682 = vpop.permute.xlu0 %1681
        %v1683 = vsel %vm1532, %v1678, %v1680
        %v1684 = vsel %vm1532, %v1680, %v1682
        %v1688 = vadd.f32 %v1658, %v1678
        %v1689 = vadd.f32 %v1659, %v1683
        %v1690 = vadd.f32 %v1660, %v1684
        %s1691 = scalar_lea.vmem %s3, 336
        %v1692 = vld [vmem:[%s1691] sm:$0x3f]
        %1694 = vset.pattern.permute.xlu0 0
        %1695 = vperm.xlu0 %1694, %v1692
        %v1696 = vpop.permute.xlu0 %1695
        %v1698 = vmul.f32 %v1696, %v578
        %v1699 = vmul.f32 %v1696, %v579
        %v1700 = vmul.f32 %v1696, %v577
        %1704 = vrot.lane.b32.xlu0 %v1698, 95
        %v1705 = vpop.permute.xlu0 %1704
        %1706 = vrot.lane.b32.xlu0 %v1699, 95
        %v1707 = vpop.permute.xlu0 %1706
        %1708 = vrot.lane.b32.xlu0 %v1700, 95
        %v1709 = vpop.permute.xlu0 %1708
        %vm1710 = vcmask 777216
        %v1711 = vsel %vm1710, %v1705, %v1707
        %v1712 = vsel %vm1710, %v1707, %v1709
        %v1716 = vadd.f32 %v1688, %v1705
        %v1717 = vadd.f32 %v1689, %v1711
        %v1718 = vadd.f32 %v1690, %v1712
        %s1719 = scalar_lea.vmem %s3, 344
        %v1720 = vld [vmem:[%s1719] sm:$0x3f]
        %1722 = vset.pattern.permute.xlu0 0
        %1723 = vperm.xlu0 %1722, %v1720
        %v1724 = vpop.permute.xlu0 %1723
        %v1726 = vmul.f32 %v1724, %v609
        %v1727 = vmul.f32 %v1724, %v610
        %v1728 = vmul.f32 %v1724, %v608
        %1732 = vrot.lane.b32.xlu0 %v1726, 95
        %v1733 = vpop.permute.xlu0 %1732
        %1734 = vrot.lane.b32.xlu0 %v1727, 95
        %v1735 = vpop.permute.xlu0 %1734
        %1736 = vrot.lane.b32.xlu0 %v1728, 95
        %v1737 = vpop.permute.xlu0 %1736
        %v1738 = vsel %vm1710, %v1733, %v1735
        %v1739 = vsel %vm1710, %v1735, %v1737
        %v1743 = vadd.f32 %v1716, %v1733
        %v1744 = vadd.f32 %v1717, %v1738
        %v1745 = vadd.f32 %v1718, %v1739
        %s1746 = scalar_lea.vmem %s3, 352
        %v1747 = vld [vmem:[%s1746] sm:$0x3f]
        %1749 = vset.pattern.permute.xlu0 0
        %1750 = vperm.xlu0 %1749, %v1747
        %v1751 = vpop.permute.xlu0 %1750
        %v1753 = vmul.f32 %v1751, %v638
        %v1754 = vmul.f32 %v1751, %v639
        %v1755 = vmul.f32 %v1751, %v577
        %1759 = vrot.lane.b32.xlu0 %v1753, 95
        %v1760 = vpop.permute.xlu0 %1759
        %1761 = vrot.lane.b32.xlu0 %v1754, 95
        %v1762 = vpop.permute.xlu0 %1761
        %1763 = vrot.lane.b32.xlu0 %v1755, 95
        %v1764 = vpop.permute.xlu0 %1763
        %v1765 = vsel %vm1710, %v1760, %v1762
        %v1766 = vsel %vm1710, %v1762, %v1764
        %v1770 = vadd.f32 %v1743, %v1760
        %v1771 = vadd.f32 %v1744, %v1765
        %v1772 = vadd.f32 %v1745, %v1766
        %s1773 = scalar_lea.vmem %s3, 360
        %v1774 = vld [vmem:[%s1773] sm:$0x3f]
        %1776 = vset.pattern.permute.xlu0 0
        %1777 = vperm.xlu0 %1776, %v1774
        %v1778 = vpop.permute.xlu0 %1777
        %v1780 = vmul.f32 %v1778, %v667
        %v1781 = vmul.f32 %v1778, %v668
        %v1782 = vmul.f32 %v1778, %v608
        %1786 = vrot.lane.b32.xlu0 %v1780, 95
        %v1787 = vpop.permute.xlu0 %1786
        %1788 = vrot.lane.b32.xlu0 %v1781, 95
        %v1789 = vpop.permute.xlu0 %1788
        %1790 = vrot.lane.b32.xlu0 %v1782, 95
        %v1791 = vpop.permute.xlu0 %1790
        %v1792 = vsel %vm1710, %v1787, %v1789
        %v1793 = vsel %vm1710, %v1789, %v1791
        %v1797 = vadd.f32 %v1770, %v1787
        %v1798 = vadd.f32 %v1771, %v1792
        %v1799 = vadd.f32 %v1772, %v1793
        %s1800 = scalar_lea.vmem %s3, 368
        %v1801 = vld [vmem:[%s1800] sm:$0x3f]
        %1803 = vset.pattern.permute.xlu0 0
        %1804 = vperm.xlu0 %1803, %v1801
        %v1805 = vpop.permute.xlu0 %1804
        %v1807 = vmul.f32 %v1805, %v697
        %v1808 = vmul.f32 %v1805, %v698
        %v1809 = vmul.f32 %v1805, %v696
        %1813 = vrot.lane.b32.xlu0 %v1807, 95
        %v1814 = vpop.permute.xlu0 %1813
        %1815 = vrot.lane.b32.xlu0 %v1808, 95
        %v1816 = vpop.permute.xlu0 %1815
        %1817 = vrot.lane.b32.xlu0 %v1809, 95
        %v1818 = vpop.permute.xlu0 %1817
        %v1819 = vsel %vm1710, %v1814, %v1816
        %v1820 = vsel %vm1710, %v1816, %v1818
        %v1824 = vadd.f32 %v1797, %v1814
        %v1825 = vadd.f32 %v1798, %v1819
        %v1826 = vadd.f32 %v1799, %v1820
        %s1827 = scalar_lea.vmem %s3, 376
        %v1828 = vld [vmem:[%s1827] sm:$0x3f]
        %1830 = vset.pattern.permute.xlu0 0
        %1831 = vperm.xlu0 %1830, %v1828
        %v1832 = vpop.permute.xlu0 %1831
        %v1834 = vmul.f32 %v1832, %v727
        %v1835 = vmul.f32 %v1832, %v728
        %v1836 = vmul.f32 %v1832, %v726
        %1840 = vrot.lane.b32.xlu0 %v1834, 95
        %v1841 = vpop.permute.xlu0 %1840
        %1842 = vrot.lane.b32.xlu0 %v1835, 95
        %v1843 = vpop.permute.xlu0 %1842
        %1844 = vrot.lane.b32.xlu0 %v1836, 95
        %v1845 = vpop.permute.xlu0 %1844
        %v1846 = vsel %vm1710, %v1841, %v1843
        %v1847 = vsel %vm1710, %v1843, %v1845
        %v1851 = vadd.f32 %v1824, %v1841
        %v1852 = vadd.f32 %v1825, %v1846
        %v1853 = vadd.f32 %v1826, %v1847
        %1854 = vrot.lane.b32.xlu0 %v750, 17
        %v1855 = vpop.permute.xlu0 %1854
        %1856 = vrot.lane.b32.xlu0 %v751, 17
        %v1857 = vpop.permute.xlu0 %1856
        %vm1858 = vcmask 138240
        %v1859 = vsel %vm1858, %v1855, %v1857
        %v1863 = vmul.f32 %v450, %v1855
        %v1864 = vmul.f32 %v451, %v1859
        %v1865 = vmul.f32 %v1857, 0.0
        %s1866 = scalar_lea.vmem %s3, 384
        %v1867 = vld [vmem:[%s1866] sm:$0x3f]
        %1869 = vset.pattern.permute.xlu0 0
        %1870 = vperm.xlu0 %1869, %v1867
        %v1871 = vpop.permute.xlu0 %1870
        %v1873 = vperm.slane %v1863, 0
        %v1874 = vperm.slane %v1864, 0
        %v1875 = vperm.slane %v1865, 0
        %v1876 = vmul.f32 %v1871, %v1873
        %v1877 = vmul.f32 %v1871, %v1874
        %v1878 = vmul.f32 %v1871, %v1875
        %1882 = vrot.lane.b32.xlu0 %v1876, 94
        %v1883 = vpop.permute.xlu0 %1882
        %1884 = vrot.lane.b32.xlu0 %v1877, 94
        %v1885 = vpop.permute.xlu0 %1884
        %1886 = vrot.lane.b32.xlu0 %v1878, 94
        %v1887 = vpop.permute.xlu0 %1886
        %vm1888 = vcmask 769024
        %v1889 = vsel %vm1888, %v1883, %v1885
        %v1890 = vsel %vm1888, %v1885, %v1887
        %v1894 = vadd.f32 %v1851, %v1883
        %v1895 = vadd.f32 %v1852, %v1889
        %v1896 = vadd.f32 %v1853, %v1890
        %s1897 = scalar_lea.vmem %s3, 392
        %v1898 = vld [vmem:[%s1897] sm:$0x3f]
        %1900 = vset.pattern.permute.xlu0 0
        %1901 = vperm.xlu0 %1900, %v1898
        %v1902 = vpop.permute.xlu0 %1901
        %v1904 = vperm.slane %v1863, 1
        %v1905 = vperm.slane %v1864, 1
        %v1906 = vperm.slane %v1865, 1
        %v1907 = vmul.f32 %v1902, %v1904
        %v1908 = vmul.f32 %v1902, %v1905
        %v1909 = vmul.f32 %v1902, %v1906
        %1913 = vrot.lane.b32.xlu0 %v1907, 94
        %v1914 = vpop.permute.xlu0 %1913
        %1915 = vrot.lane.b32.xlu0 %v1908, 94
        %v1916 = vpop.permute.xlu0 %1915
        %1917 = vrot.lane.b32.xlu0 %v1909, 94
        %v1918 = vpop.permute.xlu0 %1917
        %v1919 = vsel %vm1888, %v1914, %v1916
        %v1920 = vsel %vm1888, %v1916, %v1918
        %v1924 = vadd.f32 %v1894, %v1914
        %v1925 = vadd.f32 %v1895, %v1919
        %v1926 = vadd.f32 %v1896, %v1920
        %v1927 = vmul.f32 %v456, %v1855
        %v1928 = vmul.f32 %v457, %v1859
        %s1929 = scalar_lea.vmem %s3, 400
        %v1930 = vld [vmem:[%s1929] sm:$0x3f]
        %1932 = vset.pattern.permute.xlu0 0
        %1933 = vperm.xlu0 %1932, %v1930
        %v1934 = vpop.permute.xlu0 %1933
        %v1936 = vperm.slane %v1927, 0
        %v1937 = vperm.slane %v1928, 0
        %v1938 = vmul.f32 %v1934, %v1936
        %v1939 = vmul.f32 %v1934, %v1937
        %v1940 = vmul.f32 %v1934, %v1875
        %1944 = vrot.lane.b32.xlu0 %v1938, 94
        %v1945 = vpop.permute.xlu0 %1944
        %1946 = vrot.lane.b32.xlu0 %v1939, 94
        %v1947 = vpop.permute.xlu0 %1946
        %1948 = vrot.lane.b32.xlu0 %v1940, 94
        %v1949 = vpop.permute.xlu0 %1948
        %v1950 = vsel %vm1888, %v1945, %v1947
        %v1951 = vsel %vm1888, %v1947, %v1949
        %v1955 = vadd.f32 %v1924, %v1945
        %v1956 = vadd.f32 %v1925, %v1950
        %v1957 = vadd.f32 %v1926, %v1951
        %s1958 = scalar_lea.vmem %s3, 408
        %v1959 = vld [vmem:[%s1958] sm:$0x3f]
        %1961 = vset.pattern.permute.xlu0 0
        %1962 = vperm.xlu0 %1961, %v1959
        %v1963 = vpop.permute.xlu0 %1962
        %v1965 = vperm.slane %v1927, 1
        %v1966 = vperm.slane %v1928, 1
        %v1967 = vmul.f32 %v1963, %v1965
        %v1968 = vmul.f32 %v1963, %v1966
        %v1969 = vmul.f32 %v1963, %v1906
        %1973 = vrot.lane.b32.xlu0 %v1967, 94
        %v1974 = vpop.permute.xlu0 %1973
        %1975 = vrot.lane.b32.xlu0 %v1968, 94
        %v1976 = vpop.permute.xlu0 %1975
        %1977 = vrot.lane.b32.xlu0 %v1969, 94
        %v1978 = vpop.permute.xlu0 %1977
        %v1979 = vsel %vm1888, %v1974, %v1976
        %v1980 = vsel %vm1888, %v1976, %v1978
        %v1984 = vadd.f32 %v1955, %v1974
        %v1985 = vadd.f32 %v1956, %v1979
        %v1986 = vadd.f32 %v1957, %v1980
        %s1987 = scalar_lea.vmem %s3, 416
        %v1988 = vld [vmem:[%s1987] sm:$0x3f]
        %1990 = vset.pattern.permute.xlu0 0
        %1991 = vperm.xlu0 %1990, %v1988
        %v1992 = vpop.permute.xlu0 %1991
        %v1994 = vperm.slane %v1927, 2
        %v1995 = vperm.slane %v1928, 2
        %v1996 = vperm.slane %v1865, 2
        %v1997 = vmul.f32 %v1992, %v1994
        %v1998 = vmul.f32 %v1992, %v1995
        %v1999 = vmul.f32 %v1992, %v1996
        %2003 = vrot.lane.b32.xlu0 %v1997, 94
        %v2004 = vpop.permute.xlu0 %2003
        %2005 = vrot.lane.b32.xlu0 %v1998, 94
        %v2006 = vpop.permute.xlu0 %2005
        %2007 = vrot.lane.b32.xlu0 %v1999, 94
        %v2008 = vpop.permute.xlu0 %2007
        %v2009 = vsel %vm1888, %v2004, %v2006
        %v2010 = vsel %vm1888, %v2006, %v2008
        %v2014 = vadd.f32 %v1984, %v2004
        %v2015 = vadd.f32 %v1985, %v2009
        %v2016 = vadd.f32 %v1986, %v2010
        %s2017 = scalar_lea.vmem %s3, 424
        %v2018 = vld [vmem:[%s2017] sm:$0x3f]
        %2020 = vset.pattern.permute.xlu0 0
        %2021 = vperm.xlu0 %2020, %v2018
        %v2022 = vpop.permute.xlu0 %2021
        %v2024 = vperm.slane %v1927, 3
        %v2025 = vperm.slane %v1928, 3
        %v2026 = vperm.slane %v1865, 3
        %v2027 = vmul.f32 %v2022, %v2024
        %v2028 = vmul.f32 %v2022, %v2025
        %v2029 = vmul.f32 %v2022, %v2026
        %2033 = vrot.lane.b32.xlu0 %v2027, 94
        %v2034 = vpop.permute.xlu0 %2033
        %2035 = vrot.lane.b32.xlu0 %v2028, 94
        %v2036 = vpop.permute.xlu0 %2035
        %2037 = vrot.lane.b32.xlu0 %v2029, 94
        %v2038 = vpop.permute.xlu0 %2037
        %v2039 = vsel %vm1888, %v2034, %v2036
        %v2040 = vsel %vm1888, %v2036, %v2038
        %v2044 = vadd.f32 %v2014, %v2034
        %v2045 = vadd.f32 %v2015, %v2039
        %v2046 = vadd.f32 %v2016, %v2040
        %v2047 = vld [vmem:[%s4] sm:$0x3f]
        %2049 = vset.pattern.permute.xlu0 0
        %2050 = vperm.xlu0 %2049, %v2047
        %v2051 = vpop.permute.xlu0 %2050
        %v2053 = vadd.f32 %v2044, %v2051
        %v2054 = vadd.f32 %v2045, %v2051
        %v2055 = vadd.f32 %v2046, %v2051
        %v2059 = vrot.slane %v2053, 3
        %v2060 = vrot.slane %v2054, 3
        %v2061 = vrot.slane %v2055, 3
        %v2065 = vmul.f32 %v2053, %v2059
        %v2066 = vmul.f32 %v2054, %v2060
        %v2067 = vmul.f32 %v2055, %v2061
        %2071 = vrot.lane.b32.xlu0 %v2065, 17
        %v2072 = vpop.permute.xlu0 %2071
        %2073 = vrot.lane.b32.xlu0 %v2066, 17
        %v2074 = vpop.permute.xlu0 %2073
        %2075 = vrot.lane.b32.xlu0 %v2067, 17
        %v2076 = vpop.permute.xlu0 %2075
        %v2077 = vsel %vm1858, %v2072, %v2074
        %v2078 = vsel %vm1858, %v2074, %v2076
        %v2081 = vmul.f32 %v2077, %v468
        %v2082 = vmul.f32 %v2078, %v466
        %v2083 = vld [vmem:[%s5] sm:$0xf]
        %2085 = vset.pattern.permute.xlu0 0
        %2086 = vperm.xlu0 %2085, %v2083
        %v2087 = vpop.permute.xlu0 %2086
        %v2089 = vperm.slane %v2081, 0
        %v2090 = vperm.slane %v2082, 0
        %v2091 = vmul.f32 %v2087, %v481
        %v2092 = vmul.f32 %v2087, %v2089
        %v2093 = vmul.f32 %v2087, %v2090
        %v2094 = vadd.f32 %v2091, 0.0
        %v2095 = vadd.f32 %v2092, 0.0
        %v2096 = vadd.f32 %v2093, 0.0
        %s2097 = scalar_lea.vmem %s5, 4
        %v2098 = vld [vmem:[%s2097] sm:$0xf]
        %2100 = vset.pattern.permute.xlu0 0
        %2101 = vperm.xlu0 %2100, %v2098
        %v2102 = vpop.permute.xlu0 %2101
        %v2104 = vperm.slane %v2081, 1
        %v2105 = vperm.slane %v2082, 1
        %v2106 = vmul.f32 %v2102, %v497
        %v2107 = vmul.f32 %v2102, %v2104
        %v2108 = vmul.f32 %v2102, %v2105
        %v2109 = vadd.f32 %v2094, %v2106
        %v2110 = vadd.f32 %v2095, %v2107
        %v2111 = vadd.f32 %v2096, %v2108
        %s2112 = scalar_lea.vmem %s5, 8
        %v2113 = vld [vmem:[%s2112] sm:$0xf]
        %2115 = vset.pattern.permute.xlu0 0
        %2116 = vperm.xlu0 %2115, %v2113
        %v2117 = vpop.permute.xlu0 %2116
        %v2119 = vperm.slane %v2081, 2
        %v2120 = vperm.slane %v2082, 2
        %v2121 = vmul.f32 %v2117, %v545
        %v2122 = vmul.f32 %v2117, %v2119
        %v2123 = vmul.f32 %v2117, %v2120
        %v2124 = vadd.f32 %v2109, %v2121
        %v2125 = vadd.f32 %v2110, %v2122
        %v2126 = vadd.f32 %v2111, %v2123
        %s2127 = scalar_lea.vmem %s5, 12
        %v2128 = vld [vmem:[%s2127] sm:$0xf]
        %2130 = vset.pattern.permute.xlu0 0
        %2131 = vperm.xlu0 %2130, %v2128
        %v2132 = vpop.permute.xlu0 %2131
        %v2134 = vperm.slane %v2077, 0
        %v2135 = vperm.slane %v2078, 0
        %v2136 = vmul.f32 %v2132, %v577
        %v2137 = vmul.f32 %v2132, %v2134
        %v2138 = vmul.f32 %v2132, %v2135
        %2142 = vrot.lane.b32.xlu0 %v2136, 127
        %v2143 = vpop.permute.xlu0 %2142
        %2144 = vrot.lane.b32.xlu0 %v2137, 127
        %v2145 = vpop.permute.xlu0 %2144
        %2146 = vrot.lane.b32.xlu0 %v2138, 127
        %v2147 = vpop.permute.xlu0 %2146
        %v2148 = vsel %vm592, %v2143, %v2145
        %v2149 = vsel %vm592, %v2145, %v2147
        %v2153 = vadd.f32 %v2124, %v2148
        %v2154 = vadd.f32 %v2125, %v2149
        %v2155 = vadd.f32 %v2126, %v2147
        %s2156 = scalar_lea.vmem %s5, 16
        %v2157 = vld [vmem:[%s2156] sm:$0xf]
        %2159 = vset.pattern.permute.xlu0 0
        %2160 = vperm.xlu0 %2159, %v2157
        %v2161 = vpop.permute.xlu0 %2160
        %v2163 = vperm.slane %v2077, 1
        %v2164 = vperm.slane %v2078, 1
        %v2165 = vmul.f32 %v2161, %v608
        %v2166 = vmul.f32 %v2161, %v2163
        %v2167 = vmul.f32 %v2161, %v2164
        %2171 = vrot.lane.b32.xlu0 %v2165, 127
        %v2172 = vpop.permute.xlu0 %2171
        %2173 = vrot.lane.b32.xlu0 %v2166, 127
        %v2174 = vpop.permute.xlu0 %2173
        %2175 = vrot.lane.b32.xlu0 %v2167, 127
        %v2176 = vpop.permute.xlu0 %2175
        %v2177 = vsel %vm592, %v2172, %v2174
        %v2178 = vsel %vm592, %v2174, %v2176
        %v2182 = vadd.f32 %v2153, %v2177
        %v2183 = vadd.f32 %v2154, %v2178
        %v2184 = vadd.f32 %v2155, %v2176
        %s2185 = scalar_lea.vmem %s5, 20
        %v2186 = vld [vmem:[%s2185] sm:$0xf]
        %2188 = vset.pattern.permute.xlu0 0
        %2189 = vperm.xlu0 %2188, %v2186
        %v2190 = vpop.permute.xlu0 %2189
        %v2192 = vperm.slane %v2077, 2
        %v2193 = vperm.slane %v2078, 2
        %v2194 = vmul.f32 %v2190, %v696
        %v2195 = vmul.f32 %v2190, %v2192
        %v2196 = vmul.f32 %v2190, %v2193
        %2200 = vrot.lane.b32.xlu0 %v2194, 127
        %v2201 = vpop.permute.xlu0 %2200
        %2202 = vrot.lane.b32.xlu0 %v2195, 127
        %v2203 = vpop.permute.xlu0 %2202
        %2204 = vrot.lane.b32.xlu0 %v2196, 127
        %v2205 = vpop.permute.xlu0 %2204
        %v2206 = vsel %vm592, %v2201, %v2203
        %v2207 = vsel %vm592, %v2203, %v2205
        %v2211 = vadd.f32 %v2182, %v2206
        %v2212 = vadd.f32 %v2183, %v2207
        %v2213 = vadd.f32 %v2184, %v2205
        %v2214 = vmul.f32 %v2077, %v757
        %v2215 = vmul.f32 %v2078, %v755
        %s2216 = scalar_lea.vmem %s5, 24
        %v2217 = vld [vmem:[%s2216] sm:$0xf]
        %2219 = vset.pattern.permute.xlu0 0
        %2220 = vperm.xlu0 %2219, %v2217
        %v2221 = vpop.permute.xlu0 %2220
        %v2223 = vperm.slane %v2214, 0
        %v2224 = vperm.slane %v2215, 0
        %v2225 = vmul.f32 %v2221, %v771
        %v2226 = vmul.f32 %v2221, %v2223
        %v2227 = vmul.f32 %v2221, %v2224
        %2231 = vrot.lane.b32.xlu0 %v2225, 126
        %v2232 = vpop.permute.xlu0 %2231
        %2233 = vrot.lane.b32.xlu0 %v2226, 126
        %v2234 = vpop.permute.xlu0 %2233
        %2235 = vrot.lane.b32.xlu0 %v2227, 126
        %v2236 = vpop.permute.xlu0 %2235
        %v2237 = vsel %vm786, %v2232, %v2234
        %v2238 = vsel %vm786, %v2234, %v2236
        %v2242 = vadd.f32 %v2211, %v2237
        %v2243 = vadd.f32 %v2212, %v2238
        %v2244 = vadd.f32 %v2213, %v2236
        %s2245 = scalar_lea.vmem %s5, 28
        %v2246 = vld [vmem:[%s2245] sm:$0xf]
        %2248 = vset.pattern.permute.xlu0 0
        %2249 = vperm.xlu0 %2248, %v2246
        %v2250 = vpop.permute.xlu0 %2249
        %v2252 = vperm.slane %v2214, 1
        %v2253 = vperm.slane %v2215, 1
        %v2254 = vmul.f32 %v2250, %v802
        %v2255 = vmul.f32 %v2250, %v2252
        %v2256 = vmul.f32 %v2250, %v2253
        %2260 = vrot.lane.b32.xlu0 %v2254, 126
        %v2261 = vpop.permute.xlu0 %2260
        %2262 = vrot.lane.b32.xlu0 %v2255, 126
        %v2263 = vpop.permute.xlu0 %2262
        %2264 = vrot.lane.b32.xlu0 %v2256, 126
        %v2265 = vpop.permute.xlu0 %2264
        %v2266 = vsel %vm786, %v2261, %v2263
        %v2267 = vsel %vm786, %v2263, %v2265
        %v2271 = vadd.f32 %v2242, %v2266
        %v2272 = vadd.f32 %v2243, %v2267
        %v2273 = vadd.f32 %v2244, %v2265
        %s2274 = scalar_lea.vmem %s5, 32
        %v2275 = vld [vmem:[%s2274] sm:$0xf]
        %2277 = vset.pattern.permute.xlu0 0
        %2278 = vperm.xlu0 %2277, %v2275
        %v2279 = vpop.permute.xlu0 %2278
        %v2281 = vperm.slane %v2214, 2
        %v2282 = vperm.slane %v2215, 2
        %v2283 = vmul.f32 %v2279, %v892
        %v2284 = vmul.f32 %v2279, %v2281
        %v2285 = vmul.f32 %v2279, %v2282
        %2289 = vrot.lane.b32.xlu0 %v2283, 126
        %v2290 = vpop.permute.xlu0 %2289
        %2291 = vrot.lane.b32.xlu0 %v2284, 126
        %v2292 = vpop.permute.xlu0 %2291
        %2293 = vrot.lane.b32.xlu0 %v2285, 126
        %v2294 = vpop.permute.xlu0 %2293
        %v2295 = vsel %vm786, %v2290, %v2292
        %v2296 = vsel %vm786, %v2292, %v2294
        %v2300 = vadd.f32 %v2271, %v2295
        %v2301 = vadd.f32 %v2272, %v2296
        %v2302 = vadd.f32 %v2273, %v2294
        %v2303 = vmul.f32 %v2077, %v949
        %v2304 = vmul.f32 %v2078, %v948
        %s2305 = scalar_lea.vmem %s5, 36
        %v2306 = vld [vmem:[%s2305] sm:$0xf]
        %2308 = vset.pattern.permute.xlu0 0
        %2309 = vperm.xlu0 %2308, %v2306
        %v2310 = vpop.permute.xlu0 %2309
        %v2312 = vperm.slane %v2303, 0
        %v2313 = vperm.slane %v2304, 0
        %v2314 = vmul.f32 %v2310, %v963
        %v2315 = vmul.f32 %v2310, %v2312
        %v2316 = vmul.f32 %v2310, %v2313
        %2320 = vrot.lane.b32.xlu0 %v2314, 112
        %v2321 = vpop.permute.xlu0 %2320
        %2322 = vrot.lane.b32.xlu0 %v2315, 112
        %v2323 = vpop.permute.xlu0 %2322
        %2324 = vrot.lane.b32.xlu0 %v2316, 112
        %v2325 = vpop.permute.xlu0 %2324
        %v2326 = vsel %vm978, %v2321, %v2323
        %v2327 = vsel %vm978, %v2323, %v2325
        %v2331 = vadd.f32 %v2300, %v2326
        %v2332 = vadd.f32 %v2301, %v2327
        %v2333 = vadd.f32 %v2302, %v2325
        %s2334 = scalar_lea.vmem %s5, 40
        %v2335 = vld [vmem:[%s2334] sm:$0xf]
        %2337 = vset.pattern.permute.xlu0 0
        %2338 = vperm.xlu0 %2337, %v2335
        %v2339 = vpop.permute.xlu0 %2338
        %v2341 = vperm.slane %v2303, 1
        %v2342 = vperm.slane %v2304, 1
        %v2343 = vmul.f32 %v2339, %v994
        %v2344 = vmul.f32 %v2339, %v2341
        %v2345 = vmul.f32 %v2339, %v2342
        %2349 = vrot.lane.b32.xlu0 %v2343, 112
        %v2350 = vpop.permute.xlu0 %2349
        %2351 = vrot.lane.b32.xlu0 %v2344, 112
        %v2352 = vpop.permute.xlu0 %2351
        %2353 = vrot.lane.b32.xlu0 %v2345, 112
        %v2354 = vpop.permute.xlu0 %2353
        %v2355 = vsel %vm978, %v2350, %v2352
        %v2356 = vsel %vm978, %v2352, %v2354
        %v2360 = vadd.f32 %v2331, %v2355
        %v2361 = vadd.f32 %v2332, %v2356
        %v2362 = vadd.f32 %v2333, %v2354
        %s2363 = scalar_lea.vmem %s5, 44
        %v2364 = vld [vmem:[%s2363] sm:$0xf]
        %2366 = vset.pattern.permute.xlu0 0
        %2367 = vperm.xlu0 %2366, %v2364
        %v2368 = vpop.permute.xlu0 %2367
        %v2370 = vperm.slane %v2303, 2
        %v2371 = vperm.slane %v2304, 2
        %v2372 = vmul.f32 %v2368, %v1084
        %v2373 = vmul.f32 %v2368, %v2370
        %v2374 = vmul.f32 %v2368, %v2371
        %2378 = vrot.lane.b32.xlu0 %v2372, 112
        %v2379 = vpop.permute.xlu0 %2378
        %2380 = vrot.lane.b32.xlu0 %v2373, 112
        %v2381 = vpop.permute.xlu0 %2380
        %2382 = vrot.lane.b32.xlu0 %v2374, 112
        %v2383 = vpop.permute.xlu0 %2382
        %v2384 = vsel %vm978, %v2379, %v2381
        %v2385 = vsel %vm978, %v2381, %v2383
        %v2389 = vadd.f32 %v2360, %v2384
        %v2390 = vadd.f32 %v2361, %v2385
        %v2391 = vadd.f32 %v2362, %v2383
        %s2392 = scalar_lea.vmem %s5, 48
        %v2393 = vld [vmem:[%s2392] sm:$0xf]
        %2395 = vset.pattern.permute.xlu0 0
        %2396 = vperm.xlu0 %2395, %v2393
        %v2397 = vpop.permute.xlu0 %2396
        %v2399 = vperm.slane %v2065, 0
        %v2400 = vperm.slane %v2066, 0
        %v2401 = vperm.slane %v2067, 0
        %v2402 = vmul.f32 %v2397, %v2399
        %v2403 = vmul.f32 %v2397, %v2400
        %v2404 = vmul.f32 %v2397, %v2401
        %v2405 = vadd.f32 %v2389, %v2402
        %v2406 = vadd.f32 %v2390, %v2403
        %v2407 = vadd.f32 %v2391, %v2404
        %s2408 = scalar_lea.vmem %s5, 52
        %v2409 = vld [vmem:[%s2408] sm:$0xf]
        %2411 = vset.pattern.permute.xlu0 0
        %2412 = vperm.xlu0 %2411, %v2409
        %v2413 = vpop.permute.xlu0 %2412
        %v2415 = vperm.slane %v2065, 1
        %v2416 = vperm.slane %v2066, 1
        %v2417 = vperm.slane %v2067, 1
        %v2418 = vmul.f32 %v2413, %v2415
        %v2419 = vmul.f32 %v2413, %v2416
        %v2420 = vmul.f32 %v2413, %v2417
        %v2421 = vadd.f32 %v2405, %v2418
        %v2422 = vadd.f32 %v2406, %v2419
        %v2423 = vadd.f32 %v2407, %v2420
        %s2424 = scalar_lea.vmem %s5, 56
        %v2425 = vld [vmem:[%s2424] sm:$0xf]
        %2427 = vset.pattern.permute.xlu0 0
        %2428 = vperm.xlu0 %2427, %v2425
        %v2429 = vpop.permute.xlu0 %2428
        %v2431 = vperm.slane %v2065, 2
        %v2432 = vperm.slane %v2066, 2
        %v2433 = vperm.slane %v2067, 2
        %v2434 = vmul.f32 %v2429, %v2431
        %v2435 = vmul.f32 %v2429, %v2432
        %v2436 = vmul.f32 %v2429, %v2433
        %v2437 = vadd.f32 %v2421, %v2434
        %v2438 = vadd.f32 %v2422, %v2435
        %v2439 = vadd.f32 %v2423, %v2436
        %v2440 = vmul.f32 %v2077, %v1306
        %v2441 = vmul.f32 %v2078, %v1310
        %s2442 = scalar_lea.vmem %s5, 60
        %v2443 = vld [vmem:[%s2442] sm:$0xf]
        %2445 = vset.pattern.permute.xlu0 0
        %2446 = vperm.xlu0 %2445, %v2443
        %v2447 = vpop.permute.xlu0 %2446
        %v2449 = vperm.slane %v2440, 0
        %v2450 = vperm.slane %v2441, 0
        %v2451 = vmul.f32 %v2447, %v2449
        %v2452 = vmul.f32 %v2447, %v2450
        %v2453 = vmul.f32 %v2447, %v1326
        %2457 = vrot.lane.b32.xlu0 %v2451, 110
        %v2458 = vpop.permute.xlu0 %2457
        %2459 = vrot.lane.b32.xlu0 %v2452, 110
        %v2460 = vpop.permute.xlu0 %2459
        %2461 = vrot.lane.b32.xlu0 %v2453, 110
        %v2462 = vpop.permute.xlu0 %2461
        %v2463 = vsel %vm1339, %v2458, %v2460
        %v2464 = vsel %vm1339, %v2460, %v2462
        %v2468 = vadd.f32 %v2437, %v2458
        %v2469 = vadd.f32 %v2438, %v2463
        %v2470 = vadd.f32 %v2439, %v2464
        %s2471 = scalar_lea.vmem %s5, 64
        %v2472 = vld [vmem:[%s2471] sm:$0xf]
        %2474 = vset.pattern.permute.xlu0 0
        %2475 = vperm.xlu0 %2474, %v2472
        %v2476 = vpop.permute.xlu0 %2475
        %v2478 = vperm.slane %v2440, 1
        %v2479 = vperm.slane %v2441, 1
        %v2480 = vmul.f32 %v2476, %v2478
        %v2481 = vmul.f32 %v2476, %v2479
        %v2482 = vmul.f32 %v2476, %v1357
        %2486 = vrot.lane.b32.xlu0 %v2480, 110
        %v2487 = vpop.permute.xlu0 %2486
        %2488 = vrot.lane.b32.xlu0 %v2481, 110
        %v2489 = vpop.permute.xlu0 %2488
        %2490 = vrot.lane.b32.xlu0 %v2482, 110
        %v2491 = vpop.permute.xlu0 %2490
        %v2492 = vsel %vm1339, %v2487, %v2489
        %v2493 = vsel %vm1339, %v2489, %v2491
        %v2497 = vadd.f32 %v2468, %v2487
        %v2498 = vadd.f32 %v2469, %v2492
        %v2499 = vadd.f32 %v2470, %v2493
        %s2500 = scalar_lea.vmem %s5, 68
        %v2501 = vld [vmem:[%s2500] sm:$0xf]
        %2503 = vset.pattern.permute.xlu0 0
        %2504 = vperm.xlu0 %2503, %v2501
        %v2505 = vpop.permute.xlu0 %2504
        %v2507 = vperm.slane %v2440, 2
        %v2508 = vperm.slane %v2441, 2
        %v2509 = vmul.f32 %v2505, %v2507
        %v2510 = vmul.f32 %v2505, %v2508
        %v2511 = vmul.f32 %v2505, %v1447
        %2515 = vrot.lane.b32.xlu0 %v2509, 110
        %v2516 = vpop.permute.xlu0 %2515
        %2517 = vrot.lane.b32.xlu0 %v2510, 110
        %v2518 = vpop.permute.xlu0 %2517
        %2519 = vrot.lane.b32.xlu0 %v2511, 110
        %v2520 = vpop.permute.xlu0 %2519
        %v2521 = vsel %vm1339, %v2516, %v2518
        %v2522 = vsel %vm1339, %v2518, %v2520
        %v2526 = vadd.f32 %v2497, %v2516
        %v2527 = vadd.f32 %v2498, %v2521
        %v2528 = vadd.f32 %v2499, %v2522
        %v2529 = vmul.f32 %v2077, %v1499
        %v2530 = vmul.f32 %v2078, %v1503
        %s2531 = scalar_lea.vmem %s5, 72
        %v2532 = vld [vmem:[%s2531] sm:$0xf]
        %2534 = vset.pattern.permute.xlu0 0
        %2535 = vperm.xlu0 %2534, %v2532
        %v2536 = vpop.permute.xlu0 %2535
        %v2538 = vperm.slane %v2529, 0
        %v2539 = vperm.slane %v2530, 0
        %v2540 = vmul.f32 %v2536, %v2538
        %v2541 = vmul.f32 %v2536, %v2539
        %v2542 = vmul.f32 %v2536, %v1519
        %2546 = vrot.lane.b32.xlu0 %v2540, 96
        %v2547 = vpop.permute.xlu0 %2546
        %2548 = vrot.lane.b32.xlu0 %v2541, 96
        %v2549 = vpop.permute.xlu0 %2548
        %2550 = vrot.lane.b32.xlu0 %v2542, 96
        %v2551 = vpop.permute.xlu0 %2550
        %v2552 = vsel %vm1532, %v2547, %v2549
        %v2553 = vsel %vm1532, %v2549, %v2551
        %v2557 = vadd.f32 %v2526, %v2547
        %v2558 = vadd.f32 %v2527, %v2552
        %v2559 = vadd.f32 %v2528, %v2553
        %s2560 = scalar_lea.vmem %s5, 76
        %v2561 = vld [vmem:[%s2560] sm:$0xf]
        %2563 = vset.pattern.permute.xlu0 0
        %2564 = vperm.xlu0 %2563, %v2561
        %v2565 = vpop.permute.xlu0 %2564
        %v2567 = vperm.slane %v2529, 1
        %v2568 = vperm.slane %v2530, 1
        %v2569 = vmul.f32 %v2565, %v2567
        %v2570 = vmul.f32 %v2565, %v2568
        %v2571 = vmul.f32 %v2565, %v1550
        %2575 = vrot.lane.b32.xlu0 %v2569, 96
        %v2576 = vpop.permute.xlu0 %2575
        %2577 = vrot.lane.b32.xlu0 %v2570, 96
        %v2578 = vpop.permute.xlu0 %2577
        %2579 = vrot.lane.b32.xlu0 %v2571, 96
        %v2580 = vpop.permute.xlu0 %2579
        %v2581 = vsel %vm1532, %v2576, %v2578
        %v2582 = vsel %vm1532, %v2578, %v2580
        %v2586 = vadd.f32 %v2557, %v2576
        %v2587 = vadd.f32 %v2558, %v2581
        %v2588 = vadd.f32 %v2559, %v2582
        %s2589 = scalar_lea.vmem %s5, 80
        %v2590 = vld [vmem:[%s2589] sm:$0xf]
        %2592 = vset.pattern.permute.xlu0 0
        %2593 = vperm.xlu0 %2592, %v2590
        %v2594 = vpop.permute.xlu0 %2593
        %v2596 = vperm.slane %v2529, 2
        %v2597 = vperm.slane %v2530, 2
        %v2598 = vmul.f32 %v2594, %v2596
        %v2599 = vmul.f32 %v2594, %v2597
        %v2600 = vmul.f32 %v2594, %v1640
        %2604 = vrot.lane.b32.xlu0 %v2598, 96
        %v2605 = vpop.permute.xlu0 %2604
        %2606 = vrot.lane.b32.xlu0 %v2599, 96
        %v2607 = vpop.permute.xlu0 %2606
        %2608 = vrot.lane.b32.xlu0 %v2600, 96
        %v2609 = vpop.permute.xlu0 %2608
        %v2610 = vsel %vm1532, %v2605, %v2607
        %v2611 = vsel %vm1532, %v2607, %v2609
        %v2615 = vadd.f32 %v2586, %v2605
        %v2616 = vadd.f32 %v2587, %v2610
        %v2617 = vadd.f32 %v2588, %v2611
        %s2618 = scalar_lea.vmem %s5, 84
        %v2619 = vld [vmem:[%s2618] sm:$0xf]
        %2621 = vset.pattern.permute.xlu0 0
        %2622 = vperm.xlu0 %2621, %v2619
        %v2623 = vpop.permute.xlu0 %2622
        %v2625 = vmul.f32 %v2623, %v2134
        %v2626 = vmul.f32 %v2623, %v2135
        %v2627 = vmul.f32 %v2623, %v577
        %2631 = vrot.lane.b32.xlu0 %v2625, 95
        %v2632 = vpop.permute.xlu0 %2631
        %2633 = vrot.lane.b32.xlu0 %v2626, 95
        %v2634 = vpop.permute.xlu0 %2633
        %2635 = vrot.lane.b32.xlu0 %v2627, 95
        %v2636 = vpop.permute.xlu0 %2635
        %v2637 = vsel %vm1710, %v2632, %v2634
        %v2638 = vsel %vm1710, %v2634, %v2636
        %v2642 = vadd.f32 %v2615, %v2632
        %v2643 = vadd.f32 %v2616, %v2637
        %v2644 = vadd.f32 %v2617, %v2638
        %s2645 = scalar_lea.vmem %s5, 88
        %v2646 = vld [vmem:[%s2645] sm:$0xf]
        %2648 = vset.pattern.permute.xlu0 0
        %2649 = vperm.xlu0 %2648, %v2646
        %v2650 = vpop.permute.xlu0 %2649
        %v2652 = vmul.f32 %v2650, %v2163
        %v2653 = vmul.f32 %v2650, %v2164
        %v2654 = vmul.f32 %v2650, %v608
        %2658 = vrot.lane.b32.xlu0 %v2652, 95
        %v2659 = vpop.permute.xlu0 %2658
        %2660 = vrot.lane.b32.xlu0 %v2653, 95
        %v2661 = vpop.permute.xlu0 %2660
        %2662 = vrot.lane.b32.xlu0 %v2654, 95
        %v2663 = vpop.permute.xlu0 %2662
        %v2664 = vsel %vm1710, %v2659, %v2661
        %v2665 = vsel %vm1710, %v2661, %v2663
        %v2669 = vadd.f32 %v2642, %v2659
        %v2670 = vadd.f32 %v2643, %v2664
        %v2671 = vadd.f32 %v2644, %v2665
        %s2672 = scalar_lea.vmem %s5, 92
        %v2673 = vld [vmem:[%s2672] sm:$0xf]
        %2675 = vset.pattern.permute.xlu0 0
        %2676 = vperm.xlu0 %2675, %v2673
        %v2677 = vpop.permute.xlu0 %2676
        %v2679 = vmul.f32 %v2677, %v2192
        %v2680 = vmul.f32 %v2677, %v2193
        %v2681 = vmul.f32 %v2677, %v696
        %2685 = vrot.lane.b32.xlu0 %v2679, 95
        %v2686 = vpop.permute.xlu0 %2685
        %2687 = vrot.lane.b32.xlu0 %v2680, 95
        %v2688 = vpop.permute.xlu0 %2687
        %2689 = vrot.lane.b32.xlu0 %v2681, 95
        %v2690 = vpop.permute.xlu0 %2689
        %v2691 = vsel %vm1710, %v2686, %v2688
        %v2692 = vsel %vm1710, %v2688, %v2690
        %v2696 = vadd.f32 %v2669, %v2686
        %v2697 = vadd.f32 %v2670, %v2691
        %v2698 = vadd.f32 %v2671, %v2692
        %v2699 = vmul.f32 %v2077, %v1855
        %v2700 = vmul.f32 %v2078, %v1859
        %s2701 = scalar_lea.vmem %s5, 96
        %v2702 = vld [vmem:[%s2701] sm:$0xf]
        %2704 = vset.pattern.permute.xlu0 0
        %2705 = vperm.xlu0 %2704, %v2702
        %v2706 = vpop.permute.xlu0 %2705
        %v2708 = vperm.slane %v2699, 0
        %v2709 = vperm.slane %v2700, 0
        %v2710 = vmul.f32 %v2706, %v2708
        %v2711 = vmul.f32 %v2706, %v2709
        %v2712 = vmul.f32 %v2706, %v1875
        %2716 = vrot.lane.b32.xlu0 %v2710, 94
        %v2717 = vpop.permute.xlu0 %2716
        %2718 = vrot.lane.b32.xlu0 %v2711, 94
        %v2719 = vpop.permute.xlu0 %2718
        %2720 = vrot.lane.b32.xlu0 %v2712, 94
        %v2721 = vpop.permute.xlu0 %2720
        %v2722 = vsel %vm1888, %v2717, %v2719
        %v2723 = vsel %vm1888, %v2719, %v2721
        %v2727 = vadd.f32 %v2696, %v2717
        %v2728 = vadd.f32 %v2697, %v2722
        %v2729 = vadd.f32 %v2698, %v2723
        %s2730 = scalar_lea.vmem %s5, 100
        %v2731 = vld [vmem:[%s2730] sm:$0xf]
        %2733 = vset.pattern.permute.xlu0 0
        %2734 = vperm.xlu0 %2733, %v2731
        %v2735 = vpop.permute.xlu0 %2734
        %v2737 = vperm.slane %v2699, 1
        %v2738 = vperm.slane %v2700, 1
        %v2739 = vmul.f32 %v2735, %v2737
        %v2740 = vmul.f32 %v2735, %v2738
        %v2741 = vmul.f32 %v2735, %v1906
        %2745 = vrot.lane.b32.xlu0 %v2739, 94
        %v2746 = vpop.permute.xlu0 %2745
        %2747 = vrot.lane.b32.xlu0 %v2740, 94
        %v2748 = vpop.permute.xlu0 %2747
        %2749 = vrot.lane.b32.xlu0 %v2741, 94
        %v2750 = vpop.permute.xlu0 %2749
        %v2751 = vsel %vm1888, %v2746, %v2748
        %v2752 = vsel %vm1888, %v2748, %v2750
        %v2756 = vadd.f32 %v2727, %v2746
        %v2757 = vadd.f32 %v2728, %v2751
        %v2758 = vadd.f32 %v2729, %v2752
        %s2759 = scalar_lea.vmem %s5, 104
        %v2760 = vld [vmem:[%s2759] sm:$0xf]
        %2762 = vset.pattern.permute.xlu0 0
        %2763 = vperm.xlu0 %2762, %v2760
        %v2764 = vpop.permute.xlu0 %2763
        %v2766 = vperm.slane %v2699, 2
        %v2767 = vperm.slane %v2700, 2
        %v2768 = vmul.f32 %v2764, %v2766
        %v2769 = vmul.f32 %v2764, %v2767
        %v2770 = vmul.f32 %v2764, %v1996
        %2774 = vrot.lane.b32.xlu0 %v2768, 94
        %v2775 = vpop.permute.xlu0 %2774
        %2776 = vrot.lane.b32.xlu0 %v2769, 94
        %v2777 = vpop.permute.xlu0 %2776
        %2778 = vrot.lane.b32.xlu0 %v2770, 94
        %v2779 = vpop.permute.xlu0 %2778
        %v2780 = vsel %vm1888, %v2775, %v2777
        %v2781 = vsel %vm1888, %v2777, %v2779
        %v2785 = vadd.f32 %v2756, %v2775
        %v2786 = vadd.f32 %v2757, %v2780
        %v2787 = vadd.f32 %v2758, %v2781
        %v2788 = vld [vmem:[%s6] sm:$0xf]
        %2790 = vset.pattern.permute.xlu0 0
        %2791 = vperm.xlu0 %2790, %v2788
        %v2792 = vpop.permute.xlu0 %2791
        %v2794 = vadd.f32 %v2785, %v2792
        %v2795 = vadd.f32 %v2786, %v2792
        %v2796 = vadd.f32 %v2787, %v2792
        %2800 = vrot.lane.b32.xlu0 %v2794, 17
        %v2801 = vpop.permute.xlu0 %2800
        %2802 = vrot.lane.b32.xlu0 %v2795, 17
        %v2803 = vpop.permute.xlu0 %2802
        %2804 = vrot.lane.b32.xlu0 %v2796, 17
        %v2805 = vpop.permute.xlu0 %2804
        %v2806 = vsel %vm1858, %v2801, %v2803
        %v2807 = vsel %vm1858, %v2803, %v2805
        %2810 = vst [vmem:[#allocation1] ss:$2 sm:$0xff] %v446
        %v2811 = vld.sshfl [vmem:[#allocation1] sm:$0xff pattern:$0x75316420]
        %v2812 = vld.sshfl [vmem:[#allocation1 + $0x8] sm:$0xff pattern:$0x75316420]
        %v2813 = vrot.slane %v2811, 2
        %v2814 = vrot.slane %v2812, 2
        %v2817 = vmul.f32 %v2806, %v468
        %v2818 = vmul.f32 %v2807, %v466
        %v2819 = vld [vmem:[%s7] sm:$0x3f]
        %2821 = vset.pattern.permute.xlu0 0
        %2822 = vperm.xlu0 %2821, %v2819
        %v2823 = vpop.permute.xlu0 %2822
        %v2825 = vperm.slane %v2817, 0
        %v2826 = vperm.slane %v2818, 0
        %v2827 = vmul.f32 %v2823, %v481
        %v2828 = vmul.f32 %v2823, %v2825
        %v2829 = vmul.f32 %v2823, %v2826
        %v2830 = vadd.f32 %v2827, 0.0
        %v2831 = vadd.f32 %v2828, 0.0
        %v2832 = vadd.f32 %v2829, 0.0
        %s2833 = scalar_lea.vmem %s7, 8
        %v2834 = vld [vmem:[%s2833] sm:$0x3f]
        %2836 = vset.pattern.permute.xlu0 0
        %2837 = vperm.xlu0 %2836, %v2834
        %v2838 = vpop.permute.xlu0 %2837
        %v2840 = vperm.slane %v2817, 1
        %v2841 = vperm.slane %v2818, 1
        %v2842 = vmul.f32 %v2838, %v497
        %v2843 = vmul.f32 %v2838, %v2840
        %v2844 = vmul.f32 %v2838, %v2841
        %v2845 = vadd.f32 %v2830, %v2842
        %v2846 = vadd.f32 %v2831, %v2843
        %v2847 = vadd.f32 %v2832, %v2844
        %s2848 = scalar_lea.vmem %s7, 16
        %v2849 = vld [vmem:[%s2848] sm:$0x3f]
        %2851 = vset.pattern.permute.xlu0 0
        %2852 = vperm.xlu0 %2851, %v2849
        %v2853 = vpop.permute.xlu0 %2852
        %v2855 = vperm.slane %v2817, 2
        %v2856 = vperm.slane %v2818, 2
        %v2857 = vmul.f32 %v2853, %v545
        %v2858 = vmul.f32 %v2853, %v2855
        %v2859 = vmul.f32 %v2853, %v2856
        %v2860 = vadd.f32 %v2845, %v2857
        %v2861 = vadd.f32 %v2846, %v2858
        %v2862 = vadd.f32 %v2847, %v2859
        %s2863 = scalar_lea.vmem %s7, 24
        %v2864 = vld [vmem:[%s2863] sm:$0x3f]
        %2866 = vset.pattern.permute.xlu0 0
        %2867 = vperm.xlu0 %2866, %v2864
        %v2868 = vpop.permute.xlu0 %2867
        %v2870 = vperm.slane %v2817, 3
        %v2871 = vperm.slane %v2818, 3
        %v2872 = vmul.f32 %v2868, %v561
        %v2873 = vmul.f32 %v2868, %v2870
        %v2874 = vmul.f32 %v2868, %v2871
        %v2875 = vadd.f32 %v2860, %v2872
        %v2876 = vadd.f32 %v2861, %v2873
        %v2877 = vadd.f32 %v2862, %v2874
        %v2878 = vmul.f32 %v2813, %v468
        %v2879 = vmul.f32 %v2814, %v466
        %s2880 = scalar_lea.vmem %s7, 32
        %v2881 = vld [vmem:[%s2880] sm:$0x3f]
        %2883 = vset.pattern.permute.xlu0 0
        %2884 = vperm.xlu0 %2883, %v2881
        %v2885 = vpop.permute.xlu0 %2884
        %v2887 = vperm.slane %v2878, 0
        %v2888 = vperm.slane %v2879, 0
        %v2889 = vmul.f32 %v2885, %v481
        %v2890 = vmul.f32 %v2885, %v2887
        %v2891 = vmul.f32 %v2885, %v2888
        %v2892 = vadd.f32 %v2875, %v2889
        %v2893 = vadd.f32 %v2876, %v2890
        %v2894 = vadd.f32 %v2877, %v2891
        %s2895 = scalar_lea.vmem %s7, 40
        %v2896 = vld [vmem:[%s2895] sm:$0x3f]
        %2898 = vset.pattern.permute.xlu0 0
        %2899 = vperm.xlu0 %2898, %v2896
        %v2900 = vpop.permute.xlu0 %2899
        %v2902 = vperm.slane %v2878, 1
        %v2903 = vperm.slane %v2879, 1
        %v2904 = vmul.f32 %v2900, %v497
        %v2905 = vmul.f32 %v2900, %v2902
        %v2906 = vmul.f32 %v2900, %v2903
        %v2907 = vadd.f32 %v2892, %v2904
        %v2908 = vadd.f32 %v2893, %v2905
        %v2909 = vadd.f32 %v2894, %v2906
        %s2910 = scalar_lea.vmem %s7, 48
        %v2911 = vld [vmem:[%s2910] sm:$0x3f]
        %2913 = vset.pattern.permute.xlu0 0
        %2914 = vperm.xlu0 %2913, %v2911
        %v2915 = vpop.permute.xlu0 %2914
        %v2917 = vperm.slane %v2806, 0
        %v2918 = vperm.slane %v2807, 0
        %v2919 = vmul.f32 %v2915, %v577
        %v2920 = vmul.f32 %v2915, %v2917
        %v2921 = vmul.f32 %v2915, %v2918
        %2925 = vrot.lane.b32.xlu0 %v2919, 127
        %v2926 = vpop.permute.xlu0 %2925
        %2927 = vrot.lane.b32.xlu0 %v2920, 127
        %v2928 = vpop.permute.xlu0 %2927
        %2929 = vrot.lane.b32.xlu0 %v2921, 127
        %v2930 = vpop.permute.xlu0 %2929
        %v2931 = vsel %vm592, %v2926, %v2928
        %v2932 = vsel %vm592, %v2928, %v2930
        %v2936 = vadd.f32 %v2907, %v2931
        %v2937 = vadd.f32 %v2908, %v2932
        %v2938 = vadd.f32 %v2909, %v2930
        %s2939 = scalar_lea.vmem %s7, 56
        %v2940 = vld [vmem:[%s2939] sm:$0x3f]
        %2942 = vset.pattern.permute.xlu0 0
        %2943 = vperm.xlu0 %2942, %v2940
        %v2944 = vpop.permute.xlu0 %2943
        %v2946 = vperm.slane %v2806, 1
        %v2947 = vperm.slane %v2807, 1
        %v2948 = vmul.f32 %v2944, %v608
        %v2949 = vmul.f32 %v2944, %v2946
        %v2950 = vmul.f32 %v2944, %v2947
        %2954 = vrot.lane.b32.xlu0 %v2948, 127
        %v2955 = vpop.permute.xlu0 %2954
        %2956 = vrot.lane.b32.xlu0 %v2949, 127
        %v2957 = vpop.permute.xlu0 %2956
        %2958 = vrot.lane.b32.xlu0 %v2950, 127
        %v2959 = vpop.permute.xlu0 %2958
        %v2960 = vsel %vm592, %v2955, %v2957
        %v2961 = vsel %vm592, %v2957, %v2959
        %v2965 = vadd.f32 %v2936, %v2960
        %v2966 = vadd.f32 %v2937, %v2961
        %v2967 = vadd.f32 %v2938, %v2959
        %s2968 = scalar_lea.vmem %s7, 64
        %v2969 = vld [vmem:[%s2968] sm:$0x3f]
        %2971 = vset.pattern.permute.xlu0 0
        %2972 = vperm.xlu0 %2971, %v2969
        %v2973 = vpop.permute.xlu0 %2972
        %v2975 = vperm.slane %v2806, 2
        %v2976 = vperm.slane %v2807, 2
        %v2977 = vmul.f32 %v2973, %v696
        %v2978 = vmul.f32 %v2973, %v2975
        %v2979 = vmul.f32 %v2973, %v2976
        %2983 = vrot.lane.b32.xlu0 %v2977, 127
        %v2984 = vpop.permute.xlu0 %2983
        %2985 = vrot.lane.b32.xlu0 %v2978, 127
        %v2986 = vpop.permute.xlu0 %2985
        %2987 = vrot.lane.b32.xlu0 %v2979, 127
        %v2988 = vpop.permute.xlu0 %2987
        %v2989 = vsel %vm592, %v2984, %v2986
        %v2990 = vsel %vm592, %v2986, %v2988
        %v2994 = vadd.f32 %v2965, %v2989
        %v2995 = vadd.f32 %v2966, %v2990
        %v2996 = vadd.f32 %v2967, %v2988
        %s2997 = scalar_lea.vmem %s7, 72
        %v2998 = vld [vmem:[%s2997] sm:$0x3f]
        %3000 = vset.pattern.permute.xlu0 0
        %3001 = vperm.xlu0 %3000, %v2998
        %v3002 = vpop.permute.xlu0 %3001
        %v3004 = vperm.slane %v2806, 3
        %v3005 = vperm.slane %v2807, 3
        %v3006 = vmul.f32 %v3002, %v726
        %v3007 = vmul.f32 %v3002, %v3004
        %v3008 = vmul.f32 %v3002, %v3005
        %3012 = vrot.lane.b32.xlu0 %v3006, 127
        %v3013 = vpop.permute.xlu0 %3012
        %3014 = vrot.lane.b32.xlu0 %v3007, 127
        %v3015 = vpop.permute.xlu0 %3014
        %3016 = vrot.lane.b32.xlu0 %v3008, 127
        %v3017 = vpop.permute.xlu0 %3016
        %v3018 = vsel %vm592, %v3013, %v3015
        %v3019 = vsel %vm592, %v3015, %v3017
        %v3023 = vadd.f32 %v2994, %v3018
        %v3024 = vadd.f32 %v2995, %v3019
        %v3025 = vadd.f32 %v2996, %v3017
        %s3026 = scalar_lea.vmem %s7, 80
        %v3027 = vld [vmem:[%s3026] sm:$0x3f]
        %3029 = vset.pattern.permute.xlu0 0
        %3030 = vperm.xlu0 %3029, %v3027
        %v3031 = vpop.permute.xlu0 %3030
        %v3033 = vperm.slane %v2813, 0
        %v3034 = vperm.slane %v2814, 0
        %v3035 = vmul.f32 %v3031, %v577
        %v3036 = vmul.f32 %v3031, %v3033
        %v3037 = vmul.f32 %v3031, %v3034
        %3041 = vrot.lane.b32.xlu0 %v3035, 127
        %v3042 = vpop.permute.xlu0 %3041
        %3043 = vrot.lane.b32.xlu0 %v3036, 127
        %v3044 = vpop.permute.xlu0 %3043
        %3045 = vrot.lane.b32.xlu0 %v3037, 127
        %v3046 = vpop.permute.xlu0 %3045
        %v3047 = vsel %vm592, %v3042, %v3044
        %v3048 = vsel %vm592, %v3044, %v3046
        %v3052 = vadd.f32 %v3023, %v3047
        %v3053 = vadd.f32 %v3024, %v3048
        %v3054 = vadd.f32 %v3025, %v3046
        %s3055 = scalar_lea.vmem %s7, 88
        %v3056 = vld [vmem:[%s3055] sm:$0x3f]
        %3058 = vset.pattern.permute.xlu0 0
        %3059 = vperm.xlu0 %3058, %v3056
        %v3060 = vpop.permute.xlu0 %3059
        %v3062 = vperm.slane %v2813, 1
        %v3063 = vperm.slane %v2814, 1
        %v3064 = vmul.f32 %v3060, %v608
        %v3065 = vmul.f32 %v3060, %v3062
        %v3066 = vmul.f32 %v3060, %v3063
        %3070 = vrot.lane.b32.xlu0 %v3064, 127
        %v3071 = vpop.permute.xlu0 %3070
        %3072 = vrot.lane.b32.xlu0 %v3065, 127
        %v3073 = vpop.permute.xlu0 %3072
        %3074 = vrot.lane.b32.xlu0 %v3066, 127
        %v3075 = vpop.permute.xlu0 %3074
        %v3076 = vsel %vm592, %v3071, %v3073
        %v3077 = vsel %vm592, %v3073, %v3075
        %v3081 = vadd.f32 %v3052, %v3076
        %v3082 = vadd.f32 %v3053, %v3077
        %v3083 = vadd.f32 %v3054, %v3075
        %v3084 = vmul.f32 %v2806, %v757
        %v3085 = vmul.f32 %v2807, %v755
        %s3086 = scalar_lea.vmem %s7, 96
        %v3087 = vld [vmem:[%s3086] sm:$0x3f]
        %3089 = vset.pattern.permute.xlu0 0
        %3090 = vperm.xlu0 %3089, %v3087
        %v3091 = vpop.permute.xlu0 %3090
        %v3093 = vperm.slane %v3084, 0
        %v3094 = vperm.slane %v3085, 0
        %v3095 = vmul.f32 %v3091, %v771
        %v3096 = vmul.f32 %v3091, %v3093
        %v3097 = vmul.f32 %v3091, %v3094
        %3101 = vrot.lane.b32.xlu0 %v3095, 126
        %v3102 = vpop.permute.xlu0 %3101
        %3103 = vrot.lane.b32.xlu0 %v3096, 126
        %v3104 = vpop.permute.xlu0 %3103
        %3105 = vrot.lane.b32.xlu0 %v3097, 126
        %v3106 = vpop.permute.xlu0 %3105
        %v3107 = vsel %vm786, %v3102, %v3104
        %v3108 = vsel %vm786, %v3104, %v3106
        %v3112 = vadd.f32 %v3081, %v3107
        %v3113 = vadd.f32 %v3082, %v3108
        %v3114 = vadd.f32 %v3083, %v3106
        %s3115 = scalar_lea.vmem %s7, 104
        %v3116 = vld [vmem:[%s3115] sm:$0x3f]
        %3118 = vset.pattern.permute.xlu0 0
        %3119 = vperm.xlu0 %3118, %v3116
        %v3120 = vpop.permute.xlu0 %3119
        %v3122 = vperm.slane %v3084, 1
        %v3123 = vperm.slane %v3085, 1
        %v3124 = vmul.f32 %v3120, %v802
        %v3125 = vmul.f32 %v3120, %v3122
        %v3126 = vmul.f32 %v3120, %v3123
        %3130 = vrot.lane.b32.xlu0 %v3124, 126
        %v3131 = vpop.permute.xlu0 %3130
        %3132 = vrot.lane.b32.xlu0 %v3125, 126
        %v3133 = vpop.permute.xlu0 %3132
        %3134 = vrot.lane.b32.xlu0 %v3126, 126
        %v3135 = vpop.permute.xlu0 %3134
        %v3136 = vsel %vm786, %v3131, %v3133
        %v3137 = vsel %vm786, %v3133, %v3135
        %v3141 = vadd.f32 %v3112, %v3136
        %v3142 = vadd.f32 %v3113, %v3137
        %v3143 = vadd.f32 %v3114, %v3135
        %s3144 = scalar_lea.vmem %s7, 112
        %v3145 = vld [vmem:[%s3144] sm:$0x3f]
        %3147 = vset.pattern.permute.xlu0 0
        %3148 = vperm.xlu0 %3147, %v3145
        %v3149 = vpop.permute.xlu0 %3148
        %v3151 = vperm.slane %v3084, 2
        %v3152 = vperm.slane %v3085, 2
        %v3153 = vmul.f32 %v3149, %v892
        %v3154 = vmul.f32 %v3149, %v3151
        %v3155 = vmul.f32 %v3149, %v3152
        %3159 = vrot.lane.b32.xlu0 %v3153, 126
        %v3160 = vpop.permute.xlu0 %3159
        %3161 = vrot.lane.b32.xlu0 %v3154, 126
        %v3162 = vpop.permute.xlu0 %3161
        %3163 = vrot.lane.b32.xlu0 %v3155, 126
        %v3164 = vpop.permute.xlu0 %3163
        %v3165 = vsel %vm786, %v3160, %v3162
        %v3166 = vsel %vm786, %v3162, %v3164
        %v3170 = vadd.f32 %v3141, %v3165
        %v3171 = vadd.f32 %v3142, %v3166
        %v3172 = vadd.f32 %v3143, %v3164
        %s3173 = scalar_lea.vmem %s7, 120
        %v3174 = vld [vmem:[%s3173] sm:$0x3f]
        %3176 = vset.pattern.permute.xlu0 0
        %3177 = vperm.xlu0 %3176, %v3174
        %v3178 = vpop.permute.xlu0 %3177
        %v3180 = vperm.slane %v3084, 3
        %v3181 = vperm.slane %v3085, 3
        %v3182 = vmul.f32 %v3178, %v922
        %v3183 = vmul.f32 %v3178, %v3180
        %v3184 = vmul.f32 %v3178, %v3181
        %3188 = vrot.lane.b32.xlu0 %v3182, 126
        %v3189 = vpop.permute.xlu0 %3188
        %3190 = vrot.lane.b32.xlu0 %v3183, 126
        %v3191 = vpop.permute.xlu0 %3190
        %3192 = vrot.lane.b32.xlu0 %v3184, 126
        %v3193 = vpop.permute.xlu0 %3192
        %v3194 = vsel %vm786, %v3189, %v3191
        %v3195 = vsel %vm786, %v3191, %v3193
        %v3199 = vadd.f32 %v3170, %v3194
        %v3200 = vadd.f32 %v3171, %v3195
        %v3201 = vadd.f32 %v3172, %v3193
        %v3202 = vmul.f32 %v2813, %v757
        %v3203 = vmul.f32 %v2814, %v755
        %s3204 = scalar_lea.vmem %s7, 128
        %v3205 = vld [vmem:[%s3204] sm:$0x3f]
        %3207 = vset.pattern.permute.xlu0 0
        %3208 = vperm.xlu0 %3207, %v3205
        %v3209 = vpop.permute.xlu0 %3208
        %v3211 = vperm.slane %v3202, 0
        %v3212 = vperm.slane %v3203, 0
        %v3213 = vmul.f32 %v3209, %v771
        %v3214 = vmul.f32 %v3209, %v3211
        %v3215 = vmul.f32 %v3209, %v3212
        %3219 = vrot.lane.b32.xlu0 %v3213, 126
        %v3220 = vpop.permute.xlu0 %3219
        %3221 = vrot.lane.b32.xlu0 %v3214, 126
        %v3222 = vpop.permute.xlu0 %3221
        %3223 = vrot.lane.b32.xlu0 %v3215, 126
        %v3224 = vpop.permute.xlu0 %3223
        %v3225 = vsel %vm786, %v3220, %v3222
        %v3226 = vsel %vm786, %v3222, %v3224
        %v3230 = vadd.f32 %v3199, %v3225
        %v3231 = vadd.f32 %v3200, %v3226
        %v3232 = vadd.f32 %v3201, %v3224
        %s3233 = scalar_lea.vmem %s7, 136
        %v3234 = vld [vmem:[%s3233] sm:$0x3f]
        %3236 = vset.pattern.permute.xlu0 0
        %3237 = vperm.xlu0 %3236, %v3234
        %v3238 = vpop.permute.xlu0 %3237
        %v3240 = vperm.slane %v3202, 1
        %v3241 = vperm.slane %v3203, 1
        %v3242 = vmul.f32 %v3238, %v802
        %v3243 = vmul.f32 %v3238, %v3240
        %v3244 = vmul.f32 %v3238, %v3241
        %3248 = vrot.lane.b32.xlu0 %v3242, 126
        %v3249 = vpop.permute.xlu0 %3248
        %3250 = vrot.lane.b32.xlu0 %v3243, 126
        %v3251 = vpop.permute.xlu0 %3250
        %3252 = vrot.lane.b32.xlu0 %v3244, 126
        %v3253 = vpop.permute.xlu0 %3252
        %v3254 = vsel %vm786, %v3249, %v3251
        %v3255 = vsel %vm786, %v3251, %v3253
        %v3259 = vadd.f32 %v3230, %v3254
        %v3260 = vadd.f32 %v3231, %v3255
        %v3261 = vadd.f32 %v3232, %v3253
        %v3262 = vmul.f32 %v2806, %v949
        %v3263 = vmul.f32 %v2807, %v948
        %s3264 = scalar_lea.vmem %s7, 144
        %v3265 = vld [vmem:[%s3264] sm:$0x3f]
        %3267 = vset.pattern.permute.xlu0 0
        %3268 = vperm.xlu0 %3267, %v3265
        %v3269 = vpop.permute.xlu0 %3268
        %v3271 = vperm.slane %v3262, 0
        %v3272 = vperm.slane %v3263, 0
        %v3273 = vmul.f32 %v3269, %v963
        %v3274 = vmul.f32 %v3269, %v3271
        %v3275 = vmul.f32 %v3269, %v3272
        %3279 = vrot.lane.b32.xlu0 %v3273, 112
        %v3280 = vpop.permute.xlu0 %3279
        %3281 = vrot.lane.b32.xlu0 %v3274, 112
        %v3282 = vpop.permute.xlu0 %3281
        %3283 = vrot.lane.b32.xlu0 %v3275, 112
        %v3284 = vpop.permute.xlu0 %3283
        %v3285 = vsel %vm978, %v3280, %v3282
        %v3286 = vsel %vm978, %v3282, %v3284
        %v3290 = vadd.f32 %v3259, %v3285
        %v3291 = vadd.f32 %v3260, %v3286
        %v3292 = vadd.f32 %v3261, %v3284
        %s3293 = scalar_lea.vmem %s7, 152
        %v3294 = vld [vmem:[%s3293] sm:$0x3f]
        %3296 = vset.pattern.permute.xlu0 0
        %3297 = vperm.xlu0 %3296, %v3294
        %v3298 = vpop.permute.xlu0 %3297
        %v3300 = vperm.slane %v3262, 1
        %v3301 = vperm.slane %v3263, 1
        %v3302 = vmul.f32 %v3298, %v994
        %v3303 = vmul.f32 %v3298, %v3300
        %v3304 = vmul.f32 %v3298, %v3301
        %3308 = vrot.lane.b32.xlu0 %v3302, 112
        %v3309 = vpop.permute.xlu0 %3308
        %3310 = vrot.lane.b32.xlu0 %v3303, 112
        %v3311 = vpop.permute.xlu0 %3310
        %3312 = vrot.lane.b32.xlu0 %v3304, 112
        %v3313 = vpop.permute.xlu0 %3312
        %v3314 = vsel %vm978, %v3309, %v3311
        %v3315 = vsel %vm978, %v3311, %v3313
        %v3319 = vadd.f32 %v3290, %v3314
        %v3320 = vadd.f32 %v3291, %v3315
        %v3321 = vadd.f32 %v3292, %v3313
        %s3322 = scalar_lea.vmem %s7, 160
        %v3323 = vld [vmem:[%s3322] sm:$0x3f]
        %3325 = vset.pattern.permute.xlu0 0
        %3326 = vperm.xlu0 %3325, %v3323
        %v3327 = vpop.permute.xlu0 %3326
        %v3329 = vperm.slane %v3262, 2
        %v3330 = vperm.slane %v3263, 2
        %v3331 = vmul.f32 %v3327, %v1084
        %v3332 = vmul.f32 %v3327, %v3329
        %v3333 = vmul.f32 %v3327, %v3330
        %3337 = vrot.lane.b32.xlu0 %v3331, 112
        %v3338 = vpop.permute.xlu0 %3337
        %3339 = vrot.lane.b32.xlu0 %v3332, 112
        %v3340 = vpop.permute.xlu0 %3339
        %3341 = vrot.lane.b32.xlu0 %v3333, 112
        %v3342 = vpop.permute.xlu0 %3341
        %v3343 = vsel %vm978, %v3338, %v3340
        %v3344 = vsel %vm978, %v3340, %v3342
        %v3348 = vadd.f32 %v3319, %v3343
        %v3349 = vadd.f32 %v3320, %v3344
        %v3350 = vadd.f32 %v3321, %v3342
        %s3351 = scalar_lea.vmem %s7, 168
        %v3352 = vld [vmem:[%s3351] sm:$0x3f]
        %3354 = vset.pattern.permute.xlu0 0
        %3355 = vperm.xlu0 %3354, %v3352
        %v3356 = vpop.permute.xlu0 %3355
        %v3358 = vperm.slane %v3262, 3
        %v3359 = vperm.slane %v3263, 3
        %v3360 = vmul.f32 %v3356, %v1114
        %v3361 = vmul.f32 %v3356, %v3358
        %v3362 = vmul.f32 %v3356, %v3359
        %3366 = vrot.lane.b32.xlu0 %v3360, 112
        %v3367 = vpop.permute.xlu0 %3366
        %3368 = vrot.lane.b32.xlu0 %v3361, 112
        %v3369 = vpop.permute.xlu0 %3368
        %3370 = vrot.lane.b32.xlu0 %v3362, 112
        %v3371 = vpop.permute.xlu0 %3370
        %v3372 = vsel %vm978, %v3367, %v3369
        %v3373 = vsel %vm978, %v3369, %v3371
        %v3377 = vadd.f32 %v3348, %v3372
        %v3378 = vadd.f32 %v3349, %v3373
        %v3379 = vadd.f32 %v3350, %v3371
        %v3380 = vmul.f32 %v2813, %v949
        %v3381 = vmul.f32 %v2814, %v948
        %s3382 = scalar_lea.vmem %s7, 176
        %v3383 = vld [vmem:[%s3382] sm:$0x3f]
        %3385 = vset.pattern.permute.xlu0 0
        %3386 = vperm.xlu0 %3385, %v3383
        %v3387 = vpop.permute.xlu0 %3386
        %v3389 = vperm.slane %v3380, 0
        %v3390 = vperm.slane %v3381, 0
        %v3391 = vmul.f32 %v3387, %v963
        %v3392 = vmul.f32 %v3387, %v3389
        %v3393 = vmul.f32 %v3387, %v3390
        %3397 = vrot.lane.b32.xlu0 %v3391, 112
        %v3398 = vpop.permute.xlu0 %3397
        %3399 = vrot.lane.b32.xlu0 %v3392, 112
        %v3400 = vpop.permute.xlu0 %3399
        %3401 = vrot.lane.b32.xlu0 %v3393, 112
        %v3402 = vpop.permute.xlu0 %3401
        %v3403 = vsel %vm978, %v3398, %v3400
        %v3404 = vsel %vm978, %v3400, %v3402
        %v3408 = vadd.f32 %v3377, %v3403
        %v3409 = vadd.f32 %v3378, %v3404
        %v3410 = vadd.f32 %v3379, %v3402
        %s3411 = scalar_lea.vmem %s7, 184
        %v3412 = vld [vmem:[%s3411] sm:$0x3f]
        %3414 = vset.pattern.permute.xlu0 0
        %3415 = vperm.xlu0 %3414, %v3412
        %v3416 = vpop.permute.xlu0 %3415
        %v3418 = vperm.slane %v3380, 1
        %v3419 = vperm.slane %v3381, 1
        %v3420 = vmul.f32 %v3416, %v994
        %v3421 = vmul.f32 %v3416, %v3418
        %v3422 = vmul.f32 %v3416, %v3419
        %3426 = vrot.lane.b32.xlu0 %v3420, 112
        %v3427 = vpop.permute.xlu0 %3426
        %3428 = vrot.lane.b32.xlu0 %v3421, 112
        %v3429 = vpop.permute.xlu0 %3428
        %3430 = vrot.lane.b32.xlu0 %v3422, 112
        %v3431 = vpop.permute.xlu0 %3430
        %v3432 = vsel %vm978, %v3427, %v3429
        %v3433 = vsel %vm978, %v3429, %v3431
        %v3437 = vadd.f32 %v3408, %v3432
        %v3438 = vadd.f32 %v3409, %v3433
        %v3439 = vadd.f32 %v3410, %v3431
        %s3440 = scalar_lea.vmem %s7, 192
        %v3441 = vld [vmem:[%s3440] sm:$0x3f]
        %3443 = vset.pattern.permute.xlu0 0
        %3444 = vperm.xlu0 %3443, %v3441
        %v3445 = vpop.permute.xlu0 %3444
        %v3447 = vperm.slane %v2794, 0
        %v3448 = vperm.slane %v2795, 0
        %v3449 = vperm.slane %v2796, 0
        %v3450 = vmul.f32 %v3445, %v3447
        %v3451 = vmul.f32 %v3445, %v3448
        %v3452 = vmul.f32 %v3445, %v3449
        %v3453 = vadd.f32 %v3437, %v3450
        %v3454 = vadd.f32 %v3438, %v3451
        %v3455 = vadd.f32 %v3439, %v3452
        %s3456 = scalar_lea.vmem %s7, 200
        %v3457 = vld [vmem:[%s3456] sm:$0x3f]
        %3459 = vset.pattern.permute.xlu0 0
        %3460 = vperm.xlu0 %3459, %v3457
        %v3461 = vpop.permute.xlu0 %3460
        %v3463 = vperm.slane %v2794, 1
        %v3464 = vperm.slane %v2795, 1
        %v3465 = vperm.slane %v2796, 1
        %v3466 = vmul.f32 %v3461, %v3463
        %v3467 = vmul.f32 %v3461, %v3464
        %v3468 = vmul.f32 %v3461, %v3465
        %v3469 = vadd.f32 %v3453, %v3466
        %v3470 = vadd.f32 %v3454, %v3467
        %v3471 = vadd.f32 %v3455, %v3468
        %s3472 = scalar_lea.vmem %s7, 208
        %v3473 = vld [vmem:[%s3472] sm:$0x3f]
        %3475 = vset.pattern.permute.xlu0 0
        %3476 = vperm.xlu0 %3475, %v3473
        %v3477 = vpop.permute.xlu0 %3476
        %v3479 = vperm.slane %v2794, 2
        %v3480 = vperm.slane %v2795, 2
        %v3481 = vperm.slane %v2796, 2
        %v3482 = vmul.f32 %v3477, %v3479
        %v3483 = vmul.f32 %v3477, %v3480
        %v3484 = vmul.f32 %v3477, %v3481
        %v3485 = vadd.f32 %v3469, %v3482
        %v3486 = vadd.f32 %v3470, %v3483
        %v3487 = vadd.f32 %v3471, %v3484
        %s3488 = scalar_lea.vmem %s7, 216
        %v3489 = vld [vmem:[%s3488] sm:$0x3f]
        %3491 = vset.pattern.permute.xlu0 0
        %3492 = vperm.xlu0 %3491, %v3489
        %v3493 = vpop.permute.xlu0 %3492
        %v3495 = vperm.slane %v2794, 3
        %v3496 = vperm.slane %v2795, 3
        %v3497 = vperm.slane %v2796, 3
        %v3498 = vmul.f32 %v3493, %v3495
        %v3499 = vmul.f32 %v3493, %v3496
        %v3500 = vmul.f32 %v3493, %v3497
        %v3501 = vadd.f32 %v3485, %v3498
        %v3502 = vadd.f32 %v3486, %v3499
        %v3503 = vadd.f32 %v3487, %v3500
        %s3504 = scalar_lea.vmem %s7, 224
        %v3505 = vld [vmem:[%s3504] sm:$0x3f]
        %3507 = vset.pattern.permute.xlu0 0
        %3508 = vperm.xlu0 %3507, %v3505
        %v3509 = vpop.permute.xlu0 %3508
        %v3511 = vperm.slane %v446, 2
        %v3512 = vperm.slane %v446, 6
        %v3515 = vperm.slane %v3511, 2
        %v3516 = vperm.slane %v3512, 2
        %v3517 = vmul.f32 %v3509, %v3515
        %v3518 = vmul.f32 %v3509, %v3516
        %3521 = vrot.lane.b32.xlu0 %v3517, 111
        %v3522 = vpop.permute.xlu0 %3521
        %3523 = vrot.lane.b32.xlu0 %v3518, 111
        %v3524 = vpop.permute.xlu0 %3523
        %v3525 = vsel %vm467, %v3522, %v3524
        %v3529 = vadd.f32 %v3501, %v3522
        %v3530 = vadd.f32 %v3502, %v3525
        %v3531 = vadd.f32 %v3503, %v3524
        %s3532 = scalar_lea.vmem %s7, 232
        %v3533 = vld [vmem:[%s3532] sm:$0x3f]
        %3535 = vset.pattern.permute.xlu0 0
        %3536 = vperm.xlu0 %3535, %v3533
        %v3537 = vpop.permute.xlu0 %3536
        %v3539 = vperm.slane %v446, 3
        %v3540 = vperm.slane %v446, 7
        %v3543 = vperm.slane %v3539, 3
        %v3544 = vperm.slane %v3540, 3
        %v3545 = vmul.f32 %v3537, %v3543
        %v3546 = vmul.f32 %v3537, %v3544
        %3549 = vrot.lane.b32.xlu0 %v3545, 111
        %v3550 = vpop.permute.xlu0 %3549
        %3551 = vrot.lane.b32.xlu0 %v3546, 111
        %v3552 = vpop.permute.xlu0 %3551
        %v3553 = vsel %vm467, %v3550, %v3552
        %v3557 = vadd.f32 %v3529, %v3550
        %v3558 = vadd.f32 %v3530, %v3553
        %v3559 = vadd.f32 %v3531, %v3552
        %v3560 = vmul.f32 %v2806, %v1306
        %v3561 = vmul.f32 %v2807, %v1310
        %s3562 = scalar_lea.vmem %s7, 240
        %v3563 = vld [vmem:[%s3562] sm:$0x3f]
        %3565 = vset.pattern.permute.xlu0 0
        %3566 = vperm.xlu0 %3565, %v3563
        %v3567 = vpop.permute.xlu0 %3566
        %v3569 = vperm.slane %v3560, 0
        %v3570 = vperm.slane %v3561, 0
        %v3571 = vmul.f32 %v3567, %v3569
        %v3572 = vmul.f32 %v3567, %v3570
        %v3573 = vmul.f32 %v3567, %v1326
        %3577 = vrot.lane.b32.xlu0 %v3571, 110
        %v3578 = vpop.permute.xlu0 %3577
        %3579 = vrot.lane.b32.xlu0 %v3572, 110
        %v3580 = vpop.permute.xlu0 %3579
        %3581 = vrot.lane.b32.xlu0 %v3573, 110
        %v3582 = vpop.permute.xlu0 %3581
        %v3583 = vsel %vm1339, %v3578, %v3580
        %v3584 = vsel %vm1339, %v3580, %v3582
        %v3588 = vadd.f32 %v3557, %v3578
        %v3589 = vadd.f32 %v3558, %v3583
        %v3590 = vadd.f32 %v3559, %v3584
        %s3591 = scalar_lea.vmem %s7, 248
        %v3592 = vld [vmem:[%s3591] sm:$0x3f]
        %3594 = vset.pattern.permute.xlu0 0
        %3595 = vperm.xlu0 %3594, %v3592
        %v3596 = vpop.permute.xlu0 %3595
        %v3598 = vperm.slane %v3560, 1
        %v3599 = vperm.slane %v3561, 1
        %v3600 = vmul.f32 %v3596, %v3598
        %v3601 = vmul.f32 %v3596, %v3599
        %v3602 = vmul.f32 %v3596, %v1357
        %3606 = vrot.lane.b32.xlu0 %v3600, 110
        %v3607 = vpop.permute.xlu0 %3606
        %3608 = vrot.lane.b32.xlu0 %v3601, 110
        %v3609 = vpop.permute.xlu0 %3608
        %3610 = vrot.lane.b32.xlu0 %v3602, 110
        %v3611 = vpop.permute.xlu0 %3610
        %v3612 = vsel %vm1339, %v3607, %v3609
        %v3613 = vsel %vm1339, %v3609, %v3611
        %v3617 = vadd.f32 %v3588, %v3607
        %v3618 = vadd.f32 %v3589, %v3612
        %v3619 = vadd.f32 %v3590, %v3613
        %s3620 = scalar_lea.vmem %s7, 256
        %v3621 = vld [vmem:[%s3620] sm:$0x3f]
        %3623 = vset.pattern.permute.xlu0 0
        %3624 = vperm.xlu0 %3623, %v3621
        %v3625 = vpop.permute.xlu0 %3624
        %v3627 = vperm.slane %v3560, 2
        %v3628 = vperm.slane %v3561, 2
        %v3629 = vmul.f32 %v3625, %v3627
        %v3630 = vmul.f32 %v3625, %v3628
        %v3631 = vmul.f32 %v3625, %v1447
        %3635 = vrot.lane.b32.xlu0 %v3629, 110
        %v3636 = vpop.permute.xlu0 %3635
        %3637 = vrot.lane.b32.xlu0 %v3630, 110
        %v3638 = vpop.permute.xlu0 %3637
        %3639 = vrot.lane.b32.xlu0 %v3631, 110
        %v3640 = vpop.permute.xlu0 %3639
        %v3641 = vsel %vm1339, %v3636, %v3638
        %v3642 = vsel %vm1339, %v3638, %v3640
        %v3646 = vadd.f32 %v3617, %v3636
        %v3647 = vadd.f32 %v3618, %v3641
        %v3648 = vadd.f32 %v3619, %v3642
        %s3649 = scalar_lea.vmem %s7, 264
        %v3650 = vld [vmem:[%s3649] sm:$0x3f]
        %3652 = vset.pattern.permute.xlu0 0
        %3653 = vperm.xlu0 %3652, %v3650
        %v3654 = vpop.permute.xlu0 %3653
        %v3656 = vperm.slane %v3560, 3
        %v3657 = vperm.slane %v3561, 3
        %v3658 = vmul.f32 %v3654, %v3656
        %v3659 = vmul.f32 %v3654, %v3657
        %v3660 = vmul.f32 %v3654, %v1477
        %3664 = vrot.lane.b32.xlu0 %v3658, 110
        %v3665 = vpop.permute.xlu0 %3664
        %3666 = vrot.lane.b32.xlu0 %v3659, 110
        %v3667 = vpop.permute.xlu0 %3666
        %3668 = vrot.lane.b32.xlu0 %v3660, 110
        %v3669 = vpop.permute.xlu0 %3668
        %v3670 = vsel %vm1339, %v3665, %v3667
        %v3671 = vsel %vm1339, %v3667, %v3669
        %v3675 = vadd.f32 %v3646, %v3665
        %v3676 = vadd.f32 %v3647, %v3670
        %v3677 = vadd.f32 %v3648, %v3671
        %v3678 = vmul.f32 %v2813, %v1306
        %v3679 = vmul.f32 %v2814, %v1310
        %s3680 = scalar_lea.vmem %s7, 272
        %v3681 = vld [vmem:[%s3680] sm:$0x3f]
        %3683 = vset.pattern.permute.xlu0 0
        %3684 = vperm.xlu0 %3683, %v3681
        %v3685 = vpop.permute.xlu0 %3684
        %v3687 = vperm.slane %v3678, 0
        %v3688 = vperm.slane %v3679, 0
        %v3689 = vmul.f32 %v3685, %v3687
        %v3690 = vmul.f32 %v3685, %v3688
        %v3691 = vmul.f32 %v3685, %v1326
        %3695 = vrot.lane.b32.xlu0 %v3689, 110
        %v3696 = vpop.permute.xlu0 %3695
        %3697 = vrot.lane.b32.xlu0 %v3690, 110
        %v3698 = vpop.permute.xlu0 %3697
        %3699 = vrot.lane.b32.xlu0 %v3691, 110
        %v3700 = vpop.permute.xlu0 %3699
        %v3701 = vsel %vm1339, %v3696, %v3698
        %v3702 = vsel %vm1339, %v3698, %v3700
        %v3706 = vadd.f32 %v3675, %v3696
        %v3707 = vadd.f32 %v3676, %v3701
        %v3708 = vadd.f32 %v3677, %v3702
        %s3709 = scalar_lea.vmem %s7, 280
        %v3710 = vld [vmem:[%s3709] sm:$0x3f]
        %3712 = vset.pattern.permute.xlu0 0
        %3713 = vperm.xlu0 %3712, %v3710
        %v3714 = vpop.permute.xlu0 %3713
        %v3716 = vperm.slane %v3678, 1
        %v3717 = vperm.slane %v3679, 1
        %v3718 = vmul.f32 %v3714, %v3716
        %v3719 = vmul.f32 %v3714, %v3717
        %v3720 = vmul.f32 %v3714, %v1357
        %3724 = vrot.lane.b32.xlu0 %v3718, 110
        %v3725 = vpop.permute.xlu0 %3724
        %3726 = vrot.lane.b32.xlu0 %v3719, 110
        %v3727 = vpop.permute.xlu0 %3726
        %3728 = vrot.lane.b32.xlu0 %v3720, 110
        %v3729 = vpop.permute.xlu0 %3728
        %v3730 = vsel %vm1339, %v3725, %v3727
        %v3731 = vsel %vm1339, %v3727, %v3729
        %v3735 = vadd.f32 %v3706, %v3725
        %v3736 = vadd.f32 %v3707, %v3730
        %v3737 = vadd.f32 %v3708, %v3731
        %v3738 = vmul.f32 %v2806, %v1499
        %v3739 = vmul.f32 %v2807, %v1503
        %s3740 = scalar_lea.vmem %s7, 288
        %v3741 = vld [vmem:[%s3740] sm:$0x3f]
        %3743 = vset.pattern.permute.xlu0 0
        %3744 = vperm.xlu0 %3743, %v3741
        %v3745 = vpop.permute.xlu0 %3744
        %v3747 = vperm.slane %v3738, 0
        %v3748 = vperm.slane %v3739, 0
        %v3749 = vmul.f32 %v3745, %v3747
        %v3750 = vmul.f32 %v3745, %v3748
        %v3751 = vmul.f32 %v3745, %v1519
        %3755 = vrot.lane.b32.xlu0 %v3749, 96
        %v3756 = vpop.permute.xlu0 %3755
        %3757 = vrot.lane.b32.xlu0 %v3750, 96
        %v3758 = vpop.permute.xlu0 %3757
        %3759 = vrot.lane.b32.xlu0 %v3751, 96
        %v3760 = vpop.permute.xlu0 %3759
        %v3761 = vsel %vm1532, %v3756, %v3758
        %v3762 = vsel %vm1532, %v3758, %v3760
        %v3766 = vadd.f32 %v3735, %v3756
        %v3767 = vadd.f32 %v3736, %v3761
        %v3768 = vadd.f32 %v3737, %v3762
        %s3769 = scalar_lea.vmem %s7, 296
        %v3770 = vld [vmem:[%s3769] sm:$0x3f]
        %3772 = vset.pattern.permute.xlu0 0
        %3773 = vperm.xlu0 %3772, %v3770
        %v3774 = vpop.permute.xlu0 %3773
        %v3776 = vperm.slane %v3738, 1
        %v3777 = vperm.slane %v3739, 1
        %v3778 = vmul.f32 %v3774, %v3776
        %v3779 = vmul.f32 %v3774, %v3777
        %v3780 = vmul.f32 %v3774, %v1550
        %3784 = vrot.lane.b32.xlu0 %v3778, 96
        %v3785 = vpop.permute.xlu0 %3784
        %3786 = vrot.lane.b32.xlu0 %v3779, 96
        %v3787 = vpop.permute.xlu0 %3786
        %3788 = vrot.lane.b32.xlu0 %v3780, 96
        %v3789 = vpop.permute.xlu0 %3788
        %v3790 = vsel %vm1532, %v3785, %v3787
        %v3791 = vsel %vm1532, %v3787, %v3789
        %v3795 = vadd.f32 %v3766, %v3785
        %v3796 = vadd.f32 %v3767, %v3790
        %v3797 = vadd.f32 %v3768, %v3791
        %s3798 = scalar_lea.vmem %s7, 304
        %v3799 = vld [vmem:[%s3798] sm:$0x3f]
        %3801 = vset.pattern.permute.xlu0 0
        %3802 = vperm.xlu0 %3801, %v3799
        %v3803 = vpop.permute.xlu0 %3802
        %v3805 = vperm.slane %v3738, 2
        %v3806 = vperm.slane %v3739, 2
        %v3807 = vmul.f32 %v3803, %v3805
        %v3808 = vmul.f32 %v3803, %v3806
        %v3809 = vmul.f32 %v3803, %v1640
        %3813 = vrot.lane.b32.xlu0 %v3807, 96
        %v3814 = vpop.permute.xlu0 %3813
        %3815 = vrot.lane.b32.xlu0 %v3808, 96
        %v3816 = vpop.permute.xlu0 %3815
        %3817 = vrot.lane.b32.xlu0 %v3809, 96
        %v3818 = vpop.permute.xlu0 %3817
        %v3819 = vsel %vm1532, %v3814, %v3816
        %v3820 = vsel %vm1532, %v3816, %v3818
        %v3824 = vadd.f32 %v3795, %v3814
        %v3825 = vadd.f32 %v3796, %v3819
        %v3826 = vadd.f32 %v3797, %v3820
        %s3827 = scalar_lea.vmem %s7, 312
        %v3828 = vld [vmem:[%s3827] sm:$0x3f]
        %3830 = vset.pattern.permute.xlu0 0
        %3831 = vperm.xlu0 %3830, %v3828
        %v3832 = vpop.permute.xlu0 %3831
        %v3834 = vperm.slane %v3738, 3
        %v3835 = vperm.slane %v3739, 3
        %v3836 = vmul.f32 %v3832, %v3834
        %v3837 = vmul.f32 %v3832, %v3835
        %v3838 = vmul.f32 %v3832, %v1670
        %3842 = vrot.lane.b32.xlu0 %v3836, 96
        %v3843 = vpop.permute.xlu0 %3842
        %3844 = vrot.lane.b32.xlu0 %v3837, 96
        %v3845 = vpop.permute.xlu0 %3844
        %3846 = vrot.lane.b32.xlu0 %v3838, 96
        %v3847 = vpop.permute.xlu0 %3846
        %v3848 = vsel %vm1532, %v3843, %v3845
        %v3849 = vsel %vm1532, %v3845, %v3847
        %v3853 = vadd.f32 %v3824, %v3843
        %v3854 = vadd.f32 %v3825, %v3848
        %v3855 = vadd.f32 %v3826, %v3849
        %v3856 = vmul.f32 %v2813, %v1499
        %v3857 = vmul.f32 %v2814, %v1503
        %s3858 = scalar_lea.vmem %s7, 320
        %v3859 = vld [vmem:[%s3858] sm:$0x3f]
        %3861 = vset.pattern.permute.xlu0 0
        %3862 = vperm.xlu0 %3861, %v3859
        %v3863 = vpop.permute.xlu0 %3862
        %v3865 = vperm.slane %v3856, 0
        %v3866 = vperm.slane %v3857, 0
        %v3867 = vmul.f32 %v3863, %v3865
        %v3868 = vmul.f32 %v3863, %v3866
        %v3869 = vmul.f32 %v3863, %v1519
        %3873 = vrot.lane.b32.xlu0 %v3867, 96
        %v3874 = vpop.permute.xlu0 %3873
        %3875 = vrot.lane.b32.xlu0 %v3868, 96
        %v3876 = vpop.permute.xlu0 %3875
        %3877 = vrot.lane.b32.xlu0 %v3869, 96
        %v3878 = vpop.permute.xlu0 %3877
        %v3879 = vsel %vm1532, %v3874, %v3876
        %v3880 = vsel %vm1532, %v3876, %v3878
        %v3884 = vadd.f32 %v3853, %v3874
        %v3885 = vadd.f32 %v3854, %v3879
        %v3886 = vadd.f32 %v3855, %v3880
        %s3887 = scalar_lea.vmem %s7, 328
        %v3888 = vld [vmem:[%s3887] sm:$0x3f]
        %3890 = vset.pattern.permute.xlu0 0
        %3891 = vperm.xlu0 %3890, %v3888
        %v3892 = vpop.permute.xlu0 %3891
        %v3894 = vperm.slane %v3856, 1
        %v3895 = vperm.slane %v3857, 1
        %v3896 = vmul.f32 %v3892, %v3894
        %v3897 = vmul.f32 %v3892, %v3895
        %v3898 = vmul.f32 %v3892, %v1550
        %3902 = vrot.lane.b32.xlu0 %v3896, 96
        %v3903 = vpop.permute.xlu0 %3902
        %3904 = vrot.lane.b32.xlu0 %v3897, 96
        %v3905 = vpop.permute.xlu0 %3904
        %3906 = vrot.lane.b32.xlu0 %v3898, 96
        %v3907 = vpop.permute.xlu0 %3906
        %v3908 = vsel %vm1532, %v3903, %v3905
        %v3909 = vsel %vm1532, %v3905, %v3907
        %v3913 = vadd.f32 %v3884, %v3903
        %v3914 = vadd.f32 %v3885, %v3908
        %v3915 = vadd.f32 %v3886, %v3909
        %s3916 = scalar_lea.vmem %s7, 336
        %v3917 = vld [vmem:[%s3916] sm:$0x3f]
        %3919 = vset.pattern.permute.xlu0 0
        %3920 = vperm.xlu0 %3919, %v3917
        %v3921 = vpop.permute.xlu0 %3920
        %v3923 = vmul.f32 %v3921, %v2917
        %v3924 = vmul.f32 %v3921, %v2918
        %v3925 = vmul.f32 %v3921, %v577
        %3929 = vrot.lane.b32.xlu0 %v3923, 95
        %v3930 = vpop.permute.xlu0 %3929
        %3931 = vrot.lane.b32.xlu0 %v3924, 95
        %v3932 = vpop.permute.xlu0 %3931
        %3933 = vrot.lane.b32.xlu0 %v3925, 95
        %v3934 = vpop.permute.xlu0 %3933
        %v3935 = vsel %vm1710, %v3930, %v3932
        %v3936 = vsel %vm1710, %v3932, %v3934
        %v3940 = vadd.f32 %v3913, %v3930
        %v3941 = vadd.f32 %v3914, %v3935
        %v3942 = vadd.f32 %v3915, %v3936
        %s3943 = scalar_lea.vmem %s7, 344
        %v3944 = vld [vmem:[%s3943] sm:$0x3f]
        %3946 = vset.pattern.permute.xlu0 0
        %3947 = vperm.xlu0 %3946, %v3944
        %v3948 = vpop.permute.xlu0 %3947
        %v3950 = vmul.f32 %v3948, %v2946
        %v3951 = vmul.f32 %v3948, %v2947
        %v3952 = vmul.f32 %v3948, %v608
        %3956 = vrot.lane.b32.xlu0 %v3950, 95
        %v3957 = vpop.permute.xlu0 %3956
        %3958 = vrot.lane.b32.xlu0 %v3951, 95
        %v3959 = vpop.permute.xlu0 %3958
        %3960 = vrot.lane.b32.xlu0 %v3952, 95
        %v3961 = vpop.permute.xlu0 %3960
        %v3962 = vsel %vm1710, %v3957, %v3959
        %v3963 = vsel %vm1710, %v3959, %v3961
        %v3967 = vadd.f32 %v3940, %v3957
        %v3968 = vadd.f32 %v3941, %v3962
        %v3969 = vadd.f32 %v3942, %v3963
        %s3970 = scalar_lea.vmem %s7, 352
        %v3971 = vld [vmem:[%s3970] sm:$0x3f]
        %3973 = vset.pattern.permute.xlu0 0
        %3974 = vperm.xlu0 %3973, %v3971
        %v3975 = vpop.permute.xlu0 %3974
        %v3977 = vmul.f32 %v3975, %v2975
        %v3978 = vmul.f32 %v3975, %v2976
        %v3979 = vmul.f32 %v3975, %v696
        %3983 = vrot.lane.b32.xlu0 %v3977, 95
        %v3984 = vpop.permute.xlu0 %3983
        %3985 = vrot.lane.b32.xlu0 %v3978, 95
        %v3986 = vpop.permute.xlu0 %3985
        %3987 = vrot.lane.b32.xlu0 %v3979, 95
        %v3988 = vpop.permute.xlu0 %3987
        %v3989 = vsel %vm1710, %v3984, %v3986
        %v3990 = vsel %vm1710, %v3986, %v3988
        %v3994 = vadd.f32 %v3967, %v3984
        %v3995 = vadd.f32 %v3968, %v3989
        %v3996 = vadd.f32 %v3969, %v3990
        %s3997 = scalar_lea.vmem %s7, 360
        %v3998 = vld [vmem:[%s3997] sm:$0x3f]
        %4000 = vset.pattern.permute.xlu0 0
        %4001 = vperm.xlu0 %4000, %v3998
        %v4002 = vpop.permute.xlu0 %4001
        %v4004 = vmul.f32 %v4002, %v3004
        %v4005 = vmul.f32 %v4002, %v3005
        %v4006 = vmul.f32 %v4002, %v726
        %4010 = vrot.lane.b32.xlu0 %v4004, 95
        %v4011 = vpop.permute.xlu0 %4010
        %4012 = vrot.lane.b32.xlu0 %v4005, 95
        %v4013 = vpop.permute.xlu0 %4012
        %4014 = vrot.lane.b32.xlu0 %v4006, 95
        %v4015 = vpop.permute.xlu0 %4014
        %v4016 = vsel %vm1710, %v4011, %v4013
        %v4017 = vsel %vm1710, %v4013, %v4015
        %v4021 = vadd.f32 %v3994, %v4011
        %v4022 = vadd.f32 %v3995, %v4016
        %v4023 = vadd.f32 %v3996, %v4017
        %s4024 = scalar_lea.vmem %s7, 368
        %v4025 = vld [vmem:[%s4024] sm:$0x3f]
        %4027 = vset.pattern.permute.xlu0 0
        %4028 = vperm.xlu0 %4027, %v4025
        %v4029 = vpop.permute.xlu0 %4028
        %v4031 = vmul.f32 %v4029, %v3033
        %v4032 = vmul.f32 %v4029, %v3034
        %v4033 = vmul.f32 %v4029, %v577
        %4037 = vrot.lane.b32.xlu0 %v4031, 95
        %v4038 = vpop.permute.xlu0 %4037
        %4039 = vrot.lane.b32.xlu0 %v4032, 95
        %v4040 = vpop.permute.xlu0 %4039
        %4041 = vrot.lane.b32.xlu0 %v4033, 95
        %v4042 = vpop.permute.xlu0 %4041
        %v4043 = vsel %vm1710, %v4038, %v4040
        %v4044 = vsel %vm1710, %v4040, %v4042
        %v4048 = vadd.f32 %v4021, %v4038
        %v4049 = vadd.f32 %v4022, %v4043
        %v4050 = vadd.f32 %v4023, %v4044
        %s4051 = scalar_lea.vmem %s7, 376
        %v4052 = vld [vmem:[%s4051] sm:$0x3f]
        %4054 = vset.pattern.permute.xlu0 0
        %4055 = vperm.xlu0 %4054, %v4052
        %v4056 = vpop.permute.xlu0 %4055
        %v4058 = vmul.f32 %v4056, %v3062
        %v4059 = vmul.f32 %v4056, %v3063
        %v4060 = vmul.f32 %v4056, %v608
        %4064 = vrot.lane.b32.xlu0 %v4058, 95
        %v4065 = vpop.permute.xlu0 %4064
        %4066 = vrot.lane.b32.xlu0 %v4059, 95
        %v4067 = vpop.permute.xlu0 %4066
        %4068 = vrot.lane.b32.xlu0 %v4060, 95
        %v4069 = vpop.permute.xlu0 %4068
        %v4070 = vsel %vm1710, %v4065, %v4067
        %v4071 = vsel %vm1710, %v4067, %v4069
        %v4075 = vadd.f32 %v4048, %v4065
        %v4076 = vadd.f32 %v4049, %v4070
        %v4077 = vadd.f32 %v4050, %v4071
        %v4078 = vmul.f32 %v2806, %v1855
        %v4079 = vmul.f32 %v2807, %v1859
        %s4080 = scalar_lea.vmem %s7, 384
        %v4081 = vld [vmem:[%s4080] sm:$0x3f]
        %4083 = vset.pattern.permute.xlu0 0
        %4084 = vperm.xlu0 %4083, %v4081
        %v4085 = vpop.permute.xlu0 %4084
        %v4087 = vperm.slane %v4078, 0
        %v4088 = vperm.slane %v4079, 0
        %v4089 = vmul.f32 %v4085, %v4087
        %v4090 = vmul.f32 %v4085, %v4088
        %v4091 = vmul.f32 %v4085, %v1875
        %4095 = vrot.lane.b32.xlu0 %v4089, 94
        %v4096 = vpop.permute.xlu0 %4095
        %4097 = vrot.lane.b32.xlu0 %v4090, 94
        %v4098 = vpop.permute.xlu0 %4097
        %4099 = vrot.lane.b32.xlu0 %v4091, 94
        %v4100 = vpop.permute.xlu0 %4099
        %v4101 = vsel %vm1888, %v4096, %v4098
        %v4102 = vsel %vm1888, %v4098, %v4100
        %v4106 = vadd.f32 %v4075, %v4096
        %v4107 = vadd.f32 %v4076, %v4101
        %v4108 = vadd.f32 %v4077, %v4102
        %s4109 = scalar_lea.vmem %s7, 392
        %v4110 = vld [vmem:[%s4109] sm:$0x3f]
        %4112 = vset.pattern.permute.xlu0 0
        %4113 = vperm.xlu0 %4112, %v4110
        %v4114 = vpop.permute.xlu0 %4113
        %v4116 = vperm.slane %v4078, 1
        %v4117 = vperm.slane %v4079, 1
        %v4118 = vmul.f32 %v4114, %v4116
        %v4119 = vmul.f32 %v4114, %v4117
        %v4120 = vmul.f32 %v4114, %v1906
        %4124 = vrot.lane.b32.xlu0 %v4118, 94
        %v4125 = vpop.permute.xlu0 %4124
        %4126 = vrot.lane.b32.xlu0 %v4119, 94
        %v4127 = vpop.permute.xlu0 %4126
        %4128 = vrot.lane.b32.xlu0 %v4120, 94
        %v4129 = vpop.permute.xlu0 %4128
        %v4130 = vsel %vm1888, %v4125, %v4127
        %v4131 = vsel %vm1888, %v4127, %v4129
        %v4135 = vadd.f32 %v4106, %v4125
        %v4136 = vadd.f32 %v4107, %v4130
        %v4137 = vadd.f32 %v4108, %v4131
        %s4138 = scalar_lea.vmem %s7, 400
        %v4139 = vld [vmem:[%s4138] sm:$0x3f]
        %4141 = vset.pattern.permute.xlu0 0
        %4142 = vperm.xlu0 %4141, %v4139
        %v4143 = vpop.permute.xlu0 %4142
        %v4145 = vperm.slane %v4078, 2
        %v4146 = vperm.slane %v4079, 2
        %v4147 = vmul.f32 %v4143, %v4145
        %v4148 = vmul.f32 %v4143, %v4146
        %v4149 = vmul.f32 %v4143, %v1996
        %4153 = vrot.lane.b32.xlu0 %v4147, 94
        %v4154 = vpop.permute.xlu0 %4153
        %4155 = vrot.lane.b32.xlu0 %v4148, 94
        %v4156 = vpop.permute.xlu0 %4155
        %4157 = vrot.lane.b32.xlu0 %v4149, 94
        %v4158 = vpop.permute.xlu0 %4157
        %v4159 = vsel %vm1888, %v4154, %v4156
        %v4160 = vsel %vm1888, %v4156, %v4158
        %v4164 = vadd.f32 %v4135, %v4154
        %v4165 = vadd.f32 %v4136, %v4159
        %v4166 = vadd.f32 %v4137, %v4160
        %s4167 = scalar_lea.vmem %s7, 408
        %v4168 = vld [vmem:[%s4167] sm:$0x3f]
        %4170 = vset.pattern.permute.xlu0 0
        %4171 = vperm.xlu0 %4170, %v4168
        %v4172 = vpop.permute.xlu0 %4171
        %v4174 = vperm.slane %v4078, 3
        %v4175 = vperm.slane %v4079, 3
        %v4176 = vmul.f32 %v4172, %v4174
        %v4177 = vmul.f32 %v4172, %v4175
        %v4178 = vmul.f32 %v4172, %v2026
        %4182 = vrot.lane.b32.xlu0 %v4176, 94
        %v4183 = vpop.permute.xlu0 %4182
        %4184 = vrot.lane.b32.xlu0 %v4177, 94
        %v4185 = vpop.permute.xlu0 %4184
        %4186 = vrot.lane.b32.xlu0 %v4178, 94
        %v4187 = vpop.permute.xlu0 %4186
        %v4188 = vsel %vm1888, %v4183, %v4185
        %v4189 = vsel %vm1888, %v4185, %v4187
        %v4193 = vadd.f32 %v4164, %v4183
        %v4194 = vadd.f32 %v4165, %v4188
        %v4195 = vadd.f32 %v4166, %v4189
        %v4196 = vmul.f32 %v2813, %v1855
        %v4197 = vmul.f32 %v2814, %v1859
        %s4198 = scalar_lea.vmem %s7, 416
        %v4199 = vld [vmem:[%s4198] sm:$0x3f]
        %4201 = vset.pattern.permute.xlu0 0
        %4202 = vperm.xlu0 %4201, %v4199
        %v4203 = vpop.permute.xlu0 %4202
        %v4205 = vperm.slane %v4196, 0
        %v4206 = vperm.slane %v4197, 0
        %v4207 = vmul.f32 %v4203, %v4205
        %v4208 = vmul.f32 %v4203, %v4206
        %v4209 = vmul.f32 %v4203, %v1875
        %4213 = vrot.lane.b32.xlu0 %v4207, 94
        %v4214 = vpop.permute.xlu0 %4213
        %4215 = vrot.lane.b32.xlu0 %v4208, 94
        %v4216 = vpop.permute.xlu0 %4215
        %4217 = vrot.lane.b32.xlu0 %v4209, 94
        %v4218 = vpop.permute.xlu0 %4217
        %v4219 = vsel %vm1888, %v4214, %v4216
        %v4220 = vsel %vm1888, %v4216, %v4218
        %v4224 = vadd.f32 %v4193, %v4214
        %v4225 = vadd.f32 %v4194, %v4219
        %v4226 = vadd.f32 %v4195, %v4220
        %s4227 = scalar_lea.vmem %s7, 424
        %v4228 = vld [vmem:[%s4227] sm:$0x3f]
        %4230 = vset.pattern.permute.xlu0 0
        %4231 = vperm.xlu0 %4230, %v4228
        %v4232 = vpop.permute.xlu0 %4231
        %v4234 = vperm.slane %v4196, 1
        %v4235 = vperm.slane %v4197, 1
        %v4236 = vmul.f32 %v4232, %v4234
        %v4237 = vmul.f32 %v4232, %v4235
        %v4238 = vmul.f32 %v4232, %v1906
        %4242 = vrot.lane.b32.xlu0 %v4236, 94
        %v4243 = vpop.permute.xlu0 %4242
        %4244 = vrot.lane.b32.xlu0 %v4237, 94
        %v4245 = vpop.permute.xlu0 %4244
        %4246 = vrot.lane.b32.xlu0 %v4238, 94
        %v4247 = vpop.permute.xlu0 %4246
        %v4248 = vsel %vm1888, %v4243, %v4245
        %v4249 = vsel %vm1888, %v4245, %v4247
        %v4253 = vadd.f32 %v4224, %v4243
        %v4254 = vadd.f32 %v4225, %v4248
        %v4255 = vadd.f32 %v4226, %v4249
        %v4256 = vld [vmem:[%s8] sm:$0x3f]
        %4258 = vset.pattern.permute.xlu0 0
        %4259 = vperm.xlu0 %4258, %v4256
        %v4260 = vpop.permute.xlu0 %4259
        %v4262 = vadd.f32 %v4253, %v4260
        %v4263 = vadd.f32 %v4254, %v4260
        %v4264 = vadd.f32 %v4255, %v4260
        %v4268 = vrot.slane %v4262, 3
        %v4269 = vrot.slane %v4263, 3
        %v4270 = vrot.slane %v4264, 3
        %v4274 = vmul.f32 %v4262, %v4268
        %v4275 = vmul.f32 %v4263, %v4269
        %v4276 = vmul.f32 %v4264, %v4270
        %4280 = vrot.lane.b32.xlu0 %v4274, 17
        %v4281 = vpop.permute.xlu0 %4280
        %4282 = vrot.lane.b32.xlu0 %v4275, 17
        %v4283 = vpop.permute.xlu0 %4282
        %4284 = vrot.lane.b32.xlu0 %v4276, 17
        %v4285 = vpop.permute.xlu0 %4284
        %v4286 = vsel %vm1858, %v4281, %v4283
        %v4287 = vsel %vm1858, %v4283, %v4285
        %v4290 = vmul.f32 %v4286, %v468
        %v4291 = vmul.f32 %v4287, %v466
        %v4292 = vld [vmem:[%s9] sm:$0xf]
        %4294 = vset.pattern.permute.xlu0 0
        %4295 = vperm.xlu0 %4294, %v4292
        %v4296 = vpop.permute.xlu0 %4295
        %v4298 = vperm.slane %v4290, 0
        %v4299 = vperm.slane %v4291, 0
        %v4300 = vmul.f32 %v4296, %v481
        %v4301 = vmul.f32 %v4296, %v4298
        %v4302 = vmul.f32 %v4296, %v4299
        %v4303 = vadd.f32 %v4300, 0.0
        %v4304 = vadd.f32 %v4301, 0.0
        %v4305 = vadd.f32 %v4302, 0.0
        %s4306 = scalar_lea.vmem %s9, 4
        %v4307 = vld [vmem:[%s4306] sm:$0xf]
        %4309 = vset.pattern.permute.xlu0 0
        %4310 = vperm.xlu0 %4309, %v4307
        %v4311 = vpop.permute.xlu0 %4310
        %v4313 = vperm.slane %v4290, 1
        %v4314 = vperm.slane %v4291, 1
        %v4315 = vmul.f32 %v4311, %v497
        %v4316 = vmul.f32 %v4311, %v4313
        %v4317 = vmul.f32 %v4311, %v4314
        %v4318 = vadd.f32 %v4303, %v4315
        %v4319 = vadd.f32 %v4304, %v4316
        %v4320 = vadd.f32 %v4305, %v4317
        %s4321 = scalar_lea.vmem %s9, 8
        %v4322 = vld [vmem:[%s4321] sm:$0xf]
        %4324 = vset.pattern.permute.xlu0 0
        %4325 = vperm.xlu0 %4324, %v4322
        %v4326 = vpop.permute.xlu0 %4325
        %v4328 = vperm.slane %v4290, 2
        %v4329 = vperm.slane %v4291, 2
        %v4330 = vmul.f32 %v4326, %v545
        %v4331 = vmul.f32 %v4326, %v4328
        %v4332 = vmul.f32 %v4326, %v4329
        %v4333 = vadd.f32 %v4318, %v4330
        %v4334 = vadd.f32 %v4319, %v4331
        %v4335 = vadd.f32 %v4320, %v4332
        %s4336 = scalar_lea.vmem %s9, 12
        %v4337 = vld [vmem:[%s4336] sm:$0xf]
        %4339 = vset.pattern.permute.xlu0 0
        %4340 = vperm.xlu0 %4339, %v4337
        %v4341 = vpop.permute.xlu0 %4340
        %v4343 = vperm.slane %v4286, 0
        %v4344 = vperm.slane %v4287, 0
        %v4345 = vmul.f32 %v4341, %v577
        %v4346 = vmul.f32 %v4341, %v4343
        %v4347 = vmul.f32 %v4341, %v4344
        %4351 = vrot.lane.b32.xlu0 %v4345, 127
        %v4352 = vpop.permute.xlu0 %4351
        %4353 = vrot.lane.b32.xlu0 %v4346, 127
        %v4354 = vpop.permute.xlu0 %4353
        %4355 = vrot.lane.b32.xlu0 %v4347, 127
        %v4356 = vpop.permute.xlu0 %4355
        %v4357 = vsel %vm592, %v4352, %v4354
        %v4358 = vsel %vm592, %v4354, %v4356
        %v4362 = vadd.f32 %v4333, %v4357
        %v4363 = vadd.f32 %v4334, %v4358
        %v4364 = vadd.f32 %v4335, %v4356
        %s4365 = scalar_lea.vmem %s9, 16
        %v4366 = vld [vmem:[%s4365] sm:$0xf]
        %4368 = vset.pattern.permute.xlu0 0
        %4369 = vperm.xlu0 %4368, %v4366
        %v4370 = vpop.permute.xlu0 %4369
        %v4372 = vperm.slane %v4286, 1
        %v4373 = vperm.slane %v4287, 1
        %v4374 = vmul.f32 %v4370, %v608
        %v4375 = vmul.f32 %v4370, %v4372
        %v4376 = vmul.f32 %v4370, %v4373
        %4380 = vrot.lane.b32.xlu0 %v4374, 127
        %v4381 = vpop.permute.xlu0 %4380
        %4382 = vrot.lane.b32.xlu0 %v4375, 127
        %v4383 = vpop.permute.xlu0 %4382
        %4384 = vrot.lane.b32.xlu0 %v4376, 127
        %v4385 = vpop.permute.xlu0 %4384
        %v4386 = vsel %vm592, %v4381, %v4383
        %v4387 = vsel %vm592, %v4383, %v4385
        %v4391 = vadd.f32 %v4362, %v4386
        %v4392 = vadd.f32 %v4363, %v4387
        %v4393 = vadd.f32 %v4364, %v4385
        %s4394 = scalar_lea.vmem %s9, 20
        %v4395 = vld [vmem:[%s4394] sm:$0xf]
        %4397 = vset.pattern.permute.xlu0 0
        %4398 = vperm.xlu0 %4397, %v4395
        %v4399 = vpop.permute.xlu0 %4398
        %v4401 = vperm.slane %v4286, 2
        %v4402 = vperm.slane %v4287, 2
        %v4403 = vmul.f32 %v4399, %v696
        %v4404 = vmul.f32 %v4399, %v4401
        %v4405 = vmul.f32 %v4399, %v4402
        %4409 = vrot.lane.b32.xlu0 %v4403, 127
        %v4410 = vpop.permute.xlu0 %4409
        %4411 = vrot.lane.b32.xlu0 %v4404, 127
        %v4412 = vpop.permute.xlu0 %4411
        %4413 = vrot.lane.b32.xlu0 %v4405, 127
        %v4414 = vpop.permute.xlu0 %4413
        %v4415 = vsel %vm592, %v4410, %v4412
        %v4416 = vsel %vm592, %v4412, %v4414
        %v4420 = vadd.f32 %v4391, %v4415
        %v4421 = vadd.f32 %v4392, %v4416
        %v4422 = vadd.f32 %v4393, %v4414
        %v4423 = vmul.f32 %v4286, %v757
        %v4424 = vmul.f32 %v4287, %v755
        %s4425 = scalar_lea.vmem %s9, 24
        %v4426 = vld [vmem:[%s4425] sm:$0xf]
        %4428 = vset.pattern.permute.xlu0 0
        %4429 = vperm.xlu0 %4428, %v4426
        %v4430 = vpop.permute.xlu0 %4429
        %v4432 = vperm.slane %v4423, 0
        %v4433 = vperm.slane %v4424, 0
        %v4434 = vmul.f32 %v4430, %v771
        %v4435 = vmul.f32 %v4430, %v4432
        %v4436 = vmul.f32 %v4430, %v4433
        %4440 = vrot.lane.b32.xlu0 %v4434, 126
        %v4441 = vpop.permute.xlu0 %4440
        %4442 = vrot.lane.b32.xlu0 %v4435, 126
        %v4443 = vpop.permute.xlu0 %4442
        %4444 = vrot.lane.b32.xlu0 %v4436, 126
        %v4445 = vpop.permute.xlu0 %4444
        %v4446 = vsel %vm786, %v4441, %v4443
        %v4447 = vsel %vm786, %v4443, %v4445
        %v4451 = vadd.f32 %v4420, %v4446
        %v4452 = vadd.f32 %v4421, %v4447
        %v4453 = vadd.f32 %v4422, %v4445
        %s4454 = scalar_lea.vmem %s9, 28
        %v4455 = vld [vmem:[%s4454] sm:$0xf]
        %4457 = vset.pattern.permute.xlu0 0
        %4458 = vperm.xlu0 %4457, %v4455
        %v4459 = vpop.permute.xlu0 %4458
        %v4461 = vperm.slane %v4423, 1
        %v4462 = vperm.slane %v4424, 1
        %v4463 = vmul.f32 %v4459, %v802
        %v4464 = vmul.f32 %v4459, %v4461
        %v4465 = vmul.f32 %v4459, %v4462
        %4469 = vrot.lane.b32.xlu0 %v4463, 126
        %v4470 = vpop.permute.xlu0 %4469
        %4471 = vrot.lane.b32.xlu0 %v4464, 126
        %v4472 = vpop.permute.xlu0 %4471
        %4473 = vrot.lane.b32.xlu0 %v4465, 126
        %v4474 = vpop.permute.xlu0 %4473
        %v4475 = vsel %vm786, %v4470, %v4472
        %v4476 = vsel %vm786, %v4472, %v4474
        %v4480 = vadd.f32 %v4451, %v4475
        %v4481 = vadd.f32 %v4452, %v4476
        %v4482 = vadd.f32 %v4453, %v4474
        %s4483 = scalar_lea.vmem %s9, 32
        %v4484 = vld [vmem:[%s4483] sm:$0xf]
        %4486 = vset.pattern.permute.xlu0 0
        %4487 = vperm.xlu0 %4486, %v4484
        %v4488 = vpop.permute.xlu0 %4487
        %v4490 = vperm.slane %v4423, 2
        %v4491 = vperm.slane %v4424, 2
        %v4492 = vmul.f32 %v4488, %v892
        %v4493 = vmul.f32 %v4488, %v4490
        %v4494 = vmul.f32 %v4488, %v4491
        %4498 = vrot.lane.b32.xlu0 %v4492, 126
        %v4499 = vpop.permute.xlu0 %4498
        %4500 = vrot.lane.b32.xlu0 %v4493, 126
        %v4501 = vpop.permute.xlu0 %4500
        %4502 = vrot.lane.b32.xlu0 %v4494, 126
        %v4503 = vpop.permute.xlu0 %4502
        %v4504 = vsel %vm786, %v4499, %v4501
        %v4505 = vsel %vm786, %v4501, %v4503
        %v4509 = vadd.f32 %v4480, %v4504
        %v4510 = vadd.f32 %v4481, %v4505
        %v4511 = vadd.f32 %v4482, %v4503
        %v4512 = vmul.f32 %v4286, %v949
        %v4513 = vmul.f32 %v4287, %v948
        %s4514 = scalar_lea.vmem %s9, 36
        %v4515 = vld [vmem:[%s4514] sm:$0xf]
        %4517 = vset.pattern.permute.xlu0 0
        %4518 = vperm.xlu0 %4517, %v4515
        %v4519 = vpop.permute.xlu0 %4518
        %v4521 = vperm.slane %v4512, 0
        %v4522 = vperm.slane %v4513, 0
        %v4523 = vmul.f32 %v4519, %v963
        %v4524 = vmul.f32 %v4519, %v4521
        %v4525 = vmul.f32 %v4519, %v4522
        %4529 = vrot.lane.b32.xlu0 %v4523, 112
        %v4530 = vpop.permute.xlu0 %4529
        %4531 = vrot.lane.b32.xlu0 %v4524, 112
        %v4532 = vpop.permute.xlu0 %4531
        %4533 = vrot.lane.b32.xlu0 %v4525, 112
        %v4534 = vpop.permute.xlu0 %4533
        %v4535 = vsel %vm978, %v4530, %v4532
        %v4536 = vsel %vm978, %v4532, %v4534
        %v4540 = vadd.f32 %v4509, %v4535
        %v4541 = vadd.f32 %v4510, %v4536
        %v4542 = vadd.f32 %v4511, %v4534
        %s4543 = scalar_lea.vmem %s9, 40
        %v4544 = vld [vmem:[%s4543] sm:$0xf]
        %4546 = vset.pattern.permute.xlu0 0
        %4547 = vperm.xlu0 %4546, %v4544
        %v4548 = vpop.permute.xlu0 %4547
        %v4550 = vperm.slane %v4512, 1
        %v4551 = vperm.slane %v4513, 1
        %v4552 = vmul.f32 %v4548, %v994
        %v4553 = vmul.f32 %v4548, %v4550
        %v4554 = vmul.f32 %v4548, %v4551
        %4558 = vrot.lane.b32.xlu0 %v4552, 112
        %v4559 = vpop.permute.xlu0 %4558
        %4560 = vrot.lane.b32.xlu0 %v4553, 112
        %v4561 = vpop.permute.xlu0 %4560
        %4562 = vrot.lane.b32.xlu0 %v4554, 112
        %v4563 = vpop.permute.xlu0 %4562
        %v4564 = vsel %vm978, %v4559, %v4561
        %v4565 = vsel %vm978, %v4561, %v4563
        %v4569 = vadd.f32 %v4540, %v4564
        %v4570 = vadd.f32 %v4541, %v4565
        %v4571 = vadd.f32 %v4542, %v4563
        %s4572 = scalar_lea.vmem %s9, 44
        %v4573 = vld [vmem:[%s4572] sm:$0xf]
        %4575 = vset.pattern.permute.xlu0 0
        %4576 = vperm.xlu0 %4575, %v4573
        %v4577 = vpop.permute.xlu0 %4576
        %v4579 = vperm.slane %v4512, 2
        %v4580 = vperm.slane %v4513, 2
        %v4581 = vmul.f32 %v4577, %v1084
        %v4582 = vmul.f32 %v4577, %v4579
        %v4583 = vmul.f32 %v4577, %v4580
        %4587 = vrot.lane.b32.xlu0 %v4581, 112
        %v4588 = vpop.permute.xlu0 %4587
        %4589 = vrot.lane.b32.xlu0 %v4582, 112
        %v4590 = vpop.permute.xlu0 %4589
        %4591 = vrot.lane.b32.xlu0 %v4583, 112
        %v4592 = vpop.permute.xlu0 %4591
        %v4593 = vsel %vm978, %v4588, %v4590
        %v4594 = vsel %vm978, %v4590, %v4592
        %v4598 = vadd.f32 %v4569, %v4593
        %v4599 = vadd.f32 %v4570, %v4594
        %v4600 = vadd.f32 %v4571, %v4592
        %s4601 = scalar_lea.vmem %s9, 48
        %v4602 = vld [vmem:[%s4601] sm:$0xf]
        %4604 = vset.pattern.permute.xlu0 0
        %4605 = vperm.xlu0 %4604, %v4602
        %v4606 = vpop.permute.xlu0 %4605
        %v4608 = vperm.slane %v4274, 0
        %v4609 = vperm.slane %v4275, 0
        %v4610 = vperm.slane %v4276, 0
        %v4611 = vmul.f32 %v4606, %v4608
        %v4612 = vmul.f32 %v4606, %v4609
        %v4613 = vmul.f32 %v4606, %v4610
        %v4614 = vadd.f32 %v4598, %v4611
        %v4615 = vadd.f32 %v4599, %v4612
        %v4616 = vadd.f32 %v4600, %v4613
        %s4617 = scalar_lea.vmem %s9, 52
        %v4618 = vld [vmem:[%s4617] sm:$0xf]
        %4620 = vset.pattern.permute.xlu0 0
        %4621 = vperm.xlu0 %4620, %v4618
        %v4622 = vpop.permute.xlu0 %4621
        %v4624 = vperm.slane %v4274, 1
        %v4625 = vperm.slane %v4275, 1
        %v4626 = vperm.slane %v4276, 1
        %v4627 = vmul.f32 %v4622, %v4624
        %v4628 = vmul.f32 %v4622, %v4625
        %v4629 = vmul.f32 %v4622, %v4626
        %v4630 = vadd.f32 %v4614, %v4627
        %v4631 = vadd.f32 %v4615, %v4628
        %v4632 = vadd.f32 %v4616, %v4629
        %s4633 = scalar_lea.vmem %s9, 56
        %v4634 = vld [vmem:[%s4633] sm:$0xf]
        %4636 = vset.pattern.permute.xlu0 0
        %4637 = vperm.xlu0 %4636, %v4634
        %v4638 = vpop.permute.xlu0 %4637
        %v4640 = vperm.slane %v4274, 2
        %v4641 = vperm.slane %v4275, 2
        %v4642 = vperm.slane %v4276, 2
        %v4643 = vmul.f32 %v4638, %v4640
        %v4644 = vmul.f32 %v4638, %v4641
        %v4645 = vmul.f32 %v4638, %v4642
        %v4646 = vadd.f32 %v4630, %v4643
        %v4647 = vadd.f32 %v4631, %v4644
        %v4648 = vadd.f32 %v4632, %v4645
        %v4649 = vmul.f32 %v4286, %v1306
        %v4650 = vmul.f32 %v4287, %v1310
        %s4651 = scalar_lea.vmem %s9, 60
        %v4652 = vld [vmem:[%s4651] sm:$0xf]
        %4654 = vset.pattern.permute.xlu0 0
        %4655 = vperm.xlu0 %4654, %v4652
        %v4656 = vpop.permute.xlu0 %4655
        %v4658 = vperm.slane %v4649, 0
        %v4659 = vperm.slane %v4650, 0
        %v4660 = vmul.f32 %v4656, %v4658
        %v4661 = vmul.f32 %v4656, %v4659
        %v4662 = vmul.f32 %v4656, %v1326
        %4666 = vrot.lane.b32.xlu0 %v4660, 110
        %v4667 = vpop.permute.xlu0 %4666
        %4668 = vrot.lane.b32.xlu0 %v4661, 110
        %v4669 = vpop.permute.xlu0 %4668
        %4670 = vrot.lane.b32.xlu0 %v4662, 110
        %v4671 = vpop.permute.xlu0 %4670
        %v4672 = vsel %vm1339, %v4667, %v4669
        %v4673 = vsel %vm1339, %v4669, %v4671
        %v4677 = vadd.f32 %v4646, %v4667
        %v4678 = vadd.f32 %v4647, %v4672
        %v4679 = vadd.f32 %v4648, %v4673
        %s4680 = scalar_lea.vmem %s9, 64
        %v4681 = vld [vmem:[%s4680] sm:$0xf]
        %4683 = vset.pattern.permute.xlu0 0
        %4684 = vperm.xlu0 %4683, %v4681
        %v4685 = vpop.permute.xlu0 %4684
        %v4687 = vperm.slane %v4649, 1
        %v4688 = vperm.slane %v4650, 1
        %v4689 = vmul.f32 %v4685, %v4687
        %v4690 = vmul.f32 %v4685, %v4688
        %v4691 = vmul.f32 %v4685, %v1357
        %4695 = vrot.lane.b32.xlu0 %v4689, 110
        %v4696 = vpop.permute.xlu0 %4695
        %4697 = vrot.lane.b32.xlu0 %v4690, 110
        %v4698 = vpop.permute.xlu0 %4697
        %4699 = vrot.lane.b32.xlu0 %v4691, 110
        %v4700 = vpop.permute.xlu0 %4699
        %v4701 = vsel %vm1339, %v4696, %v4698
        %v4702 = vsel %vm1339, %v4698, %v4700
        %v4706 = vadd.f32 %v4677, %v4696
        %v4707 = vadd.f32 %v4678, %v4701
        %v4708 = vadd.f32 %v4679, %v4702
        %s4709 = scalar_lea.vmem %s9, 68
        %v4710 = vld [vmem:[%s4709] sm:$0xf]
        %4712 = vset.pattern.permute.xlu0 0
        %4713 = vperm.xlu0 %4712, %v4710
        %v4714 = vpop.permute.xlu0 %4713
        %v4716 = vperm.slane %v4649, 2
        %v4717 = vperm.slane %v4650, 2
        %v4718 = vmul.f32 %v4714, %v4716
        %v4719 = vmul.f32 %v4714, %v4717
        %v4720 = vmul.f32 %v4714, %v1447
        %4724 = vrot.lane.b32.xlu0 %v4718, 110
        %v4725 = vpop.permute.xlu0 %4724
        %4726 = vrot.lane.b32.xlu0 %v4719, 110
        %v4727 = vpop.permute.xlu0 %4726
        %4728 = vrot.lane.b32.xlu0 %v4720, 110
        %v4729 = vpop.permute.xlu0 %4728
        %v4730 = vsel %vm1339, %v4725, %v4727
        %v4731 = vsel %vm1339, %v4727, %v4729
        %v4735 = vadd.f32 %v4706, %v4725
        %v4736 = vadd.f32 %v4707, %v4730
        %v4737 = vadd.f32 %v4708, %v4731
        %v4738 = vmul.f32 %v4286, %v1499
        %v4739 = vmul.f32 %v4287, %v1503
        %s4740 = scalar_lea.vmem %s9, 72
        %v4741 = vld [vmem:[%s4740] sm:$0xf]
        %4743 = vset.pattern.permute.xlu0 0
        %4744 = vperm.xlu0 %4743, %v4741
        %v4745 = vpop.permute.xlu0 %4744
        %v4747 = vperm.slane %v4738, 0
        %v4748 = vperm.slane %v4739, 0
        %v4749 = vmul.f32 %v4745, %v4747
        %v4750 = vmul.f32 %v4745, %v4748
        %v4751 = vmul.f32 %v4745, %v1519
        %4755 = vrot.lane.b32.xlu0 %v4749, 96
        %v4756 = vpop.permute.xlu0 %4755
        %4757 = vrot.lane.b32.xlu0 %v4750, 96
        %v4758 = vpop.permute.xlu0 %4757
        %4759 = vrot.lane.b32.xlu0 %v4751, 96
        %v4760 = vpop.permute.xlu0 %4759
        %v4761 = vsel %vm1532, %v4756, %v4758
        %v4762 = vsel %vm1532, %v4758, %v4760
        %v4766 = vadd.f32 %v4735, %v4756
        %v4767 = vadd.f32 %v4736, %v4761
        %v4768 = vadd.f32 %v4737, %v4762
        %s4769 = scalar_lea.vmem %s9, 76
        %v4770 = vld [vmem:[%s4769] sm:$0xf]
        %4772 = vset.pattern.permute.xlu0 0
        %4773 = vperm.xlu0 %4772, %v4770
        %v4774 = vpop.permute.xlu0 %4773
        %v4776 = vperm.slane %v4738, 1
        %v4777 = vperm.slane %v4739, 1
        %v4778 = vmul.f32 %v4774, %v4776
        %v4779 = vmul.f32 %v4774, %v4777
        %v4780 = vmul.f32 %v4774, %v1550
        %4784 = vrot.lane.b32.xlu0 %v4778, 96
        %v4785 = vpop.permute.xlu0 %4784
        %4786 = vrot.lane.b32.xlu0 %v4779, 96
        %v4787 = vpop.permute.xlu0 %4786
        %4788 = vrot.lane.b32.xlu0 %v4780, 96
        %v4789 = vpop.permute.xlu0 %4788
        %v4790 = vsel %vm1532, %v4785, %v4787
        %v4791 = vsel %vm1532, %v4787, %v4789
        %v4795 = vadd.f32 %v4766, %v4785
        %v4796 = vadd.f32 %v4767, %v4790
        %v4797 = vadd.f32 %v4768, %v4791
        %s4798 = scalar_lea.vmem %s9, 80
        %v4799 = vld [vmem:[%s4798] sm:$0xf]
        %4801 = vset.pattern.permute.xlu0 0
        %4802 = vperm.xlu0 %4801, %v4799
        %v4803 = vpop.permute.xlu0 %4802
        %v4805 = vperm.slane %v4738, 2
        %v4806 = vperm.slane %v4739, 2
        %v4807 = vmul.f32 %v4803, %v4805
        %v4808 = vmul.f32 %v4803, %v4806
        %v4809 = vmul.f32 %v4803, %v1640
        %4813 = vrot.lane.b32.xlu0 %v4807, 96
        %v4814 = vpop.permute.xlu0 %4813
        %4815 = vrot.lane.b32.xlu0 %v4808, 96
        %v4816 = vpop.permute.xlu0 %4815
        %4817 = vrot.lane.b32.xlu0 %v4809, 96
        %v4818 = vpop.permute.xlu0 %4817
        %v4819 = vsel %vm1532, %v4814, %v4816
        %v4820 = vsel %vm1532, %v4816, %v4818
        %v4824 = vadd.f32 %v4795, %v4814
        %v4825 = vadd.f32 %v4796, %v4819
        %v4826 = vadd.f32 %v4797, %v4820
        %s4827 = scalar_lea.vmem %s9, 84
        %v4828 = vld [vmem:[%s4827] sm:$0xf]
        %4830 = vset.pattern.permute.xlu0 0
        %4831 = vperm.xlu0 %4830, %v4828
        %v4832 = vpop.permute.xlu0 %4831
        %v4834 = vmul.f32 %v4832, %v4343
        %v4835 = vmul.f32 %v4832, %v4344
        %v4836 = vmul.f32 %v4832, %v577
        %4840 = vrot.lane.b32.xlu0 %v4834, 95
        %v4841 = vpop.permute.xlu0 %4840
        %4842 = vrot.lane.b32.xlu0 %v4835, 95
        %v4843 = vpop.permute.xlu0 %4842
        %4844 = vrot.lane.b32.xlu0 %v4836, 95
        %v4845 = vpop.permute.xlu0 %4844
        %v4846 = vsel %vm1710, %v4841, %v4843
        %v4847 = vsel %vm1710, %v4843, %v4845
        %v4851 = vadd.f32 %v4824, %v4841
        %v4852 = vadd.f32 %v4825, %v4846
        %v4853 = vadd.f32 %v4826, %v4847
        %s4854 = scalar_lea.vmem %s9, 88
        %v4855 = vld [vmem:[%s4854] sm:$0xf]
        %4857 = vset.pattern.permute.xlu0 0
        %4858 = vperm.xlu0 %4857, %v4855
        %v4859 = vpop.permute.xlu0 %4858
        %v4861 = vmul.f32 %v4859, %v4372
        %v4862 = vmul.f32 %v4859, %v4373
        %v4863 = vmul.f32 %v4859, %v608
        %4867 = vrot.lane.b32.xlu0 %v4861, 95
        %v4868 = vpop.permute.xlu0 %4867
        %4869 = vrot.lane.b32.xlu0 %v4862, 95
        %v4870 = vpop.permute.xlu0 %4869
        %4871 = vrot.lane.b32.xlu0 %v4863, 95
        %v4872 = vpop.permute.xlu0 %4871
        %v4873 = vsel %vm1710, %v4868, %v4870
        %v4874 = vsel %vm1710, %v4870, %v4872
        %v4878 = vadd.f32 %v4851, %v4868
        %v4879 = vadd.f32 %v4852, %v4873
        %v4880 = vadd.f32 %v4853, %v4874
        %s4881 = scalar_lea.vmem %s9, 92
        %v4882 = vld [vmem:[%s4881] sm:$0xf]
        %4884 = vset.pattern.permute.xlu0 0
        %4885 = vperm.xlu0 %4884, %v4882
        %v4886 = vpop.permute.xlu0 %4885
        %v4888 = vmul.f32 %v4886, %v4401
        %v4889 = vmul.f32 %v4886, %v4402
        %v4890 = vmul.f32 %v4886, %v696
        %4894 = vrot.lane.b32.xlu0 %v4888, 95
        %v4895 = vpop.permute.xlu0 %4894
        %4896 = vrot.lane.b32.xlu0 %v4889, 95
        %v4897 = vpop.permute.xlu0 %4896
        %4898 = vrot.lane.b32.xlu0 %v4890, 95
        %v4899 = vpop.permute.xlu0 %4898
        %v4900 = vsel %vm1710, %v4895, %v4897
        %v4901 = vsel %vm1710, %v4897, %v4899
        %v4905 = vadd.f32 %v4878, %v4895
        %v4906 = vadd.f32 %v4879, %v4900
        %v4907 = vadd.f32 %v4880, %v4901
        %v4908 = vmul.f32 %v4286, %v1855
        %v4909 = vmul.f32 %v4287, %v1859
        %s4910 = scalar_lea.vmem %s9, 96
        %v4911 = vld [vmem:[%s4910] sm:$0xf]
        %4913 = vset.pattern.permute.xlu0 0
        %4914 = vperm.xlu0 %4913, %v4911
        %v4915 = vpop.permute.xlu0 %4914
        %v4917 = vperm.slane %v4908, 0
        %v4918 = vperm.slane %v4909, 0
        %v4919 = vmul.f32 %v4915, %v4917
        %v4920 = vmul.f32 %v4915, %v4918
        %v4921 = vmul.f32 %v4915, %v1875
        %4925 = vrot.lane.b32.xlu0 %v4919, 94
        %v4926 = vpop.permute.xlu0 %4925
        %4927 = vrot.lane.b32.xlu0 %v4920, 94
        %v4928 = vpop.permute.xlu0 %4927
        %4929 = vrot.lane.b32.xlu0 %v4921, 94
        %v4930 = vpop.permute.xlu0 %4929
        %v4931 = vsel %vm1888, %v4926, %v4928
        %v4932 = vsel %vm1888, %v4928, %v4930
        %v4936 = vadd.f32 %v4905, %v4926
        %v4937 = vadd.f32 %v4906, %v4931
        %v4938 = vadd.f32 %v4907, %v4932
        %s4939 = scalar_lea.vmem %s9, 100
        %v4940 = vld [vmem:[%s4939] sm:$0xf]
        %4942 = vset.pattern.permute.xlu0 0
        %4943 = vperm.xlu0 %4942, %v4940
        %v4944 = vpop.permute.xlu0 %4943
        %v4946 = vperm.slane %v4908, 1
        %v4947 = vperm.slane %v4909, 1
        %v4948 = vmul.f32 %v4944, %v4946
        %v4949 = vmul.f32 %v4944, %v4947
        %v4950 = vmul.f32 %v4944, %v1906
        %4954 = vrot.lane.b32.xlu0 %v4948, 94
        %v4955 = vpop.permute.xlu0 %4954
        %4956 = vrot.lane.b32.xlu0 %v4949, 94
        %v4957 = vpop.permute.xlu0 %4956
        %4958 = vrot.lane.b32.xlu0 %v4950, 94
        %v4959 = vpop.permute.xlu0 %4958
        %v4960 = vsel %vm1888, %v4955, %v4957
        %v4961 = vsel %vm1888, %v4957, %v4959
        %v4965 = vadd.f32 %v4936, %v4955
        %v4966 = vadd.f32 %v4937, %v4960
        %v4967 = vadd.f32 %v4938, %v4961
        %s4968 = scalar_lea.vmem %s9, 104
        %v4969 = vld [vmem:[%s4968] sm:$0xf]
        %4971 = vset.pattern.permute.xlu0 0
        %4972 = vperm.xlu0 %4971, %v4969
        %v4973 = vpop.permute.xlu0 %4972
        %v4975 = vperm.slane %v4908, 2
        %v4976 = vperm.slane %v4909, 2
        %v4977 = vmul.f32 %v4973, %v4975
        %v4978 = vmul.f32 %v4973, %v4976
        %v4979 = vmul.f32 %v4973, %v1996
        %4983 = vrot.lane.b32.xlu0 %v4977, 94
        %v4984 = vpop.permute.xlu0 %4983
        %4985 = vrot.lane.b32.xlu0 %v4978, 94
        %v4986 = vpop.permute.xlu0 %4985
        %4987 = vrot.lane.b32.xlu0 %v4979, 94
        %v4988 = vpop.permute.xlu0 %4987
        %v4989 = vsel %vm1888, %v4984, %v4986
        %v4990 = vsel %vm1888, %v4986, %v4988
        %v4994 = vadd.f32 %v4965, %v4984
        %v4995 = vadd.f32 %v4966, %v4989
        %v4996 = vadd.f32 %v4967, %v4990
        %v4997 = vld [vmem:[%s10] sm:$0xf]
        %4999 = vset.pattern.permute.xlu0 0
        %5000 = vperm.xlu0 %4999, %v4997
        %v5001 = vpop.permute.xlu0 %5000
        %v5003 = vadd.f32 %v4994, %v5001
        %v5004 = vadd.f32 %v4995, %v5001
        %v5005 = vadd.f32 %v4996, %v5001
        %v5009 = vrot.slane %v5004, 4
        %vm5010 = vcmask 1043456
        %v5011 = vsel %vm5010, %v5003, %v5009
        %5012 = vrot.lane.b32.xlu0 %v5011, 17
        %v5013 = vpop.permute.xlu0 %5012
        %5014 = vrot.lane.b32.xlu0 %v5005, 17
        %v5015 = vpop.permute.xlu0 %5014
        %v5016 = vrot.slane %v5013, 4
        %v5017 = vrot.slane %v5015, 4
        %v5018 = vsel %vm5010, %v5016, %v5017
        %v5019 = vsel %vm1858, %v5013, %v5018
        %5021 = vst [vmem:[%s425] sm:$0xff] %v5019
        %v5022 = vrot.slane %v2795, 4
        %v5023 = vsel %vm5010, %v2794, %v5022
        %5024 = vrot.lane.b32.xlu0 %v5023, 17
        %v5025 = vpop.permute.xlu0 %5024
        %v5026 = vrot.slane %v5025, 4
        %v5027 = vrot.slane %v2805, 4
        %v5028 = vsel %vm5010, %v5026, %v5027
        %v5029 = vsel %vm1858, %v5025, %v5028
        %5031 = vst [vmem:[%s432] sm:$0xff] %v5029
        %s5032 = sand.u32 %s279, 1
        %s5033 = scalar_lea.sflag [#allocation3], %s5032
        %s5034 = sand.u32 %s279, 1
        %s5035 = smul.addr %s5034, 8
        %s5036 = scalar_lea.vmem [#allocation2], %s5035
        %s5037 = sand.u32 %s305, 1
        %s5038 = scalar_lea.sflag [#allocation5], %s5037
        %s5039 = sand.u32 %s305, 1
        %s5040 = smul.addr %s5039, 8
        %s5041 = scalar_lea.vmem [#allocation4], %s5040
        // Predicated region
        $region65: #{tpu_custom_call.1} parent=63 // pred_check
          %p5042 = pneg %p289
        $region66: #{tpu_custom_call.1} parent=63 // pred_check_branch
          %5044 = sbr.rel (%p5042) target = $region68
        $region67: #{tpu_custom_call.1} parent=63 // pred_region
          %5046 = vsyncadd %s5033, 0
          %s5047 = smul.addr %s30, 2
          %s5048 = smul.addr %s5047, 4
          %s5049 = scalar_lea.hbm %s11, %s5048
          %s5051 = sshll.u32 %s5036, 4
          %s5052 = int_to_ptr.vmem [resolvable:$true] %s5051
          %s5053 = sshll.u32 %s5049, 4
          %s5054 = int_to_ptr.hbm [resolvable:$true] %s5053
          %5056 = dma.vmem_to_hbm [thread:$0]  %s5052, 128, %s5054, %s5033
        $region68: #{tpu_custom_call.1} parent=63 // pred_fallthru
          _
        // Predicated region
        $region69: #{tpu_custom_call.1} parent=63 // pred_check
          %p5057 = pneg %p315
        $region70: #{tpu_custom_call.1} parent=63 // pred_check_branch
          %5059 = sbr.rel (%p5057) target = $region72
        $region71: #{tpu_custom_call.1} parent=63 // pred_region
          %5061 = vsyncadd %s5038, 0
          %s5062 = smul.addr %s30, 2
          %s5063 = smul.addr %s5062, 4
          %s5064 = scalar_lea.hbm %s12, %s5063
          %s5066 = sshll.u32 %s5041, 4
          %s5067 = int_to_ptr.vmem [resolvable:$true] %s5066
          %s5068 = sshll.u32 %s5064, 4
          %s5069 = int_to_ptr.hbm [resolvable:$true] %s5068
          %5071 = dma.vmem_to_hbm [thread:$0]  %s5067, 128, %s5069, %s5038
        $region72: #{tpu_custom_call.1} parent=63 // pred_fallthru
          _
      $region64: #{tpu_custom_call.1} parent=5 // pred_fallthru
        _
      %p5072 = scmp.le.s32.totalorder 2, %s25
      // Predicated region
      $region73: #{tpu_custom_call.1} parent=5 // pred_check
        %p5073 = pneg %p5072
      $region74: #{tpu_custom_call.1} parent=5 // pred_check_branch
        %5075 = sbr.rel (%p5073) target = $region76
      $region75: #{tpu_custom_call.1} parent=5 // pred_region
        %s5076 = ssub.s32 %s25, 2
        // Predicated region
        $region77: #{tpu_custom_call.1} parent=75 // pred_check
          %p5077 = pneg %p295
        $region78: #{tpu_custom_call.1} parent=75 // pred_check_branch
          %5079 = sbr.rel (%p5077) target = $region80
        $region79: #{tpu_custom_call.1} parent=75 // pred_region
          %s5080 = sand.u32 %s280, 1
          %s5081 = scalar_lea.sflag [#allocation3], %s5080
          %s5082 = sand.u32 %s280, 1
          %s5083 = smul.addr %s5082, 8
          %s5084 = scalar_lea.vmem [#allocation2], %s5083
          %5086 = dma.done %s5081, 128
        $region80: #{tpu_custom_call.1} parent=75 // pred_fallthru
          _
        // Predicated region
        $region81: #{tpu_custom_call.1} parent=75 // pred_check
          %p5087 = pneg %p321
        $region82: #{tpu_custom_call.1} parent=75 // pred_check_branch
          %5089 = sbr.rel (%p5087) target = $region84
        $region83: #{tpu_custom_call.1} parent=75 // pred_region
          %s5090 = sand.u32 %s306, 1
          %s5091 = scalar_lea.sflag [#allocation5], %s5090
          %s5092 = sand.u32 %s306, 1
          %s5093 = smul.addr %s5092, 8
          %s5094 = scalar_lea.vmem [#allocation4], %s5093
          %5096 = dma.done %s5091, 128
        $region84: #{tpu_custom_call.1} parent=75 // pred_fallthru
          _
      $region76: #{tpu_custom_call.1} parent=5 // pred_fallthru
        _
    $region6: #{tpu_custom_call.1} parent=1 // loop_footer
      %s29 = sadd.s32 1, %s25
    $region7: #{tpu_custom_call.1} parent=1 // loop_footer_branch
      %24 = sbr.rel target = $region3
    $region8: #{tpu_custom_call.1} parent=1 // loop_exit
      _
    %5097 = vsyncpa [#allocation3], 1
    %s5098 = scalar_lea.sflag [#allocation3], 1
    %5099 = vsyncpa %s5098, 1
    %5100 = vsyncpa [#allocation5], 1
    %s5101 = scalar_lea.sflag [#allocation5], 1
    %5102 = vsyncpa %s5101, 1

</llo_original>
